<compile_context>
chip_gen: v7x
topology: tpu7x:2x2x1
jax: 0.10.0
libtpu: 0.0.40
codegen_flags: <defaults>
</compile_context>

<pallas_src>
import functools
import math

import jax
import jax.numpy as jnp
from jax.experimental import pallas as pl
from jax.experimental.pallas import tpu as pltpu


# ------------------------------------------------------------------------ in-kernel helpers

def _mha_residual_ln(x_q, x_kv, wq, bq, wkv, bkv, wo, bo, gamma, beta, *, nhead, eps):
    """LayerNorm(x_q + OutProj(MultiHeadAttention(x_q, x_kv, x_kv))) for one batch element."""
    Lq, E = x_q.shape
    Dh = E // nhead
    cdt = wq.dtype                                                  # matmul operand dtype (bf16)

    # Q projection (1/sqrt(Dh) pre-folded into wq/bq) and fused K|V projection (kv read once).
    q = jnp.dot(x_q.astype(cdt), wq, preferred_element_type=jnp.float32) + bq        # (Lq, E)
    kv = jnp.dot(x_kv.astype(cdt), wkv, preferred_element_type=jnp.float32) + bkv    # (Lk, 2E)

    q_b = q.astype(cdt)                 # single cast for all heads
    k_b = kv[:, :E].astype(cdt)         # single cast for all heads
    v_f = kv[:, E:]                     # stays f32: P@V in f32 (PyTorch-like numerics)

    # Heads handled in a static loop; out-projection accumulated per head (no lane concat).
    y = jnp.zeros((Lq, E), jnp.float32) + bo
    for h in range(nhead):
        sl = slice(h * Dh, (h + 1) * Dh)
        # q_h @ k_h^T via dot_general (no explicit transpose), f32 accumulation.
        s = jax.lax.dot_general(q_b[:, sl], k_b[:, sl], (((1,), (1,)), ((), ())),
                                preferred_element_type=jnp.float32)                   # (Lq, Lk)
        s = s - jnp.max(s, axis=-1, keepdims=True)
        p = jnp.exp(s)
        p = p / jnp.sum(p, axis=-1, keepdims=True)                                    # exact softmax
        oh = jnp.dot(p, v_f[:, sl], preferred_element_type=jnp.float32)               # (Lq, Dh) f32
        y = y + jnp.dot(oh.astype(cdt), wo[sl, :], preferred_element_type=jnp.float32)

    # Residual + LayerNorm (biased variance, as PyTorch).
    r = x_q + y
    mu = jnp.mean(r, axis=-1, keepdims=True)
    d = r - mu
    var = jnp.mean(d * d, axis=-1, keepdims=True)
    return (d * jax.lax.rsqrt(var + eps)) * gamma + beta


def _ffn_residual_ln(x, w1, b1, w2, b2, gamma, beta, *, eps):
    """LayerNorm(x + W2(ReLU(W1 x + b1)) + b2); the 4E hidden never leaves VMEM."""
    cdt = w1.dtype
    h = jnp.dot(x.astype(cdt), w1, preferred_element_type=jnp.float32) + b1
    h = jnp.maximum(h, 0.0)
    y = jnp.dot(h.astype(cdt), w2, preferred_element_type=jnp.float32) + b2
    r = x + y
    mu = jnp.mean(r, axis=-1, keepdims=True)
    d = r - mu
    var = jnp.mean(d * d, axis=-1, keepdims=True)
    return (d * jax.lax.rsqrt(var + eps)) * gamma + beta


# ------------------------------------------------------------------------ fused layer kernel

def _cross_attention_layer_kernel(
        g_ref, p_ref,
        wq_g_ref, bq_g_ref, wkv_g_ref, bkv_g_ref, wo_g_ref, bo_g_ref,
        w1_g_ref, b1_g_ref, w2_g_ref, b2_g_ref, lng_w_ref, lng_b_ref,
        wq_p_ref, bq_p_ref, wkv_p_ref, bkv_p_ref, wo_p_ref, bo_p_ref,
        w1_p_ref, b1_p_ref, w2_p_ref, b2_p_ref, lnp_w_ref, lnp_b_ref,
        g_out_ref, p_out_ref, *, nhead, eps, batch):
    """Whole cross-attention layer; tokens in PyTorch (L, N, E) layout, batch loop inside."""
    # Load all (tiny) weights once; they stay resident for every batch element.
    wq_g, bq_g = wq_g_ref[...], bq_g_ref[...]
    wkv_g, bkv_g = wkv_g_ref[...], bkv_g_ref[...]
    wo_g, bo_g = wo_g_ref[...], bo_g_ref[...]
    w1_g, b1_g = w1_g_ref[...], b1_g_ref[...]
    w2_g, b2_g = w2_g_ref[...], b2_g_ref[...]
    lng_w, lng_b = lng_w_ref[...], lng_b_ref[...]

    wq_p, bq_p = wq_p_ref[...], bq_p_ref[...]
    wkv_p, bkv_p = wkv_p_ref[...], bkv_p_ref[...]
    wo_p, bo_p = wo_p_ref[...], bo_p_ref[...]
    w1_p, b1_p = w1_p_ref[...], b1_p_ref[...]
    w2_p, b2_p = w2_p_ref[...], b2_p_ref[...]
    lnp_w, lnp_b = lnp_w_ref[...], lnp_b_ref[...]

    # Static loop over the (small) batch; each iteration's chain is independent.
    for n in range(batch):
        x_g = g_ref[:, n, :].astype(jnp.float32)        # (Lg, E) gene tokens, batch n
        x_p = p_ref[:, n, :].astype(jnp.float32)        # (Lp, E) protein tokens, batch n

        # gene path (reference module reuses norm_gene for both gene norms -> same here)
        g_enc = _mha_residual_ln(x_g, x_p, wq_g, bq_g, wkv_g, bkv_g, wo_g, bo_g,
                                 lng_w, lng_b, nhead=nhead, eps=eps)
        g_enc = _ffn_residual_ln(g_enc, w1_g, b1_g, w2_g, b2_g, lng_w, lng_b, eps=eps)

        # protein path: keys/values = encoded gene tokens (never leave VMEM)
        p_enc = _mha_residual_ln(x_p, g_enc, wq_p, bq_p, wkv_p, bkv_p, wo_p, bo_p,
                                 lnp_w, lnp_b, nhead=nhead, eps=eps)
        p_enc = _ffn_residual_ln(p_enc, w1_p, b1_p, w2_p, b2_p, lnp_w, lnp_b, eps=eps)

        g_out_ref[:, n, :] = g_enc.astype(g_out_ref.dtype)
        p_out_ref[:, n, :] = p_enc.astype(p_out_ref.dtype)


# ------------------------------------------------------------------------ wrapper

def cross_attention_layer_forward(gene_tokens, protein_tokens, params, nhead, eps=1e-5):
    """gene_tokens: (Lg, N, E), protein_tokens: (Lp, N, E) -> (gene_encoded, protein_encoded),
    both in (L, N, E) layout (PyTorch nn.MultiheadAttention default)."""
    Lg, N, E = gene_tokens.shape
    Lp = protein_tokens.shape[0]
    g2p, p2g = params["g2p"], params["p2g"]
    ffg, ffp = params["ff_g"], params["ff_p"]

    vmem = pl.BlockSpec(memory_space=pltpu.MemorySpace.VMEM)   # whole array, resident in VMEM
    args = (
        gene_tokens, protein_tokens,
        g2p["wq_t"], g2p["bq"], g2p["wkv_t"], g2p["bkv"], g2p["wo_t"], g2p["bo"],
        ffg["w1_t"], ffg["b1"], ffg["w2_t"], ffg["b2"],
        params["ln_g_w"], params["ln_g_b"],
        p2g["wq_t"], p2g["bq"], p2g["wkv_t"], p2g["bkv"], p2g["wo_t"], p2g["bo"],
        ffp["w1_t"], ffp["b1"], ffp["w2_t"], ffp["b2"],
        params["ln_p_w"], params["ln_p_b"],
    )
    g_enc, p_enc = pl.pallas_call(
        functools.partial(_cross_attention_layer_kernel, nhead=nhead, eps=eps, batch=N),
        out_shape=(jax.ShapeDtypeStruct((Lg, N, E), gene_tokens.dtype),
                   jax.ShapeDtypeStruct((Lp, N, E), protein_tokens.dtype)),
        in_specs=[vmem] * len(args),
        out_specs=(vmem, vmem),
    )(*args)
    return g_enc, p_enc


# ------------------------------------------------------------------------ params

def init_params(key, embedding_dim):
    """Parameters in PyTorch layout (nn.MultiheadAttention / nn.Linear conventions)."""
    E = embedding_dim
    ks = jax.random.split(key, 16)

    def nrm(k, shape, s=0.05):
        return (jax.random.normal(k, shape, jnp.float32) * s).astype(jnp.float32)

    def mha_params(k0, k1, k2, k3):
        return {"in_w": nrm(k0, (3 * E, E)), "in_b": nrm(k1, (3 * E,)),
                "out_w": nrm(k2, (E, E)), "out_b": nrm(k3, (E,))}

    def ff_params(k0, k1, k2, k3):
        return {"w1": nrm(k0, (4 * E, E)), "b1": nrm(k1, (4 * E,)),
                "w2": nrm(k2, (E, 4 * E)), "b2": nrm(k3, (E,))}

    return {
        "g2p": mha_params(ks[0], ks[1], ks[2], ks[3]),
        "p2g": mha_params(ks[4], ks[5], ks[6], ks[7]),
        "ln_g_w": jnp.ones((E,), jnp.float32), "ln_g_b": jnp.zeros((E,), jnp.float32),
        "ln_p_w": jnp.ones((E,), jnp.float32), "ln_p_b": jnp.zeros((E,), jnp.float32),
        "ff_g": ff_params(ks[8], ks[9], ks[10], ks[11]),
        "ff_p": ff_params(ks[12], ks[13], ks[14], ks[15]),
    }


def prepare_params(params, embedding_dim, nhead, compute_dtype=jnp.bfloat16):
    """One-time layout transform: pre-transpose weights, fold softmax scale into Q proj,
    fuse K|V weights, reshape biases/LN params to (1, ·), cast matmul weights to bf16."""
    E = embedding_dim
    scale = 1.0 / math.sqrt(E // nhead)

    def prep_mha(p):
        wq, wk, wv = p["in_w"][:E], p["in_w"][E:2 * E], p["in_w"][2 * E:]
        bq, bk, bv = p["in_b"][:E], p["in_b"][E:2 * E], p["in_b"][2 * E:]
        return {
            "wq_t": (wq.T * scale).astype(compute_dtype),                          # (E, E)
            "bq":   (bq * scale).reshape(1, E).astype(jnp.float32),
            "wkv_t": jnp.concatenate([wk.T, wv.T], axis=1).astype(compute_dtype),  # (E, 2E)
            "bkv":  jnp.concatenate([bk, bv]).reshape(1, 2 * E).astype(jnp.float32),
            "wo_t": p["out_w"].T.astype(compute_dtype),                            # (E, E)
            "bo":   p["out_b"].reshape(1, E).astype(jnp.float32),
        }

    def prep_ff(p):
        return {
            "w1_t": p["w1"].T.astype(compute_dtype),                               # (E, 4E)
            "b1":   p["b1"].reshape(1, -1).astype(jnp.float32),
            "w2_t": p["w2"].T.astype(compute_dtype),                               # (4E, E)
            "b2":   p["b2"].reshape(1, -1).astype(jnp.float32),
        }

    return {
        "g2p": prep_mha(params["g2p"]), "p2g": prep_mha(params["p2g"]),
        "ff_g": prep_ff(params["ff_g"]), "ff_p": prep_ff(params["ff_p"]),
        "ln_g_w": params["ln_g_w"].reshape(1, E), "ln_g_b": params["ln_g_b"].reshape(1, E),
        "ln_p_w": params["ln_p_w"].reshape(1, E), "ln_p_b": params["ln_p_b"].reshape(1, E),
    }


# ------------------------------------------------------------------------ main

if __name__ == "__main__":
    embedding_dim = 32
    nhead = 8
    batch = 2
    gene_len = 8
    protein_len = 16

    key = jax.random.PRNGKey(0)
    k_g, k_p, k_params = jax.random.split(key, 3)

    # (seq_len, batch, embed) -- PyTorch MultiheadAttention default layout
    gene_tokens = jax.random.normal(k_g, (gene_len, batch, embedding_dim), jnp.float32)
    protein_tokens = jax.random.normal(k_p, (protein_len, batch, embedding_dim), jnp.float32)

    params = init_params(k_params, embedding_dim)
    prepared = prepare_params(params, embedding_dim, nhead)     # one-time, outside jit

    fwd = jax.jit(cross_attention_layer_forward, static_argnums=(3,))
    gene_enc, protein_enc = fwd(gene_tokens, protein_tokens, prepared, nhead)
    jax.block_until_ready((gene_enc, protein_enc))

    assert gene_enc.shape == (gene_len, batch, embedding_dim)
    assert protein_enc.shape == (protein_len, batch, embedding_dim)
    assert bool(jnp.all(jnp.isfinite(gene_enc))) and bool(jnp.all(jnp.isfinite(protein_enc)))
    print("KERNEL_OK")
</pallas_src>

<mosaic_0001>
module attributes {stable_mosaic.version = 11 : i64} {
  func.func @_cross_attention_layer_kernel(%arg0: memref<8x2x32xf32, #tpu.memory_space<vmem>>, %arg1: memref<16x2x32xf32, #tpu.memory_space<vmem>>, %arg2: memref<32x32xbf16, #tpu.memory_space<vmem>>, %arg3: memref<1x32xf32, #tpu.memory_space<vmem>>, %arg4: memref<32x64xbf16, #tpu.memory_space<vmem>>, %arg5: memref<1x64xf32, #tpu.memory_space<vmem>>, %arg6: memref<32x32xbf16, #tpu.memory_space<vmem>>, %arg7: memref<1x32xf32, #tpu.memory_space<vmem>>, %arg8: memref<32x128xbf16, #tpu.memory_space<vmem>>, %arg9: memref<1x128xf32, #tpu.memory_space<vmem>>, %arg10: memref<128x32xbf16, #tpu.memory_space<vmem>>, %arg11: memref<1x32xf32, #tpu.memory_space<vmem>>, %arg12: memref<1x32xf32, #tpu.memory_space<vmem>>, %arg13: memref<1x32xf32, #tpu.memory_space<vmem>>, %arg14: memref<32x32xbf16, #tpu.memory_space<vmem>>, %arg15: memref<1x32xf32, #tpu.memory_space<vmem>>, %arg16: memref<32x64xbf16, #tpu.memory_space<vmem>>, %arg17: memref<1x64xf32, #tpu.memory_space<vmem>>, %arg18: memref<32x32xbf16, #tpu.memory_space<vmem>>, %arg19: memref<1x32xf32, #tpu.memory_space<vmem>>, %arg20: memref<32x128xbf16, #tpu.memory_space<vmem>>, %arg21: memref<1x128xf32, #tpu.memory_space<vmem>>, %arg22: memref<128x32xbf16, #tpu.memory_space<vmem>>, %arg23: memref<1x32xf32, #tpu.memory_space<vmem>>, %arg24: memref<1x32xf32, #tpu.memory_space<vmem>>, %arg25: memref<1x32xf32, #tpu.memory_space<vmem>>, %arg26: memref<8x2x32xf32, #tpu.memory_space<vmem>>, %arg27: memref<16x2x32xf32, #tpu.memory_space<vmem>>) attributes {dimension_semantics = [], scalar_prefetch = 0 : i64, scratch_operands = 0 : i64, tpu.core_type = #tpu.core_type<tc>} {
    %c0 = arith.constant 0 : index
    %c0_0 = arith.constant 0 : index
    %0 = vector.load %arg2[%c0, %c0_0] : memref<32x32xbf16, #tpu.memory_space<vmem>>, vector<32x32xbf16>
    %c0_1 = arith.constant 0 : index
    %c0_2 = arith.constant 0 : index
    %1 = vector.load %arg3[%c0_1, %c0_2] : memref<1x32xf32, #tpu.memory_space<vmem>>, vector<1x32xf32>
    %c0_3 = arith.constant 0 : index
    %c0_4 = arith.constant 0 : index
    %2 = vector.load %arg4[%c0_3, %c0_4] : memref<32x64xbf16, #tpu.memory_space<vmem>>, vector<32x64xbf16>
    %c0_5 = arith.constant 0 : index
    %c0_6 = arith.constant 0 : index
    %3 = vector.load %arg5[%c0_5, %c0_6] : memref<1x64xf32, #tpu.memory_space<vmem>>, vector<1x64xf32>
    %c0_7 = arith.constant 0 : index
    %c0_8 = arith.constant 0 : index
    %4 = vector.load %arg6[%c0_7, %c0_8] : memref<32x32xbf16, #tpu.memory_space<vmem>>, vector<32x32xbf16>
    %c0_9 = arith.constant 0 : index
    %c0_10 = arith.constant 0 : index
    %5 = vector.load %arg7[%c0_9, %c0_10] : memref<1x32xf32, #tpu.memory_space<vmem>>, vector<1x32xf32>
    %c0_11 = arith.constant 0 : index
    %c0_12 = arith.constant 0 : index
    %6 = vector.load %arg8[%c0_11, %c0_12] : memref<32x128xbf16, #tpu.memory_space<vmem>>, vector<32x128xbf16>
    %c0_13 = arith.constant 0 : index
    %c0_14 = arith.constant 0 : index
    %7 = vector.load %arg9[%c0_13, %c0_14] : memref<1x128xf32, #tpu.memory_space<vmem>>, vector<1x128xf32>
    %c0_15 = arith.constant 0 : index
    %c0_16 = arith.constant 0 : index
    %8 = vector.load %arg10[%c0_15, %c0_16] : memref<128x32xbf16, #tpu.memory_space<vmem>>, vector<128x32xbf16>
    %c0_17 = arith.constant 0 : index
    %c0_18 = arith.constant 0 : index
    %9 = vector.load %arg11[%c0_17, %c0_18] : memref<1x32xf32, #tpu.memory_space<vmem>>, vector<1x32xf32>
    %c0_19 = arith.constant 0 : index
    %c0_20 = arith.constant 0 : index
    %10 = vector.load %arg12[%c0_19, %c0_20] : memref<1x32xf32, #tpu.memory_space<vmem>>, vector<1x32xf32>
    %c0_21 = arith.constant 0 : index
    %c0_22 = arith.constant 0 : index
    %11 = vector.load %arg13[%c0_21, %c0_22] : memref<1x32xf32, #tpu.memory_space<vmem>>, vector<1x32xf32>
    %c0_23 = arith.constant 0 : index
    %c0_24 = arith.constant 0 : index
    %12 = vector.load %arg14[%c0_23, %c0_24] : memref<32x32xbf16, #tpu.memory_space<vmem>>, vector<32x32xbf16>
    %c0_25 = arith.constant 0 : index
    %c0_26 = arith.constant 0 : index
    %13 = vector.load %arg15[%c0_25, %c0_26] : memref<1x32xf32, #tpu.memory_space<vmem>>, vector<1x32xf32>
    %c0_27 = arith.constant 0 : index
    %c0_28 = arith.constant 0 : index
    %14 = vector.load %arg16[%c0_27, %c0_28] : memref<32x64xbf16, #tpu.memory_space<vmem>>, vector<32x64xbf16>
    %c0_29 = arith.constant 0 : index
    %c0_30 = arith.constant 0 : index
    %15 = vector.load %arg17[%c0_29, %c0_30] : memref<1x64xf32, #tpu.memory_space<vmem>>, vector<1x64xf32>
    %c0_31 = arith.constant 0 : index
    %c0_32 = arith.constant 0 : index
    %16 = vector.load %arg18[%c0_31, %c0_32] : memref<32x32xbf16, #tpu.memory_space<vmem>>, vector<32x32xbf16>
    %c0_33 = arith.constant 0 : index
    %c0_34 = arith.constant 0 : index
    %17 = vector.load %arg19[%c0_33, %c0_34] : memref<1x32xf32, #tpu.memory_space<vmem>>, vector<1x32xf32>
    %c0_35 = arith.constant 0 : index
    %c0_36 = arith.constant 0 : index
    %18 = vector.load %arg20[%c0_35, %c0_36] : memref<32x128xbf16, #tpu.memory_space<vmem>>, vector<32x128xbf16>
    %c0_37 = arith.constant 0 : index
    %c0_38 = arith.constant 0 : index
    %19 = vector.load %arg21[%c0_37, %c0_38] : memref<1x128xf32, #tpu.memory_space<vmem>>, vector<1x128xf32>
    %c0_39 = arith.constant 0 : index
    %c0_40 = arith.constant 0 : index
    %20 = vector.load %arg22[%c0_39, %c0_40] : memref<128x32xbf16, #tpu.memory_space<vmem>>, vector<128x32xbf16>
    %c0_41 = arith.constant 0 : index
    %c0_42 = arith.constant 0 : index
    %21 = vector.load %arg23[%c0_41, %c0_42] : memref<1x32xf32, #tpu.memory_space<vmem>>, vector<1x32xf32>
    %c0_43 = arith.constant 0 : index
    %c0_44 = arith.constant 0 : index
    %22 = vector.load %arg24[%c0_43, %c0_44] : memref<1x32xf32, #tpu.memory_space<vmem>>, vector<1x32xf32>
    %c0_45 = arith.constant 0 : index
    %c0_46 = arith.constant 0 : index
    %23 = vector.load %arg25[%c0_45, %c0_46] : memref<1x32xf32, #tpu.memory_space<vmem>>, vector<1x32xf32>
    %c0_47 = arith.constant 0 : index
    %c0_48 = arith.constant 0 : index
    %c0_49 = arith.constant 0 : index
    %24 = vector.load %arg0[%c0_47, %c0_48, %c0_49] : memref<8x2x32xf32, #tpu.memory_space<vmem>>, vector<8x1x32xf32>
    %25 = vector.shape_cast %24 : vector<8x1x32xf32> to vector<8x32xf32>
    %c0_50 = arith.constant 0 : index
    %c0_51 = arith.constant 0 : index
    %c0_52 = arith.constant 0 : index
    %26 = vector.load %arg1[%c0_50, %c0_51, %c0_52] : memref<16x2x32xf32, #tpu.memory_space<vmem>>, vector<16x1x32xf32>
    %27 = vector.shape_cast %26 : vector<16x1x32xf32> to vector<16x32xf32>
    %28 = arith.truncf %25 : vector<8x32xf32> to vector<8x32xbf16>
    %cst = arith.constant dense<0.000000e+00> : vector<8x32xf32>
    %29 = tpu.matmul %28, %0, %cst {dimension_numbers = #tpu.dot_dimension_numbers<[1], [0], [0], [1], [0, 0, 1, 1], [], []>} : vector<8x32xbf16>, vector<32x32xbf16>, vector<8x32xf32> -> vector<8x32xf32>
    %30 = vector.broadcast %1 : vector<1x32xf32> to vector<8x32xf32>
    %31 = arith.addf %29, %30 : vector<8x32xf32>
    %32 = arith.truncf %27 : vector<16x32xf32> to vector<16x32xbf16>
    %cst_53 = arith.constant dense<0.000000e+00> : vector<16x64xf32>
    %33 = tpu.matmul %32, %2, %cst_53 {dimension_numbers = #tpu.dot_dimension_numbers<[1], [0], [0], [1], [0, 0, 1, 1], [], []>} : vector<16x32xbf16>, vector<32x64xbf16>, vector<16x64xf32> -> vector<16x64xf32>
    %34 = vector.broadcast %3 : vector<1x64xf32> to vector<16x64xf32>
    %35 = arith.addf %33, %34 : vector<16x64xf32>
    %36 = arith.truncf %31 : vector<8x32xf32> to vector<8x32xbf16>
    %37 = vector.extract_strided_slice %35 {offsets = [0, 0], sizes = [16, 32], strides = [1, 1]} : vector<16x64xf32> to vector<16x32xf32>
    %38 = arith.truncf %37 : vector<16x32xf32> to vector<16x32xbf16>
    %39 = vector.extract_strided_slice %35 {offsets = [0, 32], sizes = [16, 32], strides = [1, 1]} : vector<16x64xf32> to vector<16x32xf32>
    %cst_54 = arith.constant 0.000000e+00 : f32
    %40 = vector.broadcast %cst_54 : f32 to vector<8x32xf32>
    %41 = vector.broadcast %5 : vector<1x32xf32> to vector<8x32xf32>
    %42 = arith.addf %40, %41 : vector<8x32xf32>
    %43 = vector.extract_strided_slice %36 {offsets = [0, 0], sizes = [8, 4], strides = [1, 1]} : vector<8x32xbf16> to vector<8x4xbf16>
    %44 = vector.extract_strided_slice %38 {offsets = [0, 0], sizes = [16, 4], strides = [1, 1]} : vector<16x32xbf16> to vector<16x4xbf16>
    %cst_55 = arith.constant dense<0.000000e+00> : vector<8x16xf32>
    %45 = tpu.matmul %43, %44, %cst_55 {dimension_numbers = #tpu.dot_dimension_numbers<[1], [1], [0], [0], [0, 0, 1, 0], [], []>} : vector<8x4xbf16>, vector<16x4xbf16>, vector<8x16xf32> -> vector<8x16xf32>
    %cst_56 = arith.constant dense<0xFF800000> : vector<8xf32>
    %46 = vector.multi_reduction <maximumf>, %45, %cst_56 [1] : vector<8x16xf32> to vector<8xf32>
    %47 = vector.shape_cast %46 : vector<8xf32> to vector<8x1xf32>
    %48 = vector.broadcast %47 : vector<8x1xf32> to vector<8x16xf32>
    %49 = arith.subf %45, %48 : vector<8x16xf32>
    %50 = math.exp %49 : vector<8x16xf32>
    %cst_57 = arith.constant dense<0.000000e+00> : vector<8xf32>
    %51 = vector.multi_reduction <add>, %50, %cst_57 [1] : vector<8x16xf32> to vector<8xf32>
    %52 = vector.shape_cast %51 : vector<8xf32> to vector<8x1xf32>
    %53 = vector.broadcast %52 : vector<8x1xf32> to vector<8x16xf32>
    %54 = arith.divf %50, %53 : vector<8x16xf32>
    %55 = vector.extract_strided_slice %39 {offsets = [0, 0], sizes = [16, 4], strides = [1, 1]} : vector<16x32xf32> to vector<16x4xf32>
    %cst_58 = arith.constant dense<0.000000e+00> : vector<8x4xf32>
    %56 = tpu.matmul %54, %55, %cst_58 {dimension_numbers = #tpu.dot_dimension_numbers<[1], [0], [0], [1], [0, 0, 1, 1], [], []>} : vector<8x16xf32>, vector<16x4xf32>, vector<8x4xf32> -> vector<8x4xf32>
    %57 = arith.truncf %56 : vector<8x4xf32> to vector<8x4xbf16>
    %58 = vector.extract_strided_slice %4 {offsets = [0, 0], sizes = [4, 32], strides = [1, 1]} : vector<32x32xbf16> to vector<4x32xbf16>
    %cst_59 = arith.constant dense<0.000000e+00> : vector<8x32xf32>
    %59 = tpu.matmul %57, %58, %cst_59 {dimension_numbers = #tpu.dot_dimension_numbers<[1], [0], [0], [1], [0, 0, 1, 1], [], []>} : vector<8x4xbf16>, vector<4x32xbf16>, vector<8x32xf32> -> vector<8x32xf32>
    %60 = arith.addf %42, %59 : vector<8x32xf32>
    %61 = vector.extract_strided_slice %36 {offsets = [0, 4], sizes = [8, 4], strides = [1, 1]} : vector<8x32xbf16> to vector<8x4xbf16>
    %62 = vector.extract_strided_slice %38 {offsets = [0, 4], sizes = [16, 4], strides = [1, 1]} : vector<16x32xbf16> to vector<16x4xbf16>
    %cst_60 = arith.constant dense<0.000000e+00> : vector<8x16xf32>
    %63 = tpu.matmul %61, %62, %cst_60 {dimension_numbers = #tpu.dot_dimension_numbers<[1], [1], [0], [0], [0, 0, 1, 0], [], []>} : vector<8x4xbf16>, vector<16x4xbf16>, vector<8x16xf32> -> vector<8x16xf32>
    %cst_61 = arith.constant dense<0xFF800000> : vector<8xf32>
    %64 = vector.multi_reduction <maximumf>, %63, %cst_61 [1] : vector<8x16xf32> to vector<8xf32>
    %65 = vector.shape_cast %64 : vector<8xf32> to vector<8x1xf32>
    %66 = vector.broadcast %65 : vector<8x1xf32> to vector<8x16xf32>
    %67 = arith.subf %63, %66 : vector<8x16xf32>
    %68 = math.exp %67 : vector<8x16xf32>
    %cst_62 = arith.constant dense<0.000000e+00> : vector<8xf32>
    %69 = vector.multi_reduction <add>, %68, %cst_62 [1] : vector<8x16xf32> to vector<8xf32>
    %70 = vector.shape_cast %69 : vector<8xf32> to vector<8x1xf32>
    %71 = vector.broadcast %70 : vector<8x1xf32> to vector<8x16xf32>
    %72 = arith.divf %68, %71 : vector<8x16xf32>
    %73 = vector.extract_strided_slice %39 {offsets = [0, 4], sizes = [16, 4], strides = [1, 1]} : vector<16x32xf32> to vector<16x4xf32>
    %cst_63 = arith.constant dense<0.000000e+00> : vector<8x4xf32>
    %74 = tpu.matmul %72, %73, %cst_63 {dimension_numbers = #tpu.dot_dimension_numbers<[1], [0], [0], [1], [0, 0, 1, 1], [], []>} : vector<8x16xf32>, vector<16x4xf32>, vector<8x4xf32> -> vector<8x4xf32>
    %75 = arith.truncf %74 : vector<8x4xf32> to vector<8x4xbf16>
    %76 = vector.extract_strided_slice %4 {offsets = [4, 0], sizes = [4, 32], strides = [1, 1]} : vector<32x32xbf16> to vector<4x32xbf16>
    %cst_64 = arith.constant dense<0.000000e+00> : vector<8x32xf32>
    %77 = tpu.matmul %75, %76, %cst_64 {dimension_numbers = #tpu.dot_dimension_numbers<[1], [0], [0], [1], [0, 0, 1, 1], [], []>} : vector<8x4xbf16>, vector<4x32xbf16>, vector<8x32xf32> -> vector<8x32xf32>
    %78 = arith.addf %60, %77 : vector<8x32xf32>
    %79 = vector.extract_strided_slice %36 {offsets = [0, 8], sizes = [8, 4], strides = [1, 1]} : vector<8x32xbf16> to vector<8x4xbf16>
    %80 = vector.extract_strided_slice %38 {offsets = [0, 8], sizes = [16, 4], strides = [1, 1]} : vector<16x32xbf16> to vector<16x4xbf16>
    %cst_65 = arith.constant dense<0.000000e+00> : vector<8x16xf32>
    %81 = tpu.matmul %79, %80, %cst_65 {dimension_numbers = #tpu.dot_dimension_numbers<[1], [1], [0], [0], [0, 0, 1, 0], [], []>} : vector<8x4xbf16>, vector<16x4xbf16>, vector<8x16xf32> -> vector<8x16xf32>
    %cst_66 = arith.constant dense<0xFF800000> : vector<8xf32>
    %82 = vector.multi_reduction <maximumf>, %81, %cst_66 [1] : vector<8x16xf32> to vector<8xf32>
    %83 = vector.shape_cast %82 : vector<8xf32> to vector<8x1xf32>
    %84 = vector.broadcast %83 : vector<8x1xf32> to vector<8x16xf32>
    %85 = arith.subf %81, %84 : vector<8x16xf32>
    %86 = math.exp %85 : vector<8x16xf32>
    %cst_67 = arith.constant dense<0.000000e+00> : vector<8xf32>
    %87 = vector.multi_reduction <add>, %86, %cst_67 [1] : vector<8x16xf32> to vector<8xf32>
    %88 = vector.shape_cast %87 : vector<8xf32> to vector<8x1xf32>
    %89 = vector.broadcast %88 : vector<8x1xf32> to vector<8x16xf32>
    %90 = arith.divf %86, %89 : vector<8x16xf32>
    %91 = vector.extract_strided_slice %39 {offsets = [0, 8], sizes = [16, 4], strides = [1, 1]} : vector<16x32xf32> to vector<16x4xf32>
    %cst_68 = arith.constant dense<0.000000e+00> : vector<8x4xf32>
    %92 = tpu.matmul %90, %91, %cst_68 {dimension_numbers = #tpu.dot_dimension_numbers<[1], [0], [0], [1], [0, 0, 1, 1], [], []>} : vector<8x16xf32>, vector<16x4xf32>, vector<8x4xf32> -> vector<8x4xf32>
    %93 = arith.truncf %92 : vector<8x4xf32> to vector<8x4xbf16>
    %94 = vector.extract_strided_slice %4 {offsets = [8, 0], sizes = [4, 32], strides = [1, 1]} : vector<32x32xbf16> to vector<4x32xbf16>
    %cst_69 = arith.constant dense<0.000000e+00> : vector<8x32xf32>
    %95 = tpu.matmul %93, %94, %cst_69 {dimension_numbers = #tpu.dot_dimension_numbers<[1], [0], [0], [1], [0, 0, 1, 1], [], []>} : vector<8x4xbf16>, vector<4x32xbf16>, vector<8x32xf32> -> vector<8x32xf32>
    %96 = arith.addf %78, %95 : vector<8x32xf32>
    %97 = vector.extract_strided_slice %36 {offsets = [0, 12], sizes = [8, 4], strides = [1, 1]} : vector<8x32xbf16> to vector<8x4xbf16>
    %98 = vector.extract_strided_slice %38 {offsets = [0, 12], sizes = [16, 4], strides = [1, 1]} : vector<16x32xbf16> to vector<16x4xbf16>
    %cst_70 = arith.constant dense<0.000000e+00> : vector<8x16xf32>
    %99 = tpu.matmul %97, %98, %cst_70 {dimension_numbers = #tpu.dot_dimension_numbers<[1], [1], [0], [0], [0, 0, 1, 0], [], []>} : vector<8x4xbf16>, vector<16x4xbf16>, vector<8x16xf32> -> vector<8x16xf32>
    %cst_71 = arith.constant dense<0xFF800000> : vector<8xf32>
    %100 = vector.multi_reduction <maximumf>, %99, %cst_71 [1] : vector<8x16xf32> to vector<8xf32>
    %101 = vector.shape_cast %100 : vector<8xf32> to vector<8x1xf32>
    %102 = vector.broadcast %101 : vector<8x1xf32> to vector<8x16xf32>
    %103 = arith.subf %99, %102 : vector<8x16xf32>
    %104 = math.exp %103 : vector<8x16xf32>
    %cst_72 = arith.constant dense<0.000000e+00> : vector<8xf32>
    %105 = vector.multi_reduction <add>, %104, %cst_72 [1] : vector<8x16xf32> to vector<8xf32>
    %106 = vector.shape_cast %105 : vector<8xf32> to vector<8x1xf32>
    %107 = vector.broadcast %106 : vector<8x1xf32> to vector<8x16xf32>
    %108 = arith.divf %104, %107 : vector<8x16xf32>
    %109 = vector.extract_strided_slice %39 {offsets = [0, 12], sizes = [16, 4], strides = [1, 1]} : vector<16x32xf32> to vector<16x4xf32>
    %cst_73 = arith.constant dense<0.000000e+00> : vector<8x4xf32>
    %110 = tpu.matmul %108, %109, %cst_73 {dimension_numbers = #tpu.dot_dimension_numbers<[1], [0], [0], [1], [0, 0, 1, 1], [], []>} : vector<8x16xf32>, vector<16x4xf32>, vector<8x4xf32> -> vector<8x4xf32>
    %111 = arith.truncf %110 : vector<8x4xf32> to vector<8x4xbf16>
    %112 = vector.extract_strided_slice %4 {offsets = [12, 0], sizes = [4, 32], strides = [1, 1]} : vector<32x32xbf16> to vector<4x32xbf16>
    %cst_74 = arith.constant dense<0.000000e+00> : vector<8x32xf32>
    %113 = tpu.matmul %111, %112, %cst_74 {dimension_numbers = #tpu.dot_dimension_numbers<[1], [0], [0], [1], [0, 0, 1, 1], [], []>} : vector<8x4xbf16>, vector<4x32xbf16>, vector<8x32xf32> -> vector<8x32xf32>
    %114 = arith.addf %96, %113 : vector<8x32xf32>
    %115 = vector.extract_strided_slice %36 {offsets = [0, 16], sizes = [8, 4], strides = [1, 1]} : vector<8x32xbf16> to vector<8x4xbf16>
    %116 = vector.extract_strided_slice %38 {offsets = [0, 16], sizes = [16, 4], strides = [1, 1]} : vector<16x32xbf16> to vector<16x4xbf16>
    %cst_75 = arith.constant dense<0.000000e+00> : vector<8x16xf32>
    %117 = tpu.matmul %115, %116, %cst_75 {dimension_numbers = #tpu.dot_dimension_numbers<[1], [1], [0], [0], [0, 0, 1, 0], [], []>} : vector<8x4xbf16>, vector<16x4xbf16>, vector<8x16xf32> -> vector<8x16xf32>
    %cst_76 = arith.constant dense<0xFF800000> : vector<8xf32>
    %118 = vector.multi_reduction <maximumf>, %117, %cst_76 [1] : vector<8x16xf32> to vector<8xf32>
    %119 = vector.shape_cast %118 : vector<8xf32> to vector<8x1xf32>
    %120 = vector.broadcast %119 : vector<8x1xf32> to vector<8x16xf32>
    %121 = arith.subf %117, %120 : vector<8x16xf32>
    %122 = math.exp %121 : vector<8x16xf32>
    %cst_77 = arith.constant dense<0.000000e+00> : vector<8xf32>
    %123 = vector.multi_reduction <add>, %122, %cst_77 [1] : vector<8x16xf32> to vector<8xf32>
    %124 = vector.shape_cast %123 : vector<8xf32> to vector<8x1xf32>
    %125 = vector.broadcast %124 : vector<8x1xf32> to vector<8x16xf32>
    %126 = arith.divf %122, %125 : vector<8x16xf32>
    %127 = vector.extract_strided_slice %39 {offsets = [0, 16], sizes = [16, 4], strides = [1, 1]} : vector<16x32xf32> to vector<16x4xf32>
    %cst_78 = arith.constant dense<0.000000e+00> : vector<8x4xf32>
    %128 = tpu.matmul %126, %127, %cst_78 {dimension_numbers = #tpu.dot_dimension_numbers<[1], [0], [0], [1], [0, 0, 1, 1], [], []>} : vector<8x16xf32>, vector<16x4xf32>, vector<8x4xf32> -> vector<8x4xf32>
    %129 = arith.truncf %128 : vector<8x4xf32> to vector<8x4xbf16>
    %130 = vector.extract_strided_slice %4 {offsets = [16, 0], sizes = [4, 32], strides = [1, 1]} : vector<32x32xbf16> to vector<4x32xbf16>
    %cst_79 = arith.constant dense<0.000000e+00> : vector<8x32xf32>
    %131 = tpu.matmul %129, %130, %cst_79 {dimension_numbers = #tpu.dot_dimension_numbers<[1], [0], [0], [1], [0, 0, 1, 1], [], []>} : vector<8x4xbf16>, vector<4x32xbf16>, vector<8x32xf32> -> vector<8x32xf32>
    %132 = arith.addf %114, %131 : vector<8x32xf32>
    %133 = vector.extract_strided_slice %36 {offsets = [0, 20], sizes = [8, 4], strides = [1, 1]} : vector<8x32xbf16> to vector<8x4xbf16>
    %134 = vector.extract_strided_slice %38 {offsets = [0, 20], sizes = [16, 4], strides = [1, 1]} : vector<16x32xbf16> to vector<16x4xbf16>
    %cst_80 = arith.constant dense<0.000000e+00> : vector<8x16xf32>
    %135 = tpu.matmul %133, %134, %cst_80 {dimension_numbers = #tpu.dot_dimension_numbers<[1], [1], [0], [0], [0, 0, 1, 0], [], []>} : vector<8x4xbf16>, vector<16x4xbf16>, vector<8x16xf32> -> vector<8x16xf32>
    %cst_81 = arith.constant dense<0xFF800000> : vector<8xf32>
    %136 = vector.multi_reduction <maximumf>, %135, %cst_81 [1] : vector<8x16xf32> to vector<8xf32>
    %137 = vector.shape_cast %136 : vector<8xf32> to vector<8x1xf32>
    %138 = vector.broadcast %137 : vector<8x1xf32> to vector<8x16xf32>
    %139 = arith.subf %135, %138 : vector<8x16xf32>
    %140 = math.exp %139 : vector<8x16xf32>
    %cst_82 = arith.constant dense<0.000000e+00> : vector<8xf32>
    %141 = vector.multi_reduction <add>, %140, %cst_82 [1] : vector<8x16xf32> to vector<8xf32>
    %142 = vector.shape_cast %141 : vector<8xf32> to vector<8x1xf32>
    %143 = vector.broadcast %142 : vector<8x1xf32> to vector<8x16xf32>
    %144 = arith.divf %140, %143 : vector<8x16xf32>
    %145 = vector.extract_strided_slice %39 {offsets = [0, 20], sizes = [16, 4], strides = [1, 1]} : vector<16x32xf32> to vector<16x4xf32>
    %cst_83 = arith.constant dense<0.000000e+00> : vector<8x4xf32>
    %146 = tpu.matmul %144, %145, %cst_83 {dimension_numbers = #tpu.dot_dimension_numbers<[1], [0], [0], [1], [0, 0, 1, 1], [], []>} : vector<8x16xf32>, vector<16x4xf32>, vector<8x4xf32> -> vector<8x4xf32>
    %147 = arith.truncf %146 : vector<8x4xf32> to vector<8x4xbf16>
    %148 = vector.extract_strided_slice %4 {offsets = [20, 0], sizes = [4, 32], strides = [1, 1]} : vector<32x32xbf16> to vector<4x32xbf16>
    %cst_84 = arith.constant dense<0.000000e+00> : vector<8x32xf32>
    %149 = tpu.matmul %147, %148, %cst_84 {dimension_numbers = #tpu.dot_dimension_numbers<[1], [0], [0], [1], [0, 0, 1, 1], [], []>} : vector<8x4xbf16>, vector<4x32xbf16>, vector<8x32xf32> -> vector<8x32xf32>
    %150 = arith.addf %132, %149 : vector<8x32xf32>
    %151 = vector.extract_strided_slice %36 {offsets = [0, 24], sizes = [8, 4], strides = [1, 1]} : vector<8x32xbf16> to vector<8x4xbf16>
    %152 = vector.extract_strided_slice %38 {offsets = [0, 24], sizes = [16, 4], strides = [1, 1]} : vector<16x32xbf16> to vector<16x4xbf16>
    %cst_85 = arith.constant dense<0.000000e+00> : vector<8x16xf32>
    %153 = tpu.matmul %151, %152, %cst_85 {dimension_numbers = #tpu.dot_dimension_numbers<[1], [1], [0], [0], [0, 0, 1, 0], [], []>} : vector<8x4xbf16>, vector<16x4xbf16>, vector<8x16xf32> -> vector<8x16xf32>
    %cst_86 = arith.constant dense<0xFF800000> : vector<8xf32>
    %154 = vector.multi_reduction <maximumf>, %153, %cst_86 [1] : vector<8x16xf32> to vector<8xf32>
    %155 = vector.shape_cast %154 : vector<8xf32> to vector<8x1xf32>
    %156 = vector.broadcast %155 : vector<8x1xf32> to vector<8x16xf32>
    %157 = arith.subf %153, %156 : vector<8x16xf32>
    %158 = math.exp %157 : vector<8x16xf32>
    %cst_87 = arith.constant dense<0.000000e+00> : vector<8xf32>
    %159 = vector.multi_reduction <add>, %158, %cst_87 [1] : vector<8x16xf32> to vector<8xf32>
    %160 = vector.shape_cast %159 : vector<8xf32> to vector<8x1xf32>
    %161 = vector.broadcast %160 : vector<8x1xf32> to vector<8x16xf32>
    %162 = arith.divf %158, %161 : vector<8x16xf32>
    %163 = vector.extract_strided_slice %39 {offsets = [0, 24], sizes = [16, 4], strides = [1, 1]} : vector<16x32xf32> to vector<16x4xf32>
    %cst_88 = arith.constant dense<0.000000e+00> : vector<8x4xf32>
    %164 = tpu.matmul %162, %163, %cst_88 {dimension_numbers = #tpu.dot_dimension_numbers<[1], [0], [0], [1], [0, 0, 1, 1], [], []>} : vector<8x16xf32>, vector<16x4xf32>, vector<8x4xf32> -> vector<8x4xf32>
    %165 = arith.truncf %164 : vector<8x4xf32> to vector<8x4xbf16>
    %166 = vector.extract_strided_slice %4 {offsets = [24, 0], sizes = [4, 32], strides = [1, 1]} : vector<32x32xbf16> to vector<4x32xbf16>
    %cst_89 = arith.constant dense<0.000000e+00> : vector<8x32xf32>
    %167 = tpu.matmul %165, %166, %cst_89 {dimension_numbers = #tpu.dot_dimension_numbers<[1], [0], [0], [1], [0, 0, 1, 1], [], []>} : vector<8x4xbf16>, vector<4x32xbf16>, vector<8x32xf32> -> vector<8x32xf32>
    %168 = arith.addf %150, %167 : vector<8x32xf32>
    %169 = vector.extract_strided_slice %36 {offsets = [0, 28], sizes = [8, 4], strides = [1, 1]} : vector<8x32xbf16> to vector<8x4xbf16>
    %170 = vector.extract_strided_slice %38 {offsets = [0, 28], sizes = [16, 4], strides = [1, 1]} : vector<16x32xbf16> to vector<16x4xbf16>
    %cst_90 = arith.constant dense<0.000000e+00> : vector<8x16xf32>
    %171 = tpu.matmul %169, %170, %cst_90 {dimension_numbers = #tpu.dot_dimension_numbers<[1], [1], [0], [0], [0, 0, 1, 0], [], []>} : vector<8x4xbf16>, vector<16x4xbf16>, vector<8x16xf32> -> vector<8x16xf32>
    %cst_91 = arith.constant dense<0xFF800000> : vector<8xf32>
    %172 = vector.multi_reduction <maximumf>, %171, %cst_91 [1] : vector<8x16xf32> to vector<8xf32>
    %173 = vector.shape_cast %172 : vector<8xf32> to vector<8x1xf32>
    %174 = vector.broadcast %173 : vector<8x1xf32> to vector<8x16xf32>
    %175 = arith.subf %171, %174 : vector<8x16xf32>
    %176 = math.exp %175 : vector<8x16xf32>
    %cst_92 = arith.constant dense<0.000000e+00> : vector<8xf32>
    %177 = vector.multi_reduction <add>, %176, %cst_92 [1] : vector<8x16xf32> to vector<8xf32>
    %178 = vector.shape_cast %177 : vector<8xf32> to vector<8x1xf32>
    %179 = vector.broadcast %178 : vector<8x1xf32> to vector<8x16xf32>
    %180 = arith.divf %176, %179 : vector<8x16xf32>
    %181 = vector.extract_strided_slice %39 {offsets = [0, 28], sizes = [16, 4], strides = [1, 1]} : vector<16x32xf32> to vector<16x4xf32>
    %cst_93 = arith.constant dense<0.000000e+00> : vector<8x4xf32>
    %182 = tpu.matmul %180, %181, %cst_93 {dimension_numbers = #tpu.dot_dimension_numbers<[1], [0], [0], [1], [0, 0, 1, 1], [], []>} : vector<8x16xf32>, vector<16x4xf32>, vector<8x4xf32> -> vector<8x4xf32>
    %183 = arith.truncf %182 : vector<8x4xf32> to vector<8x4xbf16>
    %184 = vector.extract_strided_slice %4 {offsets = [28, 0], sizes = [4, 32], strides = [1, 1]} : vector<32x32xbf16> to vector<4x32xbf16>
    %cst_94 = arith.constant dense<0.000000e+00> : vector<8x32xf32>
    %185 = tpu.matmul %183, %184, %cst_94 {dimension_numbers = #tpu.dot_dimension_numbers<[1], [0], [0], [1], [0, 0, 1, 1], [], []>} : vector<8x4xbf16>, vector<4x32xbf16>, vector<8x32xf32> -> vector<8x32xf32>
    %186 = arith.addf %168, %185 : vector<8x32xf32>
    %187 = arith.addf %25, %186 : vector<8x32xf32>
    %cst_95 = arith.constant dense<0.000000e+00> : vector<8xf32>
    %188 = vector.multi_reduction <add>, %187, %cst_95 [1] : vector<8x32xf32> to vector<8xf32>
    %189 = vector.shape_cast %188 : vector<8xf32> to vector<8x1xf32>
    %cst_96 = arith.constant 3.200000e+01 : f32
    %190 = vector.broadcast %cst_96 : f32 to vector<8x1xf32>
    %191 = arith.divf %189, %190 : vector<8x1xf32>
    %192 = vector.broadcast %191 : vector<8x1xf32> to vector<8x32xf32>
    %193 = arith.subf %187, %192 : vector<8x32xf32>
    %194 = arith.mulf %193, %193 : vector<8x32xf32>
    %cst_97 = arith.constant dense<0.000000e+00> : vector<8xf32>
    %195 = vector.multi_reduction <add>, %194, %cst_97 [1] : vector<8x32xf32> to vector<8xf32>
    %196 = vector.shape_cast %195 : vector<8xf32> to vector<8x1xf32>
    %cst_98 = arith.constant 3.200000e+01 : f32
    %197 = vector.broadcast %cst_98 : f32 to vector<8x1xf32>
    %198 = arith.divf %196, %197 : vector<8x1xf32>
    %cst_99 = arith.constant 9.99999974E-6 : f32
    %199 = vector.broadcast %cst_99 : f32 to vector<8x1xf32>
    %200 = arith.addf %198, %199 : vector<8x1xf32>
    %201 = math.rsqrt %200 : vector<8x1xf32>
    %202 = vector.broadcast %201 : vector<8x1xf32> to vector<8x32xf32>
    %203 = arith.mulf %193, %202 : vector<8x32xf32>
    %204 = vector.broadcast %10 : vector<1x32xf32> to vector<8x32xf32>
    %205 = arith.mulf %203, %204 : vector<8x32xf32>
    %206 = vector.broadcast %11 : vector<1x32xf32> to vector<8x32xf32>
    %207 = arith.addf %205, %206 : vector<8x32xf32>
    %208 = arith.truncf %207 : vector<8x32xf32> to vector<8x32xbf16>
    %cst_100 = arith.constant dense<0.000000e+00> : vector<8x128xf32>
    %209 = tpu.matmul %208, %6, %cst_100 {dimension_numbers = #tpu.dot_dimension_numbers<[1], [0], [0], [1], [0, 0, 1, 1], [], []>} : vector<8x32xbf16>, vector<32x128xbf16>, vector<8x128xf32> -> vector<8x128xf32>
    %210 = vector.broadcast %7 : vector<1x128xf32> to vector<8x128xf32>
    %211 = arith.addf %209, %210 : vector<8x128xf32>
    %cst_101 = arith.constant 0.000000e+00 : f32
    %212 = vector.broadcast %cst_101 : f32 to vector<8x128xf32>
    %213 = arith.maximumf %211, %212 : vector<8x128xf32>
    %214 = arith.truncf %213 : vector<8x128xf32> to vector<8x128xbf16>
    %cst_102 = arith.constant dense<0.000000e+00> : vector<8x32xf32>
    %215 = tpu.matmul %214, %8, %cst_102 {dimension_numbers = #tpu.dot_dimension_numbers<[1], [0], [0], [1], [0, 0, 1, 1], [], []>} : vector<8x128xbf16>, vector<128x32xbf16>, vector<8x32xf32> -> vector<8x32xf32>
    %216 = vector.broadcast %9 : vector<1x32xf32> to vector<8x32xf32>
    %217 = arith.addf %215, %216 : vector<8x32xf32>
    %218 = arith.addf %207, %217 : vector<8x32xf32>
    %cst_103 = arith.constant dense<0.000000e+00> : vector<8xf32>
    %219 = vector.multi_reduction <add>, %218, %cst_103 [1] : vector<8x32xf32> to vector<8xf32>
    %220 = vector.shape_cast %219 : vector<8xf32> to vector<8x1xf32>
    %cst_104 = arith.constant 3.200000e+01 : f32
    %221 = vector.broadcast %cst_104 : f32 to vector<8x1xf32>
    %222 = arith.divf %220, %221 : vector<8x1xf32>
    %223 = vector.broadcast %222 : vector<8x1xf32> to vector<8x32xf32>
    %224 = arith.subf %218, %223 : vector<8x32xf32>
    %225 = arith.mulf %224, %224 : vector<8x32xf32>
    %cst_105 = arith.constant dense<0.000000e+00> : vector<8xf32>
    %226 = vector.multi_reduction <add>, %225, %cst_105 [1] : vector<8x32xf32> to vector<8xf32>
    %227 = vector.shape_cast %226 : vector<8xf32> to vector<8x1xf32>
    %cst_106 = arith.constant 3.200000e+01 : f32
    %228 = vector.broadcast %cst_106 : f32 to vector<8x1xf32>
    %229 = arith.divf %227, %228 : vector<8x1xf32>
    %cst_107 = arith.constant 9.99999974E-6 : f32
    %230 = vector.broadcast %cst_107 : f32 to vector<8x1xf32>
    %231 = arith.addf %229, %230 : vector<8x1xf32>
    %232 = math.rsqrt %231 : vector<8x1xf32>
    %233 = vector.broadcast %232 : vector<8x1xf32> to vector<8x32xf32>
    %234 = arith.mulf %224, %233 : vector<8x32xf32>
    %235 = vector.broadcast %10 : vector<1x32xf32> to vector<8x32xf32>
    %236 = arith.mulf %234, %235 : vector<8x32xf32>
    %237 = vector.broadcast %11 : vector<1x32xf32> to vector<8x32xf32>
    %238 = arith.addf %236, %237 : vector<8x32xf32>
    %239 = arith.truncf %27 : vector<16x32xf32> to vector<16x32xbf16>
    %cst_108 = arith.constant dense<0.000000e+00> : vector<16x32xf32>
    %240 = tpu.matmul %239, %12, %cst_108 {dimension_numbers = #tpu.dot_dimension_numbers<[1], [0], [0], [1], [0, 0, 1, 1], [], []>} : vector<16x32xbf16>, vector<32x32xbf16>, vector<16x32xf32> -> vector<16x32xf32>
    %241 = vector.broadcast %13 : vector<1x32xf32> to vector<16x32xf32>
    %242 = arith.addf %240, %241 : vector<16x32xf32>
    %243 = arith.truncf %238 : vector<8x32xf32> to vector<8x32xbf16>
    %cst_109 = arith.constant dense<0.000000e+00> : vector<8x64xf32>
    %244 = tpu.matmul %243, %14, %cst_109 {dimension_numbers = #tpu.dot_dimension_numbers<[1], [0], [0], [1], [0, 0, 1, 1], [], []>} : vector<8x32xbf16>, vector<32x64xbf16>, vector<8x64xf32> -> vector<8x64xf32>
    %245 = vector.broadcast %15 : vector<1x64xf32> to vector<8x64xf32>
    %246 = arith.addf %244, %245 : vector<8x64xf32>
    %247 = arith.truncf %242 : vector<16x32xf32> to vector<16x32xbf16>
    %248 = vector.extract_strided_slice %246 {offsets = [0, 0], sizes = [8, 32], strides = [1, 1]} : vector<8x64xf32> to vector<8x32xf32>
    %249 = arith.truncf %248 : vector<8x32xf32> to vector<8x32xbf16>
    %250 = vector.extract_strided_slice %246 {offsets = [0, 32], sizes = [8, 32], strides = [1, 1]} : vector<8x64xf32> to vector<8x32xf32>
    %cst_110 = arith.constant 0.000000e+00 : f32
    %251 = vector.broadcast %cst_110 : f32 to vector<16x32xf32>
    %252 = vector.broadcast %17 : vector<1x32xf32> to vector<16x32xf32>
    %253 = arith.addf %251, %252 : vector<16x32xf32>
    %254 = vector.extract_strided_slice %247 {offsets = [0, 0], sizes = [16, 4], strides = [1, 1]} : vector<16x32xbf16> to vector<16x4xbf16>
    %255 = vector.extract_strided_slice %249 {offsets = [0, 0], sizes = [8, 4], strides = [1, 1]} : vector<8x32xbf16> to vector<8x4xbf16>
    %cst_111 = arith.constant dense<0.000000e+00> : vector<16x8xf32>
    %256 = tpu.matmul %254, %255, %cst_111 {dimension_numbers = #tpu.dot_dimension_numbers<[1], [1], [0], [0], [0, 0, 1, 0], [], []>} : vector<16x4xbf16>, vector<8x4xbf16>, vector<16x8xf32> -> vector<16x8xf32>
    %cst_112 = arith.constant dense<0xFF800000> : vector<16xf32>
    %257 = vector.multi_reduction <maximumf>, %256, %cst_112 [1] : vector<16x8xf32> to vector<16xf32>
    %258 = vector.shape_cast %257 : vector<16xf32> to vector<16x1xf32>
    %259 = vector.broadcast %258 : vector<16x1xf32> to vector<16x8xf32>
    %260 = arith.subf %256, %259 : vector<16x8xf32>
    %261 = math.exp %260 : vector<16x8xf32>
    %cst_113 = arith.constant dense<0.000000e+00> : vector<16xf32>
    %262 = vector.multi_reduction <add>, %261, %cst_113 [1] : vector<16x8xf32> to vector<16xf32>
    %263 = vector.shape_cast %262 : vector<16xf32> to vector<16x1xf32>
    %264 = vector.broadcast %263 : vector<16x1xf32> to vector<16x8xf32>
    %265 = arith.divf %261, %264 : vector<16x8xf32>
    %266 = vector.extract_strided_slice %250 {offsets = [0, 0], sizes = [8, 4], strides = [1, 1]} : vector<8x32xf32> to vector<8x4xf32>
    %cst_114 = arith.constant dense<0.000000e+00> : vector<16x4xf32>
    %267 = tpu.matmul %265, %266, %cst_114 {dimension_numbers = #tpu.dot_dimension_numbers<[1], [0], [0], [1], [0, 0, 1, 1], [], []>} : vector<16x8xf32>, vector<8x4xf32>, vector<16x4xf32> -> vector<16x4xf32>
    %268 = arith.truncf %267 : vector<16x4xf32> to vector<16x4xbf16>
    %269 = vector.extract_strided_slice %16 {offsets = [0, 0], sizes = [4, 32], strides = [1, 1]} : vector<32x32xbf16> to vector<4x32xbf16>
    %cst_115 = arith.constant dense<0.000000e+00> : vector<16x32xf32>
    %270 = tpu.matmul %268, %269, %cst_115 {dimension_numbers = #tpu.dot_dimension_numbers<[1], [0], [0], [1], [0, 0, 1, 1], [], []>} : vector<16x4xbf16>, vector<4x32xbf16>, vector<16x32xf32> -> vector<16x32xf32>
    %271 = arith.addf %253, %270 : vector<16x32xf32>
    %272 = vector.extract_strided_slice %247 {offsets = [0, 4], sizes = [16, 4], strides = [1, 1]} : vector<16x32xbf16> to vector<16x4xbf16>
    %273 = vector.extract_strided_slice %249 {offsets = [0, 4], sizes = [8, 4], strides = [1, 1]} : vector<8x32xbf16> to vector<8x4xbf16>
    %cst_116 = arith.constant dense<0.000000e+00> : vector<16x8xf32>
    %274 = tpu.matmul %272, %273, %cst_116 {dimension_numbers = #tpu.dot_dimension_numbers<[1], [1], [0], [0], [0, 0, 1, 0], [], []>} : vector<16x4xbf16>, vector<8x4xbf16>, vector<16x8xf32> -> vector<16x8xf32>
    %cst_117 = arith.constant dense<0xFF800000> : vector<16xf32>
    %275 = vector.multi_reduction <maximumf>, %274, %cst_117 [1] : vector<16x8xf32> to vector<16xf32>
    %276 = vector.shape_cast %275 : vector<16xf32> to vector<16x1xf32>
    %277 = vector.broadcast %276 : vector<16x1xf32> to vector<16x8xf32>
    %278 = arith.subf %274, %277 : vector<16x8xf32>
    %279 = math.exp %278 : vector<16x8xf32>
    %cst_118 = arith.constant dense<0.000000e+00> : vector<16xf32>
    %280 = vector.multi_reduction <add>, %279, %cst_118 [1] : vector<16x8xf32> to vector<16xf32>
    %281 = vector.shape_cast %280 : vector<16xf32> to vector<16x1xf32>
    %282 = vector.broadcast %281 : vector<16x1xf32> to vector<16x8xf32>
    %283 = arith.divf %279, %282 : vector<16x8xf32>
    %284 = vector.extract_strided_slice %250 {offsets = [0, 4], sizes = [8, 4], strides = [1, 1]} : vector<8x32xf32> to vector<8x4xf32>
    %cst_119 = arith.constant dense<0.000000e+00> : vector<16x4xf32>
    %285 = tpu.matmul %283, %284, %cst_119 {dimension_numbers = #tpu.dot_dimension_numbers<[1], [0], [0], [1], [0, 0, 1, 1], [], []>} : vector<16x8xf32>, vector<8x4xf32>, vector<16x4xf32> -> vector<16x4xf32>
    %286 = arith.truncf %285 : vector<16x4xf32> to vector<16x4xbf16>
    %287 = vector.extract_strided_slice %16 {offsets = [4, 0], sizes = [4, 32], strides = [1, 1]} : vector<32x32xbf16> to vector<4x32xbf16>
    %cst_120 = arith.constant dense<0.000000e+00> : vector<16x32xf32>
    %288 = tpu.matmul %286, %287, %cst_120 {dimension_numbers = #tpu.dot_dimension_numbers<[1], [0], [0], [1], [0, 0, 1, 1], [], []>} : vector<16x4xbf16>, vector<4x32xbf16>, vector<16x32xf32> -> vector<16x32xf32>
    %289 = arith.addf %271, %288 : vector<16x32xf32>
    %290 = vector.extract_strided_slice %247 {offsets = [0, 8], sizes = [16, 4], strides = [1, 1]} : vector<16x32xbf16> to vector<16x4xbf16>
    %291 = vector.extract_strided_slice %249 {offsets = [0, 8], sizes = [8, 4], strides = [1, 1]} : vector<8x32xbf16> to vector<8x4xbf16>
    %cst_121 = arith.constant dense<0.000000e+00> : vector<16x8xf32>
    %292 = tpu.matmul %290, %291, %cst_121 {dimension_numbers = #tpu.dot_dimension_numbers<[1], [1], [0], [0], [0, 0, 1, 0], [], []>} : vector<16x4xbf16>, vector<8x4xbf16>, vector<16x8xf32> -> vector<16x8xf32>
    %cst_122 = arith.constant dense<0xFF800000> : vector<16xf32>
    %293 = vector.multi_reduction <maximumf>, %292, %cst_122 [1] : vector<16x8xf32> to vector<16xf32>
    %294 = vector.shape_cast %293 : vector<16xf32> to vector<16x1xf32>
    %295 = vector.broadcast %294 : vector<16x1xf32> to vector<16x8xf32>
    %296 = arith.subf %292, %295 : vector<16x8xf32>
    %297 = math.exp %296 : vector<16x8xf32>
    %cst_123 = arith.constant dense<0.000000e+00> : vector<16xf32>
    %298 = vector.multi_reduction <add>, %297, %cst_123 [1] : vector<16x8xf32> to vector<16xf32>
    %299 = vector.shape_cast %298 : vector<16xf32> to vector<16x1xf32>
    %300 = vector.broadcast %299 : vector<16x1xf32> to vector<16x8xf32>
    %301 = arith.divf %297, %300 : vector<16x8xf32>
    %302 = vector.extract_strided_slice %250 {offsets = [0, 8], sizes = [8, 4], strides = [1, 1]} : vector<8x32xf32> to vector<8x4xf32>
    %cst_124 = arith.constant dense<0.000000e+00> : vector<16x4xf32>
    %303 = tpu.matmul %301, %302, %cst_124 {dimension_numbers = #tpu.dot_dimension_numbers<[1], [0], [0], [1], [0, 0, 1, 1], [], []>} : vector<16x8xf32>, vector<8x4xf32>, vector<16x4xf32> -> vector<16x4xf32>
    %304 = arith.truncf %303 : vector<16x4xf32> to vector<16x4xbf16>
    %305 = vector.extract_strided_slice %16 {offsets = [8, 0], sizes = [4, 32], strides = [1, 1]} : vector<32x32xbf16> to vector<4x32xbf16>
    %cst_125 = arith.constant dense<0.000000e+00> : vector<16x32xf32>
    %306 = tpu.matmul %304, %305, %cst_125 {dimension_numbers = #tpu.dot_dimension_numbers<[1], [0], [0], [1], [0, 0, 1, 1], [], []>} : vector<16x4xbf16>, vector<4x32xbf16>, vector<16x32xf32> -> vector<16x32xf32>
    %307 = arith.addf %289, %306 : vector<16x32xf32>
    %308 = vector.extract_strided_slice %247 {offsets = [0, 12], sizes = [16, 4], strides = [1, 1]} : vector<16x32xbf16> to vector<16x4xbf16>
    %309 = vector.extract_strided_slice %249 {offsets = [0, 12], sizes = [8, 4], strides = [1, 1]} : vector<8x32xbf16> to vector<8x4xbf16>
    %cst_126 = arith.constant dense<0.000000e+00> : vector<16x8xf32>
    %310 = tpu.matmul %308, %309, %cst_126 {dimension_numbers = #tpu.dot_dimension_numbers<[1], [1], [0], [0], [0, 0, 1, 0], [], []>} : vector<16x4xbf16>, vector<8x4xbf16>, vector<16x8xf32> -> vector<16x8xf32>
    %cst_127 = arith.constant dense<0xFF800000> : vector<16xf32>
    %311 = vector.multi_reduction <maximumf>, %310, %cst_127 [1] : vector<16x8xf32> to vector<16xf32>
    %312 = vector.shape_cast %311 : vector<16xf32> to vector<16x1xf32>
    %313 = vector.broadcast %312 : vector<16x1xf32> to vector<16x8xf32>
    %314 = arith.subf %310, %313 : vector<16x8xf32>
    %315 = math.exp %314 : vector<16x8xf32>
    %cst_128 = arith.constant dense<0.000000e+00> : vector<16xf32>
    %316 = vector.multi_reduction <add>, %315, %cst_128 [1] : vector<16x8xf32> to vector<16xf32>
    %317 = vector.shape_cast %316 : vector<16xf32> to vector<16x1xf32>
    %318 = vector.broadcast %317 : vector<16x1xf32> to vector<16x8xf32>
    %319 = arith.divf %315, %318 : vector<16x8xf32>
    %320 = vector.extract_strided_slice %250 {offsets = [0, 12], sizes = [8, 4], strides = [1, 1]} : vector<8x32xf32> to vector<8x4xf32>
    %cst_129 = arith.constant dense<0.000000e+00> : vector<16x4xf32>
    %321 = tpu.matmul %319, %320, %cst_129 {dimension_numbers = #tpu.dot_dimension_numbers<[1], [0], [0], [1], [0, 0, 1, 1], [], []>} : vector<16x8xf32>, vector<8x4xf32>, vector<16x4xf32> -> vector<16x4xf32>
    %322 = arith.truncf %321 : vector<16x4xf32> to vector<16x4xbf16>
    %323 = vector.extract_strided_slice %16 {offsets = [12, 0], sizes = [4, 32], strides = [1, 1]} : vector<32x32xbf16> to vector<4x32xbf16>
    %cst_130 = arith.constant dense<0.000000e+00> : vector<16x32xf32>
    %324 = tpu.matmul %322, %323, %cst_130 {dimension_numbers = #tpu.dot_dimension_numbers<[1], [0], [0], [1], [0, 0, 1, 1], [], []>} : vector<16x4xbf16>, vector<4x32xbf16>, vector<16x32xf32> -> vector<16x32xf32>
    %325 = arith.addf %307, %324 : vector<16x32xf32>
    %326 = vector.extract_strided_slice %247 {offsets = [0, 16], sizes = [16, 4], strides = [1, 1]} : vector<16x32xbf16> to vector<16x4xbf16>
    %327 = vector.extract_strided_slice %249 {offsets = [0, 16], sizes = [8, 4], strides = [1, 1]} : vector<8x32xbf16> to vector<8x4xbf16>
    %cst_131 = arith.constant dense<0.000000e+00> : vector<16x8xf32>
    %328 = tpu.matmul %326, %327, %cst_131 {dimension_numbers = #tpu.dot_dimension_numbers<[1], [1], [0], [0], [0, 0, 1, 0], [], []>} : vector<16x4xbf16>, vector<8x4xbf16>, vector<16x8xf32> -> vector<16x8xf32>
    %cst_132 = arith.constant dense<0xFF800000> : vector<16xf32>
    %329 = vector.multi_reduction <maximumf>, %328, %cst_132 [1] : vector<16x8xf32> to vector<16xf32>
    %330 = vector.shape_cast %329 : vector<16xf32> to vector<16x1xf32>
    %331 = vector.broadcast %330 : vector<16x1xf32> to vector<16x8xf32>
    %332 = arith.subf %328, %331 : vector<16x8xf32>
    %333 = math.exp %332 : vector<16x8xf32>
    %cst_133 = arith.constant dense<0.000000e+00> : vector<16xf32>
    %334 = vector.multi_reduction <add>, %333, %cst_133 [1] : vector<16x8xf32> to vector<16xf32>
    %335 = vector.shape_cast %334 : vector<16xf32> to vector<16x1xf32>
    %336 = vector.broadcast %335 : vector<16x1xf32> to vector<16x8xf32>
    %337 = arith.divf %333, %336 : vector<16x8xf32>
    %338 = vector.extract_strided_slice %250 {offsets = [0, 16], sizes = [8, 4], strides = [1, 1]} : vector<8x32xf32> to vector<8x4xf32>
    %cst_134 = arith.constant dense<0.000000e+00> : vector<16x4xf32>
    %339 = tpu.matmul %337, %338, %cst_134 {dimension_numbers = #tpu.dot_dimension_numbers<[1], [0], [0], [1], [0, 0, 1, 1], [], []>} : vector<16x8xf32>, vector<8x4xf32>, vector<16x4xf32> -> vector<16x4xf32>
    %340 = arith.truncf %339 : vector<16x4xf32> to vector<16x4xbf16>
    %341 = vector.extract_strided_slice %16 {offsets = [16, 0], sizes = [4, 32], strides = [1, 1]} : vector<32x32xbf16> to vector<4x32xbf16>
    %cst_135 = arith.constant dense<0.000000e+00> : vector<16x32xf32>
    %342 = tpu.matmul %340, %341, %cst_135 {dimension_numbers = #tpu.dot_dimension_numbers<[1], [0], [0], [1], [0, 0, 1, 1], [], []>} : vector<16x4xbf16>, vector<4x32xbf16>, vector<16x32xf32> -> vector<16x32xf32>
    %343 = arith.addf %325, %342 : vector<16x32xf32>
    %344 = vector.extract_strided_slice %247 {offsets = [0, 20], sizes = [16, 4], strides = [1, 1]} : vector<16x32xbf16> to vector<16x4xbf16>
    %345 = vector.extract_strided_slice %249 {offsets = [0, 20], sizes = [8, 4], strides = [1, 1]} : vector<8x32xbf16> to vector<8x4xbf16>
    %cst_136 = arith.constant dense<0.000000e+00> : vector<16x8xf32>
    %346 = tpu.matmul %344, %345, %cst_136 {dimension_numbers = #tpu.dot_dimension_numbers<[1], [1], [0], [0], [0, 0, 1, 0], [], []>} : vector<16x4xbf16>, vector<8x4xbf16>, vector<16x8xf32> -> vector<16x8xf32>
    %cst_137 = arith.constant dense<0xFF800000> : vector<16xf32>
    %347 = vector.multi_reduction <maximumf>, %346, %cst_137 [1] : vector<16x8xf32> to vector<16xf32>
    %348 = vector.shape_cast %347 : vector<16xf32> to vector<16x1xf32>
    %349 = vector.broadcast %348 : vector<16x1xf32> to vector<16x8xf32>
    %350 = arith.subf %346, %349 : vector<16x8xf32>
    %351 = math.exp %350 : vector<16x8xf32>
    %cst_138 = arith.constant dense<0.000000e+00> : vector<16xf32>
    %352 = vector.multi_reduction <add>, %351, %cst_138 [1] : vector<16x8xf32> to vector<16xf32>
    %353 = vector.shape_cast %352 : vector<16xf32> to vector<16x1xf32>
    %354 = vector.broadcast %353 : vector<16x1xf32> to vector<16x8xf32>
    %355 = arith.divf %351, %354 : vector<16x8xf32>
    %356 = vector.extract_strided_slice %250 {offsets = [0, 20], sizes = [8, 4], strides = [1, 1]} : vector<8x32xf32> to vector<8x4xf32>
    %cst_139 = arith.constant dense<0.000000e+00> : vector<16x4xf32>
    %357 = tpu.matmul %355, %356, %cst_139 {dimension_numbers = #tpu.dot_dimension_numbers<[1], [0], [0], [1], [0, 0, 1, 1], [], []>} : vector<16x8xf32>, vector<8x4xf32>, vector<16x4xf32> -> vector<16x4xf32>
    %358 = arith.truncf %357 : vector<16x4xf32> to vector<16x4xbf16>
    %359 = vector.extract_strided_slice %16 {offsets = [20, 0], sizes = [4, 32], strides = [1, 1]} : vector<32x32xbf16> to vector<4x32xbf16>
    %cst_140 = arith.constant dense<0.000000e+00> : vector<16x32xf32>
    %360 = tpu.matmul %358, %359, %cst_140 {dimension_numbers = #tpu.dot_dimension_numbers<[1], [0], [0], [1], [0, 0, 1, 1], [], []>} : vector<16x4xbf16>, vector<4x32xbf16>, vector<16x32xf32> -> vector<16x32xf32>
    %361 = arith.addf %343, %360 : vector<16x32xf32>
    %362 = vector.extract_strided_slice %247 {offsets = [0, 24], sizes = [16, 4], strides = [1, 1]} : vector<16x32xbf16> to vector<16x4xbf16>
    %363 = vector.extract_strided_slice %249 {offsets = [0, 24], sizes = [8, 4], strides = [1, 1]} : vector<8x32xbf16> to vector<8x4xbf16>
    %cst_141 = arith.constant dense<0.000000e+00> : vector<16x8xf32>
    %364 = tpu.matmul %362, %363, %cst_141 {dimension_numbers = #tpu.dot_dimension_numbers<[1], [1], [0], [0], [0, 0, 1, 0], [], []>} : vector<16x4xbf16>, vector<8x4xbf16>, vector<16x8xf32> -> vector<16x8xf32>
    %cst_142 = arith.constant dense<0xFF800000> : vector<16xf32>
    %365 = vector.multi_reduction <maximumf>, %364, %cst_142 [1] : vector<16x8xf32> to vector<16xf32>
    %366 = vector.shape_cast %365 : vector<16xf32> to vector<16x1xf32>
    %367 = vector.broadcast %366 : vector<16x1xf32> to vector<16x8xf32>
    %368 = arith.subf %364, %367 : vector<16x8xf32>
    %369 = math.exp %368 : vector<16x8xf32>
    %cst_143 = arith.constant dense<0.000000e+00> : vector<16xf32>
    %370 = vector.multi_reduction <add>, %369, %cst_143 [1] : vector<16x8xf32> to vector<16xf32>
    %371 = vector.shape_cast %370 : vector<16xf32> to vector<16x1xf32>
    %372 = vector.broadcast %371 : vector<16x1xf32> to vector<16x8xf32>
    %373 = arith.divf %369, %372 : vector<16x8xf32>
    %374 = vector.extract_strided_slice %250 {offsets = [0, 24], sizes = [8, 4], strides = [1, 1]} : vector<8x32xf32> to vector<8x4xf32>
    %cst_144 = arith.constant dense<0.000000e+00> : vector<16x4xf32>
    %375 = tpu.matmul %373, %374, %cst_144 {dimension_numbers = #tpu.dot_dimension_numbers<[1], [0], [0], [1], [0, 0, 1, 1], [], []>} : vector<16x8xf32>, vector<8x4xf32>, vector<16x4xf32> -> vector<16x4xf32>
    %376 = arith.truncf %375 : vector<16x4xf32> to vector<16x4xbf16>
    %377 = vector.extract_strided_slice %16 {offsets = [24, 0], sizes = [4, 32], strides = [1, 1]} : vector<32x32xbf16> to vector<4x32xbf16>
    %cst_145 = arith.constant dense<0.000000e+00> : vector<16x32xf32>
    %378 = tpu.matmul %376, %377, %cst_145 {dimension_numbers = #tpu.dot_dimension_numbers<[1], [0], [0], [1], [0, 0, 1, 1], [], []>} : vector<16x4xbf16>, vector<4x32xbf16>, vector<16x32xf32> -> vector<16x32xf32>
    %379 = arith.addf %361, %378 : vector<16x32xf32>
    %380 = vector.extract_strided_slice %247 {offsets = [0, 28], sizes = [16, 4], strides = [1, 1]} : vector<16x32xbf16> to vector<16x4xbf16>
    %381 = vector.extract_strided_slice %249 {offsets = [0, 28], sizes = [8, 4], strides = [1, 1]} : vector<8x32xbf16> to vector<8x4xbf16>
    %cst_146 = arith.constant dense<0.000000e+00> : vector<16x8xf32>
    %382 = tpu.matmul %380, %381, %cst_146 {dimension_numbers = #tpu.dot_dimension_numbers<[1], [1], [0], [0], [0, 0, 1, 0], [], []>} : vector<16x4xbf16>, vector<8x4xbf16>, vector<16x8xf32> -> vector<16x8xf32>
    %cst_147 = arith.constant dense<0xFF800000> : vector<16xf32>
    %383 = vector.multi_reduction <maximumf>, %382, %cst_147 [1] : vector<16x8xf32> to vector<16xf32>
    %384 = vector.shape_cast %383 : vector<16xf32> to vector<16x1xf32>
    %385 = vector.broadcast %384 : vector<16x1xf32> to vector<16x8xf32>
    %386 = arith.subf %382, %385 : vector<16x8xf32>
    %387 = math.exp %386 : vector<16x8xf32>
    %cst_148 = arith.constant dense<0.000000e+00> : vector<16xf32>
    %388 = vector.multi_reduction <add>, %387, %cst_148 [1] : vector<16x8xf32> to vector<16xf32>
    %389 = vector.shape_cast %388 : vector<16xf32> to vector<16x1xf32>
    %390 = vector.broadcast %389 : vector<16x1xf32> to vector<16x8xf32>
    %391 = arith.divf %387, %390 : vector<16x8xf32>
    %392 = vector.extract_strided_slice %250 {offsets = [0, 28], sizes = [8, 4], strides = [1, 1]} : vector<8x32xf32> to vector<8x4xf32>
    %cst_149 = arith.constant dense<0.000000e+00> : vector<16x4xf32>
    %393 = tpu.matmul %391, %392, %cst_149 {dimension_numbers = #tpu.dot_dimension_numbers<[1], [0], [0], [1], [0, 0, 1, 1], [], []>} : vector<16x8xf32>, vector<8x4xf32>, vector<16x4xf32> -> vector<16x4xf32>
    %394 = arith.truncf %393 : vector<16x4xf32> to vector<16x4xbf16>
    %395 = vector.extract_strided_slice %16 {offsets = [28, 0], sizes = [4, 32], strides = [1, 1]} : vector<32x32xbf16> to vector<4x32xbf16>
    %cst_150 = arith.constant dense<0.000000e+00> : vector<16x32xf32>
    %396 = tpu.matmul %394, %395, %cst_150 {dimension_numbers = #tpu.dot_dimension_numbers<[1], [0], [0], [1], [0, 0, 1, 1], [], []>} : vector<16x4xbf16>, vector<4x32xbf16>, vector<16x32xf32> -> vector<16x32xf32>
    %397 = arith.addf %379, %396 : vector<16x32xf32>
    %398 = arith.addf %27, %397 : vector<16x32xf32>
    %cst_151 = arith.constant dense<0.000000e+00> : vector<16xf32>
    %399 = vector.multi_reduction <add>, %398, %cst_151 [1] : vector<16x32xf32> to vector<16xf32>
    %400 = vector.shape_cast %399 : vector<16xf32> to vector<16x1xf32>
    %cst_152 = arith.constant 3.200000e+01 : f32
    %401 = vector.broadcast %cst_152 : f32 to vector<16x1xf32>
    %402 = arith.divf %400, %401 : vector<16x1xf32>
    %403 = vector.broadcast %402 : vector<16x1xf32> to vector<16x32xf32>
    %404 = arith.subf %398, %403 : vector<16x32xf32>
    %405 = arith.mulf %404, %404 : vector<16x32xf32>
    %cst_153 = arith.constant dense<0.000000e+00> : vector<16xf32>
    %406 = vector.multi_reduction <add>, %405, %cst_153 [1] : vector<16x32xf32> to vector<16xf32>
    %407 = vector.shape_cast %406 : vector<16xf32> to vector<16x1xf32>
    %cst_154 = arith.constant 3.200000e+01 : f32
    %408 = vector.broadcast %cst_154 : f32 to vector<16x1xf32>
    %409 = arith.divf %407, %408 : vector<16x1xf32>
    %cst_155 = arith.constant 9.99999974E-6 : f32
    %410 = vector.broadcast %cst_155 : f32 to vector<16x1xf32>
    %411 = arith.addf %409, %410 : vector<16x1xf32>
    %412 = math.rsqrt %411 : vector<16x1xf32>
    %413 = vector.broadcast %412 : vector<16x1xf32> to vector<16x32xf32>
    %414 = arith.mulf %404, %413 : vector<16x32xf32>
    %415 = vector.broadcast %22 : vector<1x32xf32> to vector<16x32xf32>
    %416 = arith.mulf %414, %415 : vector<16x32xf32>
    %417 = vector.broadcast %23 : vector<1x32xf32> to vector<16x32xf32>
    %418 = arith.addf %416, %417 : vector<16x32xf32>
    %419 = arith.truncf %418 : vector<16x32xf32> to vector<16x32xbf16>
    %cst_156 = arith.constant dense<0.000000e+00> : vector<16x128xf32>
    %420 = tpu.matmul %419, %18, %cst_156 {dimension_numbers = #tpu.dot_dimension_numbers<[1], [0], [0], [1], [0, 0, 1, 1], [], []>} : vector<16x32xbf16>, vector<32x128xbf16>, vector<16x128xf32> -> vector<16x128xf32>
    %421 = vector.broadcast %19 : vector<1x128xf32> to vector<16x128xf32>
    %422 = arith.addf %420, %421 : vector<16x128xf32>
    %cst_157 = arith.constant 0.000000e+00 : f32
    %423 = vector.broadcast %cst_157 : f32 to vector<16x128xf32>
    %424 = arith.maximumf %422, %423 : vector<16x128xf32>
    %425 = arith.truncf %424 : vector<16x128xf32> to vector<16x128xbf16>
    %cst_158 = arith.constant dense<0.000000e+00> : vector<16x32xf32>
    %426 = tpu.matmul %425, %20, %cst_158 {dimension_numbers = #tpu.dot_dimension_numbers<[1], [0], [0], [1], [0, 0, 1, 1], [], []>} : vector<16x128xbf16>, vector<128x32xbf16>, vector<16x32xf32> -> vector<16x32xf32>
    %427 = vector.broadcast %21 : vector<1x32xf32> to vector<16x32xf32>
    %428 = arith.addf %426, %427 : vector<16x32xf32>
    %429 = arith.addf %418, %428 : vector<16x32xf32>
    %cst_159 = arith.constant dense<0.000000e+00> : vector<16xf32>
    %430 = vector.multi_reduction <add>, %429, %cst_159 [1] : vector<16x32xf32> to vector<16xf32>
    %431 = vector.shape_cast %430 : vector<16xf32> to vector<16x1xf32>
    %cst_160 = arith.constant 3.200000e+01 : f32
    %432 = vector.broadcast %cst_160 : f32 to vector<16x1xf32>
    %433 = arith.divf %431, %432 : vector<16x1xf32>
    %434 = vector.broadcast %433 : vector<16x1xf32> to vector<16x32xf32>
    %435 = arith.subf %429, %434 : vector<16x32xf32>
    %436 = arith.mulf %435, %435 : vector<16x32xf32>
    %cst_161 = arith.constant dense<0.000000e+00> : vector<16xf32>
    %437 = vector.multi_reduction <add>, %436, %cst_161 [1] : vector<16x32xf32> to vector<16xf32>
    %438 = vector.shape_cast %437 : vector<16xf32> to vector<16x1xf32>
    %cst_162 = arith.constant 3.200000e+01 : f32
    %439 = vector.broadcast %cst_162 : f32 to vector<16x1xf32>
    %440 = arith.divf %438, %439 : vector<16x1xf32>
    %cst_163 = arith.constant 9.99999974E-6 : f32
    %441 = vector.broadcast %cst_163 : f32 to vector<16x1xf32>
    %442 = arith.addf %440, %441 : vector<16x1xf32>
    %443 = math.rsqrt %442 : vector<16x1xf32>
    %444 = vector.broadcast %443 : vector<16x1xf32> to vector<16x32xf32>
    %445 = arith.mulf %435, %444 : vector<16x32xf32>
    %446 = vector.broadcast %22 : vector<1x32xf32> to vector<16x32xf32>
    %447 = arith.mulf %445, %446 : vector<16x32xf32>
    %448 = vector.broadcast %23 : vector<1x32xf32> to vector<16x32xf32>
    %449 = arith.addf %447, %448 : vector<16x32xf32>
    %c0_164 = arith.constant 0 : index
    %c0_165 = arith.constant 0 : index
    %c0_166 = arith.constant 0 : index
    %450 = vector.load %arg26[%c0_164, %c0_165, %c0_166] : memref<8x2x32xf32, #tpu.memory_space<vmem>>, vector<8x1x32xf32>
    %451 = vector.shape_cast %450 : vector<8x1x32xf32> to vector<8x32xf32>
    %452 = vector.shape_cast %238 : vector<8x32xf32> to vector<8x1x32xf32>
    tpu.vector_store %arg26[%c0_164, %c0_165, %c0_166], %452 {strides = array<i32>} : memref<8x2x32xf32, #tpu.memory_space<vmem>>, vector<8x1x32xf32>,
    %c0_167 = arith.constant 0 : index
    %c0_168 = arith.constant 0 : index
    %c0_169 = arith.constant 0 : index
    %453 = vector.load %arg27[%c0_167, %c0_168, %c0_169] : memref<16x2x32xf32, #tpu.memory_space<vmem>>, vector<16x1x32xf32>
    %454 = vector.shape_cast %453 : vector<16x1x32xf32> to vector<16x32xf32>
    %455 = vector.shape_cast %449 : vector<16x32xf32> to vector<16x1x32xf32>
    tpu.vector_store %arg27[%c0_167, %c0_168, %c0_169], %455 {strides = array<i32>} : memref<16x2x32xf32, #tpu.memory_space<vmem>>, vector<16x1x32xf32>,
    %c0_170 = arith.constant 0 : index
    %c1 = arith.constant 1 : index
    %c0_171 = arith.constant 0 : index
    %456 = vector.load %arg0[%c0_170, %c1, %c0_171] : memref<8x2x32xf32, #tpu.memory_space<vmem>>, vector<8x1x32xf32>
    %457 = vector.shape_cast %456 : vector<8x1x32xf32> to vector<8x32xf32>
    %c0_172 = arith.constant 0 : index
    %c1_173 = arith.constant 1 : index
    %c0_174 = arith.constant 0 : index
    %458 = vector.load %arg1[%c0_172, %c1_173, %c0_174] : memref<16x2x32xf32, #tpu.memory_space<vmem>>, vector<16x1x32xf32>
    %459 = vector.shape_cast %458 : vector<16x1x32xf32> to vector<16x32xf32>
    %460 = arith.truncf %457 : vector<8x32xf32> to vector<8x32xbf16>
    %cst_175 = arith.constant dense<0.000000e+00> : vector<8x32xf32>
    %461 = tpu.matmul %460, %0, %cst_175 {dimension_numbers = #tpu.dot_dimension_numbers<[1], [0], [0], [1], [0, 0, 1, 1], [], []>} : vector<8x32xbf16>, vector<32x32xbf16>, vector<8x32xf32> -> vector<8x32xf32>
    %462 = vector.broadcast %1 : vector<1x32xf32> to vector<8x32xf32>
    %463 = arith.addf %461, %462 : vector<8x32xf32>
    %464 = arith.truncf %459 : vector<16x32xf32> to vector<16x32xbf16>
    %cst_176 = arith.constant dense<0.000000e+00> : vector<16x64xf32>
    %465 = tpu.matmul %464, %2, %cst_176 {dimension_numbers = #tpu.dot_dimension_numbers<[1], [0], [0], [1], [0, 0, 1, 1], [], []>} : vector<16x32xbf16>, vector<32x64xbf16>, vector<16x64xf32> -> vector<16x64xf32>
    %466 = vector.broadcast %3 : vector<1x64xf32> to vector<16x64xf32>
    %467 = arith.addf %465, %466 : vector<16x64xf32>
    %468 = arith.truncf %463 : vector<8x32xf32> to vector<8x32xbf16>
    %469 = vector.extract_strided_slice %467 {offsets = [0, 0], sizes = [16, 32], strides = [1, 1]} : vector<16x64xf32> to vector<16x32xf32>
    %470 = arith.truncf %469 : vector<16x32xf32> to vector<16x32xbf16>
    %471 = vector.extract_strided_slice %467 {offsets = [0, 32], sizes = [16, 32], strides = [1, 1]} : vector<16x64xf32> to vector<16x32xf32>
    %cst_177 = arith.constant 0.000000e+00 : f32
    %472 = vector.broadcast %cst_177 : f32 to vector<8x32xf32>
    %473 = vector.broadcast %5 : vector<1x32xf32> to vector<8x32xf32>
    %474 = arith.addf %472, %473 : vector<8x32xf32>
    %475 = vector.extract_strided_slice %468 {offsets = [0, 0], sizes = [8, 4], strides = [1, 1]} : vector<8x32xbf16> to vector<8x4xbf16>
    %476 = vector.extract_strided_slice %470 {offsets = [0, 0], sizes = [16, 4], strides = [1, 1]} : vector<16x32xbf16> to vector<16x4xbf16>
    %cst_178 = arith.constant dense<0.000000e+00> : vector<8x16xf32>
    %477 = tpu.matmul %475, %476, %cst_178 {dimension_numbers = #tpu.dot_dimension_numbers<[1], [1], [0], [0], [0, 0, 1, 0], [], []>} : vector<8x4xbf16>, vector<16x4xbf16>, vector<8x16xf32> -> vector<8x16xf32>
    %cst_179 = arith.constant dense<0xFF800000> : vector<8xf32>
    %478 = vector.multi_reduction <maximumf>, %477, %cst_179 [1] : vector<8x16xf32> to vector<8xf32>
    %479 = vector.shape_cast %478 : vector<8xf32> to vector<8x1xf32>
    %480 = vector.broadcast %479 : vector<8x1xf32> to vector<8x16xf32>
    %481 = arith.subf %477, %480 : vector<8x16xf32>
    %482 = math.exp %481 : vector<8x16xf32>
    %cst_180 = arith.constant dense<0.000000e+00> : vector<8xf32>
    %483 = vector.multi_reduction <add>, %482, %cst_180 [1] : vector<8x16xf32> to vector<8xf32>
    %484 = vector.shape_cast %483 : vector<8xf32> to vector<8x1xf32>
    %485 = vector.broadcast %484 : vector<8x1xf32> to vector<8x16xf32>
    %486 = arith.divf %482, %485 : vector<8x16xf32>
    %487 = vector.extract_strided_slice %471 {offsets = [0, 0], sizes = [16, 4], strides = [1, 1]} : vector<16x32xf32> to vector<16x4xf32>
    %cst_181 = arith.constant dense<0.000000e+00> : vector<8x4xf32>
    %488 = tpu.matmul %486, %487, %cst_181 {dimension_numbers = #tpu.dot_dimension_numbers<[1], [0], [0], [1], [0, 0, 1, 1], [], []>} : vector<8x16xf32>, vector<16x4xf32>, vector<8x4xf32> -> vector<8x4xf32>
    %489 = arith.truncf %488 : vector<8x4xf32> to vector<8x4xbf16>
    %490 = vector.extract_strided_slice %4 {offsets = [0, 0], sizes = [4, 32], strides = [1, 1]} : vector<32x32xbf16> to vector<4x32xbf16>
    %cst_182 = arith.constant dense<0.000000e+00> : vector<8x32xf32>
    %491 = tpu.matmul %489, %490, %cst_182 {dimension_numbers = #tpu.dot_dimension_numbers<[1], [0], [0], [1], [0, 0, 1, 1], [], []>} : vector<8x4xbf16>, vector<4x32xbf16>, vector<8x32xf32> -> vector<8x32xf32>
    %492 = arith.addf %474, %491 : vector<8x32xf32>
    %493 = vector.extract_strided_slice %468 {offsets = [0, 4], sizes = [8, 4], strides = [1, 1]} : vector<8x32xbf16> to vector<8x4xbf16>
    %494 = vector.extract_strided_slice %470 {offsets = [0, 4], sizes = [16, 4], strides = [1, 1]} : vector<16x32xbf16> to vector<16x4xbf16>
    %cst_183 = arith.constant dense<0.000000e+00> : vector<8x16xf32>
    %495 = tpu.matmul %493, %494, %cst_183 {dimension_numbers = #tpu.dot_dimension_numbers<[1], [1], [0], [0], [0, 0, 1, 0], [], []>} : vector<8x4xbf16>, vector<16x4xbf16>, vector<8x16xf32> -> vector<8x16xf32>
    %cst_184 = arith.constant dense<0xFF800000> : vector<8xf32>
    %496 = vector.multi_reduction <maximumf>, %495, %cst_184 [1] : vector<8x16xf32> to vector<8xf32>
    %497 = vector.shape_cast %496 : vector<8xf32> to vector<8x1xf32>
    %498 = vector.broadcast %497 : vector<8x1xf32> to vector<8x16xf32>
    %499 = arith.subf %495, %498 : vector<8x16xf32>
    %500 = math.exp %499 : vector<8x16xf32>
    %cst_185 = arith.constant dense<0.000000e+00> : vector<8xf32>
    %501 = vector.multi_reduction <add>, %500, %cst_185 [1] : vector<8x16xf32> to vector<8xf32>
    %502 = vector.shape_cast %501 : vector<8xf32> to vector<8x1xf32>
    %503 = vector.broadcast %502 : vector<8x1xf32> to vector<8x16xf32>
    %504 = arith.divf %500, %503 : vector<8x16xf32>
    %505 = vector.extract_strided_slice %471 {offsets = [0, 4], sizes = [16, 4], strides = [1, 1]} : vector<16x32xf32> to vector<16x4xf32>
    %cst_186 = arith.constant dense<0.000000e+00> : vector<8x4xf32>
    %506 = tpu.matmul %504, %505, %cst_186 {dimension_numbers = #tpu.dot_dimension_numbers<[1], [0], [0], [1], [0, 0, 1, 1], [], []>} : vector<8x16xf32>, vector<16x4xf32>, vector<8x4xf32> -> vector<8x4xf32>
    %507 = arith.truncf %506 : vector<8x4xf32> to vector<8x4xbf16>
    %508 = vector.extract_strided_slice %4 {offsets = [4, 0], sizes = [4, 32], strides = [1, 1]} : vector<32x32xbf16> to vector<4x32xbf16>
    %cst_187 = arith.constant dense<0.000000e+00> : vector<8x32xf32>
    %509 = tpu.matmul %507, %508, %cst_187 {dimension_numbers = #tpu.dot_dimension_numbers<[1], [0], [0], [1], [0, 0, 1, 1], [], []>} : vector<8x4xbf16>, vector<4x32xbf16>, vector<8x32xf32> -> vector<8x32xf32>
    %510 = arith.addf %492, %509 : vector<8x32xf32>
    %511 = vector.extract_strided_slice %468 {offsets = [0, 8], sizes = [8, 4], strides = [1, 1]} : vector<8x32xbf16> to vector<8x4xbf16>
    %512 = vector.extract_strided_slice %470 {offsets = [0, 8], sizes = [16, 4], strides = [1, 1]} : vector<16x32xbf16> to vector<16x4xbf16>
    %cst_188 = arith.constant dense<0.000000e+00> : vector<8x16xf32>
    %513 = tpu.matmul %511, %512, %cst_188 {dimension_numbers = #tpu.dot_dimension_numbers<[1], [1], [0], [0], [0, 0, 1, 0], [], []>} : vector<8x4xbf16>, vector<16x4xbf16>, vector<8x16xf32> -> vector<8x16xf32>
    %cst_189 = arith.constant dense<0xFF800000> : vector<8xf32>
    %514 = vector.multi_reduction <maximumf>, %513, %cst_189 [1] : vector<8x16xf32> to vector<8xf32>
    %515 = vector.shape_cast %514 : vector<8xf32> to vector<8x1xf32>
    %516 = vector.broadcast %515 : vector<8x1xf32> to vector<8x16xf32>
    %517 = arith.subf %513, %516 : vector<8x16xf32>
    %518 = math.exp %517 : vector<8x16xf32>
    %cst_190 = arith.constant dense<0.000000e+00> : vector<8xf32>
    %519 = vector.multi_reduction <add>, %518, %cst_190 [1] : vector<8x16xf32> to vector<8xf32>
    %520 = vector.shape_cast %519 : vector<8xf32> to vector<8x1xf32>
    %521 = vector.broadcast %520 : vector<8x1xf32> to vector<8x16xf32>
    %522 = arith.divf %518, %521 : vector<8x16xf32>
    %523 = vector.extract_strided_slice %471 {offsets = [0, 8], sizes = [16, 4], strides = [1, 1]} : vector<16x32xf32> to vector<16x4xf32>
    %cst_191 = arith.constant dense<0.000000e+00> : vector<8x4xf32>
    %524 = tpu.matmul %522, %523, %cst_191 {dimension_numbers = #tpu.dot_dimension_numbers<[1], [0], [0], [1], [0, 0, 1, 1], [], []>} : vector<8x16xf32>, vector<16x4xf32>, vector<8x4xf32> -> vector<8x4xf32>
    %525 = arith.truncf %524 : vector<8x4xf32> to vector<8x4xbf16>
    %526 = vector.extract_strided_slice %4 {offsets = [8, 0], sizes = [4, 32], strides = [1, 1]} : vector<32x32xbf16> to vector<4x32xbf16>
    %cst_192 = arith.constant dense<0.000000e+00> : vector<8x32xf32>
    %527 = tpu.matmul %525, %526, %cst_192 {dimension_numbers = #tpu.dot_dimension_numbers<[1], [0], [0], [1], [0, 0, 1, 1], [], []>} : vector<8x4xbf16>, vector<4x32xbf16>, vector<8x32xf32> -> vector<8x32xf32>
    %528 = arith.addf %510, %527 : vector<8x32xf32>
    %529 = vector.extract_strided_slice %468 {offsets = [0, 12], sizes = [8, 4], strides = [1, 1]} : vector<8x32xbf16> to vector<8x4xbf16>
    %530 = vector.extract_strided_slice %470 {offsets = [0, 12], sizes = [16, 4], strides = [1, 1]} : vector<16x32xbf16> to vector<16x4xbf16>
    %cst_193 = arith.constant dense<0.000000e+00> : vector<8x16xf32>
    %531 = tpu.matmul %529, %530, %cst_193 {dimension_numbers = #tpu.dot_dimension_numbers<[1], [1], [0], [0], [0, 0, 1, 0], [], []>} : vector<8x4xbf16>, vector<16x4xbf16>, vector<8x16xf32> -> vector<8x16xf32>
    %cst_194 = arith.constant dense<0xFF800000> : vector<8xf32>
    %532 = vector.multi_reduction <maximumf>, %531, %cst_194 [1] : vector<8x16xf32> to vector<8xf32>
    %533 = vector.shape_cast %532 : vector<8xf32> to vector<8x1xf32>
    %534 = vector.broadcast %533 : vector<8x1xf32> to vector<8x16xf32>
    %535 = arith.subf %531, %534 : vector<8x16xf32>
    %536 = math.exp %535 : vector<8x16xf32>
    %cst_195 = arith.constant dense<0.000000e+00> : vector<8xf32>
    %537 = vector.multi_reduction <add>, %536, %cst_195 [1] : vector<8x16xf32> to vector<8xf32>
    %538 = vector.shape_cast %537 : vector<8xf32> to vector<8x1xf32>
    %539 = vector.broadcast %538 : vector<8x1xf32> to vector<8x16xf32>
    %540 = arith.divf %536, %539 : vector<8x16xf32>
    %541 = vector.extract_strided_slice %471 {offsets = [0, 12], sizes = [16, 4], strides = [1, 1]} : vector<16x32xf32> to vector<16x4xf32>
    %cst_196 = arith.constant dense<0.000000e+00> : vector<8x4xf32>
    %542 = tpu.matmul %540, %541, %cst_196 {dimension_numbers = #tpu.dot_dimension_numbers<[1], [0], [0], [1], [0, 0, 1, 1], [], []>} : vector<8x16xf32>, vector<16x4xf32>, vector<8x4xf32> -> vector<8x4xf32>
    %543 = arith.truncf %542 : vector<8x4xf32> to vector<8x4xbf16>
    %544 = vector.extract_strided_slice %4 {offsets = [12, 0], sizes = [4, 32], strides = [1, 1]} : vector<32x32xbf16> to vector<4x32xbf16>
    %cst_197 = arith.constant dense<0.000000e+00> : vector<8x32xf32>
    %545 = tpu.matmul %543, %544, %cst_197 {dimension_numbers = #tpu.dot_dimension_numbers<[1], [0], [0], [1], [0, 0, 1, 1], [], []>} : vector<8x4xbf16>, vector<4x32xbf16>, vector<8x32xf32> -> vector<8x32xf32>
    %546 = arith.addf %528, %545 : vector<8x32xf32>
    %547 = vector.extract_strided_slice %468 {offsets = [0, 16], sizes = [8, 4], strides = [1, 1]} : vector<8x32xbf16> to vector<8x4xbf16>
    %548 = vector.extract_strided_slice %470 {offsets = [0, 16], sizes = [16, 4], strides = [1, 1]} : vector<16x32xbf16> to vector<16x4xbf16>
    %cst_198 = arith.constant dense<0.000000e+00> : vector<8x16xf32>
    %549 = tpu.matmul %547, %548, %cst_198 {dimension_numbers = #tpu.dot_dimension_numbers<[1], [1], [0], [0], [0, 0, 1, 0], [], []>} : vector<8x4xbf16>, vector<16x4xbf16>, vector<8x16xf32> -> vector<8x16xf32>
    %cst_199 = arith.constant dense<0xFF800000> : vector<8xf32>
    %550 = vector.multi_reduction <maximumf>, %549, %cst_199 [1] : vector<8x16xf32> to vector<8xf32>
    %551 = vector.shape_cast %550 : vector<8xf32> to vector<8x1xf32>
    %552 = vector.broadcast %551 : vector<8x1xf32> to vector<8x16xf32>
    %553 = arith.subf %549, %552 : vector<8x16xf32>
    %554 = math.exp %553 : vector<8x16xf32>
    %cst_200 = arith.constant dense<0.000000e+00> : vector<8xf32>
    %555 = vector.multi_reduction <add>, %554, %cst_200 [1] : vector<8x16xf32> to vector<8xf32>
    %556 = vector.shape_cast %555 : vector<8xf32> to vector<8x1xf32>
    %557 = vector.broadcast %556 : vector<8x1xf32> to vector<8x16xf32>
    %558 = arith.divf %554, %557 : vector<8x16xf32>
    %559 = vector.extract_strided_slice %471 {offsets = [0, 16], sizes = [16, 4], strides = [1, 1]} : vector<16x32xf32> to vector<16x4xf32>
    %cst_201 = arith.constant dense<0.000000e+00> : vector<8x4xf32>
    %560 = tpu.matmul %558, %559, %cst_201 {dimension_numbers = #tpu.dot_dimension_numbers<[1], [0], [0], [1], [0, 0, 1, 1], [], []>} : vector<8x16xf32>, vector<16x4xf32>, vector<8x4xf32> -> vector<8x4xf32>
    %561 = arith.truncf %560 : vector<8x4xf32> to vector<8x4xbf16>
    %562 = vector.extract_strided_slice %4 {offsets = [16, 0], sizes = [4, 32], strides = [1, 1]} : vector<32x32xbf16> to vector<4x32xbf16>
    %cst_202 = arith.constant dense<0.000000e+00> : vector<8x32xf32>
    %563 = tpu.matmul %561, %562, %cst_202 {dimension_numbers = #tpu.dot_dimension_numbers<[1], [0], [0], [1], [0, 0, 1, 1], [], []>} : vector<8x4xbf16>, vector<4x32xbf16>, vector<8x32xf32> -> vector<8x32xf32>
    %564 = arith.addf %546, %563 : vector<8x32xf32>
    %565 = vector.extract_strided_slice %468 {offsets = [0, 20], sizes = [8, 4], strides = [1, 1]} : vector<8x32xbf16> to vector<8x4xbf16>
    %566 = vector.extract_strided_slice %470 {offsets = [0, 20], sizes = [16, 4], strides = [1, 1]} : vector<16x32xbf16> to vector<16x4xbf16>
    %cst_203 = arith.constant dense<0.000000e+00> : vector<8x16xf32>
    %567 = tpu.matmul %565, %566, %cst_203 {dimension_numbers = #tpu.dot_dimension_numbers<[1], [1], [0], [0], [0, 0, 1, 0], [], []>} : vector<8x4xbf16>, vector<16x4xbf16>, vector<8x16xf32> -> vector<8x16xf32>
    %cst_204 = arith.constant dense<0xFF800000> : vector<8xf32>
    %568 = vector.multi_reduction <maximumf>, %567, %cst_204 [1] : vector<8x16xf32> to vector<8xf32>
    %569 = vector.shape_cast %568 : vector<8xf32> to vector<8x1xf32>
    %570 = vector.broadcast %569 : vector<8x1xf32> to vector<8x16xf32>
    %571 = arith.subf %567, %570 : vector<8x16xf32>
    %572 = math.exp %571 : vector<8x16xf32>
    %cst_205 = arith.constant dense<0.000000e+00> : vector<8xf32>
    %573 = vector.multi_reduction <add>, %572, %cst_205 [1] : vector<8x16xf32> to vector<8xf32>
    %574 = vector.shape_cast %573 : vector<8xf32> to vector<8x1xf32>
    %575 = vector.broadcast %574 : vector<8x1xf32> to vector<8x16xf32>
    %576 = arith.divf %572, %575 : vector<8x16xf32>
    %577 = vector.extract_strided_slice %471 {offsets = [0, 20], sizes = [16, 4], strides = [1, 1]} : vector<16x32xf32> to vector<16x4xf32>
    %cst_206 = arith.constant dense<0.000000e+00> : vector<8x4xf32>
    %578 = tpu.matmul %576, %577, %cst_206 {dimension_numbers = #tpu.dot_dimension_numbers<[1], [0], [0], [1], [0, 0, 1, 1], [], []>} : vector<8x16xf32>, vector<16x4xf32>, vector<8x4xf32> -> vector<8x4xf32>
    %579 = arith.truncf %578 : vector<8x4xf32> to vector<8x4xbf16>
    %580 = vector.extract_strided_slice %4 {offsets = [20, 0], sizes = [4, 32], strides = [1, 1]} : vector<32x32xbf16> to vector<4x32xbf16>
    %cst_207 = arith.constant dense<0.000000e+00> : vector<8x32xf32>
    %581 = tpu.matmul %579, %580, %cst_207 {dimension_numbers = #tpu.dot_dimension_numbers<[1], [0], [0], [1], [0, 0, 1, 1], [], []>} : vector<8x4xbf16>, vector<4x32xbf16>, vector<8x32xf32> -> vector<8x32xf32>
    %582 = arith.addf %564, %581 : vector<8x32xf32>
    %583 = vector.extract_strided_slice %468 {offsets = [0, 24], sizes = [8, 4], strides = [1, 1]} : vector<8x32xbf16> to vector<8x4xbf16>
    %584 = vector.extract_strided_slice %470 {offsets = [0, 24], sizes = [16, 4], strides = [1, 1]} : vector<16x32xbf16> to vector<16x4xbf16>
    %cst_208 = arith.constant dense<0.000000e+00> : vector<8x16xf32>
    %585 = tpu.matmul %583, %584, %cst_208 {dimension_numbers = #tpu.dot_dimension_numbers<[1], [1], [0], [0], [0, 0, 1, 0], [], []>} : vector<8x4xbf16>, vector<16x4xbf16>, vector<8x16xf32> -> vector<8x16xf32>
    %cst_209 = arith.constant dense<0xFF800000> : vector<8xf32>
    %586 = vector.multi_reduction <maximumf>, %585, %cst_209 [1] : vector<8x16xf32> to vector<8xf32>
    %587 = vector.shape_cast %586 : vector<8xf32> to vector<8x1xf32>
    %588 = vector.broadcast %587 : vector<8x1xf32> to vector<8x16xf32>
    %589 = arith.subf %585, %588 : vector<8x16xf32>
    %590 = math.exp %589 : vector<8x16xf32>
    %cst_210 = arith.constant dense<0.000000e+00> : vector<8xf32>
    %591 = vector.multi_reduction <add>, %590, %cst_210 [1] : vector<8x16xf32> to vector<8xf32>
    %592 = vector.shape_cast %591 : vector<8xf32> to vector<8x1xf32>
    %593 = vector.broadcast %592 : vector<8x1xf32> to vector<8x16xf32>
    %594 = arith.divf %590, %593 : vector<8x16xf32>
    %595 = vector.extract_strided_slice %471 {offsets = [0, 24], sizes = [16, 4], strides = [1, 1]} : vector<16x32xf32> to vector<16x4xf32>
    %cst_211 = arith.constant dense<0.000000e+00> : vector<8x4xf32>
    %596 = tpu.matmul %594, %595, %cst_211 {dimension_numbers = #tpu.dot_dimension_numbers<[1], [0], [0], [1], [0, 0, 1, 1], [], []>} : vector<8x16xf32>, vector<16x4xf32>, vector<8x4xf32> -> vector<8x4xf32>
    %597 = arith.truncf %596 : vector<8x4xf32> to vector<8x4xbf16>
    %598 = vector.extract_strided_slice %4 {offsets = [24, 0], sizes = [4, 32], strides = [1, 1]} : vector<32x32xbf16> to vector<4x32xbf16>
    %cst_212 = arith.constant dense<0.000000e+00> : vector<8x32xf32>
    %599 = tpu.matmul %597, %598, %cst_212 {dimension_numbers = #tpu.dot_dimension_numbers<[1], [0], [0], [1], [0, 0, 1, 1], [], []>} : vector<8x4xbf16>, vector<4x32xbf16>, vector<8x32xf32> -> vector<8x32xf32>
    %600 = arith.addf %582, %599 : vector<8x32xf32>
    %601 = vector.extract_strided_slice %468 {offsets = [0, 28], sizes = [8, 4], strides = [1, 1]} : vector<8x32xbf16> to vector<8x4xbf16>
    %602 = vector.extract_strided_slice %470 {offsets = [0, 28], sizes = [16, 4], strides = [1, 1]} : vector<16x32xbf16> to vector<16x4xbf16>
    %cst_213 = arith.constant dense<0.000000e+00> : vector<8x16xf32>
    %603 = tpu.matmul %601, %602, %cst_213 {dimension_numbers = #tpu.dot_dimension_numbers<[1], [1], [0], [0], [0, 0, 1, 0], [], []>} : vector<8x4xbf16>, vector<16x4xbf16>, vector<8x16xf32> -> vector<8x16xf32>
    %cst_214 = arith.constant dense<0xFF800000> : vector<8xf32>
    %604 = vector.multi_reduction <maximumf>, %603, %cst_214 [1] : vector<8x16xf32> to vector<8xf32>
    %605 = vector.shape_cast %604 : vector<8xf32> to vector<8x1xf32>
    %606 = vector.broadcast %605 : vector<8x1xf32> to vector<8x16xf32>
    %607 = arith.subf %603, %606 : vector<8x16xf32>
    %608 = math.exp %607 : vector<8x16xf32>
    %cst_215 = arith.constant dense<0.000000e+00> : vector<8xf32>
    %609 = vector.multi_reduction <add>, %608, %cst_215 [1] : vector<8x16xf32> to vector<8xf32>
    %610 = vector.shape_cast %609 : vector<8xf32> to vector<8x1xf32>
    %611 = vector.broadcast %610 : vector<8x1xf32> to vector<8x16xf32>
    %612 = arith.divf %608, %611 : vector<8x16xf32>
    %613 = vector.extract_strided_slice %471 {offsets = [0, 28], sizes = [16, 4], strides = [1, 1]} : vector<16x32xf32> to vector<16x4xf32>
    %cst_216 = arith.constant dense<0.000000e+00> : vector<8x4xf32>
    %614 = tpu.matmul %612, %613, %cst_216 {dimension_numbers = #tpu.dot_dimension_numbers<[1], [0], [0], [1], [0, 0, 1, 1], [], []>} : vector<8x16xf32>, vector<16x4xf32>, vector<8x4xf32> -> vector<8x4xf32>
    %615 = arith.truncf %614 : vector<8x4xf32> to vector<8x4xbf16>
    %616 = vector.extract_strided_slice %4 {offsets = [28, 0], sizes = [4, 32], strides = [1, 1]} : vector<32x32xbf16> to vector<4x32xbf16>
    %cst_217 = arith.constant dense<0.000000e+00> : vector<8x32xf32>
    %617 = tpu.matmul %615, %616, %cst_217 {dimension_numbers = #tpu.dot_dimension_numbers<[1], [0], [0], [1], [0, 0, 1, 1], [], []>} : vector<8x4xbf16>, vector<4x32xbf16>, vector<8x32xf32> -> vector<8x32xf32>
    %618 = arith.addf %600, %617 : vector<8x32xf32>
    %619 = arith.addf %457, %618 : vector<8x32xf32>
    %cst_218 = arith.constant dense<0.000000e+00> : vector<8xf32>
    %620 = vector.multi_reduction <add>, %619, %cst_218 [1] : vector<8x32xf32> to vector<8xf32>
    %621 = vector.shape_cast %620 : vector<8xf32> to vector<8x1xf32>
    %cst_219 = arith.constant 3.200000e+01 : f32
    %622 = vector.broadcast %cst_219 : f32 to vector<8x1xf32>
    %623 = arith.divf %621, %622 : vector<8x1xf32>
    %624 = vector.broadcast %623 : vector<8x1xf32> to vector<8x32xf32>
    %625 = arith.subf %619, %624 : vector<8x32xf32>
    %626 = arith.mulf %625, %625 : vector<8x32xf32>
    %cst_220 = arith.constant dense<0.000000e+00> : vector<8xf32>
    %627 = vector.multi_reduction <add>, %626, %cst_220 [1] : vector<8x32xf32> to vector<8xf32>
    %628 = vector.shape_cast %627 : vector<8xf32> to vector<8x1xf32>
    %cst_221 = arith.constant 3.200000e+01 : f32
    %629 = vector.broadcast %cst_221 : f32 to vector<8x1xf32>
    %630 = arith.divf %628, %629 : vector<8x1xf32>
    %cst_222 = arith.constant 9.99999974E-6 : f32
    %631 = vector.broadcast %cst_222 : f32 to vector<8x1xf32>
    %632 = arith.addf %630, %631 : vector<8x1xf32>
    %633 = math.rsqrt %632 : vector<8x1xf32>
    %634 = vector.broadcast %633 : vector<8x1xf32> to vector<8x32xf32>
    %635 = arith.mulf %625, %634 : vector<8x32xf32>
    %636 = vector.broadcast %10 : vector<1x32xf32> to vector<8x32xf32>
    %637 = arith.mulf %635, %636 : vector<8x32xf32>
    %638 = vector.broadcast %11 : vector<1x32xf32> to vector<8x32xf32>
    %639 = arith.addf %637, %638 : vector<8x32xf32>
    %640 = arith.truncf %639 : vector<8x32xf32> to vector<8x32xbf16>
    %cst_223 = arith.constant dense<0.000000e+00> : vector<8x128xf32>
    %641 = tpu.matmul %640, %6, %cst_223 {dimension_numbers = #tpu.dot_dimension_numbers<[1], [0], [0], [1], [0, 0, 1, 1], [], []>} : vector<8x32xbf16>, vector<32x128xbf16>, vector<8x128xf32> -> vector<8x128xf32>
    %642 = vector.broadcast %7 : vector<1x128xf32> to vector<8x128xf32>
    %643 = arith.addf %641, %642 : vector<8x128xf32>
    %cst_224 = arith.constant 0.000000e+00 : f32
    %644 = vector.broadcast %cst_224 : f32 to vector<8x128xf32>
    %645 = arith.maximumf %643, %644 : vector<8x128xf32>
    %646 = arith.truncf %645 : vector<8x128xf32> to vector<8x128xbf16>
    %cst_225 = arith.constant dense<0.000000e+00> : vector<8x32xf32>
    %647 = tpu.matmul %646, %8, %cst_225 {dimension_numbers = #tpu.dot_dimension_numbers<[1], [0], [0], [1], [0, 0, 1, 1], [], []>} : vector<8x128xbf16>, vector<128x32xbf16>, vector<8x32xf32> -> vector<8x32xf32>
    %648 = vector.broadcast %9 : vector<1x32xf32> to vector<8x32xf32>
    %649 = arith.addf %647, %648 : vector<8x32xf32>
    %650 = arith.addf %639, %649 : vector<8x32xf32>
    %cst_226 = arith.constant dense<0.000000e+00> : vector<8xf32>
    %651 = vector.multi_reduction <add>, %650, %cst_226 [1] : vector<8x32xf32> to vector<8xf32>
    %652 = vector.shape_cast %651 : vector<8xf32> to vector<8x1xf32>
    %cst_227 = arith.constant 3.200000e+01 : f32
    %653 = vector.broadcast %cst_227 : f32 to vector<8x1xf32>
    %654 = arith.divf %652, %653 : vector<8x1xf32>
    %655 = vector.broadcast %654 : vector<8x1xf32> to vector<8x32xf32>
    %656 = arith.subf %650, %655 : vector<8x32xf32>
    %657 = arith.mulf %656, %656 : vector<8x32xf32>
    %cst_228 = arith.constant dense<0.000000e+00> : vector<8xf32>
    %658 = vector.multi_reduction <add>, %657, %cst_228 [1] : vector<8x32xf32> to vector<8xf32>
    %659 = vector.shape_cast %658 : vector<8xf32> to vector<8x1xf32>
    %cst_229 = arith.constant 3.200000e+01 : f32
    %660 = vector.broadcast %cst_229 : f32 to vector<8x1xf32>
    %661 = arith.divf %659, %660 : vector<8x1xf32>
    %cst_230 = arith.constant 9.99999974E-6 : f32
    %662 = vector.broadcast %cst_230 : f32 to vector<8x1xf32>
    %663 = arith.addf %661, %662 : vector<8x1xf32>
    %664 = math.rsqrt %663 : vector<8x1xf32>
    %665 = vector.broadcast %664 : vector<8x1xf32> to vector<8x32xf32>
    %666 = arith.mulf %656, %665 : vector<8x32xf32>
    %667 = vector.broadcast %10 : vector<1x32xf32> to vector<8x32xf32>
    %668 = arith.mulf %666, %667 : vector<8x32xf32>
    %669 = vector.broadcast %11 : vector<1x32xf32> to vector<8x32xf32>
    %670 = arith.addf %668, %669 : vector<8x32xf32>
    %671 = arith.truncf %459 : vector<16x32xf32> to vector<16x32xbf16>
    %cst_231 = arith.constant dense<0.000000e+00> : vector<16x32xf32>
    %672 = tpu.matmul %671, %12, %cst_231 {dimension_numbers = #tpu.dot_dimension_numbers<[1], [0], [0], [1], [0, 0, 1, 1], [], []>} : vector<16x32xbf16>, vector<32x32xbf16>, vector<16x32xf32> -> vector<16x32xf32>
    %673 = vector.broadcast %13 : vector<1x32xf32> to vector<16x32xf32>
    %674 = arith.addf %672, %673 : vector<16x32xf32>
    %675 = arith.truncf %670 : vector<8x32xf32> to vector<8x32xbf16>
    %cst_232 = arith.constant dense<0.000000e+00> : vector<8x64xf32>
    %676 = tpu.matmul %675, %14, %cst_232 {dimension_numbers = #tpu.dot_dimension_numbers<[1], [0], [0], [1], [0, 0, 1, 1], [], []>} : vector<8x32xbf16>, vector<32x64xbf16>, vector<8x64xf32> -> vector<8x64xf32>
    %677 = vector.broadcast %15 : vector<1x64xf32> to vector<8x64xf32>
    %678 = arith.addf %676, %677 : vector<8x64xf32>
    %679 = arith.truncf %674 : vector<16x32xf32> to vector<16x32xbf16>
    %680 = vector.extract_strided_slice %678 {offsets = [0, 0], sizes = [8, 32], strides = [1, 1]} : vector<8x64xf32> to vector<8x32xf32>
    %681 = arith.truncf %680 : vector<8x32xf32> to vector<8x32xbf16>
    %682 = vector.extract_strided_slice %678 {offsets = [0, 32], sizes = [8, 32], strides = [1, 1]} : vector<8x64xf32> to vector<8x32xf32>
    %cst_233 = arith.constant 0.000000e+00 : f32
    %683 = vector.broadcast %cst_233 : f32 to vector<16x32xf32>
    %684 = vector.broadcast %17 : vector<1x32xf32> to vector<16x32xf32>
    %685 = arith.addf %683, %684 : vector<16x32xf32>
    %686 = vector.extract_strided_slice %679 {offsets = [0, 0], sizes = [16, 4], strides = [1, 1]} : vector<16x32xbf16> to vector<16x4xbf16>
    %687 = vector.extract_strided_slice %681 {offsets = [0, 0], sizes = [8, 4], strides = [1, 1]} : vector<8x32xbf16> to vector<8x4xbf16>
    %cst_234 = arith.constant dense<0.000000e+00> : vector<16x8xf32>
    %688 = tpu.matmul %686, %687, %cst_234 {dimension_numbers = #tpu.dot_dimension_numbers<[1], [1], [0], [0], [0, 0, 1, 0], [], []>} : vector<16x4xbf16>, vector<8x4xbf16>, vector<16x8xf32> -> vector<16x8xf32>
    %cst_235 = arith.constant dense<0xFF800000> : vector<16xf32>
    %689 = vector.multi_reduction <maximumf>, %688, %cst_235 [1] : vector<16x8xf32> to vector<16xf32>
    %690 = vector.shape_cast %689 : vector<16xf32> to vector<16x1xf32>
    %691 = vector.broadcast %690 : vector<16x1xf32> to vector<16x8xf32>
    %692 = arith.subf %688, %691 : vector<16x8xf32>
    %693 = math.exp %692 : vector<16x8xf32>
    %cst_236 = arith.constant dense<0.000000e+00> : vector<16xf32>
    %694 = vector.multi_reduction <add>, %693, %cst_236 [1] : vector<16x8xf32> to vector<16xf32>
    %695 = vector.shape_cast %694 : vector<16xf32> to vector<16x1xf32>
    %696 = vector.broadcast %695 : vector<16x1xf32> to vector<16x8xf32>
    %697 = arith.divf %693, %696 : vector<16x8xf32>
    %698 = vector.extract_strided_slice %682 {offsets = [0, 0], sizes = [8, 4], strides = [1, 1]} : vector<8x32xf32> to vector<8x4xf32>
    %cst_237 = arith.constant dense<0.000000e+00> : vector<16x4xf32>
    %699 = tpu.matmul %697, %698, %cst_237 {dimension_numbers = #tpu.dot_dimension_numbers<[1], [0], [0], [1], [0, 0, 1, 1], [], []>} : vector<16x8xf32>, vector<8x4xf32>, vector<16x4xf32> -> vector<16x4xf32>
    %700 = arith.truncf %699 : vector<16x4xf32> to vector<16x4xbf16>
    %701 = vector.extract_strided_slice %16 {offsets = [0, 0], sizes = [4, 32], strides = [1, 1]} : vector<32x32xbf16> to vector<4x32xbf16>
    %cst_238 = arith.constant dense<0.000000e+00> : vector<16x32xf32>
    %702 = tpu.matmul %700, %701, %cst_238 {dimension_numbers = #tpu.dot_dimension_numbers<[1], [0], [0], [1], [0, 0, 1, 1], [], []>} : vector<16x4xbf16>, vector<4x32xbf16>, vector<16x32xf32> -> vector<16x32xf32>
    %703 = arith.addf %685, %702 : vector<16x32xf32>
    %704 = vector.extract_strided_slice %679 {offsets = [0, 4], sizes = [16, 4], strides = [1, 1]} : vector<16x32xbf16> to vector<16x4xbf16>
    %705 = vector.extract_strided_slice %681 {offsets = [0, 4], sizes = [8, 4], strides = [1, 1]} : vector<8x32xbf16> to vector<8x4xbf16>
    %cst_239 = arith.constant dense<0.000000e+00> : vector<16x8xf32>
    %706 = tpu.matmul %704, %705, %cst_239 {dimension_numbers = #tpu.dot_dimension_numbers<[1], [1], [0], [0], [0, 0, 1, 0], [], []>} : vector<16x4xbf16>, vector<8x4xbf16>, vector<16x8xf32> -> vector<16x8xf32>
    %cst_240 = arith.constant dense<0xFF800000> : vector<16xf32>
    %707 = vector.multi_reduction <maximumf>, %706, %cst_240 [1] : vector<16x8xf32> to vector<16xf32>
    %708 = vector.shape_cast %707 : vector<16xf32> to vector<16x1xf32>
    %709 = vector.broadcast %708 : vector<16x1xf32> to vector<16x8xf32>
    %710 = arith.subf %706, %709 : vector<16x8xf32>
    %711 = math.exp %710 : vector<16x8xf32>
    %cst_241 = arith.constant dense<0.000000e+00> : vector<16xf32>
    %712 = vector.multi_reduction <add>, %711, %cst_241 [1] : vector<16x8xf32> to vector<16xf32>
    %713 = vector.shape_cast %712 : vector<16xf32> to vector<16x1xf32>
    %714 = vector.broadcast %713 : vector<16x1xf32> to vector<16x8xf32>
    %715 = arith.divf %711, %714 : vector<16x8xf32>
    %716 = vector.extract_strided_slice %682 {offsets = [0, 4], sizes = [8, 4], strides = [1, 1]} : vector<8x32xf32> to vector<8x4xf32>
    %cst_242 = arith.constant dense<0.000000e+00> : vector<16x4xf32>
    %717 = tpu.matmul %715, %716, %cst_242 {dimension_numbers = #tpu.dot_dimension_numbers<[1], [0], [0], [1], [0, 0, 1, 1], [], []>} : vector<16x8xf32>, vector<8x4xf32>, vector<16x4xf32> -> vector<16x4xf32>
    %718 = arith.truncf %717 : vector<16x4xf32> to vector<16x4xbf16>
    %719 = vector.extract_strided_slice %16 {offsets = [4, 0], sizes = [4, 32], strides = [1, 1]} : vector<32x32xbf16> to vector<4x32xbf16>
    %cst_243 = arith.constant dense<0.000000e+00> : vector<16x32xf32>
    %720 = tpu.matmul %718, %719, %cst_243 {dimension_numbers = #tpu.dot_dimension_numbers<[1], [0], [0], [1], [0, 0, 1, 1], [], []>} : vector<16x4xbf16>, vector<4x32xbf16>, vector<16x32xf32> -> vector<16x32xf32>
    %721 = arith.addf %703, %720 : vector<16x32xf32>
    %722 = vector.extract_strided_slice %679 {offsets = [0, 8], sizes = [16, 4], strides = [1, 1]} : vector<16x32xbf16> to vector<16x4xbf16>
    %723 = vector.extract_strided_slice %681 {offsets = [0, 8], sizes = [8, 4], strides = [1, 1]} : vector<8x32xbf16> to vector<8x4xbf16>
    %cst_244 = arith.constant dense<0.000000e+00> : vector<16x8xf32>
    %724 = tpu.matmul %722, %723, %cst_244 {dimension_numbers = #tpu.dot_dimension_numbers<[1], [1], [0], [0], [0, 0, 1, 0], [], []>} : vector<16x4xbf16>, vector<8x4xbf16>, vector<16x8xf32> -> vector<16x8xf32>
    %cst_245 = arith.constant dense<0xFF800000> : vector<16xf32>
    %725 = vector.multi_reduction <maximumf>, %724, %cst_245 [1] : vector<16x8xf32> to vector<16xf32>
    %726 = vector.shape_cast %725 : vector<16xf32> to vector<16x1xf32>
    %727 = vector.broadcast %726 : vector<16x1xf32> to vector<16x8xf32>
    %728 = arith.subf %724, %727 : vector<16x8xf32>
    %729 = math.exp %728 : vector<16x8xf32>
    %cst_246 = arith.constant dense<0.000000e+00> : vector<16xf32>
    %730 = vector.multi_reduction <add>, %729, %cst_246 [1] : vector<16x8xf32> to vector<16xf32>
    %731 = vector.shape_cast %730 : vector<16xf32> to vector<16x1xf32>
    %732 = vector.broadcast %731 : vector<16x1xf32> to vector<16x8xf32>
    %733 = arith.divf %729, %732 : vector<16x8xf32>
    %734 = vector.extract_strided_slice %682 {offsets = [0, 8], sizes = [8, 4], strides = [1, 1]} : vector<8x32xf32> to vector<8x4xf32>
    %cst_247 = arith.constant dense<0.000000e+00> : vector<16x4xf32>
    %735 = tpu.matmul %733, %734, %cst_247 {dimension_numbers = #tpu.dot_dimension_numbers<[1], [0], [0], [1], [0, 0, 1, 1], [], []>} : vector<16x8xf32>, vector<8x4xf32>, vector<16x4xf32> -> vector<16x4xf32>
    %736 = arith.truncf %735 : vector<16x4xf32> to vector<16x4xbf16>
    %737 = vector.extract_strided_slice %16 {offsets = [8, 0], sizes = [4, 32], strides = [1, 1]} : vector<32x32xbf16> to vector<4x32xbf16>
    %cst_248 = arith.constant dense<0.000000e+00> : vector<16x32xf32>
    %738 = tpu.matmul %736, %737, %cst_248 {dimension_numbers = #tpu.dot_dimension_numbers<[1], [0], [0], [1], [0, 0, 1, 1], [], []>} : vector<16x4xbf16>, vector<4x32xbf16>, vector<16x32xf32> -> vector<16x32xf32>
    %739 = arith.addf %721, %738 : vector<16x32xf32>
    %740 = vector.extract_strided_slice %679 {offsets = [0, 12], sizes = [16, 4], strides = [1, 1]} : vector<16x32xbf16> to vector<16x4xbf16>
    %741 = vector.extract_strided_slice %681 {offsets = [0, 12], sizes = [8, 4], strides = [1, 1]} : vector<8x32xbf16> to vector<8x4xbf16>
    %cst_249 = arith.constant dense<0.000000e+00> : vector<16x8xf32>
    %742 = tpu.matmul %740, %741, %cst_249 {dimension_numbers = #tpu.dot_dimension_numbers<[1], [1], [0], [0], [0, 0, 1, 0], [], []>} : vector<16x4xbf16>, vector<8x4xbf16>, vector<16x8xf32> -> vector<16x8xf32>
    %cst_250 = arith.constant dense<0xFF800000> : vector<16xf32>
    %743 = vector.multi_reduction <maximumf>, %742, %cst_250 [1] : vector<16x8xf32> to vector<16xf32>
    %744 = vector.shape_cast %743 : vector<16xf32> to vector<16x1xf32>
    %745 = vector.broadcast %744 : vector<16x1xf32> to vector<16x8xf32>
    %746 = arith.subf %742, %745 : vector<16x8xf32>
    %747 = math.exp %746 : vector<16x8xf32>
    %cst_251 = arith.constant dense<0.000000e+00> : vector<16xf32>
    %748 = vector.multi_reduction <add>, %747, %cst_251 [1] : vector<16x8xf32> to vector<16xf32>
    %749 = vector.shape_cast %748 : vector<16xf32> to vector<16x1xf32>
    %750 = vector.broadcast %749 : vector<16x1xf32> to vector<16x8xf32>
    %751 = arith.divf %747, %750 : vector<16x8xf32>
    %752 = vector.extract_strided_slice %682 {offsets = [0, 12], sizes = [8, 4], strides = [1, 1]} : vector<8x32xf32> to vector<8x4xf32>
    %cst_252 = arith.constant dense<0.000000e+00> : vector<16x4xf32>
    %753 = tpu.matmul %751, %752, %cst_252 {dimension_numbers = #tpu.dot_dimension_numbers<[1], [0], [0], [1], [0, 0, 1, 1], [], []>} : vector<16x8xf32>, vector<8x4xf32>, vector<16x4xf32> -> vector<16x4xf32>
    %754 = arith.truncf %753 : vector<16x4xf32> to vector<16x4xbf16>
    %755 = vector.extract_strided_slice %16 {offsets = [12, 0], sizes = [4, 32], strides = [1, 1]} : vector<32x32xbf16> to vector<4x32xbf16>
    %cst_253 = arith.constant dense<0.000000e+00> : vector<16x32xf32>
    %756 = tpu.matmul %754, %755, %cst_253 {dimension_numbers = #tpu.dot_dimension_numbers<[1], [0], [0], [1], [0, 0, 1, 1], [], []>} : vector<16x4xbf16>, vector<4x32xbf16>, vector<16x32xf32> -> vector<16x32xf32>
    %757 = arith.addf %739, %756 : vector<16x32xf32>
    %758 = vector.extract_strided_slice %679 {offsets = [0, 16], sizes = [16, 4], strides = [1, 1]} : vector<16x32xbf16> to vector<16x4xbf16>
    %759 = vector.extract_strided_slice %681 {offsets = [0, 16], sizes = [8, 4], strides = [1, 1]} : vector<8x32xbf16> to vector<8x4xbf16>
    %cst_254 = arith.constant dense<0.000000e+00> : vector<16x8xf32>
    %760 = tpu.matmul %758, %759, %cst_254 {dimension_numbers = #tpu.dot_dimension_numbers<[1], [1], [0], [0], [0, 0, 1, 0], [], []>} : vector<16x4xbf16>, vector<8x4xbf16>, vector<16x8xf32> -> vector<16x8xf32>
    %cst_255 = arith.constant dense<0xFF800000> : vector<16xf32>
    %761 = vector.multi_reduction <maximumf>, %760, %cst_255 [1] : vector<16x8xf32> to vector<16xf32>
    %762 = vector.shape_cast %761 : vector<16xf32> to vector<16x1xf32>
    %763 = vector.broadcast %762 : vector<16x1xf32> to vector<16x8xf32>
    %764 = arith.subf %760, %763 : vector<16x8xf32>
    %765 = math.exp %764 : vector<16x8xf32>
    %cst_256 = arith.constant dense<0.000000e+00> : vector<16xf32>
    %766 = vector.multi_reduction <add>, %765, %cst_256 [1] : vector<16x8xf32> to vector<16xf32>
    %767 = vector.shape_cast %766 : vector<16xf32> to vector<16x1xf32>
    %768 = vector.broadcast %767 : vector<16x1xf32> to vector<16x8xf32>
    %769 = arith.divf %765, %768 : vector<16x8xf32>
    %770 = vector.extract_strided_slice %682 {offsets = [0, 16], sizes = [8, 4], strides = [1, 1]} : vector<8x32xf32> to vector<8x4xf32>
    %cst_257 = arith.constant dense<0.000000e+00> : vector<16x4xf32>
    %771 = tpu.matmul %769, %770, %cst_257 {dimension_numbers = #tpu.dot_dimension_numbers<[1], [0], [0], [1], [0, 0, 1, 1], [], []>} : vector<16x8xf32>, vector<8x4xf32>, vector<16x4xf32> -> vector<16x4xf32>
    %772 = arith.truncf %771 : vector<16x4xf32> to vector<16x4xbf16>
    %773 = vector.extract_strided_slice %16 {offsets = [16, 0], sizes = [4, 32], strides = [1, 1]} : vector<32x32xbf16> to vector<4x32xbf16>
    %cst_258 = arith.constant dense<0.000000e+00> : vector<16x32xf32>
    %774 = tpu.matmul %772, %773, %cst_258 {dimension_numbers = #tpu.dot_dimension_numbers<[1], [0], [0], [1], [0, 0, 1, 1], [], []>} : vector<16x4xbf16>, vector<4x32xbf16>, vector<16x32xf32> -> vector<16x32xf32>
    %775 = arith.addf %757, %774 : vector<16x32xf32>
    %776 = vector.extract_strided_slice %679 {offsets = [0, 20], sizes = [16, 4], strides = [1, 1]} : vector<16x32xbf16> to vector<16x4xbf16>
    %777 = vector.extract_strided_slice %681 {offsets = [0, 20], sizes = [8, 4], strides = [1, 1]} : vector<8x32xbf16> to vector<8x4xbf16>
    %cst_259 = arith.constant dense<0.000000e+00> : vector<16x8xf32>
    %778 = tpu.matmul %776, %777, %cst_259 {dimension_numbers = #tpu.dot_dimension_numbers<[1], [1], [0], [0], [0, 0, 1, 0], [], []>} : vector<16x4xbf16>, vector<8x4xbf16>, vector<16x8xf32> -> vector<16x8xf32>
    %cst_260 = arith.constant dense<0xFF800000> : vector<16xf32>
    %779 = vector.multi_reduction <maximumf>, %778, %cst_260 [1] : vector<16x8xf32> to vector<16xf32>
    %780 = vector.shape_cast %779 : vector<16xf32> to vector<16x1xf32>
    %781 = vector.broadcast %780 : vector<16x1xf32> to vector<16x8xf32>
    %782 = arith.subf %778, %781 : vector<16x8xf32>
    %783 = math.exp %782 : vector<16x8xf32>
    %cst_261 = arith.constant dense<0.000000e+00> : vector<16xf32>
    %784 = vector.multi_reduction <add>, %783, %cst_261 [1] : vector<16x8xf32> to vector<16xf32>
    %785 = vector.shape_cast %784 : vector<16xf32> to vector<16x1xf32>
    %786 = vector.broadcast %785 : vector<16x1xf32> to vector<16x8xf32>
    %787 = arith.divf %783, %786 : vector<16x8xf32>
    %788 = vector.extract_strided_slice %682 {offsets = [0, 20], sizes = [8, 4], strides = [1, 1]} : vector<8x32xf32> to vector<8x4xf32>
    %cst_262 = arith.constant dense<0.000000e+00> : vector<16x4xf32>
    %789 = tpu.matmul %787, %788, %cst_262 {dimension_numbers = #tpu.dot_dimension_numbers<[1], [0], [0], [1], [0, 0, 1, 1], [], []>} : vector<16x8xf32>, vector<8x4xf32>, vector<16x4xf32> -> vector<16x4xf32>
    %790 = arith.truncf %789 : vector<16x4xf32> to vector<16x4xbf16>
    %791 = vector.extract_strided_slice %16 {offsets = [20, 0], sizes = [4, 32], strides = [1, 1]} : vector<32x32xbf16> to vector<4x32xbf16>
    %cst_263 = arith.constant dense<0.000000e+00> : vector<16x32xf32>
    %792 = tpu.matmul %790, %791, %cst_263 {dimension_numbers = #tpu.dot_dimension_numbers<[1], [0], [0], [1], [0, 0, 1, 1], [], []>} : vector<16x4xbf16>, vector<4x32xbf16>, vector<16x32xf32> -> vector<16x32xf32>
    %793 = arith.addf %775, %792 : vector<16x32xf32>
    %794 = vector.extract_strided_slice %679 {offsets = [0, 24], sizes = [16, 4], strides = [1, 1]} : vector<16x32xbf16> to vector<16x4xbf16>
    %795 = vector.extract_strided_slice %681 {offsets = [0, 24], sizes = [8, 4], strides = [1, 1]} : vector<8x32xbf16> to vector<8x4xbf16>
    %cst_264 = arith.constant dense<0.000000e+00> : vector<16x8xf32>
    %796 = tpu.matmul %794, %795, %cst_264 {dimension_numbers = #tpu.dot_dimension_numbers<[1], [1], [0], [0], [0, 0, 1, 0], [], []>} : vector<16x4xbf16>, vector<8x4xbf16>, vector<16x8xf32> -> vector<16x8xf32>
    %cst_265 = arith.constant dense<0xFF800000> : vector<16xf32>
    %797 = vector.multi_reduction <maximumf>, %796, %cst_265 [1] : vector<16x8xf32> to vector<16xf32>
    %798 = vector.shape_cast %797 : vector<16xf32> to vector<16x1xf32>
    %799 = vector.broadcast %798 : vector<16x1xf32> to vector<16x8xf32>
    %800 = arith.subf %796, %799 : vector<16x8xf32>
    %801 = math.exp %800 : vector<16x8xf32>
    %cst_266 = arith.constant dense<0.000000e+00> : vector<16xf32>
    %802 = vector.multi_reduction <add>, %801, %cst_266 [1] : vector<16x8xf32> to vector<16xf32>
    %803 = vector.shape_cast %802 : vector<16xf32> to vector<16x1xf32>
    %804 = vector.broadcast %803 : vector<16x1xf32> to vector<16x8xf32>
    %805 = arith.divf %801, %804 : vector<16x8xf32>
    %806 = vector.extract_strided_slice %682 {offsets = [0, 24], sizes = [8, 4], strides = [1, 1]} : vector<8x32xf32> to vector<8x4xf32>
    %cst_267 = arith.constant dense<0.000000e+00> : vector<16x4xf32>
    %807 = tpu.matmul %805, %806, %cst_267 {dimension_numbers = #tpu.dot_dimension_numbers<[1], [0], [0], [1], [0, 0, 1, 1], [], []>} : vector<16x8xf32>, vector<8x4xf32>, vector<16x4xf32> -> vector<16x4xf32>
    %808 = arith.truncf %807 : vector<16x4xf32> to vector<16x4xbf16>
    %809 = vector.extract_strided_slice %16 {offsets = [24, 0], sizes = [4, 32], strides = [1, 1]} : vector<32x32xbf16> to vector<4x32xbf16>
    %cst_268 = arith.constant dense<0.000000e+00> : vector<16x32xf32>
    %810 = tpu.matmul %808, %809, %cst_268 {dimension_numbers = #tpu.dot_dimension_numbers<[1], [0], [0], [1], [0, 0, 1, 1], [], []>} : vector<16x4xbf16>, vector<4x32xbf16>, vector<16x32xf32> -> vector<16x32xf32>
    %811 = arith.addf %793, %810 : vector<16x32xf32>
    %812 = vector.extract_strided_slice %679 {offsets = [0, 28], sizes = [16, 4], strides = [1, 1]} : vector<16x32xbf16> to vector<16x4xbf16>
    %813 = vector.extract_strided_slice %681 {offsets = [0, 28], sizes = [8, 4], strides = [1, 1]} : vector<8x32xbf16> to vector<8x4xbf16>
    %cst_269 = arith.constant dense<0.000000e+00> : vector<16x8xf32>
    %814 = tpu.matmul %812, %813, %cst_269 {dimension_numbers = #tpu.dot_dimension_numbers<[1], [1], [0], [0], [0, 0, 1, 0], [], []>} : vector<16x4xbf16>, vector<8x4xbf16>, vector<16x8xf32> -> vector<16x8xf32>
    %cst_270 = arith.constant dense<0xFF800000> : vector<16xf32>
    %815 = vector.multi_reduction <maximumf>, %814, %cst_270 [1] : vector<16x8xf32> to vector<16xf32>
    %816 = vector.shape_cast %815 : vector<16xf32> to vector<16x1xf32>
    %817 = vector.broadcast %816 : vector<16x1xf32> to vector<16x8xf32>
    %818 = arith.subf %814, %817 : vector<16x8xf32>
    %819 = math.exp %818 : vector<16x8xf32>
    %cst_271 = arith.constant dense<0.000000e+00> : vector<16xf32>
    %820 = vector.multi_reduction <add>, %819, %cst_271 [1] : vector<16x8xf32> to vector<16xf32>
    %821 = vector.shape_cast %820 : vector<16xf32> to vector<16x1xf32>
    %822 = vector.broadcast %821 : vector<16x1xf32> to vector<16x8xf32>
    %823 = arith.divf %819, %822 : vector<16x8xf32>
    %824 = vector.extract_strided_slice %682 {offsets = [0, 28], sizes = [8, 4], strides = [1, 1]} : vector<8x32xf32> to vector<8x4xf32>
    %cst_272 = arith.constant dense<0.000000e+00> : vector<16x4xf32>
    %825 = tpu.matmul %823, %824, %cst_272 {dimension_numbers = #tpu.dot_dimension_numbers<[1], [0], [0], [1], [0, 0, 1, 1], [], []>} : vector<16x8xf32>, vector<8x4xf32>, vector<16x4xf32> -> vector<16x4xf32>
    %826 = arith.truncf %825 : vector<16x4xf32> to vector<16x4xbf16>
    %827 = vector.extract_strided_slice %16 {offsets = [28, 0], sizes = [4, 32], strides = [1, 1]} : vector<32x32xbf16> to vector<4x32xbf16>
    %cst_273 = arith.constant dense<0.000000e+00> : vector<16x32xf32>
    %828 = tpu.matmul %826, %827, %cst_273 {dimension_numbers = #tpu.dot_dimension_numbers<[1], [0], [0], [1], [0, 0, 1, 1], [], []>} : vector<16x4xbf16>, vector<4x32xbf16>, vector<16x32xf32> -> vector<16x32xf32>
    %829 = arith.addf %811, %828 : vector<16x32xf32>
    %830 = arith.addf %459, %829 : vector<16x32xf32>
    %cst_274 = arith.constant dense<0.000000e+00> : vector<16xf32>
    %831 = vector.multi_reduction <add>, %830, %cst_274 [1] : vector<16x32xf32> to vector<16xf32>
    %832 = vector.shape_cast %831 : vector<16xf32> to vector<16x1xf32>
    %cst_275 = arith.constant 3.200000e+01 : f32
    %833 = vector.broadcast %cst_275 : f32 to vector<16x1xf32>
    %834 = arith.divf %832, %833 : vector<16x1xf32>
    %835 = vector.broadcast %834 : vector<16x1xf32> to vector<16x32xf32>
    %836 = arith.subf %830, %835 : vector<16x32xf32>
    %837 = arith.mulf %836, %836 : vector<16x32xf32>
    %cst_276 = arith.constant dense<0.000000e+00> : vector<16xf32>
    %838 = vector.multi_reduction <add>, %837, %cst_276 [1] : vector<16x32xf32> to vector<16xf32>
    %839 = vector.shape_cast %838 : vector<16xf32> to vector<16x1xf32>
    %cst_277 = arith.constant 3.200000e+01 : f32
    %840 = vector.broadcast %cst_277 : f32 to vector<16x1xf32>
    %841 = arith.divf %839, %840 : vector<16x1xf32>
    %cst_278 = arith.constant 9.99999974E-6 : f32
    %842 = vector.broadcast %cst_278 : f32 to vector<16x1xf32>
    %843 = arith.addf %841, %842 : vector<16x1xf32>
    %844 = math.rsqrt %843 : vector<16x1xf32>
    %845 = vector.broadcast %844 : vector<16x1xf32> to vector<16x32xf32>
    %846 = arith.mulf %836, %845 : vector<16x32xf32>
    %847 = vector.broadcast %22 : vector<1x32xf32> to vector<16x32xf32>
    %848 = arith.mulf %846, %847 : vector<16x32xf32>
    %849 = vector.broadcast %23 : vector<1x32xf32> to vector<16x32xf32>
    %850 = arith.addf %848, %849 : vector<16x32xf32>
    %851 = arith.truncf %850 : vector<16x32xf32> to vector<16x32xbf16>
    %cst_279 = arith.constant dense<0.000000e+00> : vector<16x128xf32>
    %852 = tpu.matmul %851, %18, %cst_279 {dimension_numbers = #tpu.dot_dimension_numbers<[1], [0], [0], [1], [0, 0, 1, 1], [], []>} : vector<16x32xbf16>, vector<32x128xbf16>, vector<16x128xf32> -> vector<16x128xf32>
    %853 = vector.broadcast %19 : vector<1x128xf32> to vector<16x128xf32>
    %854 = arith.addf %852, %853 : vector<16x128xf32>
    %cst_280 = arith.constant 0.000000e+00 : f32
    %855 = vector.broadcast %cst_280 : f32 to vector<16x128xf32>
    %856 = arith.maximumf %854, %855 : vector<16x128xf32>
    %857 = arith.truncf %856 : vector<16x128xf32> to vector<16x128xbf16>
    %cst_281 = arith.constant dense<0.000000e+00> : vector<16x32xf32>
    %858 = tpu.matmul %857, %20, %cst_281 {dimension_numbers = #tpu.dot_dimension_numbers<[1], [0], [0], [1], [0, 0, 1, 1], [], []>} : vector<16x128xbf16>, vector<128x32xbf16>, vector<16x32xf32> -> vector<16x32xf32>
    %859 = vector.broadcast %21 : vector<1x32xf32> to vector<16x32xf32>
    %860 = arith.addf %858, %859 : vector<16x32xf32>
    %861 = arith.addf %850, %860 : vector<16x32xf32>
    %cst_282 = arith.constant dense<0.000000e+00> : vector<16xf32>
    %862 = vector.multi_reduction <add>, %861, %cst_282 [1] : vector<16x32xf32> to vector<16xf32>
    %863 = vector.shape_cast %862 : vector<16xf32> to vector<16x1xf32>
    %cst_283 = arith.constant 3.200000e+01 : f32
    %864 = vector.broadcast %cst_283 : f32 to vector<16x1xf32>
    %865 = arith.divf %863, %864 : vector<16x1xf32>
    %866 = vector.broadcast %865 : vector<16x1xf32> to vector<16x32xf32>
    %867 = arith.subf %861, %866 : vector<16x32xf32>
    %868 = arith.mulf %867, %867 : vector<16x32xf32>
    %cst_284 = arith.constant dense<0.000000e+00> : vector<16xf32>
    %869 = vector.multi_reduction <add>, %868, %cst_284 [1] : vector<16x32xf32> to vector<16xf32>
    %870 = vector.shape_cast %869 : vector<16xf32> to vector<16x1xf32>
    %cst_285 = arith.constant 3.200000e+01 : f32
    %871 = vector.broadcast %cst_285 : f32 to vector<16x1xf32>
    %872 = arith.divf %870, %871 : vector<16x1xf32>
    %cst_286 = arith.constant 9.99999974E-6 : f32
    %873 = vector.broadcast %cst_286 : f32 to vector<16x1xf32>
    %874 = arith.addf %872, %873 : vector<16x1xf32>
    %875 = math.rsqrt %874 : vector<16x1xf32>
    %876 = vector.broadcast %875 : vector<16x1xf32> to vector<16x32xf32>
    %877 = arith.mulf %867, %876 : vector<16x32xf32>
    %878 = vector.broadcast %22 : vector<1x32xf32> to vector<16x32xf32>
    %879 = arith.mulf %877, %878 : vector<16x32xf32>
    %880 = vector.broadcast %23 : vector<1x32xf32> to vector<16x32xf32>
    %881 = arith.addf %879, %880 : vector<16x32xf32>
    %c0_287 = arith.constant 0 : index
    %c1_288 = arith.constant 1 : index
    %c0_289 = arith.constant 0 : index
    %882 = vector.load %arg26[%c0_287, %c1_288, %c0_289] : memref<8x2x32xf32, #tpu.memory_space<vmem>>, vector<8x1x32xf32>
    %883 = vector.shape_cast %882 : vector<8x1x32xf32> to vector<8x32xf32>
    %884 = vector.shape_cast %670 : vector<8x32xf32> to vector<8x1x32xf32>
    tpu.vector_store %arg26[%c0_287, %c1_288, %c0_289], %884 {strides = array<i32>} : memref<8x2x32xf32, #tpu.memory_space<vmem>>, vector<8x1x32xf32>,
    %c0_290 = arith.constant 0 : index
    %c1_291 = arith.constant 1 : index
    %c0_292 = arith.constant 0 : index
    %885 = vector.load %arg27[%c0_290, %c1_291, %c0_292] : memref<16x2x32xf32, #tpu.memory_space<vmem>>, vector<16x1x32xf32>
    %886 = vector.shape_cast %885 : vector<16x1x32xf32> to vector<16x32xf32>
    %887 = vector.shape_cast %881 : vector<16x32xf32> to vector<16x1x32xf32>
    tpu.vector_store %arg27[%c0_290, %c1_291, %c0_292], %887 {strides = array<i32>} : memref<16x2x32xf32, #tpu.memory_space<vmem>>, vector<16x1x32xf32>,
    return
  }
}

</mosaic_0001>

<llo_original>
// kernel: cross_attention_layer_forward.1
$region0: #{cross_attention_layer_forward.1}
  #allocation0 [shape = 'u32[]', space=smem, size = 0x4, offset = 0x4, fixed_abs, tag = 'smem constant byte address 0x4 - core index']
  #allocation1 [shape = 'u32[144,128]{1,0:T(1,128)}', space=vmem, size = 0x12000, scoped, tag = 'internal scratch']
  %s0 = inlined_call_operand.vmem [shape: f32[8,2,32], index: 0, kind: input, shape index: {}]
  %s1 = inlined_call_operand.vmem [shape: f32[16,2,32], index: 1, kind: input, shape index: {}]
  %s2 = inlined_call_operand.vmem [shape: bf16[32,32], index: 2, kind: input, shape index: {}]
  %s3 = inlined_call_operand.vmem [shape: f32[1,32], index: 3, kind: input, shape index: {}]
  %s4 = inlined_call_operand.vmem [shape: bf16[32,64], index: 4, kind: input, shape index: {}]
  %s5 = inlined_call_operand.vmem [shape: f32[1,64], index: 5, kind: input, shape index: {}]
  %s6 = inlined_call_operand.vmem [shape: bf16[32,32], index: 6, kind: input, shape index: {}]
  %s7 = inlined_call_operand.vmem [shape: f32[1,32], index: 7, kind: input, shape index: {}]
  %s8 = inlined_call_operand.vmem [shape: bf16[32,128], index: 8, kind: input, shape index: {}]
  %s9 = inlined_call_operand.hbm [shape: f32[1,128], index: 9, kind: input, shape index: {}]
  %s10 = inlined_call_operand.vmem [shape: bf16[128,32], index: 10, kind: input, shape index: {}]
  %s11 = inlined_call_operand.hbm [shape: f32[1,32], index: 11, kind: input, shape index: {}]
  %s12 = inlined_call_operand.vmem [shape: f32[1,32], index: 12, kind: input, shape index: {}]
  %s13 = inlined_call_operand.vmem [shape: f32[1,32], index: 13, kind: input, shape index: {}]
  %s14 = inlined_call_operand.vmem [shape: bf16[32,32], index: 14, kind: input, shape index: {}]
  %s15 = inlined_call_operand.vmem [shape: f32[1,32], index: 15, kind: input, shape index: {}]
  %s16 = inlined_call_operand.vmem [shape: bf16[32,64], index: 16, kind: input, shape index: {}]
  %s17 = inlined_call_operand.vmem [shape: f32[1,64], index: 17, kind: input, shape index: {}]
  %s18 = inlined_call_operand.vmem [shape: bf16[32,32], index: 18, kind: input, shape index: {}]
  %s19 = inlined_call_operand.vmem [shape: f32[1,32], index: 19, kind: input, shape index: {}]
  %s20 = inlined_call_operand.hbm [shape: bf16[32,128], index: 20, kind: input, shape index: {}]
  %s21 = inlined_call_operand.hbm [shape: f32[1,128], index: 21, kind: input, shape index: {}]
  %s22 = inlined_call_operand.vmem [shape: bf16[128,32], index: 22, kind: input, shape index: {}]
  %s23 = inlined_call_operand.hbm [shape: f32[1,32], index: 23, kind: input, shape index: {}]
  %s24 = inlined_call_operand.vmem [shape: f32[1,32], index: 24, kind: input, shape index: {}]
  %s25 = inlined_call_operand.vmem [shape: f32[1,32], index: 25, kind: input, shape index: {}]
  %s26 = inlined_call_operand.hbm [shape: f32[8,2,32], index: 26, kind: output, shape index: {0}]
  %s27 = inlined_call_operand.hbm [shape: f32[16,2,32], index: 27, kind: output, shape index: {1}]
  %28 = xla_tuple %s26, %s27
  %s29 = sld [smem:[#allocation0]]
  $region142: #{cross_attention_layer_forward.1} parent=0
    _
  %s31 = ssub.s32 1, %s29
  %s32 = scalar_select 0, %s31, %s29
  $region1: #{cross_attention_layer_forward.1} parent=0
    #allocation2 [shape = 'u8[512]{0}', space=vmem, size = 0x400, scoped, tag = 'input window, operand 9, single buffered']
    #allocation3 [shape = 's32[1]{0}', space=sflag, size = 0x4, scoped, tag = 'scoped memory for cross_attention_layer_forward.1']
    #allocation4 [shape = 's32[1]{0}', space=sflag, size = 0x4, scoped, tag = 'scoped memory for cross_attention_layer_forward.1']
    #allocation5 [shape = 'u8[512]{0}', space=vmem, size = 0x400, scoped, tag = 'input window, operand 11, single buffered']
    #allocation6 [shape = 's32[1]{0}', space=sflag, size = 0x4, scoped, tag = 'scoped memory for cross_attention_layer_forward.1']
    #allocation7 [shape = 'u8[8192]{0}', space=vmem, size = 0x2000, scoped, tag = 'input window, operand 20, single buffered']
    #allocation8 [shape = 'u8[512]{0}', space=vmem, size = 0x400, scoped, tag = 'input window, operand 21, single buffered']
    #allocation9 [shape = 's32[1]{0}', space=sflag, size = 0x4, scoped, tag = 'scoped memory for cross_attention_layer_forward.1']
    #allocation10 [shape = 'u8[512]{0}', space=vmem, size = 0x400, scoped, tag = 'input window, operand 23, single buffered']
    #allocation11 [shape = 'u8[8192]{0}', space=vmem, size = 0x2000, scoped, tag = 'output window, operand 0, single buffered']
    #allocation12 [shape = 'u8[16384]{0}', space=vmem, size = 0x4000, scoped, tag = 'output window, operand 1, single buffered']
    #allocation13 [shape = 's32[1]{0}', space=sflag, size = 0x4, scoped, tag = 'scoped memory for cross_attention_layer_forward.1']
    %33 = vsyncpa [#allocation3], 0
    %34 = vsyncpa [#allocation6], 0
    %35 = vsyncpa [#allocation9], 0
    %36 = vsyncpa [#allocation4], 0
    %37 = vsyncpa [#allocation13], 0
    // Predicated region
    $region2: #{cross_attention_layer_forward.1} parent=1 // pred_check
      _
    $region3: #{cross_attention_layer_forward.1} parent=1 // pred_check_branch
      %39 = sbr.rel (0) target = $region5
    $region4: #{cross_attention_layer_forward.1} parent=1 // pred_region
      _
    $region5: #{cross_attention_layer_forward.1} parent=1 // pred_fallthru
      _
    // Predicated region
    $region6: #{cross_attention_layer_forward.1} parent=1 // pred_check
      _
    $region7: #{cross_attention_layer_forward.1} parent=1 // pred_check_branch
      %41 = sbr.rel (0) target = $region9
    $region8: #{cross_attention_layer_forward.1} parent=1 // pred_region
      _
    $region9: #{cross_attention_layer_forward.1} parent=1 // pred_fallthru
      _
    // Predicated region
    $region10: #{cross_attention_layer_forward.1} parent=1 // pred_check
      _
    $region11: #{cross_attention_layer_forward.1} parent=1 // pred_check_branch
      %43 = sbr.rel (0) target = $region13
    $region12: #{cross_attention_layer_forward.1} parent=1 // pred_region
      _
    $region13: #{cross_attention_layer_forward.1} parent=1 // pred_fallthru
      _
    // Predicated region
    $region14: #{cross_attention_layer_forward.1} parent=1 // pred_check
      _
    $region15: #{cross_attention_layer_forward.1} parent=1 // pred_check_branch
      %45 = sbr.rel (0) target = $region17
    $region16: #{cross_attention_layer_forward.1} parent=1 // pred_region
      _
    $region17: #{cross_attention_layer_forward.1} parent=1 // pred_fallthru
      _
    // Predicated region
    $region18: #{cross_attention_layer_forward.1} parent=1 // pred_check
      _
    $region19: #{cross_attention_layer_forward.1} parent=1 // pred_check_branch
      %47 = sbr.rel (0) target = $region21
    $region20: #{cross_attention_layer_forward.1} parent=1 // pred_region
      _
    $region21: #{cross_attention_layer_forward.1} parent=1 // pred_fallthru
      _
    // Predicated region
    $region22: #{cross_attention_layer_forward.1} parent=1 // pred_check
      _
    $region23: #{cross_attention_layer_forward.1} parent=1 // pred_check_branch
      %49 = sbr.rel (0) target = $region25
    $region24: #{cross_attention_layer_forward.1} parent=1 // pred_region
      _
    $region25: #{cross_attention_layer_forward.1} parent=1 // pred_fallthru
      _
    // Predicated region
    $region26: #{cross_attention_layer_forward.1} parent=1 // pred_check
      _
    $region27: #{cross_attention_layer_forward.1} parent=1 // pred_check_branch
      %51 = sbr.rel (0) target = $region29
    $region28: #{cross_attention_layer_forward.1} parent=1 // pred_region
      _
    $region29: #{cross_attention_layer_forward.1} parent=1 // pred_fallthru
      _
    // Predicated region
    $region30: #{cross_attention_layer_forward.1} parent=1 // pred_check
      _
    $region31: #{cross_attention_layer_forward.1} parent=1 // pred_check_branch
      %53 = sbr.rel (0) target = $region33
    $region32: #{cross_attention_layer_forward.1} parent=1 // pred_region
      _
    $region33: #{cross_attention_layer_forward.1} parent=1 // pred_fallthru
      _
    // Predicated region
    $region34: #{cross_attention_layer_forward.1} parent=1 // pred_check
      _
    $region35: #{cross_attention_layer_forward.1} parent=1 // pred_check_branch
      %55 = sbr.rel (0) target = $region37
    $region36: #{cross_attention_layer_forward.1} parent=1 // pred_region
      _
    $region37: #{cross_attention_layer_forward.1} parent=1 // pred_fallthru
      _
    // Predicated region
    $region38: #{cross_attention_layer_forward.1} parent=1 // pred_check
      _
    $region39: #{cross_attention_layer_forward.1} parent=1 // pred_check_branch
      %57 = sbr.rel (0) target = $region41
    $region40: #{cross_attention_layer_forward.1} parent=1 // pred_region
      %s59 = ssub.s32 16, 16
      %60 = vsyncadd [#allocation3], %s59
      %s62 = sshll.u32 [#allocation2], 4
      %s63 = int_to_ptr.vmem [resolvable:$true] %s62
      %65 = dma.hbm_to_vmem [thread:$0]  %s9, 16, %s63, [#allocation3]
    $region41: #{cross_attention_layer_forward.1} parent=1 // pred_fallthru
      _
    // Predicated region
    $region42: #{cross_attention_layer_forward.1} parent=1 // pred_check
      _
    $region43: #{cross_attention_layer_forward.1} parent=1 // pred_check_branch
      %67 = sbr.rel (0) target = $region45
    $region44: #{cross_attention_layer_forward.1} parent=1 // pred_region
      _
    $region45: #{cross_attention_layer_forward.1} parent=1 // pred_fallthru
      _
    // Predicated region
    $region46: #{cross_attention_layer_forward.1} parent=1 // pred_check
      _
    $region47: #{cross_attention_layer_forward.1} parent=1 // pred_check_branch
      %69 = sbr.rel (0) target = $region49
    $region48: #{cross_attention_layer_forward.1} parent=1 // pred_region
      %s71 = ssub.s32 16, 16
      %72 = vsyncadd [#allocation6], %s71
      %s74 = sshll.u32 [#allocation5], 4
      %s75 = int_to_ptr.vmem [resolvable:$true] %s74
      %77 = dma.hbm_to_vmem [thread:$0]  %s11, 16, %s75, [#allocation6]
    $region49: #{cross_attention_layer_forward.1} parent=1 // pred_fallthru
      _
    // Predicated region
    $region50: #{cross_attention_layer_forward.1} parent=1 // pred_check
      _
    $region51: #{cross_attention_layer_forward.1} parent=1 // pred_check_branch
      %79 = sbr.rel (0) target = $region53
    $region52: #{cross_attention_layer_forward.1} parent=1 // pred_region
      _
    $region53: #{cross_attention_layer_forward.1} parent=1 // pred_fallthru
      _
    // Predicated region
    $region54: #{cross_attention_layer_forward.1} parent=1 // pred_check
      _
    $region55: #{cross_attention_layer_forward.1} parent=1 // pred_check_branch
      %81 = sbr.rel (0) target = $region57
    $region56: #{cross_attention_layer_forward.1} parent=1 // pred_region
      _
    $region57: #{cross_attention_layer_forward.1} parent=1 // pred_fallthru
      _
    // Predicated region
    $region58: #{cross_attention_layer_forward.1} parent=1 // pred_check
      _
    $region59: #{cross_attention_layer_forward.1} parent=1 // pred_check_branch
      %83 = sbr.rel (0) target = $region61
    $region60: #{cross_attention_layer_forward.1} parent=1 // pred_region
      _
    $region61: #{cross_attention_layer_forward.1} parent=1 // pred_fallthru
      _
    // Predicated region
    $region62: #{cross_attention_layer_forward.1} parent=1 // pred_check
      _
    $region63: #{cross_attention_layer_forward.1} parent=1 // pred_check_branch
      %85 = sbr.rel (0) target = $region65
    $region64: #{cross_attention_layer_forward.1} parent=1 // pred_region
      _
    $region65: #{cross_attention_layer_forward.1} parent=1 // pred_fallthru
      _
    // Predicated region
    $region66: #{cross_attention_layer_forward.1} parent=1 // pred_check
      _
    $region67: #{cross_attention_layer_forward.1} parent=1 // pred_check_branch
      %87 = sbr.rel (0) target = $region69
    $region68: #{cross_attention_layer_forward.1} parent=1 // pred_region
      _
    $region69: #{cross_attention_layer_forward.1} parent=1 // pred_fallthru
      _
    // Predicated region
    $region70: #{cross_attention_layer_forward.1} parent=1 // pred_check
      _
    $region71: #{cross_attention_layer_forward.1} parent=1 // pred_check_branch
      %89 = sbr.rel (0) target = $region73
    $region72: #{cross_attention_layer_forward.1} parent=1 // pred_region
      _
    $region73: #{cross_attention_layer_forward.1} parent=1 // pred_fallthru
      _
    // Predicated region
    $region74: #{cross_attention_layer_forward.1} parent=1 // pred_check
      _
    $region75: #{cross_attention_layer_forward.1} parent=1 // pred_check_branch
      %91 = sbr.rel (0) target = $region77
    $region76: #{cross_attention_layer_forward.1} parent=1 // pred_region
      _
    $region77: #{cross_attention_layer_forward.1} parent=1 // pred_fallthru
      _
    // Predicated region
    $region78: #{cross_attention_layer_forward.1} parent=1 // pred_check
      _
    $region79: #{cross_attention_layer_forward.1} parent=1 // pred_check_branch
      %93 = sbr.rel (0) target = $region81
    $region80: #{cross_attention_layer_forward.1} parent=1 // pred_region
      _
    $region81: #{cross_attention_layer_forward.1} parent=1 // pred_fallthru
      _
    // Predicated region
    $region82: #{cross_attention_layer_forward.1} parent=1 // pred_check
      _
    $region83: #{cross_attention_layer_forward.1} parent=1 // pred_check_branch
      %95 = sbr.rel (0) target = $region85
    $region84: #{cross_attention_layer_forward.1} parent=1 // pred_region
      %s97 = ssub.s32 256, 256
      %98 = vsyncadd [#allocation6], %s97
      %s99 = sshll.u32 [#allocation7], 4
      %s100 = int_to_ptr.vmem [resolvable:$true] %s99
      %105 = dma.hbm_to_vmem [thread:$0]  %s20, 256, %s100, [#allocation6], 64, 64, 4
    $region85: #{cross_attention_layer_forward.1} parent=1 // pred_fallthru
      _
    // Predicated region
    $region86: #{cross_attention_layer_forward.1} parent=1 // pred_check
      _
    $region87: #{cross_attention_layer_forward.1} parent=1 // pred_check_branch
      %107 = sbr.rel (0) target = $region89
    $region88: #{cross_attention_layer_forward.1} parent=1 // pred_region
      %s109 = ssub.s32 16, 16
      %110 = vsyncadd [#allocation9], %s109
      %s112 = sshll.u32 [#allocation8], 4
      %s113 = int_to_ptr.vmem [resolvable:$true] %s112
      %115 = dma.hbm_to_vmem [thread:$0]  %s21, 16, %s113, [#allocation9]
    $region89: #{cross_attention_layer_forward.1} parent=1 // pred_fallthru
      _
    // Predicated region
    $region90: #{cross_attention_layer_forward.1} parent=1 // pred_check
      _
    $region91: #{cross_attention_layer_forward.1} parent=1 // pred_check_branch
      %117 = sbr.rel (0) target = $region93
    $region92: #{cross_attention_layer_forward.1} parent=1 // pred_region
      _
    $region93: #{cross_attention_layer_forward.1} parent=1 // pred_fallthru
      _
    // Predicated region
    $region94: #{cross_attention_layer_forward.1} parent=1 // pred_check
      _
    $region95: #{cross_attention_layer_forward.1} parent=1 // pred_check_branch
      %119 = sbr.rel (0) target = $region97
    $region96: #{cross_attention_layer_forward.1} parent=1 // pred_region
      %s121 = ssub.s32 16, 16
      %122 = vsyncadd [#allocation9], %s121
      %s124 = sshll.u32 [#allocation10], 4
      %s125 = int_to_ptr.vmem [resolvable:$true] %s124
      %127 = dma.hbm_to_vmem [thread:$0]  %s23, 16, %s125, [#allocation9]
    $region97: #{cross_attention_layer_forward.1} parent=1 // pred_fallthru
      _
    // Predicated region
    $region98: #{cross_attention_layer_forward.1} parent=1 // pred_check
      _
    $region99: #{cross_attention_layer_forward.1} parent=1 // pred_check_branch
      %129 = sbr.rel (0) target = $region101
    $region100: #{cross_attention_layer_forward.1} parent=1 // pred_region
      _
    $region101: #{cross_attention_layer_forward.1} parent=1 // pred_fallthru
      _
    // Predicated region
    $region102: #{cross_attention_layer_forward.1} parent=1 // pred_check
      _
    $region103: #{cross_attention_layer_forward.1} parent=1 // pred_check_branch
      %131 = sbr.rel (0) target = $region105
    $region104: #{cross_attention_layer_forward.1} parent=1 // pred_region
      _
    $region105: #{cross_attention_layer_forward.1} parent=1 // pred_fallthru
      _
    // Predicated region
    $region106: #{cross_attention_layer_forward.1} parent=1 // pred_check
      _
    $region107: #{cross_attention_layer_forward.1} parent=1 // pred_check_branch
      %133 = sbr.rel (0) target = $region109
    $region108: #{cross_attention_layer_forward.1} parent=1 // pred_region
      %134 = dma.done [#allocation3], 16
    $region109: #{cross_attention_layer_forward.1} parent=1 // pred_fallthru
      _
    // Predicated region
    $region110: #{cross_attention_layer_forward.1} parent=1 // pred_check
      _
    $region111: #{cross_attention_layer_forward.1} parent=1 // pred_check_branch
      %136 = sbr.rel (0) target = $region113
    $region112: #{cross_attention_layer_forward.1} parent=1 // pred_region
      %137 = dma.done [#allocation6], 16
    $region113: #{cross_attention_layer_forward.1} parent=1 // pred_fallthru
      _
    // Predicated region
    $region114: #{cross_attention_layer_forward.1} parent=1 // pred_check
      _
    $region115: #{cross_attention_layer_forward.1} parent=1 // pred_check_branch
      %139 = sbr.rel (0) target = $region117
    $region116: #{cross_attention_layer_forward.1} parent=1 // pred_region
      %140 = dma.done [#allocation6], 256
    $region117: #{cross_attention_layer_forward.1} parent=1 // pred_fallthru
      _
    // Predicated region
    $region118: #{cross_attention_layer_forward.1} parent=1 // pred_check
      _
    $region119: #{cross_attention_layer_forward.1} parent=1 // pred_check_branch
      %142 = sbr.rel (0) target = $region121
    $region120: #{cross_attention_layer_forward.1} parent=1 // pred_region
      %143 = dma.done [#allocation9], 16
    $region121: #{cross_attention_layer_forward.1} parent=1 // pred_fallthru
      _
    // Predicated region
    $region122: #{cross_attention_layer_forward.1} parent=1 // pred_check
      _
    $region123: #{cross_attention_layer_forward.1} parent=1 // pred_check_branch
      %145 = sbr.rel (0) target = $region125
    $region124: #{cross_attention_layer_forward.1} parent=1 // pred_region
      %146 = dma.done [#allocation9], 16
    $region125: #{cross_attention_layer_forward.1} parent=1 // pred_fallthru
      _
    %v148 = vld [vmem:[%s2] sm:$0xf]
    %v149 = vld [vmem:[%s2 + $0x4] sm:$0xf]
    %v150 = vld [vmem:[%s2 + $0x8] sm:$0xf]
    %v151 = vld [vmem:[%s2 + $0xc] sm:$0xf]
    %v152 = vld [vmem:[%s3] sm:$0x1]
    %v153 = vld [vmem:[%s4] sm:$0xf]
    %v154 = vld [vmem:[%s4 + $0x4] sm:$0xf]
    %v155 = vld [vmem:[%s4 + $0x8] sm:$0xf]
    %v156 = vld [vmem:[%s4 + $0xc] sm:$0xf]
    %v157 = vld [vmem:[%s5] sm:$0x1]
    %v158 = vld [vmem:[%s6] sm:$0xf]
    %v159 = vld [vmem:[%s6 + $0x4] sm:$0xf]
    %v160 = vld [vmem:[%s6 + $0x8] sm:$0xf]
    %v161 = vld [vmem:[%s6 + $0xc] sm:$0xf]
    %v162 = vld [vmem:[%s7] sm:$0x1]
    %v163 = vld [vmem:[%s8] sm:$0xf]
    %v164 = vld [vmem:[%s8 + $0x4] sm:$0xf]
    %v165 = vld [vmem:[%s8 + $0x8] sm:$0xf]
    %v166 = vld [vmem:[%s8 + $0xc] sm:$0xf]
    %v167 = vld [vmem:[#allocation2] sm:$0x1]
    %v168 = vld [vmem:[%s10] sm:$0xf]
    %v169 = vld [vmem:[%s10 + $0x4] sm:$0xf]
    %v170 = vld [vmem:[%s10 + $0x8] sm:$0xf]
    %v171 = vld [vmem:[%s10 + $0xc] sm:$0xf]
    %v172 = vld [vmem:[%s10 + $0x10] sm:$0xf]
    %v173 = vld [vmem:[%s10 + $0x14] sm:$0xf]
    %v174 = vld [vmem:[%s10 + $0x18] sm:$0xf]
    %v175 = vld [vmem:[%s10 + $0x1c] sm:$0xf]
    %v176 = vld [vmem:[%s10 + $0x20] sm:$0xf]
    %v177 = vld [vmem:[%s10 + $0x24] sm:$0xf]
    %v178 = vld [vmem:[%s10 + $0x28] sm:$0xf]
    %v179 = vld [vmem:[%s10 + $0x2c] sm:$0xf]
    %v180 = vld [vmem:[%s10 + $0x30] sm:$0xf]
    %v181 = vld [vmem:[%s10 + $0x34] sm:$0xf]
    %v182 = vld [vmem:[%s10 + $0x38] sm:$0xf]
    %v183 = vld [vmem:[%s10 + $0x3c] sm:$0xf]
    %v184 = vld [vmem:[#allocation5] sm:$0x1]
    %v185 = vld [vmem:[%s12] sm:$0x1]
    %v186 = vld [vmem:[%s13] sm:$0x1]
    %v187 = vld [vmem:[%s14] sm:$0xf]
    %v188 = vld [vmem:[%s14 + $0x4] sm:$0xf]
    %v189 = vld [vmem:[%s14 + $0x8] sm:$0xf]
    %v190 = vld [vmem:[%s14 + $0xc] sm:$0xf]
    %v191 = vld [vmem:[%s15] sm:$0x1]
    %v192 = vld [vmem:[%s16] sm:$0xf]
    %v193 = vld [vmem:[%s16 + $0x4] sm:$0xf]
    %v194 = vld [vmem:[%s16 + $0x8] sm:$0xf]
    %v195 = vld [vmem:[%s16 + $0xc] sm:$0xf]
    %v196 = vld [vmem:[%s17] sm:$0x1]
    %v197 = vld [vmem:[%s18] sm:$0xf]
    %v198 = vld [vmem:[%s18 + $0x4] sm:$0xf]
    %v199 = vld [vmem:[%s18 + $0x8] sm:$0xf]
    %v200 = vld [vmem:[%s18 + $0xc] sm:$0xf]
    %v201 = vld [vmem:[%s19] sm:$0x1]
    %v202 = vld [vmem:[#allocation7] sm:$0xf]
    %v203 = vld [vmem:[#allocation7 + $0x4] sm:$0xf]
    %v204 = vld [vmem:[#allocation7 + $0x8] sm:$0xf]
    %v205 = vld [vmem:[#allocation7 + $0xc] sm:$0xf]
    %v206 = vld [vmem:[#allocation8] sm:$0x1]
    %v207 = vld [vmem:[%s22] sm:$0xf]
    %v208 = vld [vmem:[%s22 + $0x4] sm:$0xf]
    %v209 = vld [vmem:[%s22 + $0x8] sm:$0xf]
    %v210 = vld [vmem:[%s22 + $0xc] sm:$0xf]
    %v211 = vld [vmem:[%s22 + $0x10] sm:$0xf]
    %v212 = vld [vmem:[%s22 + $0x14] sm:$0xf]
    %v213 = vld [vmem:[%s22 + $0x18] sm:$0xf]
    %v214 = vld [vmem:[%s22 + $0x1c] sm:$0xf]
    %v215 = vld [vmem:[%s22 + $0x20] sm:$0xf]
    %v216 = vld [vmem:[%s22 + $0x24] sm:$0xf]
    %v217 = vld [vmem:[%s22 + $0x28] sm:$0xf]
    %v218 = vld [vmem:[%s22 + $0x2c] sm:$0xf]
    %v219 = vld [vmem:[%s22 + $0x30] sm:$0xf]
    %v220 = vld [vmem:[%s22 + $0x34] sm:$0xf]
    %v221 = vld [vmem:[%s22 + $0x38] sm:$0xf]
    %v222 = vld [vmem:[%s22 + $0x3c] sm:$0xf]
    %v223 = vld [vmem:[#allocation10] sm:$0x1]
    %v224 = vld [vmem:[%s24] sm:$0x1]
    %v225 = vld [vmem:[%s25] sm:$0x1]
    %v226 = vld [vmem:[%s0] sm:$0x1]
    %v227 = vld [vmem:[%s0 + $0x2] sm:$0x1]
    %v228 = vld [vmem:[%s0 + $0x4] sm:$0x1]
    %v229 = vld [vmem:[%s0 + $0x6] sm:$0x1]
    %v230 = vld [vmem:[%s0 + $0x8] sm:$0x1]
    %v231 = vld [vmem:[%s0 + $0xa] sm:$0x1]
    %v232 = vld [vmem:[%s0 + $0xc] sm:$0x1]
    %v233 = vld [vmem:[%s0 + $0xe] sm:$0x1]
    %v234 = vld [vmem:[%s1] sm:$0x1]
    %v235 = vld [vmem:[%s1 + $0x2] sm:$0x1]
    %v236 = vld [vmem:[%s1 + $0x4] sm:$0x1]
    %v237 = vld [vmem:[%s1 + $0x6] sm:$0x1]
    %v238 = vld [vmem:[%s1 + $0x8] sm:$0x1]
    %v239 = vld [vmem:[%s1 + $0xa] sm:$0x1]
    %v240 = vld [vmem:[%s1 + $0xc] sm:$0x1]
    %v241 = vld [vmem:[%s1 + $0xe] sm:$0x1]
    %v242 = vld [vmem:[%s1 + $0x10] sm:$0x1]
    %v243 = vld [vmem:[%s1 + $0x12] sm:$0x1]
    %v244 = vld [vmem:[%s1 + $0x14] sm:$0x1]
    %v245 = vld [vmem:[%s1 + $0x16] sm:$0x1]
    %v246 = vld [vmem:[%s1 + $0x18] sm:$0x1]
    %v247 = vld [vmem:[%s1 + $0x1a] sm:$0x1]
    %v248 = vld [vmem:[%s1 + $0x1c] sm:$0x1]
    %v249 = vld [vmem:[%s1 + $0x1e] sm:$0x1]
    %v250 = vpack.c.bf16 %v226, %v226
    %v251 = vpack.c.bf16 %v227, %v227
    %v252 = vpack.c.bf16 %v228, %v228
    %v253 = vpack.c.bf16 %v229, %v229
    %v254 = vpack.c.bf16 %v230, %v230
    %v255 = vpack.c.bf16 %v231, %v231
    %v256 = vpack.c.bf16 %v232, %v232
    %v257 = vpack.c.bf16 %v233, %v233
    %v259 = vlaneseq
    %v260 = vshrl.u32 %v259, 7
    %v261 = vsub.s32 0, %v260
    %v262 = vrot.slane %v152, %v261
    %v272 = vunpack.c.l.b16 %v250
    %v273 = vunpack.c.l.b16 %v251
    %v274 = vunpack.c.l.b16 %v252
    %v275 = vunpack.c.l.b16 %v253
    %v276 = vunpack.c.l.b16 %v254
    %v277 = vunpack.c.l.b16 %v255
    %v278 = vunpack.c.l.b16 %v256
    %v279 = vunpack.c.l.b16 %v257
    %v280 = vrot.slane %v273, 7
    %vm281 = vcmask 1041409
    %v282 = vsel %vm281, %v280, %v272
    %v283 = vrot.slane %v274, 6
    %vm284 = vcmask 1042434
    %v285 = vsel %vm284, %v283, %v282
    %v286 = vrot.slane %v275, 5
    %vm287 = vcmask 1043459
    %v288 = vsel %vm287, %v286, %v285
    %v289 = vrot.slane %v276, 4
    %vm290 = vcmask 1044484
    %v291 = vsel %vm290, %v289, %v288
    %v292 = vrot.slane %v277, 3
    %vm293 = vcmask 1045509
    %v294 = vsel %vm293, %v292, %v291
    %v295 = vrot.slane %v278, 2
    %vm296 = vcmask 1046534
    %v297 = vsel %vm296, %v295, %v294
    %v298 = vrot.slane %v279, 1
    %vm299 = vcmask 1047559
    %v300 = vsel %vm299, %v298, %v297
    %v301 = vpack.c.b16 %v300, %v300
    %v306 = vunpack.c.l.b16 %v148
    %v307 = vunpack.c.l.b16 %v149
    %v308 = vunpack.c.l.b16 %v150
    %v309 = vunpack.c.l.b16 %v151
    %v310 = vpack.c.b16 %v307, %v306
    %v311 = vpack.c.b16 %v309, %v308
    %vm314 = vcmask 261120
    %v316 = vsel %vm314, %v301, 0
    %318 = vmatprep.subr.bf16.mxu0 0
    %319 = vmatpush1.bf16.msra.mxu0 %v310
    %320 = vmatprep.subr.bf16.mxu0 0
    %321 = vmatpush1.bf16.msra.mxu0 %v311
    %322 = vmatprep.subr.bf16.mxu0 0
    %323 = vmatpush1.bf16.msra.mxu0 0
    %324 = vmatprep.subr.bf16.mxu0 0
    %325 = vmatpush1.bf16.msra.mxu0 0
    %326 = vmatprep.subr.bf16.mxu0 0
    %327 = vmatpush1.bf16.msra.mxu0 0
    %328 = vmatprep.subr.bf16.mxu0 0
    %329 = vmatpush1.bf16.msra.mxu0 0
    %330 = vmatprep.subr.bf16.mxu0 0
    %331 = vmatpush1.bf16.msra.mxu0 0
    %332 = vmatprep.subr.bf16.mxu0 0
    %333 = vmatpush1.bf16.msra.mxu0 0
    %334 = vmatprep.subr.bf16.mxu0 0
    %335 = vmatpush1.bf16.msra.mxu0 0
    %336 = vmatprep.subr.bf16.mxu0 0
    %337 = vmatpush1.bf16.msra.mxu0 0
    %338 = vmatprep.subr.bf16.mxu0 0
    %339 = vmatpush1.bf16.msra.mxu0 0
    %340 = vmatprep.subr.bf16.mxu0 0
    %341 = vmatpush1.bf16.msra.mxu0 0
    %342 = vmatprep.subr.bf16.mxu0 0
    %343 = vmatpush1.bf16.msra.mxu0 0
    %344 = vmatprep.subr.bf16.mxu0 0
    %345 = vmatpush1.bf16.msra.mxu0 0
    %346 = vmatprep.subr.bf16.mxu0 0
    %347 = vmatpush1.bf16.msra.mxu0 0
    %348 = vmatprep.subr.bf16.mxu0 0
    %349 = vmatpush1.bf16.msra.mxu0 0
    %350 = vmatprep.mubr.bf16.mxu0 0
    %351 = vmatmul.mubr.bf16.gmra.mrb[0].mxu0 %v316
    %v352 = vpop.f32.mrb[0].mxu0
    %v353 = vadd.f32 %v262, %v352
    %v354 = vpop.f32.mrb[0].mxu0
    %v355 = vpop.f32.mrb[0].mxu0
    %v356 = vpop.f32.mrb[0].mxu0
    %357 = vdwg.mxu0
    %v358 = vpack.c.bf16 %v234, %v234
    %v359 = vpack.c.bf16 %v235, %v235
    %v360 = vpack.c.bf16 %v236, %v236
    %v361 = vpack.c.bf16 %v237, %v237
    %v362 = vpack.c.bf16 %v238, %v238
    %v363 = vpack.c.bf16 %v239, %v239
    %v364 = vpack.c.bf16 %v240, %v240
    %v365 = vpack.c.bf16 %v241, %v241
    %v366 = vpack.c.bf16 %v242, %v242
    %v367 = vpack.c.bf16 %v243, %v243
    %v368 = vpack.c.bf16 %v244, %v244
    %v369 = vpack.c.bf16 %v245, %v245
    %v370 = vpack.c.bf16 %v246, %v246
    %v371 = vpack.c.bf16 %v247, %v247
    %v372 = vpack.c.bf16 %v248, %v248
    %v373 = vpack.c.bf16 %v249, %v249
    %v375 = vlaneseq
    %v376 = vshrl.u32 %v375, 7
    %v377 = vsub.s32 0, %v376
    %v378 = vrot.slane %v157, %v377
    %v396 = vunpack.c.l.b16 %v358
    %v397 = vunpack.c.l.b16 %v359
    %v398 = vunpack.c.l.b16 %v360
    %v399 = vunpack.c.l.b16 %v361
    %v400 = vunpack.c.l.b16 %v362
    %v401 = vunpack.c.l.b16 %v363
    %v402 = vunpack.c.l.b16 %v364
    %v403 = vunpack.c.l.b16 %v365
    %v404 = vunpack.c.l.b16 %v366
    %v405 = vunpack.c.l.b16 %v367
    %v406 = vunpack.c.l.b16 %v368
    %v407 = vunpack.c.l.b16 %v369
    %v408 = vunpack.c.l.b16 %v370
    %v409 = vunpack.c.l.b16 %v371
    %v410 = vunpack.c.l.b16 %v372
    %v411 = vunpack.c.l.b16 %v373
    %v412 = vrot.slane %v397, 7
    %v413 = vsel %vm281, %v412, %v396
    %v414 = vrot.slane %v398, 6
    %v415 = vsel %vm284, %v414, %v413
    %v416 = vrot.slane %v399, 5
    %v417 = vsel %vm287, %v416, %v415
    %v418 = vrot.slane %v400, 4
    %v419 = vsel %vm290, %v418, %v417
    %v420 = vrot.slane %v401, 3
    %v421 = vsel %vm293, %v420, %v419
    %v422 = vrot.slane %v402, 2
    %v423 = vsel %vm296, %v422, %v421
    %v424 = vrot.slane %v403, 1
    %v425 = vsel %vm299, %v424, %v423
    %v426 = vrot.slane %v405, 7
    %v427 = vsel %vm281, %v426, %v404
    %v428 = vrot.slane %v406, 6
    %v429 = vsel %vm284, %v428, %v427
    %v430 = vrot.slane %v407, 5
    %v431 = vsel %vm287, %v430, %v429
    %v432 = vrot.slane %v408, 4
    %v433 = vsel %vm290, %v432, %v431
    %v434 = vrot.slane %v409, 3
    %v435 = vsel %vm293, %v434, %v433
    %v436 = vrot.slane %v410, 2
    %v437 = vsel %vm296, %v436, %v435
    %v438 = vrot.slane %v411, 1
    %v439 = vsel %vm299, %v438, %v437
    %v440 = vpack.c.b16 %v439, %v425
    %v445 = vunpack.c.l.b16 %v153
    %v446 = vunpack.c.l.b16 %v154
    %v447 = vunpack.c.l.b16 %v155
    %v448 = vunpack.c.l.b16 %v156
    %v449 = vpack.c.b16 %v446, %v445
    %v450 = vpack.c.b16 %v448, %v447
    %v454 = vsel %vm314, %v440, 0
    %456 = vmatprep.subr.bf16.mxu0 0
    %457 = vmatpush1.bf16.msra.mxu0 %v449
    %458 = vmatprep.subr.bf16.mxu0 0
    %459 = vmatpush1.bf16.msra.mxu0 %v450
    %460 = vmatprep.subr.bf16.mxu0 0
    %461 = vmatpush1.bf16.msra.mxu0 0
    %462 = vmatprep.subr.bf16.mxu0 0
    %463 = vmatpush1.bf16.msra.mxu0 0
    %464 = vmatprep.subr.bf16.mxu0 0
    %465 = vmatpush1.bf16.msra.mxu0 0
    %466 = vmatprep.subr.bf16.mxu0 0
    %467 = vmatpush1.bf16.msra.mxu0 0
    %468 = vmatprep.subr.bf16.mxu0 0
    %469 = vmatpush1.bf16.msra.mxu0 0
    %470 = vmatprep.subr.bf16.mxu0 0
    %471 = vmatpush1.bf16.msra.mxu0 0
    %472 = vmatprep.subr.bf16.mxu0 0
    %473 = vmatpush1.bf16.msra.mxu0 0
    %474 = vmatprep.subr.bf16.mxu0 0
    %475 = vmatpush1.bf16.msra.mxu0 0
    %476 = vmatprep.subr.bf16.mxu0 0
    %477 = vmatpush1.bf16.msra.mxu0 0
    %478 = vmatprep.subr.bf16.mxu0 0
    %479 = vmatpush1.bf16.msra.mxu0 0
    %480 = vmatprep.subr.bf16.mxu0 0
    %481 = vmatpush1.bf16.msra.mxu0 0
    %482 = vmatprep.subr.bf16.mxu0 0
    %483 = vmatpush1.bf16.msra.mxu0 0
    %484 = vmatprep.subr.bf16.mxu0 0
    %485 = vmatpush1.bf16.msra.mxu0 0
    %486 = vmatprep.subr.bf16.mxu0 0
    %487 = vmatpush1.bf16.msra.mxu0 0
    %488 = vmatprep.mubr.bf16.mxu0 0
    %489 = vmatmul.mubr.bf16.gmra.mrb[0].mxu0 %v454
    %v490 = vpop.f32.mrb[0].mxu0
    %v491 = vadd.f32 %v378, %v490
    %v492 = vpop.f32.mrb[0].mxu0
    %v493 = vpop.f32.mrb[0].mxu0
    %v494 = vadd.f32 %v378, %v493
    %v495 = vpop.f32.mrb[0].mxu0
    %496 = vdwg.mxu0
    %v497 = vpack.c.bf16 %v353, %v353
    %v498 = vpack.c.bf16 %v494, %v491
    %v500 = vlaneseq
    %v501 = vshrl.u32 %v500, 7
    %v502 = vsub.s32 0, %v501
    %v503 = vrot.slane %v162, %v502
    %v505 = vadd.f32 %v503, 0.0
    %vm506 = vcmask 31744
    %v508 = vsel %vm506, %v497, 0
    %v511 = vsel %vm506, %v498, 0
    %513 = vmatprep.subr.bf16.mxu0 0
    %514 = vmatpush1.bf16.xpose.msra.mxu0 %v511
    %515 = vmatprep.subr.bf16.mxu0 0
    %516 = vmatpush1.bf16.xpose.msra.mxu0 0
    %517 = vmatprep.subr.bf16.mxu0 0
    %518 = vmatpush1.bf16.xpose.msra.mxu0 0
    %519 = vmatprep.subr.bf16.mxu0 0
    %520 = vmatpush1.bf16.xpose.msra.mxu0 0
    %521 = vmatprep.subr.bf16.mxu0 0
    %522 = vmatpush1.bf16.xpose.msra.mxu0 0
    %523 = vmatprep.subr.bf16.mxu0 0
    %524 = vmatpush1.bf16.xpose.msra.mxu0 0
    %525 = vmatprep.subr.bf16.mxu0 0
    %526 = vmatpush1.bf16.xpose.msra.mxu0 0
    %527 = vmatprep.subr.bf16.mxu0 0
    %528 = vmatpush1.bf16.xpose.msra.mxu0 0
    %529 = vmatprep.subr.bf16.mxu0 0
    %530 = vmatpush1.bf16.xpose.msra.mxu0 0
    %531 = vmatprep.subr.bf16.mxu0 0
    %532 = vmatpush1.bf16.xpose.msra.mxu0 0
    %533 = vmatprep.subr.bf16.mxu0 0
    %534 = vmatpush1.bf16.xpose.msra.mxu0 0
    %535 = vmatprep.subr.bf16.mxu0 0
    %536 = vmatpush1.bf16.xpose.msra.mxu0 0
    %537 = vmatprep.subr.bf16.mxu0 0
    %538 = vmatpush1.bf16.xpose.msra.mxu0 0
    %539 = vmatprep.subr.bf16.mxu0 0
    %540 = vmatpush1.bf16.xpose.msra.mxu0 0
    %541 = vmatprep.subr.bf16.mxu0 0
    %542 = vmatpush1.bf16.xpose.msra.mxu0 0
    %543 = vmatprep.subr.bf16.mxu0 0
    %544 = vmatpush1.bf16.xpose.msra.mxu0 0
    %545 = vmatprep.mubr.bf16.mxu0 0
    %546 = vmatmul.mubr.bf16.gmra.mrb[0].mxu0 %v508
    %v547 = vpop.f32.mrb[0].mxu0
    %v548 = vadd.f32 0.0, %v547
    %v549 = vpop.f32.mrb[0].mxu0
    %v550 = vpop.f32.mrb[0].mxu0
    %v551 = vpop.f32.mrb[0].mxu0
    %552 = vdwg.mxu0
    %vm553 = vcmask 130048
    %v554 = vsel %vm553, %v548, -inf
    %555 = vmax.xlane.f32.xlu0 %v554
    %v556 = vpop.xlane.xlu0 %555
    %v557 = vsub.f32 %v548, %v556
    %v558 = vmul.f32 %v557, 1.442695
    %v559 = vpow.pop %v558
    %v560 = vsel %vm553, %v559, 0.0
    %561 = vadd.xlane.f32.xlu0 %v560
    %v562 = vpop.xlane.xlu0 %561
    %v563 = vrcp.pop %v562
    %v564 = vmul.f32 %v559, %v563
    %567 = vrot.lane.b32.xlu0 %v491, 96
    %v568 = vpop.permute.xlu0 %567
    %569 = vrot.lane.b32.xlu0 %v494, 96
    %v570 = vpop.permute.xlu0 %569
    %v574 = vsel %vm553, %v564, 0
    %576 = vmatprep.subr.mxu0 0.0
    %577 = vmatpush1.msra.mxu0 %v568
    %578 = vmatprep.subr.mxu0 0.0
    %579 = vmatpush1.msra.mxu0 %v570
    %580 = vmatprep.subr.mxu0 0.0
    %581 = vmatpush1.msra.mxu0 0.0
    %582 = vmatprep.subr.mxu0 0.0
    %583 = vmatpush1.msra.mxu0 0.0
    %584 = vmatprep.subr.mxu0 0.0
    %585 = vmatpush1.msra.mxu0 0.0
    %586 = vmatprep.subr.mxu0 0.0
    %587 = vmatpush1.msra.mxu0 0.0
    %588 = vmatprep.subr.mxu0 0.0
    %589 = vmatpush1.msra.mxu0 0.0
    %590 = vmatprep.subr.mxu0 0.0
    %591 = vmatpush1.msra.mxu0 0.0
    %592 = vmatprep.subr.mxu0 0.0
    %593 = vmatpush1.msra.mxu0 0.0
    %594 = vmatprep.subr.mxu0 0.0
    %595 = vmatpush1.msra.mxu0 0.0
    %596 = vmatprep.subr.mxu0 0.0
    %597 = vmatpush1.msra.mxu0 0.0
    %598 = vmatprep.subr.mxu0 0.0
    %599 = vmatpush1.msra.mxu0 0.0
    %600 = vmatprep.subr.mxu0 0.0
    %601 = vmatpush1.msra.mxu0 0.0
    %602 = vmatprep.subr.mxu0 0.0
    %603 = vmatpush1.msra.mxu0 0.0
    %604 = vmatprep.subr.mxu0 0.0
    %605 = vmatpush1.msra.mxu0 0.0
    %606 = vmatprep.subr.mxu0 0.0
    %607 = vmatpush1.msra.mxu0 0.0
    %608 = vmatprep.subr.mxu0 0.0
    %609 = vmatpush1.msra.mxu0 0.0
    %610 = vmatprep.subr.mxu0 0.0
    %611 = vmatpush1.msra.mxu0 0.0
    %612 = vmatprep.subr.mxu0 0.0
    %613 = vmatpush1.msra.mxu0 0.0
    %614 = vmatprep.subr.mxu0 0.0
    %615 = vmatpush1.msra.mxu0 0.0
    %616 = vmatprep.subr.mxu0 0.0
    %617 = vmatpush1.msra.mxu0 0.0
    %618 = vmatprep.subr.mxu0 0.0
    %619 = vmatpush1.msra.mxu0 0.0
    %620 = vmatprep.subr.mxu0 0.0
    %621 = vmatpush1.msra.mxu0 0.0
    %622 = vmatprep.subr.mxu0 0.0
    %623 = vmatpush1.msra.mxu0 0.0
    %624 = vmatprep.subr.mxu0 0.0
    %625 = vmatpush1.msra.mxu0 0.0
    %626 = vmatprep.subr.mxu0 0.0
    %627 = vmatpush1.msra.mxu0 0.0
    %628 = vmatprep.subr.mxu0 0.0
    %629 = vmatpush1.msra.mxu0 0.0
    %630 = vmatprep.subr.mxu0 0.0
    %631 = vmatpush1.msra.mxu0 0.0
    %632 = vmatprep.subr.mxu0 0.0
    %633 = vmatpush1.msra.mxu0 0.0
    %634 = vmatprep.subr.mxu0 0.0
    %635 = vmatpush1.msra.mxu0 0.0
    %636 = vmatprep.subr.mxu0 0.0
    %637 = vmatpush1.msra.mxu0 0.0
    %638 = vmatprep.subr.mxu0 0.0
    %639 = vmatpush1.msra.mxu0 0.0
    %640 = vmatprep.mubr.f32.mxu0 0.0
    %641 = vmatmul.mubr.f32.gmra.mrb[0].mxu0 %v574
    %v642 = vpop.f32.mrb[0].mxu0
    %v643 = vadd.f32 0.0, %v642
    %v644 = vpop.f32.mrb[0].mxu0
    %645 = vdwg.mxu0
    %v646 = vpack.c.bf16 %v643, %v643
    %v648 = vsel %vm506, %v646, 0
    %vm650 = vcmask 1041408
    %v652 = vsel %vm650, %v158, 0
    %654 = vmatprep.subr.bf16.mxu0 0
    %655 = vmatpush1.bf16.msra.mxu0 %v652
    %656 = vmatprep.subr.bf16.mxu0 0
    %657 = vmatpush1.bf16.msra.mxu0 0
    %658 = vmatprep.subr.bf16.mxu0 0
    %659 = vmatpush1.bf16.msra.mxu0 0
    %660 = vmatprep.subr.bf16.mxu0 0
    %661 = vmatpush1.bf16.msra.mxu0 0
    %662 = vmatprep.subr.bf16.mxu0 0
    %663 = vmatpush1.bf16.msra.mxu0 0
    %664 = vmatprep.subr.bf16.mxu0 0
    %665 = vmatpush1.bf16.msra.mxu0 0
    %666 = vmatprep.subr.bf16.mxu0 0
    %667 = vmatpush1.bf16.msra.mxu0 0
    %668 = vmatprep.subr.bf16.mxu0 0
    %669 = vmatpush1.bf16.msra.mxu0 0
    %670 = vmatprep.subr.bf16.mxu0 0
    %671 = vmatpush1.bf16.msra.mxu0 0
    %672 = vmatprep.subr.bf16.mxu0 0
    %673 = vmatpush1.bf16.msra.mxu0 0
    %674 = vmatprep.subr.bf16.mxu0 0
    %675 = vmatpush1.bf16.msra.mxu0 0
    %676 = vmatprep.subr.bf16.mxu0 0
    %677 = vmatpush1.bf16.msra.mxu0 0
    %678 = vmatprep.subr.bf16.mxu0 0
    %679 = vmatpush1.bf16.msra.mxu0 0
    %680 = vmatprep.subr.bf16.mxu0 0
    %681 = vmatpush1.bf16.msra.mxu0 0
    %682 = vmatprep.subr.bf16.mxu0 0
    %683 = vmatpush1.bf16.msra.mxu0 0
    %684 = vmatprep.subr.bf16.mxu0 0
    %685 = vmatpush1.bf16.msra.mxu0 0
    %686 = vmatprep.mubr.bf16.mxu0 0
    %687 = vmatmul.mubr.bf16.gmra.mrb[0].mxu0 %v648
    %v688 = vpop.f32.mrb[0].mxu0
    %v689 = vadd.f32 0.0, %v688
    %v690 = vpop.f32.mrb[0].mxu0
    %v691 = vpop.f32.mrb[0].mxu0
    %v692 = vpop.f32.mrb[0].mxu0
    %693 = vdwg.mxu0
    %v694 = vadd.f32 %v505, %v689
    %696 = vrot.lane.b32.xlu0 %v497, 124
    %v697 = vpop.permute.xlu0 %696
    %699 = vrot.lane.b32.xlu0 %v498, 124
    %v700 = vpop.permute.xlu0 %699
    %v702 = vsel %vm506, %v697, 0
    %v705 = vsel %vm506, %v700, 0
    %707 = vmatprep.subr.bf16.mxu0 0
    %708 = vmatpush1.bf16.xpose.msra.mxu0 %v705
    %709 = vmatprep.subr.bf16.mxu0 0
    %710 = vmatpush1.bf16.xpose.msra.mxu0 0
    %711 = vmatprep.subr.bf16.mxu0 0
    %712 = vmatpush1.bf16.xpose.msra.mxu0 0
    %713 = vmatprep.subr.bf16.mxu0 0
    %714 = vmatpush1.bf16.xpose.msra.mxu0 0
    %715 = vmatprep.subr.bf16.mxu0 0
    %716 = vmatpush1.bf16.xpose.msra.mxu0 0
    %717 = vmatprep.subr.bf16.mxu0 0
    %718 = vmatpush1.bf16.xpose.msra.mxu0 0
    %719 = vmatprep.subr.bf16.mxu0 0
    %720 = vmatpush1.bf16.xpose.msra.mxu0 0
    %721 = vmatprep.subr.bf16.mxu0 0
    %722 = vmatpush1.bf16.xpose.msra.mxu0 0
    %723 = vmatprep.subr.bf16.mxu0 0
    %724 = vmatpush1.bf16.xpose.msra.mxu0 0
    %725 = vmatprep.subr.bf16.mxu0 0
    %726 = vmatpush1.bf16.xpose.msra.mxu0 0
    %727 = vmatprep.subr.bf16.mxu0 0
    %728 = vmatpush1.bf16.xpose.msra.mxu0 0
    %729 = vmatprep.subr.bf16.mxu0 0
    %730 = vmatpush1.bf16.xpose.msra.mxu0 0
    %731 = vmatprep.subr.bf16.mxu0 0
    %732 = vmatpush1.bf16.xpose.msra.mxu0 0
    %733 = vmatprep.subr.bf16.mxu0 0
    %734 = vmatpush1.bf16.xpose.msra.mxu0 0
    %735 = vmatprep.subr.bf16.mxu0 0
    %736 = vmatpush1.bf16.xpose.msra.mxu0 0
    %737 = vmatprep.subr.bf16.mxu0 0
    %738 = vmatpush1.bf16.xpose.msra.mxu0 0
    %739 = vmatprep.mubr.bf16.mxu0 0
    %740 = vmatmul.mubr.bf16.gmra.mrb[0].mxu0 %v702
    %v741 = vpop.f32.mrb[0].mxu0
    %v742 = vadd.f32 0.0, %v741
    %v743 = vpop.f32.mrb[0].mxu0
    %v744 = vpop.f32.mrb[0].mxu0
    %v745 = vpop.f32.mrb[0].mxu0
    %746 = vdwg.mxu0
    %v747 = vsel %vm553, %v742, -inf
    %748 = vmax.xlane.f32.xlu0 %v747
    %v749 = vpop.xlane.xlu0 %748
    %v750 = vsub.f32 %v742, %v749
    %v751 = vmul.f32 %v750, 1.442695
    %v752 = vpow.pop %v751
    %v753 = vsel %vm553, %v752, 0.0
    %754 = vadd.xlane.f32.xlu0 %v753
    %v755 = vpop.xlane.xlu0 %754
    %v756 = vrcp.pop %v755
    %v757 = vmul.f32 %v752, %v756
    %758 = vrot.lane.b32.xlu0 %v491, 92
    %v759 = vpop.permute.xlu0 %758
    %760 = vrot.lane.b32.xlu0 %v494, 92
    %v761 = vpop.permute.xlu0 %760
    %v765 = vsel %vm553, %v757, 0
    %767 = vmatprep.subr.mxu0 0.0
    %768 = vmatpush1.msra.mxu0 %v759
    %769 = vmatprep.subr.mxu0 0.0
    %770 = vmatpush1.msra.mxu0 %v761
    %771 = vmatprep.subr.mxu0 0.0
    %772 = vmatpush1.msra.mxu0 0.0
    %773 = vmatprep.subr.mxu0 0.0
    %774 = vmatpush1.msra.mxu0 0.0
    %775 = vmatprep.subr.mxu0 0.0
    %776 = vmatpush1.msra.mxu0 0.0
    %777 = vmatprep.subr.mxu0 0.0
    %778 = vmatpush1.msra.mxu0 0.0
    %779 = vmatprep.subr.mxu0 0.0
    %780 = vmatpush1.msra.mxu0 0.0
    %781 = vmatprep.subr.mxu0 0.0
    %782 = vmatpush1.msra.mxu0 0.0
    %783 = vmatprep.subr.mxu0 0.0
    %784 = vmatpush1.msra.mxu0 0.0
    %785 = vmatprep.subr.mxu0 0.0
    %786 = vmatpush1.msra.mxu0 0.0
    %787 = vmatprep.subr.mxu0 0.0
    %788 = vmatpush1.msra.mxu0 0.0
    %789 = vmatprep.subr.mxu0 0.0
    %790 = vmatpush1.msra.mxu0 0.0
    %791 = vmatprep.subr.mxu0 0.0
    %792 = vmatpush1.msra.mxu0 0.0
    %793 = vmatprep.subr.mxu0 0.0
    %794 = vmatpush1.msra.mxu0 0.0
    %795 = vmatprep.subr.mxu0 0.0
    %796 = vmatpush1.msra.mxu0 0.0
    %797 = vmatprep.subr.mxu0 0.0
    %798 = vmatpush1.msra.mxu0 0.0
    %799 = vmatprep.subr.mxu0 0.0
    %800 = vmatpush1.msra.mxu0 0.0
    %801 = vmatprep.subr.mxu0 0.0
    %802 = vmatpush1.msra.mxu0 0.0
    %803 = vmatprep.subr.mxu0 0.0
    %804 = vmatpush1.msra.mxu0 0.0
    %805 = vmatprep.subr.mxu0 0.0
    %806 = vmatpush1.msra.mxu0 0.0
    %807 = vmatprep.subr.mxu0 0.0
    %808 = vmatpush1.msra.mxu0 0.0
    %809 = vmatprep.subr.mxu0 0.0
    %810 = vmatpush1.msra.mxu0 0.0
    %811 = vmatprep.subr.mxu0 0.0
    %812 = vmatpush1.msra.mxu0 0.0
    %813 = vmatprep.subr.mxu0 0.0
    %814 = vmatpush1.msra.mxu0 0.0
    %815 = vmatprep.subr.mxu0 0.0
    %816 = vmatpush1.msra.mxu0 0.0
    %817 = vmatprep.subr.mxu0 0.0
    %818 = vmatpush1.msra.mxu0 0.0
    %819 = vmatprep.subr.mxu0 0.0
    %820 = vmatpush1.msra.mxu0 0.0
    %821 = vmatprep.subr.mxu0 0.0
    %822 = vmatpush1.msra.mxu0 0.0
    %823 = vmatprep.subr.mxu0 0.0
    %824 = vmatpush1.msra.mxu0 0.0
    %825 = vmatprep.subr.mxu0 0.0
    %826 = vmatpush1.msra.mxu0 0.0
    %827 = vmatprep.subr.mxu0 0.0
    %828 = vmatpush1.msra.mxu0 0.0
    %829 = vmatprep.subr.mxu0 0.0
    %830 = vmatpush1.msra.mxu0 0.0
    %831 = vmatprep.mubr.f32.mxu0 0.0
    %832 = vmatmul.mubr.f32.gmra.mrb[0].mxu0 %v765
    %v833 = vpop.f32.mrb[0].mxu0
    %v834 = vadd.f32 0.0, %v833
    %v835 = vpop.f32.mrb[0].mxu0
    %836 = vdwg.mxu0
    %v837 = vpack.c.bf16 %v834, %v834
    %v839 = vunpack.c.l.b16 %v158
    %v840 = vpack.c.b16 %v839, %v839
    %v841 = vrot.slane %v840, 2
    %v843 = vsel %vm506, %v837, 0
    %v846 = vsel %vm650, %v841, 0
    %848 = vmatprep.subr.bf16.mxu0 0
    %849 = vmatpush1.bf16.msra.mxu0 %v846
    %850 = vmatprep.subr.bf16.mxu0 0
    %851 = vmatpush1.bf16.msra.mxu0 0
    %852 = vmatprep.subr.bf16.mxu0 0
    %853 = vmatpush1.bf16.msra.mxu0 0
    %854 = vmatprep.subr.bf16.mxu0 0
    %855 = vmatpush1.bf16.msra.mxu0 0
    %856 = vmatprep.subr.bf16.mxu0 0
    %857 = vmatpush1.bf16.msra.mxu0 0
    %858 = vmatprep.subr.bf16.mxu0 0
    %859 = vmatpush1.bf16.msra.mxu0 0
    %860 = vmatprep.subr.bf16.mxu0 0
    %861 = vmatpush1.bf16.msra.mxu0 0
    %862 = vmatprep.subr.bf16.mxu0 0
    %863 = vmatpush1.bf16.msra.mxu0 0
    %864 = vmatprep.subr.bf16.mxu0 0
    %865 = vmatpush1.bf16.msra.mxu0 0
    %866 = vmatprep.subr.bf16.mxu0 0
    %867 = vmatpush1.bf16.msra.mxu0 0
    %868 = vmatprep.subr.bf16.mxu0 0
    %869 = vmatpush1.bf16.msra.mxu0 0
    %870 = vmatprep.subr.bf16.mxu0 0
    %871 = vmatpush1.bf16.msra.mxu0 0
    %872 = vmatprep.subr.bf16.mxu0 0
    %873 = vmatpush1.bf16.msra.mxu0 0
    %874 = vmatprep.subr.bf16.mxu0 0
    %875 = vmatpush1.bf16.msra.mxu0 0
    %876 = vmatprep.subr.bf16.mxu0 0
    %877 = vmatpush1.bf16.msra.mxu0 0
    %878 = vmatprep.subr.bf16.mxu0 0
    %879 = vmatpush1.bf16.msra.mxu0 0
    %880 = vmatprep.mubr.bf16.mxu0 0
    %881 = vmatmul.mubr.bf16.gmra.mrb[0].mxu0 %v843
    %v882 = vpop.f32.mrb[0].mxu0
    %v883 = vadd.f32 0.0, %v882
    %v884 = vpop.f32.mrb[0].mxu0
    %v885 = vpop.f32.mrb[0].mxu0
    %v886 = vpop.f32.mrb[0].mxu0
    %887 = vdwg.mxu0
    %v888 = vadd.f32 %v694, %v883
    %889 = vrot.lane.b32.xlu0 %v497, 120
    %v890 = vpop.permute.xlu0 %889
    %891 = vrot.lane.b32.xlu0 %v498, 120
    %v892 = vpop.permute.xlu0 %891
    %v894 = vsel %vm506, %v890, 0
    %v897 = vsel %vm506, %v892, 0
    %899 = vmatprep.subr.bf16.mxu0 0
    %900 = vmatpush1.bf16.xpose.msra.mxu0 %v897
    %901 = vmatprep.subr.bf16.mxu0 0
    %902 = vmatpush1.bf16.xpose.msra.mxu0 0
    %903 = vmatprep.subr.bf16.mxu0 0
    %904 = vmatpush1.bf16.xpose.msra.mxu0 0
    %905 = vmatprep.subr.bf16.mxu0 0
    %906 = vmatpush1.bf16.xpose.msra.mxu0 0
    %907 = vmatprep.subr.bf16.mxu0 0
    %908 = vmatpush1.bf16.xpose.msra.mxu0 0
    %909 = vmatprep.subr.bf16.mxu0 0
    %910 = vmatpush1.bf16.xpose.msra.mxu0 0
    %911 = vmatprep.subr.bf16.mxu0 0
    %912 = vmatpush1.bf16.xpose.msra.mxu0 0
    %913 = vmatprep.subr.bf16.mxu0 0
    %914 = vmatpush1.bf16.xpose.msra.mxu0 0
    %915 = vmatprep.subr.bf16.mxu0 0
    %916 = vmatpush1.bf16.xpose.msra.mxu0 0
    %917 = vmatprep.subr.bf16.mxu0 0
    %918 = vmatpush1.bf16.xpose.msra.mxu0 0
    %919 = vmatprep.subr.bf16.mxu0 0
    %920 = vmatpush1.bf16.xpose.msra.mxu0 0
    %921 = vmatprep.subr.bf16.mxu0 0
    %922 = vmatpush1.bf16.xpose.msra.mxu0 0
    %923 = vmatprep.subr.bf16.mxu0 0
    %924 = vmatpush1.bf16.xpose.msra.mxu0 0
    %925 = vmatprep.subr.bf16.mxu0 0
    %926 = vmatpush1.bf16.xpose.msra.mxu0 0
    %927 = vmatprep.subr.bf16.mxu0 0
    %928 = vmatpush1.bf16.xpose.msra.mxu0 0
    %929 = vmatprep.subr.bf16.mxu0 0
    %930 = vmatpush1.bf16.xpose.msra.mxu0 0
    %931 = vmatprep.mubr.bf16.mxu0 0
    %932 = vmatmul.mubr.bf16.gmra.mrb[0].mxu0 %v894
    %v933 = vpop.f32.mrb[0].mxu0
    %v934 = vadd.f32 0.0, %v933
    %v935 = vpop.f32.mrb[0].mxu0
    %v936 = vpop.f32.mrb[0].mxu0
    %v937 = vpop.f32.mrb[0].mxu0
    %938 = vdwg.mxu0
    %v939 = vsel %vm553, %v934, -inf
    %940 = vmax.xlane.f32.xlu0 %v939
    %v941 = vpop.xlane.xlu0 %940
    %v942 = vsub.f32 %v934, %v941
    %v943 = vmul.f32 %v942, 1.442695
    %v944 = vpow.pop %v943
    %v945 = vsel %vm553, %v944, 0.0
    %946 = vadd.xlane.f32.xlu0 %v945
    %v947 = vpop.xlane.xlu0 %946
    %v948 = vrcp.pop %v947
    %v949 = vmul.f32 %v944, %v948
    %950 = vrot.lane.b32.xlu0 %v491, 88
    %v951 = vpop.permute.xlu0 %950
    %952 = vrot.lane.b32.xlu0 %v494, 88
    %v953 = vpop.permute.xlu0 %952
    %v957 = vsel %vm553, %v949, 0
    %959 = vmatprep.subr.mxu0 0.0
    %960 = vmatpush1.msra.mxu0 %v951
    %961 = vmatprep.subr.mxu0 0.0
    %962 = vmatpush1.msra.mxu0 %v953
    %963 = vmatprep.subr.mxu0 0.0
    %964 = vmatpush1.msra.mxu0 0.0
    %965 = vmatprep.subr.mxu0 0.0
    %966 = vmatpush1.msra.mxu0 0.0
    %967 = vmatprep.subr.mxu0 0.0
    %968 = vmatpush1.msra.mxu0 0.0
    %969 = vmatprep.subr.mxu0 0.0
    %970 = vmatpush1.msra.mxu0 0.0
    %971 = vmatprep.subr.mxu0 0.0
    %972 = vmatpush1.msra.mxu0 0.0
    %973 = vmatprep.subr.mxu0 0.0
    %974 = vmatpush1.msra.mxu0 0.0
    %975 = vmatprep.subr.mxu0 0.0
    %976 = vmatpush1.msra.mxu0 0.0
    %977 = vmatprep.subr.mxu0 0.0
    %978 = vmatpush1.msra.mxu0 0.0
    %979 = vmatprep.subr.mxu0 0.0
    %980 = vmatpush1.msra.mxu0 0.0
    %981 = vmatprep.subr.mxu0 0.0
    %982 = vmatpush1.msra.mxu0 0.0
    %983 = vmatprep.subr.mxu0 0.0
    %984 = vmatpush1.msra.mxu0 0.0
    %985 = vmatprep.subr.mxu0 0.0
    %986 = vmatpush1.msra.mxu0 0.0
    %987 = vmatprep.subr.mxu0 0.0
    %988 = vmatpush1.msra.mxu0 0.0
    %989 = vmatprep.subr.mxu0 0.0
    %990 = vmatpush1.msra.mxu0 0.0
    %991 = vmatprep.subr.mxu0 0.0
    %992 = vmatpush1.msra.mxu0 0.0
    %993 = vmatprep.subr.mxu0 0.0
    %994 = vmatpush1.msra.mxu0 0.0
    %995 = vmatprep.subr.mxu0 0.0
    %996 = vmatpush1.msra.mxu0 0.0
    %997 = vmatprep.subr.mxu0 0.0
    %998 = vmatpush1.msra.mxu0 0.0
    %999 = vmatprep.subr.mxu0 0.0
    %1000 = vmatpush1.msra.mxu0 0.0
    %1001 = vmatprep.subr.mxu0 0.0
    %1002 = vmatpush1.msra.mxu0 0.0
    %1003 = vmatprep.subr.mxu0 0.0
    %1004 = vmatpush1.msra.mxu0 0.0
    %1005 = vmatprep.subr.mxu0 0.0
    %1006 = vmatpush1.msra.mxu0 0.0
    %1007 = vmatprep.subr.mxu0 0.0
    %1008 = vmatpush1.msra.mxu0 0.0
    %1009 = vmatprep.subr.mxu0 0.0
    %1010 = vmatpush1.msra.mxu0 0.0
    %1011 = vmatprep.subr.mxu0 0.0
    %1012 = vmatpush1.msra.mxu0 0.0
    %1013 = vmatprep.subr.mxu0 0.0
    %1014 = vmatpush1.msra.mxu0 0.0
    %1015 = vmatprep.subr.mxu0 0.0
    %1016 = vmatpush1.msra.mxu0 0.0
    %1017 = vmatprep.subr.mxu0 0.0
    %1018 = vmatpush1.msra.mxu0 0.0
    %1019 = vmatprep.subr.mxu0 0.0
    %1020 = vmatpush1.msra.mxu0 0.0
    %1021 = vmatprep.subr.mxu0 0.0
    %1022 = vmatpush1.msra.mxu0 0.0
    %1023 = vmatprep.mubr.f32.mxu0 0.0
    %1024 = vmatmul.mubr.f32.gmra.mrb[0].mxu0 %v957
    %v1025 = vpop.f32.mrb[0].mxu0
    %v1026 = vadd.f32 0.0, %v1025
    %v1027 = vpop.f32.mrb[0].mxu0
    %1028 = vdwg.mxu0
    %v1029 = vpack.c.bf16 %v1026, %v1026
    %v1031 = vsel %vm506, %v1029, 0
    %v1034 = vsel %vm650, %v159, 0
    %1036 = vmatprep.subr.bf16.mxu0 0
    %1037 = vmatpush1.bf16.msra.mxu0 %v1034
    %1038 = vmatprep.subr.bf16.mxu0 0
    %1039 = vmatpush1.bf16.msra.mxu0 0
    %1040 = vmatprep.subr.bf16.mxu0 0
    %1041 = vmatpush1.bf16.msra.mxu0 0
    %1042 = vmatprep.subr.bf16.mxu0 0
    %1043 = vmatpush1.bf16.msra.mxu0 0
    %1044 = vmatprep.subr.bf16.mxu0 0
    %1045 = vmatpush1.bf16.msra.mxu0 0
    %1046 = vmatprep.subr.bf16.mxu0 0
    %1047 = vmatpush1.bf16.msra.mxu0 0
    %1048 = vmatprep.subr.bf16.mxu0 0
    %1049 = vmatpush1.bf16.msra.mxu0 0
    %1050 = vmatprep.subr.bf16.mxu0 0
    %1051 = vmatpush1.bf16.msra.mxu0 0
    %1052 = vmatprep.subr.bf16.mxu0 0
    %1053 = vmatpush1.bf16.msra.mxu0 0
    %1054 = vmatprep.subr.bf16.mxu0 0
    %1055 = vmatpush1.bf16.msra.mxu0 0
    %1056 = vmatprep.subr.bf16.mxu0 0
    %1057 = vmatpush1.bf16.msra.mxu0 0
    %1058 = vmatprep.subr.bf16.mxu0 0
    %1059 = vmatpush1.bf16.msra.mxu0 0
    %1060 = vmatprep.subr.bf16.mxu0 0
    %1061 = vmatpush1.bf16.msra.mxu0 0
    %1062 = vmatprep.subr.bf16.mxu0 0
    %1063 = vmatpush1.bf16.msra.mxu0 0
    %1064 = vmatprep.subr.bf16.mxu0 0
    %1065 = vmatpush1.bf16.msra.mxu0 0
    %1066 = vmatprep.subr.bf16.mxu0 0
    %1067 = vmatpush1.bf16.msra.mxu0 0
    %1068 = vmatprep.mubr.bf16.mxu0 0
    %1069 = vmatmul.mubr.bf16.gmra.mrb[0].mxu0 %v1031
    %v1070 = vpop.f32.mrb[0].mxu0
    %v1071 = vadd.f32 0.0, %v1070
    %v1072 = vpop.f32.mrb[0].mxu0
    %v1073 = vpop.f32.mrb[0].mxu0
    %v1074 = vpop.f32.mrb[0].mxu0
    %1075 = vdwg.mxu0
    %v1076 = vadd.f32 %v888, %v1071
    %1077 = vrot.lane.b32.xlu0 %v497, 116
    %v1078 = vpop.permute.xlu0 %1077
    %1079 = vrot.lane.b32.xlu0 %v498, 116
    %v1080 = vpop.permute.xlu0 %1079
    %v1082 = vsel %vm506, %v1078, 0
    %v1085 = vsel %vm506, %v1080, 0
    %1087 = vmatprep.subr.bf16.mxu0 0
    %1088 = vmatpush1.bf16.xpose.msra.mxu0 %v1085
    %1089 = vmatprep.subr.bf16.mxu0 0
    %1090 = vmatpush1.bf16.xpose.msra.mxu0 0
    %1091 = vmatprep.subr.bf16.mxu0 0
    %1092 = vmatpush1.bf16.xpose.msra.mxu0 0
    %1093 = vmatprep.subr.bf16.mxu0 0
    %1094 = vmatpush1.bf16.xpose.msra.mxu0 0
    %1095 = vmatprep.subr.bf16.mxu0 0
    %1096 = vmatpush1.bf16.xpose.msra.mxu0 0
    %1097 = vmatprep.subr.bf16.mxu0 0
    %1098 = vmatpush1.bf16.xpose.msra.mxu0 0
    %1099 = vmatprep.subr.bf16.mxu0 0
    %1100 = vmatpush1.bf16.xpose.msra.mxu0 0
    %1101 = vmatprep.subr.bf16.mxu0 0
    %1102 = vmatpush1.bf16.xpose.msra.mxu0 0
    %1103 = vmatprep.subr.bf16.mxu0 0
    %1104 = vmatpush1.bf16.xpose.msra.mxu0 0
    %1105 = vmatprep.subr.bf16.mxu0 0
    %1106 = vmatpush1.bf16.xpose.msra.mxu0 0
    %1107 = vmatprep.subr.bf16.mxu0 0
    %1108 = vmatpush1.bf16.xpose.msra.mxu0 0
    %1109 = vmatprep.subr.bf16.mxu0 0
    %1110 = vmatpush1.bf16.xpose.msra.mxu0 0
    %1111 = vmatprep.subr.bf16.mxu0 0
    %1112 = vmatpush1.bf16.xpose.msra.mxu0 0
    %1113 = vmatprep.subr.bf16.mxu0 0
    %1114 = vmatpush1.bf16.xpose.msra.mxu0 0
    %1115 = vmatprep.subr.bf16.mxu0 0
    %1116 = vmatpush1.bf16.xpose.msra.mxu0 0
    %1117 = vmatprep.subr.bf16.mxu0 0
    %1118 = vmatpush1.bf16.xpose.msra.mxu0 0
    %1119 = vmatprep.mubr.bf16.mxu0 0
    %1120 = vmatmul.mubr.bf16.gmra.mrb[0].mxu0 %v1082
    %v1121 = vpop.f32.mrb[0].mxu0
    %v1122 = vadd.f32 0.0, %v1121
    %v1123 = vpop.f32.mrb[0].mxu0
    %v1124 = vpop.f32.mrb[0].mxu0
    %v1125 = vpop.f32.mrb[0].mxu0
    %1126 = vdwg.mxu0
    %v1127 = vsel %vm553, %v1122, -inf
    %1128 = vmax.xlane.f32.xlu0 %v1127
    %v1129 = vpop.xlane.xlu0 %1128
    %v1130 = vsub.f32 %v1122, %v1129
    %v1131 = vmul.f32 %v1130, 1.442695
    %v1132 = vpow.pop %v1131
    %v1133 = vsel %vm553, %v1132, 0.0
    %1134 = vadd.xlane.f32.xlu0 %v1133
    %v1135 = vpop.xlane.xlu0 %1134
    %v1136 = vrcp.pop %v1135
    %v1137 = vmul.f32 %v1132, %v1136
    %1138 = vrot.lane.b32.xlu0 %v491, 84
    %v1139 = vpop.permute.xlu0 %1138
    %1140 = vrot.lane.b32.xlu0 %v494, 84
    %v1141 = vpop.permute.xlu0 %1140
    %v1145 = vsel %vm553, %v1137, 0
    %1147 = vmatprep.subr.mxu0 0.0
    %1148 = vmatpush1.msra.mxu0 %v1139
    %1149 = vmatprep.subr.mxu0 0.0
    %1150 = vmatpush1.msra.mxu0 %v1141
    %1151 = vmatprep.subr.mxu0 0.0
    %1152 = vmatpush1.msra.mxu0 0.0
    %1153 = vmatprep.subr.mxu0 0.0
    %1154 = vmatpush1.msra.mxu0 0.0
    %1155 = vmatprep.subr.mxu0 0.0
    %1156 = vmatpush1.msra.mxu0 0.0
    %1157 = vmatprep.subr.mxu0 0.0
    %1158 = vmatpush1.msra.mxu0 0.0
    %1159 = vmatprep.subr.mxu0 0.0
    %1160 = vmatpush1.msra.mxu0 0.0
    %1161 = vmatprep.subr.mxu0 0.0
    %1162 = vmatpush1.msra.mxu0 0.0
    %1163 = vmatprep.subr.mxu0 0.0
    %1164 = vmatpush1.msra.mxu0 0.0
    %1165 = vmatprep.subr.mxu0 0.0
    %1166 = vmatpush1.msra.mxu0 0.0
    %1167 = vmatprep.subr.mxu0 0.0
    %1168 = vmatpush1.msra.mxu0 0.0
    %1169 = vmatprep.subr.mxu0 0.0
    %1170 = vmatpush1.msra.mxu0 0.0
    %1171 = vmatprep.subr.mxu0 0.0
    %1172 = vmatpush1.msra.mxu0 0.0
    %1173 = vmatprep.subr.mxu0 0.0
    %1174 = vmatpush1.msra.mxu0 0.0
    %1175 = vmatprep.subr.mxu0 0.0
    %1176 = vmatpush1.msra.mxu0 0.0
    %1177 = vmatprep.subr.mxu0 0.0
    %1178 = vmatpush1.msra.mxu0 0.0
    %1179 = vmatprep.subr.mxu0 0.0
    %1180 = vmatpush1.msra.mxu0 0.0
    %1181 = vmatprep.subr.mxu0 0.0
    %1182 = vmatpush1.msra.mxu0 0.0
    %1183 = vmatprep.subr.mxu0 0.0
    %1184 = vmatpush1.msra.mxu0 0.0
    %1185 = vmatprep.subr.mxu0 0.0
    %1186 = vmatpush1.msra.mxu0 0.0
    %1187 = vmatprep.subr.mxu0 0.0
    %1188 = vmatpush1.msra.mxu0 0.0
    %1189 = vmatprep.subr.mxu0 0.0
    %1190 = vmatpush1.msra.mxu0 0.0
    %1191 = vmatprep.subr.mxu0 0.0
    %1192 = vmatpush1.msra.mxu0 0.0
    %1193 = vmatprep.subr.mxu0 0.0
    %1194 = vmatpush1.msra.mxu0 0.0
    %1195 = vmatprep.subr.mxu0 0.0
    %1196 = vmatpush1.msra.mxu0 0.0
    %1197 = vmatprep.subr.mxu0 0.0
    %1198 = vmatpush1.msra.mxu0 0.0
    %1199 = vmatprep.subr.mxu0 0.0
    %1200 = vmatpush1.msra.mxu0 0.0
    %1201 = vmatprep.subr.mxu0 0.0
    %1202 = vmatpush1.msra.mxu0 0.0
    %1203 = vmatprep.subr.mxu0 0.0
    %1204 = vmatpush1.msra.mxu0 0.0
    %1205 = vmatprep.subr.mxu0 0.0
    %1206 = vmatpush1.msra.mxu0 0.0
    %1207 = vmatprep.subr.mxu0 0.0
    %1208 = vmatpush1.msra.mxu0 0.0
    %1209 = vmatprep.subr.mxu0 0.0
    %1210 = vmatpush1.msra.mxu0 0.0
    %1211 = vmatprep.mubr.f32.mxu0 0.0
    %1212 = vmatmul.mubr.f32.gmra.mrb[0].mxu0 %v1145
    %v1213 = vpop.f32.mrb[0].mxu0
    %v1214 = vadd.f32 0.0, %v1213
    %v1215 = vpop.f32.mrb[0].mxu0
    %1216 = vdwg.mxu0
    %v1217 = vpack.c.bf16 %v1214, %v1214
    %v1219 = vunpack.c.l.b16 %v159
    %v1220 = vpack.c.b16 %v1219, %v1219
    %v1221 = vrot.slane %v1220, 2
    %v1223 = vsel %vm506, %v1217, 0
    %v1226 = vsel %vm650, %v1221, 0
    %1228 = vmatprep.subr.bf16.mxu0 0
    %1229 = vmatpush1.bf16.msra.mxu0 %v1226
    %1230 = vmatprep.subr.bf16.mxu0 0
    %1231 = vmatpush1.bf16.msra.mxu0 0
    %1232 = vmatprep.subr.bf16.mxu0 0
    %1233 = vmatpush1.bf16.msra.mxu0 0
    %1234 = vmatprep.subr.bf16.mxu0 0
    %1235 = vmatpush1.bf16.msra.mxu0 0
    %1236 = vmatprep.subr.bf16.mxu0 0
    %1237 = vmatpush1.bf16.msra.mxu0 0
    %1238 = vmatprep.subr.bf16.mxu0 0
    %1239 = vmatpush1.bf16.msra.mxu0 0
    %1240 = vmatprep.subr.bf16.mxu0 0
    %1241 = vmatpush1.bf16.msra.mxu0 0
    %1242 = vmatprep.subr.bf16.mxu0 0
    %1243 = vmatpush1.bf16.msra.mxu0 0
    %1244 = vmatprep.subr.bf16.mxu0 0
    %1245 = vmatpush1.bf16.msra.mxu0 0
    %1246 = vmatprep.subr.bf16.mxu0 0
    %1247 = vmatpush1.bf16.msra.mxu0 0
    %1248 = vmatprep.subr.bf16.mxu0 0
    %1249 = vmatpush1.bf16.msra.mxu0 0
    %1250 = vmatprep.subr.bf16.mxu0 0
    %1251 = vmatpush1.bf16.msra.mxu0 0
    %1252 = vmatprep.subr.bf16.mxu0 0
    %1253 = vmatpush1.bf16.msra.mxu0 0
    %1254 = vmatprep.subr.bf16.mxu0 0
    %1255 = vmatpush1.bf16.msra.mxu0 0
    %1256 = vmatprep.subr.bf16.mxu0 0
    %1257 = vmatpush1.bf16.msra.mxu0 0
    %1258 = vmatprep.subr.bf16.mxu0 0
    %1259 = vmatpush1.bf16.msra.mxu0 0
    %1260 = vmatprep.mubr.bf16.mxu0 0
    %1261 = vmatmul.mubr.bf16.gmra.mrb[0].mxu0 %v1223
    %v1262 = vpop.f32.mrb[0].mxu0
    %v1263 = vadd.f32 0.0, %v1262
    %v1264 = vpop.f32.mrb[0].mxu0
    %v1265 = vpop.f32.mrb[0].mxu0
    %v1266 = vpop.f32.mrb[0].mxu0
    %1267 = vdwg.mxu0
    %v1268 = vadd.f32 %v1076, %v1263
    %1269 = vrot.lane.b32.xlu0 %v497, 112
    %v1270 = vpop.permute.xlu0 %1269
    %1271 = vrot.lane.b32.xlu0 %v498, 112
    %v1272 = vpop.permute.xlu0 %1271
    %v1274 = vsel %vm506, %v1270, 0
    %v1277 = vsel %vm506, %v1272, 0
    %1279 = vmatprep.subr.bf16.mxu0 0
    %1280 = vmatpush1.bf16.xpose.msra.mxu0 %v1277
    %1281 = vmatprep.subr.bf16.mxu0 0
    %1282 = vmatpush1.bf16.xpose.msra.mxu0 0
    %1283 = vmatprep.subr.bf16.mxu0 0
    %1284 = vmatpush1.bf16.xpose.msra.mxu0 0
    %1285 = vmatprep.subr.bf16.mxu0 0
    %1286 = vmatpush1.bf16.xpose.msra.mxu0 0
    %1287 = vmatprep.subr.bf16.mxu0 0
    %1288 = vmatpush1.bf16.xpose.msra.mxu0 0
    %1289 = vmatprep.subr.bf16.mxu0 0
    %1290 = vmatpush1.bf16.xpose.msra.mxu0 0
    %1291 = vmatprep.subr.bf16.mxu0 0
    %1292 = vmatpush1.bf16.xpose.msra.mxu0 0
    %1293 = vmatprep.subr.bf16.mxu0 0
    %1294 = vmatpush1.bf16.xpose.msra.mxu0 0
    %1295 = vmatprep.subr.bf16.mxu0 0
    %1296 = vmatpush1.bf16.xpose.msra.mxu0 0
    %1297 = vmatprep.subr.bf16.mxu0 0
    %1298 = vmatpush1.bf16.xpose.msra.mxu0 0
    %1299 = vmatprep.subr.bf16.mxu0 0
    %1300 = vmatpush1.bf16.xpose.msra.mxu0 0
    %1301 = vmatprep.subr.bf16.mxu0 0
    %1302 = vmatpush1.bf16.xpose.msra.mxu0 0
    %1303 = vmatprep.subr.bf16.mxu0 0
    %1304 = vmatpush1.bf16.xpose.msra.mxu0 0
    %1305 = vmatprep.subr.bf16.mxu0 0
    %1306 = vmatpush1.bf16.xpose.msra.mxu0 0
    %1307 = vmatprep.subr.bf16.mxu0 0
    %1308 = vmatpush1.bf16.xpose.msra.mxu0 0
    %1309 = vmatprep.subr.bf16.mxu0 0
    %1310 = vmatpush1.bf16.xpose.msra.mxu0 0
    %1311 = vmatprep.mubr.bf16.mxu0 0
    %1312 = vmatmul.mubr.bf16.gmra.mrb[0].mxu0 %v1274
    %v1313 = vpop.f32.mrb[0].mxu0
    %v1314 = vadd.f32 0.0, %v1313
    %v1315 = vpop.f32.mrb[0].mxu0
    %v1316 = vpop.f32.mrb[0].mxu0
    %v1317 = vpop.f32.mrb[0].mxu0
    %1318 = vdwg.mxu0
    %v1319 = vsel %vm553, %v1314, -inf
    %1320 = vmax.xlane.f32.xlu0 %v1319
    %v1321 = vpop.xlane.xlu0 %1320
    %v1322 = vsub.f32 %v1314, %v1321
    %v1323 = vmul.f32 %v1322, 1.442695
    %v1324 = vpow.pop %v1323
    %v1325 = vsel %vm553, %v1324, 0.0
    %1326 = vadd.xlane.f32.xlu0 %v1325
    %v1327 = vpop.xlane.xlu0 %1326
    %v1328 = vrcp.pop %v1327
    %v1329 = vmul.f32 %v1324, %v1328
    %1330 = vrot.lane.b32.xlu0 %v491, 80
    %v1331 = vpop.permute.xlu0 %1330
    %1332 = vrot.lane.b32.xlu0 %v494, 80
    %v1333 = vpop.permute.xlu0 %1332
    %v1337 = vsel %vm553, %v1329, 0
    %1339 = vmatprep.subr.mxu0 0.0
    %1340 = vmatpush1.msra.mxu0 %v1331
    %1341 = vmatprep.subr.mxu0 0.0
    %1342 = vmatpush1.msra.mxu0 %v1333
    %1343 = vmatprep.subr.mxu0 0.0
    %1344 = vmatpush1.msra.mxu0 0.0
    %1345 = vmatprep.subr.mxu0 0.0
    %1346 = vmatpush1.msra.mxu0 0.0
    %1347 = vmatprep.subr.mxu0 0.0
    %1348 = vmatpush1.msra.mxu0 0.0
    %1349 = vmatprep.subr.mxu0 0.0
    %1350 = vmatpush1.msra.mxu0 0.0
    %1351 = vmatprep.subr.mxu0 0.0
    %1352 = vmatpush1.msra.mxu0 0.0
    %1353 = vmatprep.subr.mxu0 0.0
    %1354 = vmatpush1.msra.mxu0 0.0
    %1355 = vmatprep.subr.mxu0 0.0
    %1356 = vmatpush1.msra.mxu0 0.0
    %1357 = vmatprep.subr.mxu0 0.0
    %1358 = vmatpush1.msra.mxu0 0.0
    %1359 = vmatprep.subr.mxu0 0.0
    %1360 = vmatpush1.msra.mxu0 0.0
    %1361 = vmatprep.subr.mxu0 0.0
    %1362 = vmatpush1.msra.mxu0 0.0
    %1363 = vmatprep.subr.mxu0 0.0
    %1364 = vmatpush1.msra.mxu0 0.0
    %1365 = vmatprep.subr.mxu0 0.0
    %1366 = vmatpush1.msra.mxu0 0.0
    %1367 = vmatprep.subr.mxu0 0.0
    %1368 = vmatpush1.msra.mxu0 0.0
    %1369 = vmatprep.subr.mxu0 0.0
    %1370 = vmatpush1.msra.mxu0 0.0
    %1371 = vmatprep.subr.mxu0 0.0
    %1372 = vmatpush1.msra.mxu0 0.0
    %1373 = vmatprep.subr.mxu0 0.0
    %1374 = vmatpush1.msra.mxu0 0.0
    %1375 = vmatprep.subr.mxu0 0.0
    %1376 = vmatpush1.msra.mxu0 0.0
    %1377 = vmatprep.subr.mxu0 0.0
    %1378 = vmatpush1.msra.mxu0 0.0
    %1379 = vmatprep.subr.mxu0 0.0
    %1380 = vmatpush1.msra.mxu0 0.0
    %1381 = vmatprep.subr.mxu0 0.0
    %1382 = vmatpush1.msra.mxu0 0.0
    %1383 = vmatprep.subr.mxu0 0.0
    %1384 = vmatpush1.msra.mxu0 0.0
    %1385 = vmatprep.subr.mxu0 0.0
    %1386 = vmatpush1.msra.mxu0 0.0
    %1387 = vmatprep.subr.mxu0 0.0
    %1388 = vmatpush1.msra.mxu0 0.0
    %1389 = vmatprep.subr.mxu0 0.0
    %1390 = vmatpush1.msra.mxu0 0.0
    %1391 = vmatprep.subr.mxu0 0.0
    %1392 = vmatpush1.msra.mxu0 0.0
    %1393 = vmatprep.subr.mxu0 0.0
    %1394 = vmatpush1.msra.mxu0 0.0
    %1395 = vmatprep.subr.mxu0 0.0
    %1396 = vmatpush1.msra.mxu0 0.0
    %1397 = vmatprep.subr.mxu0 0.0
    %1398 = vmatpush1.msra.mxu0 0.0
    %1399 = vmatprep.subr.mxu0 0.0
    %1400 = vmatpush1.msra.mxu0 0.0
    %1401 = vmatprep.subr.mxu0 0.0
    %1402 = vmatpush1.msra.mxu0 0.0
    %1403 = vmatprep.mubr.f32.mxu0 0.0
    %1404 = vmatmul.mubr.f32.gmra.mrb[0].mxu0 %v1337
    %v1405 = vpop.f32.mrb[0].mxu0
    %v1406 = vadd.f32 0.0, %v1405
    %v1407 = vpop.f32.mrb[0].mxu0
    %1408 = vdwg.mxu0
    %v1409 = vpack.c.bf16 %v1406, %v1406
    %v1411 = vsel %vm506, %v1409, 0
    %v1414 = vsel %vm650, %v160, 0
    %1416 = vmatprep.subr.bf16.mxu0 0
    %1417 = vmatpush1.bf16.msra.mxu0 %v1414
    %1418 = vmatprep.subr.bf16.mxu0 0
    %1419 = vmatpush1.bf16.msra.mxu0 0
    %1420 = vmatprep.subr.bf16.mxu0 0
    %1421 = vmatpush1.bf16.msra.mxu0 0
    %1422 = vmatprep.subr.bf16.mxu0 0
    %1423 = vmatpush1.bf16.msra.mxu0 0
    %1424 = vmatprep.subr.bf16.mxu0 0
    %1425 = vmatpush1.bf16.msra.mxu0 0
    %1426 = vmatprep.subr.bf16.mxu0 0
    %1427 = vmatpush1.bf16.msra.mxu0 0
    %1428 = vmatprep.subr.bf16.mxu0 0
    %1429 = vmatpush1.bf16.msra.mxu0 0
    %1430 = vmatprep.subr.bf16.mxu0 0
    %1431 = vmatpush1.bf16.msra.mxu0 0
    %1432 = vmatprep.subr.bf16.mxu0 0
    %1433 = vmatpush1.bf16.msra.mxu0 0
    %1434 = vmatprep.subr.bf16.mxu0 0
    %1435 = vmatpush1.bf16.msra.mxu0 0
    %1436 = vmatprep.subr.bf16.mxu0 0
    %1437 = vmatpush1.bf16.msra.mxu0 0
    %1438 = vmatprep.subr.bf16.mxu0 0
    %1439 = vmatpush1.bf16.msra.mxu0 0
    %1440 = vmatprep.subr.bf16.mxu0 0
    %1441 = vmatpush1.bf16.msra.mxu0 0
    %1442 = vmatprep.subr.bf16.mxu0 0
    %1443 = vmatpush1.bf16.msra.mxu0 0
    %1444 = vmatprep.subr.bf16.mxu0 0
    %1445 = vmatpush1.bf16.msra.mxu0 0
    %1446 = vmatprep.subr.bf16.mxu0 0
    %1447 = vmatpush1.bf16.msra.mxu0 0
    %1448 = vmatprep.mubr.bf16.mxu0 0
    %1449 = vmatmul.mubr.bf16.gmra.mrb[0].mxu0 %v1411
    %v1450 = vpop.f32.mrb[0].mxu0
    %v1451 = vadd.f32 0.0, %v1450
    %v1452 = vpop.f32.mrb[0].mxu0
    %v1453 = vpop.f32.mrb[0].mxu0
    %v1454 = vpop.f32.mrb[0].mxu0
    %1455 = vdwg.mxu0
    %v1456 = vadd.f32 %v1268, %v1451
    %1457 = vrot.lane.b32.xlu0 %v497, 108
    %v1458 = vpop.permute.xlu0 %1457
    %1459 = vrot.lane.b32.xlu0 %v498, 108
    %v1460 = vpop.permute.xlu0 %1459
    %v1462 = vsel %vm506, %v1458, 0
    %v1465 = vsel %vm506, %v1460, 0
    %1467 = vmatprep.subr.bf16.mxu0 0
    %1468 = vmatpush1.bf16.xpose.msra.mxu0 %v1465
    %1469 = vmatprep.subr.bf16.mxu0 0
    %1470 = vmatpush1.bf16.xpose.msra.mxu0 0
    %1471 = vmatprep.subr.bf16.mxu0 0
    %1472 = vmatpush1.bf16.xpose.msra.mxu0 0
    %1473 = vmatprep.subr.bf16.mxu0 0
    %1474 = vmatpush1.bf16.xpose.msra.mxu0 0
    %1475 = vmatprep.subr.bf16.mxu0 0
    %1476 = vmatpush1.bf16.xpose.msra.mxu0 0
    %1477 = vmatprep.subr.bf16.mxu0 0
    %1478 = vmatpush1.bf16.xpose.msra.mxu0 0
    %1479 = vmatprep.subr.bf16.mxu0 0
    %1480 = vmatpush1.bf16.xpose.msra.mxu0 0
    %1481 = vmatprep.subr.bf16.mxu0 0
    %1482 = vmatpush1.bf16.xpose.msra.mxu0 0
    %1483 = vmatprep.subr.bf16.mxu0 0
    %1484 = vmatpush1.bf16.xpose.msra.mxu0 0
    %1485 = vmatprep.subr.bf16.mxu0 0
    %1486 = vmatpush1.bf16.xpose.msra.mxu0 0
    %1487 = vmatprep.subr.bf16.mxu0 0
    %1488 = vmatpush1.bf16.xpose.msra.mxu0 0
    %1489 = vmatprep.subr.bf16.mxu0 0
    %1490 = vmatpush1.bf16.xpose.msra.mxu0 0
    %1491 = vmatprep.subr.bf16.mxu0 0
    %1492 = vmatpush1.bf16.xpose.msra.mxu0 0
    %1493 = vmatprep.subr.bf16.mxu0 0
    %1494 = vmatpush1.bf16.xpose.msra.mxu0 0
    %1495 = vmatprep.subr.bf16.mxu0 0
    %1496 = vmatpush1.bf16.xpose.msra.mxu0 0
    %1497 = vmatprep.subr.bf16.mxu0 0
    %1498 = vmatpush1.bf16.xpose.msra.mxu0 0
    %1499 = vmatprep.mubr.bf16.mxu0 0
    %1500 = vmatmul.mubr.bf16.gmra.mrb[0].mxu0 %v1462
    %v1501 = vpop.f32.mrb[0].mxu0
    %v1502 = vadd.f32 0.0, %v1501
    %v1503 = vpop.f32.mrb[0].mxu0
    %v1504 = vpop.f32.mrb[0].mxu0
    %v1505 = vpop.f32.mrb[0].mxu0
    %1506 = vdwg.mxu0
    %v1507 = vsel %vm553, %v1502, -inf
    %1508 = vmax.xlane.f32.xlu0 %v1507
    %v1509 = vpop.xlane.xlu0 %1508
    %v1510 = vsub.f32 %v1502, %v1509
    %v1511 = vmul.f32 %v1510, 1.442695
    %v1512 = vpow.pop %v1511
    %v1513 = vsel %vm553, %v1512, 0.0
    %1514 = vadd.xlane.f32.xlu0 %v1513
    %v1515 = vpop.xlane.xlu0 %1514
    %v1516 = vrcp.pop %v1515
    %v1517 = vmul.f32 %v1512, %v1516
    %1518 = vrot.lane.b32.xlu0 %v491, 76
    %v1519 = vpop.permute.xlu0 %1518
    %1520 = vrot.lane.b32.xlu0 %v494, 76
    %v1521 = vpop.permute.xlu0 %1520
    %v1525 = vsel %vm553, %v1517, 0
    %1527 = vmatprep.subr.mxu0 0.0
    %1528 = vmatpush1.msra.mxu0 %v1519
    %1529 = vmatprep.subr.mxu0 0.0
    %1530 = vmatpush1.msra.mxu0 %v1521
    %1531 = vmatprep.subr.mxu0 0.0
    %1532 = vmatpush1.msra.mxu0 0.0
    %1533 = vmatprep.subr.mxu0 0.0
    %1534 = vmatpush1.msra.mxu0 0.0
    %1535 = vmatprep.subr.mxu0 0.0
    %1536 = vmatpush1.msra.mxu0 0.0
    %1537 = vmatprep.subr.mxu0 0.0
    %1538 = vmatpush1.msra.mxu0 0.0
    %1539 = vmatprep.subr.mxu0 0.0
    %1540 = vmatpush1.msra.mxu0 0.0
    %1541 = vmatprep.subr.mxu0 0.0
    %1542 = vmatpush1.msra.mxu0 0.0
    %1543 = vmatprep.subr.mxu0 0.0
    %1544 = vmatpush1.msra.mxu0 0.0
    %1545 = vmatprep.subr.mxu0 0.0
    %1546 = vmatpush1.msra.mxu0 0.0
    %1547 = vmatprep.subr.mxu0 0.0
    %1548 = vmatpush1.msra.mxu0 0.0
    %1549 = vmatprep.subr.mxu0 0.0
    %1550 = vmatpush1.msra.mxu0 0.0
    %1551 = vmatprep.subr.mxu0 0.0
    %1552 = vmatpush1.msra.mxu0 0.0
    %1553 = vmatprep.subr.mxu0 0.0
    %1554 = vmatpush1.msra.mxu0 0.0
    %1555 = vmatprep.subr.mxu0 0.0
    %1556 = vmatpush1.msra.mxu0 0.0
    %1557 = vmatprep.subr.mxu0 0.0
    %1558 = vmatpush1.msra.mxu0 0.0
    %1559 = vmatprep.subr.mxu0 0.0
    %1560 = vmatpush1.msra.mxu0 0.0
    %1561 = vmatprep.subr.mxu0 0.0
    %1562 = vmatpush1.msra.mxu0 0.0
    %1563 = vmatprep.subr.mxu0 0.0
    %1564 = vmatpush1.msra.mxu0 0.0
    %1565 = vmatprep.subr.mxu0 0.0
    %1566 = vmatpush1.msra.mxu0 0.0
    %1567 = vmatprep.subr.mxu0 0.0
    %1568 = vmatpush1.msra.mxu0 0.0
    %1569 = vmatprep.subr.mxu0 0.0
    %1570 = vmatpush1.msra.mxu0 0.0
    %1571 = vmatprep.subr.mxu0 0.0
    %1572 = vmatpush1.msra.mxu0 0.0
    %1573 = vmatprep.subr.mxu0 0.0
    %1574 = vmatpush1.msra.mxu0 0.0
    %1575 = vmatprep.subr.mxu0 0.0
    %1576 = vmatpush1.msra.mxu0 0.0
    %1577 = vmatprep.subr.mxu0 0.0
    %1578 = vmatpush1.msra.mxu0 0.0
    %1579 = vmatprep.subr.mxu0 0.0
    %1580 = vmatpush1.msra.mxu0 0.0
    %1581 = vmatprep.subr.mxu0 0.0
    %1582 = vmatpush1.msra.mxu0 0.0
    %1583 = vmatprep.subr.mxu0 0.0
    %1584 = vmatpush1.msra.mxu0 0.0
    %1585 = vmatprep.subr.mxu0 0.0
    %1586 = vmatpush1.msra.mxu0 0.0
    %1587 = vmatprep.subr.mxu0 0.0
    %1588 = vmatpush1.msra.mxu0 0.0
    %1589 = vmatprep.subr.mxu0 0.0
    %1590 = vmatpush1.msra.mxu0 0.0
    %1591 = vmatprep.mubr.f32.mxu0 0.0
    %1592 = vmatmul.mubr.f32.gmra.mrb[0].mxu0 %v1525
    %v1593 = vpop.f32.mrb[0].mxu0
    %v1594 = vadd.f32 0.0, %v1593
    %v1595 = vpop.f32.mrb[0].mxu0
    %1596 = vdwg.mxu0
    %v1597 = vpack.c.bf16 %v1594, %v1594
    %v1599 = vunpack.c.l.b16 %v160
    %v1600 = vpack.c.b16 %v1599, %v1599
    %v1601 = vrot.slane %v1600, 2
    %v1603 = vsel %vm506, %v1597, 0
    %v1606 = vsel %vm650, %v1601, 0
    %1608 = vmatprep.subr.bf16.mxu0 0
    %1609 = vmatpush1.bf16.msra.mxu0 %v1606
    %1610 = vmatprep.subr.bf16.mxu0 0
    %1611 = vmatpush1.bf16.msra.mxu0 0
    %1612 = vmatprep.subr.bf16.mxu0 0
    %1613 = vmatpush1.bf16.msra.mxu0 0
    %1614 = vmatprep.subr.bf16.mxu0 0
    %1615 = vmatpush1.bf16.msra.mxu0 0
    %1616 = vmatprep.subr.bf16.mxu0 0
    %1617 = vmatpush1.bf16.msra.mxu0 0
    %1618 = vmatprep.subr.bf16.mxu0 0
    %1619 = vmatpush1.bf16.msra.mxu0 0
    %1620 = vmatprep.subr.bf16.mxu0 0
    %1621 = vmatpush1.bf16.msra.mxu0 0
    %1622 = vmatprep.subr.bf16.mxu0 0
    %1623 = vmatpush1.bf16.msra.mxu0 0
    %1624 = vmatprep.subr.bf16.mxu0 0
    %1625 = vmatpush1.bf16.msra.mxu0 0
    %1626 = vmatprep.subr.bf16.mxu0 0
    %1627 = vmatpush1.bf16.msra.mxu0 0
    %1628 = vmatprep.subr.bf16.mxu0 0
    %1629 = vmatpush1.bf16.msra.mxu0 0
    %1630 = vmatprep.subr.bf16.mxu0 0
    %1631 = vmatpush1.bf16.msra.mxu0 0
    %1632 = vmatprep.subr.bf16.mxu0 0
    %1633 = vmatpush1.bf16.msra.mxu0 0
    %1634 = vmatprep.subr.bf16.mxu0 0
    %1635 = vmatpush1.bf16.msra.mxu0 0
    %1636 = vmatprep.subr.bf16.mxu0 0
    %1637 = vmatpush1.bf16.msra.mxu0 0
    %1638 = vmatprep.subr.bf16.mxu0 0
    %1639 = vmatpush1.bf16.msra.mxu0 0
    %1640 = vmatprep.mubr.bf16.mxu0 0
    %1641 = vmatmul.mubr.bf16.gmra.mrb[0].mxu0 %v1603
    %v1642 = vpop.f32.mrb[0].mxu0
    %v1643 = vadd.f32 0.0, %v1642
    %v1644 = vpop.f32.mrb[0].mxu0
    %v1645 = vpop.f32.mrb[0].mxu0
    %v1646 = vpop.f32.mrb[0].mxu0
    %1647 = vdwg.mxu0
    %v1648 = vadd.f32 %v1456, %v1643
    %1649 = vrot.lane.b32.xlu0 %v497, 104
    %v1650 = vpop.permute.xlu0 %1649
    %1651 = vrot.lane.b32.xlu0 %v498, 104
    %v1652 = vpop.permute.xlu0 %1651
    %v1654 = vsel %vm506, %v1650, 0
    %v1657 = vsel %vm506, %v1652, 0
    %1659 = vmatprep.subr.bf16.mxu0 0
    %1660 = vmatpush1.bf16.xpose.msra.mxu0 %v1657
    %1661 = vmatprep.subr.bf16.mxu0 0
    %1662 = vmatpush1.bf16.xpose.msra.mxu0 0
    %1663 = vmatprep.subr.bf16.mxu0 0
    %1664 = vmatpush1.bf16.xpose.msra.mxu0 0
    %1665 = vmatprep.subr.bf16.mxu0 0
    %1666 = vmatpush1.bf16.xpose.msra.mxu0 0
    %1667 = vmatprep.subr.bf16.mxu0 0
    %1668 = vmatpush1.bf16.xpose.msra.mxu0 0
    %1669 = vmatprep.subr.bf16.mxu0 0
    %1670 = vmatpush1.bf16.xpose.msra.mxu0 0
    %1671 = vmatprep.subr.bf16.mxu0 0
    %1672 = vmatpush1.bf16.xpose.msra.mxu0 0
    %1673 = vmatprep.subr.bf16.mxu0 0
    %1674 = vmatpush1.bf16.xpose.msra.mxu0 0
    %1675 = vmatprep.subr.bf16.mxu0 0
    %1676 = vmatpush1.bf16.xpose.msra.mxu0 0
    %1677 = vmatprep.subr.bf16.mxu0 0
    %1678 = vmatpush1.bf16.xpose.msra.mxu0 0
    %1679 = vmatprep.subr.bf16.mxu0 0
    %1680 = vmatpush1.bf16.xpose.msra.mxu0 0
    %1681 = vmatprep.subr.bf16.mxu0 0
    %1682 = vmatpush1.bf16.xpose.msra.mxu0 0
    %1683 = vmatprep.subr.bf16.mxu0 0
    %1684 = vmatpush1.bf16.xpose.msra.mxu0 0
    %1685 = vmatprep.subr.bf16.mxu0 0
    %1686 = vmatpush1.bf16.xpose.msra.mxu0 0
    %1687 = vmatprep.subr.bf16.mxu0 0
    %1688 = vmatpush1.bf16.xpose.msra.mxu0 0
    %1689 = vmatprep.subr.bf16.mxu0 0
    %1690 = vmatpush1.bf16.xpose.msra.mxu0 0
    %1691 = vmatprep.mubr.bf16.mxu0 0
    %1692 = vmatmul.mubr.bf16.gmra.mrb[0].mxu0 %v1654
    %v1693 = vpop.f32.mrb[0].mxu0
    %v1694 = vadd.f32 0.0, %v1693
    %v1695 = vpop.f32.mrb[0].mxu0
    %v1696 = vpop.f32.mrb[0].mxu0
    %v1697 = vpop.f32.mrb[0].mxu0
    %1698 = vdwg.mxu0
    %v1699 = vsel %vm553, %v1694, -inf
    %1700 = vmax.xlane.f32.xlu0 %v1699
    %v1701 = vpop.xlane.xlu0 %1700
    %v1702 = vsub.f32 %v1694, %v1701
    %v1703 = vmul.f32 %v1702, 1.442695
    %v1704 = vpow.pop %v1703
    %v1705 = vsel %vm553, %v1704, 0.0
    %1706 = vadd.xlane.f32.xlu0 %v1705
    %v1707 = vpop.xlane.xlu0 %1706
    %v1708 = vrcp.pop %v1707
    %v1709 = vmul.f32 %v1704, %v1708
    %1710 = vrot.lane.b32.xlu0 %v491, 72
    %v1711 = vpop.permute.xlu0 %1710
    %1712 = vrot.lane.b32.xlu0 %v494, 72
    %v1713 = vpop.permute.xlu0 %1712
    %v1717 = vsel %vm553, %v1709, 0
    %1719 = vmatprep.subr.mxu0 0.0
    %1720 = vmatpush1.msra.mxu0 %v1711
    %1721 = vmatprep.subr.mxu0 0.0
    %1722 = vmatpush1.msra.mxu0 %v1713
    %1723 = vmatprep.subr.mxu0 0.0
    %1724 = vmatpush1.msra.mxu0 0.0
    %1725 = vmatprep.subr.mxu0 0.0
    %1726 = vmatpush1.msra.mxu0 0.0
    %1727 = vmatprep.subr.mxu0 0.0
    %1728 = vmatpush1.msra.mxu0 0.0
    %1729 = vmatprep.subr.mxu0 0.0
    %1730 = vmatpush1.msra.mxu0 0.0
    %1731 = vmatprep.subr.mxu0 0.0
    %1732 = vmatpush1.msra.mxu0 0.0
    %1733 = vmatprep.subr.mxu0 0.0
    %1734 = vmatpush1.msra.mxu0 0.0
    %1735 = vmatprep.subr.mxu0 0.0
    %1736 = vmatpush1.msra.mxu0 0.0
    %1737 = vmatprep.subr.mxu0 0.0
    %1738 = vmatpush1.msra.mxu0 0.0
    %1739 = vmatprep.subr.mxu0 0.0
    %1740 = vmatpush1.msra.mxu0 0.0
    %1741 = vmatprep.subr.mxu0 0.0
    %1742 = vmatpush1.msra.mxu0 0.0
    %1743 = vmatprep.subr.mxu0 0.0
    %1744 = vmatpush1.msra.mxu0 0.0
    %1745 = vmatprep.subr.mxu0 0.0
    %1746 = vmatpush1.msra.mxu0 0.0
    %1747 = vmatprep.subr.mxu0 0.0
    %1748 = vmatpush1.msra.mxu0 0.0
    %1749 = vmatprep.subr.mxu0 0.0
    %1750 = vmatpush1.msra.mxu0 0.0
    %1751 = vmatprep.subr.mxu0 0.0
    %1752 = vmatpush1.msra.mxu0 0.0
    %1753 = vmatprep.subr.mxu0 0.0
    %1754 = vmatpush1.msra.mxu0 0.0
    %1755 = vmatprep.subr.mxu0 0.0
    %1756 = vmatpush1.msra.mxu0 0.0
    %1757 = vmatprep.subr.mxu0 0.0
    %1758 = vmatpush1.msra.mxu0 0.0
    %1759 = vmatprep.subr.mxu0 0.0
    %1760 = vmatpush1.msra.mxu0 0.0
    %1761 = vmatprep.subr.mxu0 0.0
    %1762 = vmatpush1.msra.mxu0 0.0
    %1763 = vmatprep.subr.mxu0 0.0
    %1764 = vmatpush1.msra.mxu0 0.0
    %1765 = vmatprep.subr.mxu0 0.0
    %1766 = vmatpush1.msra.mxu0 0.0
    %1767 = vmatprep.subr.mxu0 0.0
    %1768 = vmatpush1.msra.mxu0 0.0
    %1769 = vmatprep.subr.mxu0 0.0
    %1770 = vmatpush1.msra.mxu0 0.0
    %1771 = vmatprep.subr.mxu0 0.0
    %1772 = vmatpush1.msra.mxu0 0.0
    %1773 = vmatprep.subr.mxu0 0.0
    %1774 = vmatpush1.msra.mxu0 0.0
    %1775 = vmatprep.subr.mxu0 0.0
    %1776 = vmatpush1.msra.mxu0 0.0
    %1777 = vmatprep.subr.mxu0 0.0
    %1778 = vmatpush1.msra.mxu0 0.0
    %1779 = vmatprep.subr.mxu0 0.0
    %1780 = vmatpush1.msra.mxu0 0.0
    %1781 = vmatprep.subr.mxu0 0.0
    %1782 = vmatpush1.msra.mxu0 0.0
    %1783 = vmatprep.mubr.f32.mxu0 0.0
    %1784 = vmatmul.mubr.f32.gmra.mrb[0].mxu0 %v1717
    %v1785 = vpop.f32.mrb[0].mxu0
    %v1786 = vadd.f32 0.0, %v1785
    %v1787 = vpop.f32.mrb[0].mxu0
    %1788 = vdwg.mxu0
    %v1789 = vpack.c.bf16 %v1786, %v1786
    %v1791 = vsel %vm506, %v1789, 0
    %v1794 = vsel %vm650, %v161, 0
    %1796 = vmatprep.subr.bf16.mxu0 0
    %1797 = vmatpush1.bf16.msra.mxu0 %v1794
    %1798 = vmatprep.subr.bf16.mxu0 0
    %1799 = vmatpush1.bf16.msra.mxu0 0
    %1800 = vmatprep.subr.bf16.mxu0 0
    %1801 = vmatpush1.bf16.msra.mxu0 0
    %1802 = vmatprep.subr.bf16.mxu0 0
    %1803 = vmatpush1.bf16.msra.mxu0 0
    %1804 = vmatprep.subr.bf16.mxu0 0
    %1805 = vmatpush1.bf16.msra.mxu0 0
    %1806 = vmatprep.subr.bf16.mxu0 0
    %1807 = vmatpush1.bf16.msra.mxu0 0
    %1808 = vmatprep.subr.bf16.mxu0 0
    %1809 = vmatpush1.bf16.msra.mxu0 0
    %1810 = vmatprep.subr.bf16.mxu0 0
    %1811 = vmatpush1.bf16.msra.mxu0 0
    %1812 = vmatprep.subr.bf16.mxu0 0
    %1813 = vmatpush1.bf16.msra.mxu0 0
    %1814 = vmatprep.subr.bf16.mxu0 0
    %1815 = vmatpush1.bf16.msra.mxu0 0
    %1816 = vmatprep.subr.bf16.mxu0 0
    %1817 = vmatpush1.bf16.msra.mxu0 0
    %1818 = vmatprep.subr.bf16.mxu0 0
    %1819 = vmatpush1.bf16.msra.mxu0 0
    %1820 = vmatprep.subr.bf16.mxu0 0
    %1821 = vmatpush1.bf16.msra.mxu0 0
    %1822 = vmatprep.subr.bf16.mxu0 0
    %1823 = vmatpush1.bf16.msra.mxu0 0
    %1824 = vmatprep.subr.bf16.mxu0 0
    %1825 = vmatpush1.bf16.msra.mxu0 0
    %1826 = vmatprep.subr.bf16.mxu0 0
    %1827 = vmatpush1.bf16.msra.mxu0 0
    %1828 = vmatprep.mubr.bf16.mxu0 0
    %1829 = vmatmul.mubr.bf16.gmra.mrb[0].mxu0 %v1791
    %v1830 = vpop.f32.mrb[0].mxu0
    %v1831 = vadd.f32 0.0, %v1830
    %v1832 = vpop.f32.mrb[0].mxu0
    %v1833 = vpop.f32.mrb[0].mxu0
    %v1834 = vpop.f32.mrb[0].mxu0
    %1835 = vdwg.mxu0
    %v1836 = vadd.f32 %v1648, %v1831
    %1837 = vrot.lane.b32.xlu0 %v497, 100
    %v1838 = vpop.permute.xlu0 %1837
    %1839 = vrot.lane.b32.xlu0 %v498, 100
    %v1840 = vpop.permute.xlu0 %1839
    %v1842 = vsel %vm506, %v1838, 0
    %v1845 = vsel %vm506, %v1840, 0
    %1847 = vmatprep.subr.bf16.mxu0 0
    %1848 = vmatpush1.bf16.xpose.msra.mxu0 %v1845
    %1849 = vmatprep.subr.bf16.mxu0 0
    %1850 = vmatpush1.bf16.xpose.msra.mxu0 0
    %1851 = vmatprep.subr.bf16.mxu0 0
    %1852 = vmatpush1.bf16.xpose.msra.mxu0 0
    %1853 = vmatprep.subr.bf16.mxu0 0
    %1854 = vmatpush1.bf16.xpose.msra.mxu0 0
    %1855 = vmatprep.subr.bf16.mxu0 0
    %1856 = vmatpush1.bf16.xpose.msra.mxu0 0
    %1857 = vmatprep.subr.bf16.mxu0 0
    %1858 = vmatpush1.bf16.xpose.msra.mxu0 0
    %1859 = vmatprep.subr.bf16.mxu0 0
    %1860 = vmatpush1.bf16.xpose.msra.mxu0 0
    %1861 = vmatprep.subr.bf16.mxu0 0
    %1862 = vmatpush1.bf16.xpose.msra.mxu0 0
    %1863 = vmatprep.subr.bf16.mxu0 0
    %1864 = vmatpush1.bf16.xpose.msra.mxu0 0
    %1865 = vmatprep.subr.bf16.mxu0 0
    %1866 = vmatpush1.bf16.xpose.msra.mxu0 0
    %1867 = vmatprep.subr.bf16.mxu0 0
    %1868 = vmatpush1.bf16.xpose.msra.mxu0 0
    %1869 = vmatprep.subr.bf16.mxu0 0
    %1870 = vmatpush1.bf16.xpose.msra.mxu0 0
    %1871 = vmatprep.subr.bf16.mxu0 0
    %1872 = vmatpush1.bf16.xpose.msra.mxu0 0
    %1873 = vmatprep.subr.bf16.mxu0 0
    %1874 = vmatpush1.bf16.xpose.msra.mxu0 0
    %1875 = vmatprep.subr.bf16.mxu0 0
    %1876 = vmatpush1.bf16.xpose.msra.mxu0 0
    %1877 = vmatprep.subr.bf16.mxu0 0
    %1878 = vmatpush1.bf16.xpose.msra.mxu0 0
    %1879 = vmatprep.mubr.bf16.mxu0 0
    %1880 = vmatmul.mubr.bf16.gmra.mrb[0].mxu0 %v1842
    %v1881 = vpop.f32.mrb[0].mxu0
    %v1882 = vadd.f32 0.0, %v1881
    %v1883 = vpop.f32.mrb[0].mxu0
    %v1884 = vpop.f32.mrb[0].mxu0
    %v1885 = vpop.f32.mrb[0].mxu0
    %1886 = vdwg.mxu0
    %v1887 = vsel %vm553, %v1882, -inf
    %1888 = vmax.xlane.f32.xlu0 %v1887
    %v1889 = vpop.xlane.xlu0 %1888
    %v1890 = vsub.f32 %v1882, %v1889
    %v1891 = vmul.f32 %v1890, 1.442695
    %v1892 = vpow.pop %v1891
    %v1893 = vsel %vm553, %v1892, 0.0
    %1894 = vadd.xlane.f32.xlu0 %v1893
    %v1895 = vpop.xlane.xlu0 %1894
    %v1896 = vrcp.pop %v1895
    %v1897 = vmul.f32 %v1892, %v1896
    %1898 = vrot.lane.b32.xlu0 %v491, 68
    %v1899 = vpop.permute.xlu0 %1898
    %1900 = vrot.lane.b32.xlu0 %v494, 68
    %v1901 = vpop.permute.xlu0 %1900
    %v1905 = vsel %vm553, %v1897, 0
    %1907 = vmatprep.subr.mxu0 0.0
    %1908 = vmatpush1.msra.mxu0 %v1899
    %1909 = vmatprep.subr.mxu0 0.0
    %1910 = vmatpush1.msra.mxu0 %v1901
    %1911 = vmatprep.subr.mxu0 0.0
    %1912 = vmatpush1.msra.mxu0 0.0
    %1913 = vmatprep.subr.mxu0 0.0
    %1914 = vmatpush1.msra.mxu0 0.0
    %1915 = vmatprep.subr.mxu0 0.0
    %1916 = vmatpush1.msra.mxu0 0.0
    %1917 = vmatprep.subr.mxu0 0.0
    %1918 = vmatpush1.msra.mxu0 0.0
    %1919 = vmatprep.subr.mxu0 0.0
    %1920 = vmatpush1.msra.mxu0 0.0
    %1921 = vmatprep.subr.mxu0 0.0
    %1922 = vmatpush1.msra.mxu0 0.0
    %1923 = vmatprep.subr.mxu0 0.0
    %1924 = vmatpush1.msra.mxu0 0.0
    %1925 = vmatprep.subr.mxu0 0.0
    %1926 = vmatpush1.msra.mxu0 0.0
    %1927 = vmatprep.subr.mxu0 0.0
    %1928 = vmatpush1.msra.mxu0 0.0
    %1929 = vmatprep.subr.mxu0 0.0
    %1930 = vmatpush1.msra.mxu0 0.0
    %1931 = vmatprep.subr.mxu0 0.0
    %1932 = vmatpush1.msra.mxu0 0.0
    %1933 = vmatprep.subr.mxu0 0.0
    %1934 = vmatpush1.msra.mxu0 0.0
    %1935 = vmatprep.subr.mxu0 0.0
    %1936 = vmatpush1.msra.mxu0 0.0
    %1937 = vmatprep.subr.mxu0 0.0
    %1938 = vmatpush1.msra.mxu0 0.0
    %1939 = vmatprep.subr.mxu0 0.0
    %1940 = vmatpush1.msra.mxu0 0.0
    %1941 = vmatprep.subr.mxu0 0.0
    %1942 = vmatpush1.msra.mxu0 0.0
    %1943 = vmatprep.subr.mxu0 0.0
    %1944 = vmatpush1.msra.mxu0 0.0
    %1945 = vmatprep.subr.mxu0 0.0
    %1946 = vmatpush1.msra.mxu0 0.0
    %1947 = vmatprep.subr.mxu0 0.0
    %1948 = vmatpush1.msra.mxu0 0.0
    %1949 = vmatprep.subr.mxu0 0.0
    %1950 = vmatpush1.msra.mxu0 0.0
    %1951 = vmatprep.subr.mxu0 0.0
    %1952 = vmatpush1.msra.mxu0 0.0
    %1953 = vmatprep.subr.mxu0 0.0
    %1954 = vmatpush1.msra.mxu0 0.0
    %1955 = vmatprep.subr.mxu0 0.0
    %1956 = vmatpush1.msra.mxu0 0.0
    %1957 = vmatprep.subr.mxu0 0.0
    %1958 = vmatpush1.msra.mxu0 0.0
    %1959 = vmatprep.subr.mxu0 0.0
    %1960 = vmatpush1.msra.mxu0 0.0
    %1961 = vmatprep.subr.mxu0 0.0
    %1962 = vmatpush1.msra.mxu0 0.0
    %1963 = vmatprep.subr.mxu0 0.0
    %1964 = vmatpush1.msra.mxu0 0.0
    %1965 = vmatprep.subr.mxu0 0.0
    %1966 = vmatpush1.msra.mxu0 0.0
    %1967 = vmatprep.subr.mxu0 0.0
    %1968 = vmatpush1.msra.mxu0 0.0
    %1969 = vmatprep.subr.mxu0 0.0
    %1970 = vmatpush1.msra.mxu0 0.0
    %1971 = vmatprep.mubr.f32.mxu0 0.0
    %1972 = vmatmul.mubr.f32.gmra.mrb[0].mxu0 %v1905
    %v1973 = vpop.f32.mrb[0].mxu0
    %v1974 = vadd.f32 0.0, %v1973
    %v1975 = vpop.f32.mrb[0].mxu0
    %1976 = vdwg.mxu0
    %v1977 = vpack.c.bf16 %v1974, %v1974
    %v1979 = vunpack.c.l.b16 %v161
    %v1980 = vpack.c.b16 %v1979, %v1979
    %v1981 = vrot.slane %v1980, 2
    %v1983 = vsel %vm506, %v1977, 0
    %v1986 = vsel %vm650, %v1981, 0
    %1988 = vmatprep.subr.bf16.mxu0 0
    %1989 = vmatpush1.bf16.msra.mxu0 %v1986
    %1990 = vmatprep.subr.bf16.mxu0 0
    %1991 = vmatpush1.bf16.msra.mxu0 0
    %1992 = vmatprep.subr.bf16.mxu0 0
    %1993 = vmatpush1.bf16.msra.mxu0 0
    %1994 = vmatprep.subr.bf16.mxu0 0
    %1995 = vmatpush1.bf16.msra.mxu0 0
    %1996 = vmatprep.subr.bf16.mxu0 0
    %1997 = vmatpush1.bf16.msra.mxu0 0
    %1998 = vmatprep.subr.bf16.mxu0 0
    %1999 = vmatpush1.bf16.msra.mxu0 0
    %2000 = vmatprep.subr.bf16.mxu0 0
    %2001 = vmatpush1.bf16.msra.mxu0 0
    %2002 = vmatprep.subr.bf16.mxu0 0
    %2003 = vmatpush1.bf16.msra.mxu0 0
    %2004 = vmatprep.subr.bf16.mxu0 0
    %2005 = vmatpush1.bf16.msra.mxu0 0
    %2006 = vmatprep.subr.bf16.mxu0 0
    %2007 = vmatpush1.bf16.msra.mxu0 0
    %2008 = vmatprep.subr.bf16.mxu0 0
    %2009 = vmatpush1.bf16.msra.mxu0 0
    %2010 = vmatprep.subr.bf16.mxu0 0
    %2011 = vmatpush1.bf16.msra.mxu0 0
    %2012 = vmatprep.subr.bf16.mxu0 0
    %2013 = vmatpush1.bf16.msra.mxu0 0
    %2014 = vmatprep.subr.bf16.mxu0 0
    %2015 = vmatpush1.bf16.msra.mxu0 0
    %2016 = vmatprep.subr.bf16.mxu0 0
    %2017 = vmatpush1.bf16.msra.mxu0 0
    %2018 = vmatprep.subr.bf16.mxu0 0
    %2019 = vmatpush1.bf16.msra.mxu0 0
    %2020 = vmatprep.mubr.bf16.mxu0 0
    %2021 = vmatmul.mubr.bf16.gmra.mrb[0].mxu0 %v1983
    %v2022 = vpop.f32.mrb[0].mxu0
    %v2023 = vadd.f32 0.0, %v2022
    %v2024 = vpop.f32.mrb[0].mxu0
    %v2025 = vpop.f32.mrb[0].mxu0
    %v2026 = vpop.f32.mrb[0].mxu0
    %2027 = vdwg.mxu0
    %v2028 = vadd.f32 %v1836, %v2023
    %v2030 = vrot.slane %v2028, 1
    %v2031 = vrot.slane %v2028, 2
    %v2032 = vrot.slane %v2028, 3
    %v2033 = vrot.slane %v2028, 4
    %v2034 = vrot.slane %v2028, 5
    %v2035 = vrot.slane %v2028, 6
    %v2036 = vrot.slane %v2028, 7
    %v2045 = vadd.f32 %v226, %v2028
    %v2046 = vadd.f32 %v227, %v2030
    %v2047 = vadd.f32 %v228, %v2031
    %v2048 = vadd.f32 %v229, %v2032
    %v2049 = vadd.f32 %v230, %v2033
    %v2050 = vadd.f32 %v231, %v2034
    %v2051 = vadd.f32 %v232, %v2035
    %v2052 = vadd.f32 %v233, %v2036
    %v2061 = vrot.slane %v2046, 7
    %v2062 = vsel %vm281, %v2061, %v2045
    %v2063 = vrot.slane %v2047, 6
    %v2064 = vsel %vm284, %v2063, %v2062
    %v2065 = vrot.slane %v2048, 5
    %v2066 = vsel %vm287, %v2065, %v2064
    %v2067 = vrot.slane %v2049, 4
    %v2068 = vsel %vm290, %v2067, %v2066
    %v2069 = vrot.slane %v2050, 3
    %v2070 = vsel %vm293, %v2069, %v2068
    %v2071 = vrot.slane %v2051, 2
    %v2072 = vsel %vm296, %v2071, %v2070
    %v2073 = vrot.slane %v2052, 1
    %v2074 = vsel %vm299, %v2073, %v2072
    %v2076 = vsel %vm314, %v2074, 0.0
    %2077 = vadd.xlane.f32.xlu0 %v2076
    %v2078 = vpop.xlane.xlu0 %2077
    %v2079 = vrcp.pop 32.0
    %v2080 = vmul.f32 %v2078, %v2079
    %v2082 = vrot.slane %v2080, 1
    %v2083 = vrot.slane %v2080, 2
    %v2084 = vrot.slane %v2080, 3
    %v2085 = vrot.slane %v2080, 4
    %v2086 = vrot.slane %v2080, 5
    %v2087 = vrot.slane %v2080, 6
    %v2088 = vrot.slane %v2080, 7
    %v2097 = vsub.f32 %v2045, %v2080
    %v2098 = vsub.f32 %v2046, %v2082
    %v2099 = vsub.f32 %v2047, %v2083
    %v2100 = vsub.f32 %v2048, %v2084
    %v2101 = vsub.f32 %v2049, %v2085
    %v2102 = vsub.f32 %v2050, %v2086
    %v2103 = vsub.f32 %v2051, %v2087
    %v2104 = vsub.f32 %v2052, %v2088
    %v2105 = vmul.f32 %v2097, %v2097
    %v2106 = vmul.f32 %v2098, %v2098
    %v2107 = vmul.f32 %v2099, %v2099
    %v2108 = vmul.f32 %v2100, %v2100
    %v2109 = vmul.f32 %v2101, %v2101
    %v2110 = vmul.f32 %v2102, %v2102
    %v2111 = vmul.f32 %v2103, %v2103
    %v2112 = vmul.f32 %v2104, %v2104
    %v2121 = vrot.slane %v2106, 7
    %v2122 = vsel %vm281, %v2121, %v2105
    %v2123 = vrot.slane %v2107, 6
    %v2124 = vsel %vm284, %v2123, %v2122
    %v2125 = vrot.slane %v2108, 5
    %v2126 = vsel %vm287, %v2125, %v2124
    %v2127 = vrot.slane %v2109, 4
    %v2128 = vsel %vm290, %v2127, %v2126
    %v2129 = vrot.slane %v2110, 3
    %v2130 = vsel %vm293, %v2129, %v2128
    %v2131 = vrot.slane %v2111, 2
    %v2132 = vsel %vm296, %v2131, %v2130
    %v2133 = vrot.slane %v2112, 1
    %v2134 = vsel %vm299, %v2133, %v2132
    %v2136 = vsel %vm314, %v2134, 0.0
    %2137 = vadd.xlane.f32.xlu0 %v2136
    %v2138 = vpop.xlane.xlu0 %2137
    %v2139 = vmul.f32 %v2138, %v2079
    %v2140 = vadd.f32 %v2139, 1e-05
    %v2141 = vrsqrt.pop %v2140
    %v2143 = vrot.slane %v2141, 1
    %v2144 = vrot.slane %v2141, 2
    %v2145 = vrot.slane %v2141, 3
    %v2146 = vrot.slane %v2141, 4
    %v2147 = vrot.slane %v2141, 5
    %v2148 = vrot.slane %v2141, 6
    %v2149 = vrot.slane %v2141, 7
    %v2158 = vmul.f32 %v2097, %v2141
    %v2159 = vmul.f32 %v2098, %v2143
    %v2160 = vmul.f32 %v2099, %v2144
    %v2161 = vmul.f32 %v2100, %v2145
    %v2162 = vmul.f32 %v2101, %v2146
    %v2163 = vmul.f32 %v2102, %v2147
    %v2164 = vmul.f32 %v2103, %v2148
    %v2165 = vmul.f32 %v2104, %v2149
    %v2167 = vlaneseq
    %v2168 = vshrl.u32 %v2167, 7
    %v2169 = vsub.s32 0, %v2168
    %v2170 = vrot.slane %v185, %v2169
    %v2172 = vmul.f32 %v2158, %v2170
    %v2173 = vmul.f32 %v2159, %v2170
    %v2174 = vmul.f32 %v2160, %v2170
    %v2175 = vmul.f32 %v2161, %v2170
    %v2176 = vmul.f32 %v2162, %v2170
    %v2177 = vmul.f32 %v2163, %v2170
    %v2178 = vmul.f32 %v2164, %v2170
    %v2179 = vmul.f32 %v2165, %v2170
    %v2181 = vlaneseq
    %v2182 = vshrl.u32 %v2181, 7
    %v2183 = vsub.s32 0, %v2182
    %v2184 = vrot.slane %v186, %v2183
    %v2186 = vadd.f32 %v2172, %v2184
    %v2187 = vadd.f32 %v2173, %v2184
    %v2188 = vadd.f32 %v2174, %v2184
    %v2189 = vadd.f32 %v2175, %v2184
    %v2190 = vadd.f32 %v2176, %v2184
    %v2191 = vadd.f32 %v2177, %v2184
    %v2192 = vadd.f32 %v2178, %v2184
    %v2193 = vadd.f32 %v2179, %v2184
    %v2194 = vpack.c.bf16 %v2186, %v2186
    %v2195 = vpack.c.bf16 %v2187, %v2187
    %v2196 = vpack.c.bf16 %v2188, %v2188
    %v2197 = vpack.c.bf16 %v2189, %v2189
    %v2198 = vpack.c.bf16 %v2190, %v2190
    %v2199 = vpack.c.bf16 %v2191, %v2191
    %v2200 = vpack.c.bf16 %v2192, %v2192
    %v2201 = vpack.c.bf16 %v2193, %v2193
    %v2203 = vlaneseq
    %v2204 = vshrl.u32 %v2203, 7
    %v2205 = vsub.s32 0, %v2204
    %v2206 = vrot.slane %v167, %v2205
    %v2216 = vunpack.c.l.b16 %v2194
    %v2217 = vunpack.c.l.b16 %v2195
    %v2218 = vunpack.c.l.b16 %v2196
    %v2219 = vunpack.c.l.b16 %v2197
    %v2220 = vunpack.c.l.b16 %v2198
    %v2221 = vunpack.c.l.b16 %v2199
    %v2222 = vunpack.c.l.b16 %v2200
    %v2223 = vunpack.c.l.b16 %v2201
    %v2224 = vrot.slane %v2217, 7
    %v2225 = vsel %vm281, %v2224, %v2216
    %v2226 = vrot.slane %v2218, 6
    %v2227 = vsel %vm284, %v2226, %v2225
    %v2228 = vrot.slane %v2219, 5
    %v2229 = vsel %vm287, %v2228, %v2227
    %v2230 = vrot.slane %v2220, 4
    %v2231 = vsel %vm290, %v2230, %v2229
    %v2232 = vrot.slane %v2221, 3
    %v2233 = vsel %vm293, %v2232, %v2231
    %v2234 = vrot.slane %v2222, 2
    %v2235 = vsel %vm296, %v2234, %v2233
    %v2236 = vrot.slane %v2223, 1
    %v2237 = vsel %vm299, %v2236, %v2235
    %v2238 = vpack.c.b16 %v2237, %v2237
    %v2243 = vunpack.c.l.b16 %v163
    %v2244 = vunpack.c.l.b16 %v164
    %v2245 = vunpack.c.l.b16 %v165
    %v2246 = vunpack.c.l.b16 %v166
    %v2247 = vpack.c.b16 %v2244, %v2243
    %v2248 = vpack.c.b16 %v2246, %v2245
    %v2252 = vsel %vm314, %v2238, 0
    %2254 = vmatprep.subr.bf16.mxu0 0
    %2255 = vmatpush1.bf16.msra.mxu0 %v2247
    %2256 = vmatprep.subr.bf16.mxu0 0
    %2257 = vmatpush1.bf16.msra.mxu0 %v2248
    %2258 = vmatprep.subr.bf16.mxu0 0
    %2259 = vmatpush1.bf16.msra.mxu0 0
    %2260 = vmatprep.subr.bf16.mxu0 0
    %2261 = vmatpush1.bf16.msra.mxu0 0
    %2262 = vmatprep.subr.bf16.mxu0 0
    %2263 = vmatpush1.bf16.msra.mxu0 0
    %2264 = vmatprep.subr.bf16.mxu0 0
    %2265 = vmatpush1.bf16.msra.mxu0 0
    %2266 = vmatprep.subr.bf16.mxu0 0
    %2267 = vmatpush1.bf16.msra.mxu0 0
    %2268 = vmatprep.subr.bf16.mxu0 0
    %2269 = vmatpush1.bf16.msra.mxu0 0
    %2270 = vmatprep.subr.bf16.mxu0 0
    %2271 = vmatpush1.bf16.msra.mxu0 0
    %2272 = vmatprep.subr.bf16.mxu0 0
    %2273 = vmatpush1.bf16.msra.mxu0 0
    %2274 = vmatprep.subr.bf16.mxu0 0
    %2275 = vmatpush1.bf16.msra.mxu0 0
    %2276 = vmatprep.subr.bf16.mxu0 0
    %2277 = vmatpush1.bf16.msra.mxu0 0
    %2278 = vmatprep.subr.bf16.mxu0 0
    %2279 = vmatpush1.bf16.msra.mxu0 0
    %2280 = vmatprep.subr.bf16.mxu0 0
    %2281 = vmatpush1.bf16.msra.mxu0 0
    %2282 = vmatprep.subr.bf16.mxu0 0
    %2283 = vmatpush1.bf16.msra.mxu0 0
    %2284 = vmatprep.subr.bf16.mxu0 0
    %2285 = vmatpush1.bf16.msra.mxu0 0
    %2286 = vmatprep.mubr.bf16.mxu0 0
    %2287 = vmatmul.mubr.bf16.gmra.mrb[0].mxu0 %v2252
    %v2288 = vpop.f32.mrb[0].mxu0
    %v2289 = vadd.f32 %v2206, %v2288
    %v2290 = vpop.f32.mrb[0].mxu0
    %v2291 = vpop.f32.mrb[0].mxu0
    %v2292 = vpop.f32.mrb[0].mxu0
    %2293 = vdwg.mxu0
    %v2294 = vmax.f32 %v2289, 0.0
    %v2295 = vpack.c.bf16 %v2294, %v2294
    %v2297 = vlaneseq
    %v2298 = vshrl.u32 %v2297, 7
    %v2299 = vsub.s32 0, %v2298
    %v2300 = vrot.slane %v184, %v2299
    %v2318 = vunpack.c.l.b16 %v168
    %v2319 = vunpack.c.l.b16 %v169
    %v2320 = vunpack.c.l.b16 %v170
    %v2321 = vunpack.c.l.b16 %v171
    %v2322 = vunpack.c.l.b16 %v172
    %v2323 = vunpack.c.l.b16 %v173
    %v2324 = vunpack.c.l.b16 %v174
    %v2325 = vunpack.c.l.b16 %v175
    %v2326 = vunpack.c.l.b16 %v176
    %v2327 = vunpack.c.l.b16 %v177
    %v2328 = vunpack.c.l.b16 %v178
    %v2329 = vunpack.c.l.b16 %v179
    %v2330 = vunpack.c.l.b16 %v180
    %v2331 = vunpack.c.l.b16 %v181
    %v2332 = vunpack.c.l.b16 %v182
    %v2333 = vunpack.c.l.b16 %v183
    %v2334 = vpack.c.b16 %v2319, %v2318
    %v2335 = vpack.c.b16 %v2321, %v2320
    %v2336 = vpack.c.b16 %v2323, %v2322
    %v2337 = vpack.c.b16 %v2325, %v2324
    %v2338 = vpack.c.b16 %v2327, %v2326
    %v2339 = vpack.c.b16 %v2329, %v2328
    %v2340 = vpack.c.b16 %v2331, %v2330
    %v2341 = vpack.c.b16 %v2333, %v2332
    %2350 = vmatprep.subr.bf16.mxu0 0
    %2351 = vmatpush1.bf16.msra.mxu0 %v2334
    %2352 = vmatprep.subr.bf16.mxu0 0
    %2353 = vmatpush1.bf16.msra.mxu0 %v2335
    %2354 = vmatprep.subr.bf16.mxu0 0
    %2355 = vmatpush1.bf16.msra.mxu0 %v2336
    %2356 = vmatprep.subr.bf16.mxu0 0
    %2357 = vmatpush1.bf16.msra.mxu0 %v2337
    %2358 = vmatprep.subr.bf16.mxu0 0
    %2359 = vmatpush1.bf16.msra.mxu0 %v2338
    %2360 = vmatprep.subr.bf16.mxu0 0
    %2361 = vmatpush1.bf16.msra.mxu0 %v2339
    %2362 = vmatprep.subr.bf16.mxu0 0
    %2363 = vmatpush1.bf16.msra.mxu0 %v2340
    %2364 = vmatprep.subr.bf16.mxu0 0
    %2365 = vmatpush1.bf16.msra.mxu0 %v2341
    %2366 = vmatprep.subr.bf16.mxu0 0
    %2367 = vmatpush1.bf16.msra.mxu0 0
    %2368 = vmatprep.subr.bf16.mxu0 0
    %2369 = vmatpush1.bf16.msra.mxu0 0
    %2370 = vmatprep.subr.bf16.mxu0 0
    %2371 = vmatpush1.bf16.msra.mxu0 0
    %2372 = vmatprep.subr.bf16.mxu0 0
    %2373 = vmatpush1.bf16.msra.mxu0 0
    %2374 = vmatprep.subr.bf16.mxu0 0
    %2375 = vmatpush1.bf16.msra.mxu0 0
    %2376 = vmatprep.subr.bf16.mxu0 0
    %2377 = vmatpush1.bf16.msra.mxu0 0
    %2378 = vmatprep.subr.bf16.mxu0 0
    %2379 = vmatpush1.bf16.msra.mxu0 0
    %2380 = vmatprep.subr.bf16.mxu0 0
    %2381 = vmatpush1.bf16.msra.mxu0 0
    %2382 = vmatprep.mubr.bf16.mxu0 0
    %2383 = vmatmul.mubr.bf16.gmra.mrb[0].mxu0 %v2295
    %v2384 = vpop.f32.mrb[0].mxu0
    %v2385 = vadd.f32 %v2300, %v2384
    %v2386 = vpop.f32.mrb[0].mxu0
    %v2387 = vpop.f32.mrb[0].mxu0
    %v2388 = vpop.f32.mrb[0].mxu0
    %2389 = vdwg.mxu0
    %v2391 = vrot.slane %v2385, 1
    %v2392 = vrot.slane %v2385, 2
    %v2393 = vrot.slane %v2385, 3
    %v2394 = vrot.slane %v2385, 4
    %v2395 = vrot.slane %v2385, 5
    %v2396 = vrot.slane %v2385, 6
    %v2397 = vrot.slane %v2385, 7
    %v2406 = vadd.f32 %v2186, %v2385
    %v2407 = vadd.f32 %v2187, %v2391
    %v2408 = vadd.f32 %v2188, %v2392
    %v2409 = vadd.f32 %v2189, %v2393
    %v2410 = vadd.f32 %v2190, %v2394
    %v2411 = vadd.f32 %v2191, %v2395
    %v2412 = vadd.f32 %v2192, %v2396
    %v2413 = vadd.f32 %v2193, %v2397
    %v2422 = vrot.slane %v2407, 7
    %v2423 = vsel %vm281, %v2422, %v2406
    %v2424 = vrot.slane %v2408, 6
    %v2425 = vsel %vm284, %v2424, %v2423
    %v2426 = vrot.slane %v2409, 5
    %v2427 = vsel %vm287, %v2426, %v2425
    %v2428 = vrot.slane %v2410, 4
    %v2429 = vsel %vm290, %v2428, %v2427
    %v2430 = vrot.slane %v2411, 3
    %v2431 = vsel %vm293, %v2430, %v2429
    %v2432 = vrot.slane %v2412, 2
    %v2433 = vsel %vm296, %v2432, %v2431
    %v2434 = vrot.slane %v2413, 1
    %v2435 = vsel %vm299, %v2434, %v2433
    %v2437 = vsel %vm314, %v2435, 0.0
    %2438 = vadd.xlane.f32.xlu0 %v2437
    %v2439 = vpop.xlane.xlu0 %2438
    %v2440 = vmul.f32 %v2439, %v2079
    %v2442 = vrot.slane %v2440, 1
    %v2443 = vrot.slane %v2440, 2
    %v2444 = vrot.slane %v2440, 3
    %v2445 = vrot.slane %v2440, 4
    %v2446 = vrot.slane %v2440, 5
    %v2447 = vrot.slane %v2440, 6
    %v2448 = vrot.slane %v2440, 7
    %v2457 = vsub.f32 %v2406, %v2440
    %v2458 = vsub.f32 %v2407, %v2442
    %v2459 = vsub.f32 %v2408, %v2443
    %v2460 = vsub.f32 %v2409, %v2444
    %v2461 = vsub.f32 %v2410, %v2445
    %v2462 = vsub.f32 %v2411, %v2446
    %v2463 = vsub.f32 %v2412, %v2447
    %v2464 = vsub.f32 %v2413, %v2448
    %v2465 = vmul.f32 %v2457, %v2457
    %v2466 = vmul.f32 %v2458, %v2458
    %v2467 = vmul.f32 %v2459, %v2459
    %v2468 = vmul.f32 %v2460, %v2460
    %v2469 = vmul.f32 %v2461, %v2461
    %v2470 = vmul.f32 %v2462, %v2462
    %v2471 = vmul.f32 %v2463, %v2463
    %v2472 = vmul.f32 %v2464, %v2464
    %v2481 = vrot.slane %v2466, 7
    %v2482 = vsel %vm281, %v2481, %v2465
    %v2483 = vrot.slane %v2467, 6
    %v2484 = vsel %vm284, %v2483, %v2482
    %v2485 = vrot.slane %v2468, 5
    %v2486 = vsel %vm287, %v2485, %v2484
    %v2487 = vrot.slane %v2469, 4
    %v2488 = vsel %vm290, %v2487, %v2486
    %v2489 = vrot.slane %v2470, 3
    %v2490 = vsel %vm293, %v2489, %v2488
    %v2491 = vrot.slane %v2471, 2
    %v2492 = vsel %vm296, %v2491, %v2490
    %v2493 = vrot.slane %v2472, 1
    %v2494 = vsel %vm299, %v2493, %v2492
    %v2496 = vsel %vm314, %v2494, 0.0
    %2497 = vadd.xlane.f32.xlu0 %v2496
    %v2498 = vpop.xlane.xlu0 %2497
    %v2499 = vmul.f32 %v2498, %v2079
    %v2500 = vadd.f32 %v2499, 1e-05
    %v2501 = vrsqrt.pop %v2500
    %v2503 = vrot.slane %v2501, 1
    %v2504 = vrot.slane %v2501, 2
    %v2505 = vrot.slane %v2501, 3
    %v2506 = vrot.slane %v2501, 4
    %v2507 = vrot.slane %v2501, 5
    %v2508 = vrot.slane %v2501, 6
    %v2509 = vrot.slane %v2501, 7
    %v2518 = vmul.f32 %v2457, %v2501
    %v2519 = vmul.f32 %v2458, %v2503
    %v2520 = vmul.f32 %v2459, %v2504
    %v2521 = vmul.f32 %v2460, %v2505
    %v2522 = vmul.f32 %v2461, %v2506
    %v2523 = vmul.f32 %v2462, %v2507
    %v2524 = vmul.f32 %v2463, %v2508
    %v2525 = vmul.f32 %v2464, %v2509
    %v2526 = vmul.f32 %v2518, %v2170
    %v2527 = vmul.f32 %v2519, %v2170
    %v2528 = vmul.f32 %v2520, %v2170
    %v2529 = vmul.f32 %v2521, %v2170
    %v2530 = vmul.f32 %v2522, %v2170
    %v2531 = vmul.f32 %v2523, %v2170
    %v2532 = vmul.f32 %v2524, %v2170
    %v2533 = vmul.f32 %v2525, %v2170
    %v2534 = vadd.f32 %v2526, %v2184
    %v2535 = vadd.f32 %v2527, %v2184
    %v2536 = vadd.f32 %v2528, %v2184
    %v2537 = vadd.f32 %v2529, %v2184
    %v2538 = vadd.f32 %v2530, %v2184
    %v2539 = vadd.f32 %v2531, %v2184
    %v2540 = vadd.f32 %v2532, %v2184
    %v2541 = vadd.f32 %v2533, %v2184
    %v2543 = vlaneseq
    %v2544 = vshrl.u32 %v2543, 7
    %v2545 = vsub.s32 0, %v2544
    %v2546 = vrot.slane %v191, %v2545
    %v2552 = vunpack.c.l.b16 %v187
    %v2553 = vunpack.c.l.b16 %v188
    %v2554 = vunpack.c.l.b16 %v189
    %v2555 = vunpack.c.l.b16 %v190
    %v2556 = vpack.c.b16 %v2553, %v2552
    %v2557 = vpack.c.b16 %v2555, %v2554
    %2560 = vmatprep.subr.bf16.mxu0 0
    %2561 = vmatpush1.bf16.msra.mxu0 %v2556
    %2562 = vmatprep.subr.bf16.mxu0 0
    %2563 = vmatpush1.bf16.msra.mxu0 %v2557
    %2564 = vmatprep.subr.bf16.mxu0 0
    %2565 = vmatpush1.bf16.msra.mxu0 0
    %2566 = vmatprep.subr.bf16.mxu0 0
    %2567 = vmatpush1.bf16.msra.mxu0 0
    %2568 = vmatprep.subr.bf16.mxu0 0
    %2569 = vmatpush1.bf16.msra.mxu0 0
    %2570 = vmatprep.subr.bf16.mxu0 0
    %2571 = vmatpush1.bf16.msra.mxu0 0
    %2572 = vmatprep.subr.bf16.mxu0 0
    %2573 = vmatpush1.bf16.msra.mxu0 0
    %2574 = vmatprep.subr.bf16.mxu0 0
    %2575 = vmatpush1.bf16.msra.mxu0 0
    %2576 = vmatprep.subr.bf16.mxu0 0
    %2577 = vmatpush1.bf16.msra.mxu0 0
    %2578 = vmatprep.subr.bf16.mxu0 0
    %2579 = vmatpush1.bf16.msra.mxu0 0
    %2580 = vmatprep.subr.bf16.mxu0 0
    %2581 = vmatpush1.bf16.msra.mxu0 0
    %2582 = vmatprep.subr.bf16.mxu0 0
    %2583 = vmatpush1.bf16.msra.mxu0 0
    %2584 = vmatprep.subr.bf16.mxu0 0
    %2585 = vmatpush1.bf16.msra.mxu0 0
    %2586 = vmatprep.subr.bf16.mxu0 0
    %2587 = vmatpush1.bf16.msra.mxu0 0
    %2588 = vmatprep.subr.bf16.mxu0 0
    %2589 = vmatpush1.bf16.msra.mxu0 0
    %2590 = vmatprep.subr.bf16.mxu0 0
    %2591 = vmatpush1.bf16.msra.mxu0 0
    %2592 = vmatprep.mubr.bf16.mxu0 0
    %2593 = vmatmul.mubr.bf16.gmra.mrb[0].mxu0 %v454
    %v2594 = vpop.f32.mrb[0].mxu0
    %v2595 = vadd.f32 %v2546, %v2594
    %v2596 = vpop.f32.mrb[0].mxu0
    %v2597 = vpop.f32.mrb[0].mxu0
    %v2598 = vadd.f32 %v2546, %v2597
    %v2599 = vpop.f32.mrb[0].mxu0
    %2600 = vdwg.mxu0
    %v2601 = vpack.c.bf16 %v2534, %v2534
    %v2602 = vpack.c.bf16 %v2535, %v2535
    %v2603 = vpack.c.bf16 %v2536, %v2536
    %v2604 = vpack.c.bf16 %v2537, %v2537
    %v2605 = vpack.c.bf16 %v2538, %v2538
    %v2606 = vpack.c.bf16 %v2539, %v2539
    %v2607 = vpack.c.bf16 %v2540, %v2540
    %v2608 = vpack.c.bf16 %v2541, %v2541
    %v2610 = vlaneseq
    %v2611 = vshrl.u32 %v2610, 7
    %v2612 = vsub.s32 0, %v2611
    %v2613 = vrot.slane %v196, %v2612
    %v2623 = vunpack.c.l.b16 %v2601
    %v2624 = vunpack.c.l.b16 %v2602
    %v2625 = vunpack.c.l.b16 %v2603
    %v2626 = vunpack.c.l.b16 %v2604
    %v2627 = vunpack.c.l.b16 %v2605
    %v2628 = vunpack.c.l.b16 %v2606
    %v2629 = vunpack.c.l.b16 %v2607
    %v2630 = vunpack.c.l.b16 %v2608
    %v2631 = vrot.slane %v2624, 7
    %v2632 = vsel %vm281, %v2631, %v2623
    %v2633 = vrot.slane %v2625, 6
    %v2634 = vsel %vm284, %v2633, %v2632
    %v2635 = vrot.slane %v2626, 5
    %v2636 = vsel %vm287, %v2635, %v2634
    %v2637 = vrot.slane %v2627, 4
    %v2638 = vsel %vm290, %v2637, %v2636
    %v2639 = vrot.slane %v2628, 3
    %v2640 = vsel %vm293, %v2639, %v2638
    %v2641 = vrot.slane %v2629, 2
    %v2642 = vsel %vm296, %v2641, %v2640
    %v2643 = vrot.slane %v2630, 1
    %v2644 = vsel %vm299, %v2643, %v2642
    %v2645 = vpack.c.b16 %v2644, %v2644
    %v2650 = vunpack.c.l.b16 %v192
    %v2651 = vunpack.c.l.b16 %v193
    %v2652 = vunpack.c.l.b16 %v194
    %v2653 = vunpack.c.l.b16 %v195
    %v2654 = vpack.c.b16 %v2651, %v2650
    %v2655 = vpack.c.b16 %v2653, %v2652
    %v2659 = vsel %vm314, %v2645, 0
    %2661 = vmatprep.subr.bf16.mxu0 0
    %2662 = vmatpush1.bf16.msra.mxu0 %v2654
    %2663 = vmatprep.subr.bf16.mxu0 0
    %2664 = vmatpush1.bf16.msra.mxu0 %v2655
    %2665 = vmatprep.subr.bf16.mxu0 0
    %2666 = vmatpush1.bf16.msra.mxu0 0
    %2667 = vmatprep.subr.bf16.mxu0 0
    %2668 = vmatpush1.bf16.msra.mxu0 0
    %2669 = vmatprep.subr.bf16.mxu0 0
    %2670 = vmatpush1.bf16.msra.mxu0 0
    %2671 = vmatprep.subr.bf16.mxu0 0
    %2672 = vmatpush1.bf16.msra.mxu0 0
    %2673 = vmatprep.subr.bf16.mxu0 0
    %2674 = vmatpush1.bf16.msra.mxu0 0
    %2675 = vmatprep.subr.bf16.mxu0 0
    %2676 = vmatpush1.bf16.msra.mxu0 0
    %2677 = vmatprep.subr.bf16.mxu0 0
    %2678 = vmatpush1.bf16.msra.mxu0 0
    %2679 = vmatprep.subr.bf16.mxu0 0
    %2680 = vmatpush1.bf16.msra.mxu0 0
    %2681 = vmatprep.subr.bf16.mxu0 0
    %2682 = vmatpush1.bf16.msra.mxu0 0
    %2683 = vmatprep.subr.bf16.mxu0 0
    %2684 = vmatpush1.bf16.msra.mxu0 0
    %2685 = vmatprep.subr.bf16.mxu0 0
    %2686 = vmatpush1.bf16.msra.mxu0 0
    %2687 = vmatprep.subr.bf16.mxu0 0
    %2688 = vmatpush1.bf16.msra.mxu0 0
    %2689 = vmatprep.subr.bf16.mxu0 0
    %2690 = vmatpush1.bf16.msra.mxu0 0
    %2691 = vmatprep.subr.bf16.mxu0 0
    %2692 = vmatpush1.bf16.msra.mxu0 0
    %2693 = vmatprep.mubr.bf16.mxu0 0
    %2694 = vmatmul.mubr.bf16.gmra.mrb[0].mxu0 %v2659
    %v2695 = vpop.f32.mrb[0].mxu0
    %v2696 = vadd.f32 %v2613, %v2695
    %v2697 = vpop.f32.mrb[0].mxu0
    %v2698 = vpop.f32.mrb[0].mxu0
    %v2699 = vpop.f32.mrb[0].mxu0
    %2700 = vdwg.mxu0
    %v2701 = vpack.c.bf16 %v2598, %v2595
    %v2702 = vpack.c.bf16 %v2696, %v2696
    %v2704 = vlaneseq
    %v2705 = vshrl.u32 %v2704, 7
    %v2706 = vsub.s32 0, %v2705
    %v2707 = vrot.slane %v201, %v2706
    %v2709 = vadd.f32 %v2707, 0.0
    %v2711 = vsel %vm506, %v2701, 0
    %v2714 = vsel %vm506, %v2702, 0
    %2716 = vmatprep.subr.bf16.mxu0 0
    %2717 = vmatpush1.bf16.xpose.msra.mxu0 %v2714
    %2718 = vmatprep.subr.bf16.mxu0 0
    %2719 = vmatpush1.bf16.xpose.msra.mxu0 0
    %2720 = vmatprep.subr.bf16.mxu0 0
    %2721 = vmatpush1.bf16.xpose.msra.mxu0 0
    %2722 = vmatprep.subr.bf16.mxu0 0
    %2723 = vmatpush1.bf16.xpose.msra.mxu0 0
    %2724 = vmatprep.subr.bf16.mxu0 0
    %2725 = vmatpush1.bf16.xpose.msra.mxu0 0
    %2726 = vmatprep.subr.bf16.mxu0 0
    %2727 = vmatpush1.bf16.xpose.msra.mxu0 0
    %2728 = vmatprep.subr.bf16.mxu0 0
    %2729 = vmatpush1.bf16.xpose.msra.mxu0 0
    %2730 = vmatprep.subr.bf16.mxu0 0
    %2731 = vmatpush1.bf16.xpose.msra.mxu0 0
    %2732 = vmatprep.subr.bf16.mxu0 0
    %2733 = vmatpush1.bf16.xpose.msra.mxu0 0
    %2734 = vmatprep.subr.bf16.mxu0 0
    %2735 = vmatpush1.bf16.xpose.msra.mxu0 0
    %2736 = vmatprep.subr.bf16.mxu0 0
    %2737 = vmatpush1.bf16.xpose.msra.mxu0 0
    %2738 = vmatprep.subr.bf16.mxu0 0
    %2739 = vmatpush1.bf16.xpose.msra.mxu0 0
    %2740 = vmatprep.subr.bf16.mxu0 0
    %2741 = vmatpush1.bf16.xpose.msra.mxu0 0
    %2742 = vmatprep.subr.bf16.mxu0 0
    %2743 = vmatpush1.bf16.xpose.msra.mxu0 0
    %2744 = vmatprep.subr.bf16.mxu0 0
    %2745 = vmatpush1.bf16.xpose.msra.mxu0 0
    %2746 = vmatprep.subr.bf16.mxu0 0
    %2747 = vmatpush1.bf16.xpose.msra.mxu0 0
    %2748 = vmatprep.mubr.bf16.mxu0 0
    %2749 = vmatmul.mubr.bf16.gmra.mrb[0].mxu0 %v2711
    %v2750 = vpop.f32.mrb[0].mxu0
    %v2751 = vadd.f32 0.0, %v2750
    %v2752 = vpop.f32.mrb[0].mxu0
    %v2753 = vpop.f32.mrb[0].mxu0
    %v2754 = vadd.f32 0.0, %v2753
    %v2755 = vpop.f32.mrb[0].mxu0
    %2756 = vdwg.mxu0
    %vm2757 = vcmask 64512
    %v2758 = vsel %vm2757, %v2751, -inf
    %2759 = vmax.xlane.f32.xlu0 %v2758
    %v2760 = vpop.xlane.xlu0 %2759
    %v2761 = vsel %vm2757, %v2754, -inf
    %2762 = vmax.xlane.f32.xlu0 %v2761
    %v2763 = vpop.xlane.xlu0 %2762
    %v2764 = vsub.f32 %v2751, %v2760
    %v2765 = vsub.f32 %v2754, %v2763
    %v2766 = vmul.f32 %v2764, 1.442695
    %v2767 = vpow.pop %v2766
    %v2768 = vmul.f32 %v2765, 1.442695
    %v2769 = vpow.pop %v2768
    %v2770 = vsel %vm2757, %v2767, 0.0
    %2771 = vadd.xlane.f32.xlu0 %v2770
    %v2772 = vpop.xlane.xlu0 %2771
    %v2773 = vsel %vm2757, %v2769, 0.0
    %2774 = vadd.xlane.f32.xlu0 %v2773
    %v2775 = vpop.xlane.xlu0 %2774
    %v2776 = vrcp.pop %v2772
    %v2777 = vmul.f32 %v2767, %v2776
    %v2778 = vrcp.pop %v2775
    %v2779 = vmul.f32 %v2769, %v2778
    %2781 = vrot.lane.b32.xlu0 %v2696, 96
    %v2782 = vpop.permute.xlu0 %2781
    %v2785 = vsel %vm2757, %v2777, 0
    %v2788 = vsel %vm2757, %v2779, 0
    %2790 = vmatprep.subr.mxu0 0.0
    %2791 = vmatpush1.msra.mxu0 %v2782
    %2792 = vmatprep.subr.mxu0 0.0
    %2793 = vmatpush1.msra.mxu0 0.0
    %2794 = vmatprep.subr.mxu0 0.0
    %2795 = vmatpush1.msra.mxu0 0.0
    %2796 = vmatprep.subr.mxu0 0.0
    %2797 = vmatpush1.msra.mxu0 0.0
    %2798 = vmatprep.subr.mxu0 0.0
    %2799 = vmatpush1.msra.mxu0 0.0
    %2800 = vmatprep.subr.mxu0 0.0
    %2801 = vmatpush1.msra.mxu0 0.0
    %2802 = vmatprep.subr.mxu0 0.0
    %2803 = vmatpush1.msra.mxu0 0.0
    %2804 = vmatprep.subr.mxu0 0.0
    %2805 = vmatpush1.msra.mxu0 0.0
    %2806 = vmatprep.subr.mxu0 0.0
    %2807 = vmatpush1.msra.mxu0 0.0
    %2808 = vmatprep.subr.mxu0 0.0
    %2809 = vmatpush1.msra.mxu0 0.0
    %2810 = vmatprep.subr.mxu0 0.0
    %2811 = vmatpush1.msra.mxu0 0.0
    %2812 = vmatprep.subr.mxu0 0.0
    %2813 = vmatpush1.msra.mxu0 0.0
    %2814 = vmatprep.subr.mxu0 0.0
    %2815 = vmatpush1.msra.mxu0 0.0
    %2816 = vmatprep.subr.mxu0 0.0
    %2817 = vmatpush1.msra.mxu0 0.0
    %2818 = vmatprep.subr.mxu0 0.0
    %2819 = vmatpush1.msra.mxu0 0.0
    %2820 = vmatprep.subr.mxu0 0.0
    %2821 = vmatpush1.msra.mxu0 0.0
    %2822 = vmatprep.subr.mxu0 0.0
    %2823 = vmatpush1.msra.mxu0 0.0
    %2824 = vmatprep.subr.mxu0 0.0
    %2825 = vmatpush1.msra.mxu0 0.0
    %2826 = vmatprep.subr.mxu0 0.0
    %2827 = vmatpush1.msra.mxu0 0.0
    %2828 = vmatprep.subr.mxu0 0.0
    %2829 = vmatpush1.msra.mxu0 0.0
    %2830 = vmatprep.subr.mxu0 0.0
    %2831 = vmatpush1.msra.mxu0 0.0
    %2832 = vmatprep.subr.mxu0 0.0
    %2833 = vmatpush1.msra.mxu0 0.0
    %2834 = vmatprep.subr.mxu0 0.0
    %2835 = vmatpush1.msra.mxu0 0.0
    %2836 = vmatprep.subr.mxu0 0.0
    %2837 = vmatpush1.msra.mxu0 0.0
    %2838 = vmatprep.subr.mxu0 0.0
    %2839 = vmatpush1.msra.mxu0 0.0
    %2840 = vmatprep.subr.mxu0 0.0
    %2841 = vmatpush1.msra.mxu0 0.0
    %2842 = vmatprep.subr.mxu0 0.0
    %2843 = vmatpush1.msra.mxu0 0.0
    %2844 = vmatprep.subr.mxu0 0.0
    %2845 = vmatpush1.msra.mxu0 0.0
    %2846 = vmatprep.subr.mxu0 0.0
    %2847 = vmatpush1.msra.mxu0 0.0
    %2848 = vmatprep.subr.mxu0 0.0
    %2849 = vmatpush1.msra.mxu0 0.0
    %2850 = vmatprep.subr.mxu0 0.0
    %2851 = vmatpush1.msra.mxu0 0.0
    %2852 = vmatprep.subr.mxu0 0.0
    %2853 = vmatpush1.msra.mxu0 0.0
    %2854 = vmatprep.mubr.f32.mxu0 0.0
    %2855 = vmatmul.mubr.f32.gmra.mrb[0].mxu0 %v2785
    %v2856 = vpop.f32.mrb[0].mxu0
    %v2857 = vadd.f32 0.0, %v2856
    %v2858 = vpop.f32.mrb[0].mxu0
    %2859 = vmatprep.mubr.f32.mxu0 0.0
    %2860 = vmatmul.mubr.f32.gmra.mrb[0].mxu0 %v2788
    %v2861 = vpop.f32.mrb[0].mxu0
    %v2862 = vadd.f32 0.0, %v2861
    %v2863 = vpop.f32.mrb[0].mxu0
    %2864 = vdwg.mxu0
    %v2865 = vpack.c.bf16 %v2862, %v2857
    %v2867 = vsel %vm506, %v2865, 0
    %v2870 = vsel %vm650, %v197, 0
    %2872 = vmatprep.subr.bf16.mxu0 0
    %2873 = vmatpush1.bf16.msra.mxu0 %v2870
    %2874 = vmatprep.subr.bf16.mxu0 0
    %2875 = vmatpush1.bf16.msra.mxu0 0
    %2876 = vmatprep.subr.bf16.mxu0 0
    %2877 = vmatpush1.bf16.msra.mxu0 0
    %2878 = vmatprep.subr.bf16.mxu0 0
    %2879 = vmatpush1.bf16.msra.mxu0 0
    %2880 = vmatprep.subr.bf16.mxu0 0
    %2881 = vmatpush1.bf16.msra.mxu0 0
    %2882 = vmatprep.subr.bf16.mxu0 0
    %2883 = vmatpush1.bf16.msra.mxu0 0
    %2884 = vmatprep.subr.bf16.mxu0 0
    %2885 = vmatpush1.bf16.msra.mxu0 0
    %2886 = vmatprep.subr.bf16.mxu0 0
    %2887 = vmatpush1.bf16.msra.mxu0 0
    %2888 = vmatprep.subr.bf16.mxu0 0
    %2889 = vmatpush1.bf16.msra.mxu0 0
    %2890 = vmatprep.subr.bf16.mxu0 0
    %2891 = vmatpush1.bf16.msra.mxu0 0
    %2892 = vmatprep.subr.bf16.mxu0 0
    %2893 = vmatpush1.bf16.msra.mxu0 0
    %2894 = vmatprep.subr.bf16.mxu0 0
    %2895 = vmatpush1.bf16.msra.mxu0 0
    %2896 = vmatprep.subr.bf16.mxu0 0
    %2897 = vmatpush1.bf16.msra.mxu0 0
    %2898 = vmatprep.subr.bf16.mxu0 0
    %2899 = vmatpush1.bf16.msra.mxu0 0
    %2900 = vmatprep.subr.bf16.mxu0 0
    %2901 = vmatpush1.bf16.msra.mxu0 0
    %2902 = vmatprep.subr.bf16.mxu0 0
    %2903 = vmatpush1.bf16.msra.mxu0 0
    %2904 = vmatprep.mubr.bf16.mxu0 0
    %2905 = vmatmul.mubr.bf16.gmra.mrb[0].mxu0 %v2867
    %v2906 = vpop.f32.mrb[0].mxu0
    %v2907 = vadd.f32 0.0, %v2906
    %v2908 = vpop.f32.mrb[0].mxu0
    %v2909 = vpop.f32.mrb[0].mxu0
    %v2910 = vadd.f32 0.0, %v2909
    %v2911 = vpop.f32.mrb[0].mxu0
    %2912 = vdwg.mxu0
    %v2913 = vadd.f32 %v2709, %v2907
    %v2914 = vadd.f32 %v2709, %v2910
    %2916 = vrot.lane.b32.xlu0 %v2701, 124
    %v2917 = vpop.permute.xlu0 %2916
    %2919 = vrot.lane.b32.xlu0 %v2702, 124
    %v2920 = vpop.permute.xlu0 %2919
    %v2922 = vsel %vm506, %v2917, 0
    %v2925 = vsel %vm506, %v2920, 0
    %2927 = vmatprep.subr.bf16.mxu0 0
    %2928 = vmatpush1.bf16.xpose.msra.mxu0 %v2925
    %2929 = vmatprep.subr.bf16.mxu0 0
    %2930 = vmatpush1.bf16.xpose.msra.mxu0 0
    %2931 = vmatprep.subr.bf16.mxu0 0
    %2932 = vmatpush1.bf16.xpose.msra.mxu0 0
    %2933 = vmatprep.subr.bf16.mxu0 0
    %2934 = vmatpush1.bf16.xpose.msra.mxu0 0
    %2935 = vmatprep.subr.bf16.mxu0 0
    %2936 = vmatpush1.bf16.xpose.msra.mxu0 0
    %2937 = vmatprep.subr.bf16.mxu0 0
    %2938 = vmatpush1.bf16.xpose.msra.mxu0 0
    %2939 = vmatprep.subr.bf16.mxu0 0
    %2940 = vmatpush1.bf16.xpose.msra.mxu0 0
    %2941 = vmatprep.subr.bf16.mxu0 0
    %2942 = vmatpush1.bf16.xpose.msra.mxu0 0
    %2943 = vmatprep.subr.bf16.mxu0 0
    %2944 = vmatpush1.bf16.xpose.msra.mxu0 0
    %2945 = vmatprep.subr.bf16.mxu0 0
    %2946 = vmatpush1.bf16.xpose.msra.mxu0 0
    %2947 = vmatprep.subr.bf16.mxu0 0
    %2948 = vmatpush1.bf16.xpose.msra.mxu0 0
    %2949 = vmatprep.subr.bf16.mxu0 0
    %2950 = vmatpush1.bf16.xpose.msra.mxu0 0
    %2951 = vmatprep.subr.bf16.mxu0 0
    %2952 = vmatpush1.bf16.xpose.msra.mxu0 0
    %2953 = vmatprep.subr.bf16.mxu0 0
    %2954 = vmatpush1.bf16.xpose.msra.mxu0 0
    %2955 = vmatprep.subr.bf16.mxu0 0
    %2956 = vmatpush1.bf16.xpose.msra.mxu0 0
    %2957 = vmatprep.subr.bf16.mxu0 0
    %2958 = vmatpush1.bf16.xpose.msra.mxu0 0
    %2959 = vmatprep.mubr.bf16.mxu0 0
    %2960 = vmatmul.mubr.bf16.gmra.mrb[0].mxu0 %v2922
    %v2961 = vpop.f32.mrb[0].mxu0
    %v2962 = vadd.f32 0.0, %v2961
    %v2963 = vpop.f32.mrb[0].mxu0
    %v2964 = vpop.f32.mrb[0].mxu0
    %v2965 = vadd.f32 0.0, %v2964
    %v2966 = vpop.f32.mrb[0].mxu0
    %2967 = vdwg.mxu0
    %v2968 = vsel %vm2757, %v2962, -inf
    %2969 = vmax.xlane.f32.xlu0 %v2968
    %v2970 = vpop.xlane.xlu0 %2969
    %v2971 = vsel %vm2757, %v2965, -inf
    %2972 = vmax.xlane.f32.xlu0 %v2971
    %v2973 = vpop.xlane.xlu0 %2972
    %v2974 = vsub.f32 %v2962, %v2970
    %v2975 = vsub.f32 %v2965, %v2973
    %v2976 = vmul.f32 %v2974, 1.442695
    %v2977 = vpow.pop %v2976
    %v2978 = vmul.f32 %v2975, 1.442695
    %v2979 = vpow.pop %v2978
    %v2980 = vsel %vm2757, %v2977, 0.0
    %2981 = vadd.xlane.f32.xlu0 %v2980
    %v2982 = vpop.xlane.xlu0 %2981
    %v2983 = vsel %vm2757, %v2979, 0.0
    %2984 = vadd.xlane.f32.xlu0 %v2983
    %v2985 = vpop.xlane.xlu0 %2984
    %v2986 = vrcp.pop %v2982
    %v2987 = vmul.f32 %v2977, %v2986
    %v2988 = vrcp.pop %v2985
    %v2989 = vmul.f32 %v2979, %v2988
    %2990 = vrot.lane.b32.xlu0 %v2696, 92
    %v2991 = vpop.permute.xlu0 %2990
    %v2994 = vsel %vm2757, %v2987, 0
    %v2997 = vsel %vm2757, %v2989, 0
    %2999 = vmatprep.subr.mxu0 0.0
    %3000 = vmatpush1.msra.mxu0 %v2991
    %3001 = vmatprep.subr.mxu0 0.0
    %3002 = vmatpush1.msra.mxu0 0.0
    %3003 = vmatprep.subr.mxu0 0.0
    %3004 = vmatpush1.msra.mxu0 0.0
    %3005 = vmatprep.subr.mxu0 0.0
    %3006 = vmatpush1.msra.mxu0 0.0
    %3007 = vmatprep.subr.mxu0 0.0
    %3008 = vmatpush1.msra.mxu0 0.0
    %3009 = vmatprep.subr.mxu0 0.0
    %3010 = vmatpush1.msra.mxu0 0.0
    %3011 = vmatprep.subr.mxu0 0.0
    %3012 = vmatpush1.msra.mxu0 0.0
    %3013 = vmatprep.subr.mxu0 0.0
    %3014 = vmatpush1.msra.mxu0 0.0
    %3015 = vmatprep.subr.mxu0 0.0
    %3016 = vmatpush1.msra.mxu0 0.0
    %3017 = vmatprep.subr.mxu0 0.0
    %3018 = vmatpush1.msra.mxu0 0.0
    %3019 = vmatprep.subr.mxu0 0.0
    %3020 = vmatpush1.msra.mxu0 0.0
    %3021 = vmatprep.subr.mxu0 0.0
    %3022 = vmatpush1.msra.mxu0 0.0
    %3023 = vmatprep.subr.mxu0 0.0
    %3024 = vmatpush1.msra.mxu0 0.0
    %3025 = vmatprep.subr.mxu0 0.0
    %3026 = vmatpush1.msra.mxu0 0.0
    %3027 = vmatprep.subr.mxu0 0.0
    %3028 = vmatpush1.msra.mxu0 0.0
    %3029 = vmatprep.subr.mxu0 0.0
    %3030 = vmatpush1.msra.mxu0 0.0
    %3031 = vmatprep.subr.mxu0 0.0
    %3032 = vmatpush1.msra.mxu0 0.0
    %3033 = vmatprep.subr.mxu0 0.0
    %3034 = vmatpush1.msra.mxu0 0.0
    %3035 = vmatprep.subr.mxu0 0.0
    %3036 = vmatpush1.msra.mxu0 0.0
    %3037 = vmatprep.subr.mxu0 0.0
    %3038 = vmatpush1.msra.mxu0 0.0
    %3039 = vmatprep.subr.mxu0 0.0
    %3040 = vmatpush1.msra.mxu0 0.0
    %3041 = vmatprep.subr.mxu0 0.0
    %3042 = vmatpush1.msra.mxu0 0.0
    %3043 = vmatprep.subr.mxu0 0.0
    %3044 = vmatpush1.msra.mxu0 0.0
    %3045 = vmatprep.subr.mxu0 0.0
    %3046 = vmatpush1.msra.mxu0 0.0
    %3047 = vmatprep.subr.mxu0 0.0
    %3048 = vmatpush1.msra.mxu0 0.0
    %3049 = vmatprep.subr.mxu0 0.0
    %3050 = vmatpush1.msra.mxu0 0.0
    %3051 = vmatprep.subr.mxu0 0.0
    %3052 = vmatpush1.msra.mxu0 0.0
    %3053 = vmatprep.subr.mxu0 0.0
    %3054 = vmatpush1.msra.mxu0 0.0
    %3055 = vmatprep.subr.mxu0 0.0
    %3056 = vmatpush1.msra.mxu0 0.0
    %3057 = vmatprep.subr.mxu0 0.0
    %3058 = vmatpush1.msra.mxu0 0.0
    %3059 = vmatprep.subr.mxu0 0.0
    %3060 = vmatpush1.msra.mxu0 0.0
    %3061 = vmatprep.subr.mxu0 0.0
    %3062 = vmatpush1.msra.mxu0 0.0
    %3063 = vmatprep.mubr.f32.mxu0 0.0
    %3064 = vmatmul.mubr.f32.gmra.mrb[0].mxu0 %v2994
    %v3065 = vpop.f32.mrb[0].mxu0
    %v3066 = vadd.f32 0.0, %v3065
    %v3067 = vpop.f32.mrb[0].mxu0
    %3068 = vmatprep.mubr.f32.mxu0 0.0
    %3069 = vmatmul.mubr.f32.gmra.mrb[0].mxu0 %v2997
    %v3070 = vpop.f32.mrb[0].mxu0
    %v3071 = vadd.f32 0.0, %v3070
    %v3072 = vpop.f32.mrb[0].mxu0
    %3073 = vdwg.mxu0
    %v3074 = vpack.c.bf16 %v3071, %v3066
    %v3076 = vunpack.c.l.b16 %v197
    %v3077 = vpack.c.b16 %v3076, %v3076
    %v3078 = vrot.slane %v3077, 2
    %v3080 = vsel %vm506, %v3074, 0
    %v3083 = vsel %vm650, %v3078, 0
    %3085 = vmatprep.subr.bf16.mxu0 0
    %3086 = vmatpush1.bf16.msra.mxu0 %v3083
    %3087 = vmatprep.subr.bf16.mxu0 0
    %3088 = vmatpush1.bf16.msra.mxu0 0
    %3089 = vmatprep.subr.bf16.mxu0 0
    %3090 = vmatpush1.bf16.msra.mxu0 0
    %3091 = vmatprep.subr.bf16.mxu0 0
    %3092 = vmatpush1.bf16.msra.mxu0 0
    %3093 = vmatprep.subr.bf16.mxu0 0
    %3094 = vmatpush1.bf16.msra.mxu0 0
    %3095 = vmatprep.subr.bf16.mxu0 0
    %3096 = vmatpush1.bf16.msra.mxu0 0
    %3097 = vmatprep.subr.bf16.mxu0 0
    %3098 = vmatpush1.bf16.msra.mxu0 0
    %3099 = vmatprep.subr.bf16.mxu0 0
    %3100 = vmatpush1.bf16.msra.mxu0 0
    %3101 = vmatprep.subr.bf16.mxu0 0
    %3102 = vmatpush1.bf16.msra.mxu0 0
    %3103 = vmatprep.subr.bf16.mxu0 0
    %3104 = vmatpush1.bf16.msra.mxu0 0
    %3105 = vmatprep.subr.bf16.mxu0 0
    %3106 = vmatpush1.bf16.msra.mxu0 0
    %3107 = vmatprep.subr.bf16.mxu0 0
    %3108 = vmatpush1.bf16.msra.mxu0 0
    %3109 = vmatprep.subr.bf16.mxu0 0
    %3110 = vmatpush1.bf16.msra.mxu0 0
    %3111 = vmatprep.subr.bf16.mxu0 0
    %3112 = vmatpush1.bf16.msra.mxu0 0
    %3113 = vmatprep.subr.bf16.mxu0 0
    %3114 = vmatpush1.bf16.msra.mxu0 0
    %3115 = vmatprep.subr.bf16.mxu0 0
    %3116 = vmatpush1.bf16.msra.mxu0 0
    %3117 = vmatprep.mubr.bf16.mxu0 0
    %3118 = vmatmul.mubr.bf16.gmra.mrb[0].mxu0 %v3080
    %v3119 = vpop.f32.mrb[0].mxu0
    %v3120 = vadd.f32 0.0, %v3119
    %v3121 = vpop.f32.mrb[0].mxu0
    %v3122 = vpop.f32.mrb[0].mxu0
    %v3123 = vadd.f32 0.0, %v3122
    %v3124 = vpop.f32.mrb[0].mxu0
    %3125 = vdwg.mxu0
    %v3126 = vadd.f32 %v2913, %v3120
    %v3127 = vadd.f32 %v2914, %v3123
    %3128 = vrot.lane.b32.xlu0 %v2701, 120
    %v3129 = vpop.permute.xlu0 %3128
    %3130 = vrot.lane.b32.xlu0 %v2702, 120
    %v3131 = vpop.permute.xlu0 %3130
    %v3133 = vsel %vm506, %v3129, 0
    %v3136 = vsel %vm506, %v3131, 0
    %3138 = vmatprep.subr.bf16.mxu0 0
    %3139 = vmatpush1.bf16.xpose.msra.mxu0 %v3136
    %3140 = vmatprep.subr.bf16.mxu0 0
    %3141 = vmatpush1.bf16.xpose.msra.mxu0 0
    %3142 = vmatprep.subr.bf16.mxu0 0
    %3143 = vmatpush1.bf16.xpose.msra.mxu0 0
    %3144 = vmatprep.subr.bf16.mxu0 0
    %3145 = vmatpush1.bf16.xpose.msra.mxu0 0
    %3146 = vmatprep.subr.bf16.mxu0 0
    %3147 = vmatpush1.bf16.xpose.msra.mxu0 0
    %3148 = vmatprep.subr.bf16.mxu0 0
    %3149 = vmatpush1.bf16.xpose.msra.mxu0 0
    %3150 = vmatprep.subr.bf16.mxu0 0
    %3151 = vmatpush1.bf16.xpose.msra.mxu0 0
    %3152 = vmatprep.subr.bf16.mxu0 0
    %3153 = vmatpush1.bf16.xpose.msra.mxu0 0
    %3154 = vmatprep.subr.bf16.mxu0 0
    %3155 = vmatpush1.bf16.xpose.msra.mxu0 0
    %3156 = vmatprep.subr.bf16.mxu0 0
    %3157 = vmatpush1.bf16.xpose.msra.mxu0 0
    %3158 = vmatprep.subr.bf16.mxu0 0
    %3159 = vmatpush1.bf16.xpose.msra.mxu0 0
    %3160 = vmatprep.subr.bf16.mxu0 0
    %3161 = vmatpush1.bf16.xpose.msra.mxu0 0
    %3162 = vmatprep.subr.bf16.mxu0 0
    %3163 = vmatpush1.bf16.xpose.msra.mxu0 0
    %3164 = vmatprep.subr.bf16.mxu0 0
    %3165 = vmatpush1.bf16.xpose.msra.mxu0 0
    %3166 = vmatprep.subr.bf16.mxu0 0
    %3167 = vmatpush1.bf16.xpose.msra.mxu0 0
    %3168 = vmatprep.subr.bf16.mxu0 0
    %3169 = vmatpush1.bf16.xpose.msra.mxu0 0
    %3170 = vmatprep.mubr.bf16.mxu0 0
    %3171 = vmatmul.mubr.bf16.gmra.mrb[0].mxu0 %v3133
    %v3172 = vpop.f32.mrb[0].mxu0
    %v3173 = vadd.f32 0.0, %v3172
    %v3174 = vpop.f32.mrb[0].mxu0
    %v3175 = vpop.f32.mrb[0].mxu0
    %v3176 = vadd.f32 0.0, %v3175
    %v3177 = vpop.f32.mrb[0].mxu0
    %3178 = vdwg.mxu0
    %v3179 = vsel %vm2757, %v3173, -inf
    %3180 = vmax.xlane.f32.xlu0 %v3179
    %v3181 = vpop.xlane.xlu0 %3180
    %v3182 = vsel %vm2757, %v3176, -inf
    %3183 = vmax.xlane.f32.xlu0 %v3182
    %v3184 = vpop.xlane.xlu0 %3183
    %v3185 = vsub.f32 %v3173, %v3181
    %v3186 = vsub.f32 %v3176, %v3184
    %v3187 = vmul.f32 %v3185, 1.442695
    %v3188 = vpow.pop %v3187
    %v3189 = vmul.f32 %v3186, 1.442695
    %v3190 = vpow.pop %v3189
    %v3191 = vsel %vm2757, %v3188, 0.0
    %3192 = vadd.xlane.f32.xlu0 %v3191
    %v3193 = vpop.xlane.xlu0 %3192
    %v3194 = vsel %vm2757, %v3190, 0.0
    %3195 = vadd.xlane.f32.xlu0 %v3194
    %v3196 = vpop.xlane.xlu0 %3195
    %v3197 = vrcp.pop %v3193
    %v3198 = vmul.f32 %v3188, %v3197
    %v3199 = vrcp.pop %v3196
    %v3200 = vmul.f32 %v3190, %v3199
    %3201 = vrot.lane.b32.xlu0 %v2696, 88
    %v3202 = vpop.permute.xlu0 %3201
    %v3205 = vsel %vm2757, %v3198, 0
    %v3208 = vsel %vm2757, %v3200, 0
    %3210 = vmatprep.subr.mxu0 0.0
    %3211 = vmatpush1.msra.mxu0 %v3202
    %3212 = vmatprep.subr.mxu0 0.0
    %3213 = vmatpush1.msra.mxu0 0.0
    %3214 = vmatprep.subr.mxu0 0.0
    %3215 = vmatpush1.msra.mxu0 0.0
    %3216 = vmatprep.subr.mxu0 0.0
    %3217 = vmatpush1.msra.mxu0 0.0
    %3218 = vmatprep.subr.mxu0 0.0
    %3219 = vmatpush1.msra.mxu0 0.0
    %3220 = vmatprep.subr.mxu0 0.0
    %3221 = vmatpush1.msra.mxu0 0.0
    %3222 = vmatprep.subr.mxu0 0.0
    %3223 = vmatpush1.msra.mxu0 0.0
    %3224 = vmatprep.subr.mxu0 0.0
    %3225 = vmatpush1.msra.mxu0 0.0
    %3226 = vmatprep.subr.mxu0 0.0
    %3227 = vmatpush1.msra.mxu0 0.0
    %3228 = vmatprep.subr.mxu0 0.0
    %3229 = vmatpush1.msra.mxu0 0.0
    %3230 = vmatprep.subr.mxu0 0.0
    %3231 = vmatpush1.msra.mxu0 0.0
    %3232 = vmatprep.subr.mxu0 0.0
    %3233 = vmatpush1.msra.mxu0 0.0
    %3234 = vmatprep.subr.mxu0 0.0
    %3235 = vmatpush1.msra.mxu0 0.0
    %3236 = vmatprep.subr.mxu0 0.0
    %3237 = vmatpush1.msra.mxu0 0.0
    %3238 = vmatprep.subr.mxu0 0.0
    %3239 = vmatpush1.msra.mxu0 0.0
    %3240 = vmatprep.subr.mxu0 0.0
    %3241 = vmatpush1.msra.mxu0 0.0
    %3242 = vmatprep.subr.mxu0 0.0
    %3243 = vmatpush1.msra.mxu0 0.0
    %3244 = vmatprep.subr.mxu0 0.0
    %3245 = vmatpush1.msra.mxu0 0.0
    %3246 = vmatprep.subr.mxu0 0.0
    %3247 = vmatpush1.msra.mxu0 0.0
    %3248 = vmatprep.subr.mxu0 0.0
    %3249 = vmatpush1.msra.mxu0 0.0
    %3250 = vmatprep.subr.mxu0 0.0
    %3251 = vmatpush1.msra.mxu0 0.0
    %3252 = vmatprep.subr.mxu0 0.0
    %3253 = vmatpush1.msra.mxu0 0.0
    %3254 = vmatprep.subr.mxu0 0.0
    %3255 = vmatpush1.msra.mxu0 0.0
    %3256 = vmatprep.subr.mxu0 0.0
    %3257 = vmatpush1.msra.mxu0 0.0
    %3258 = vmatprep.subr.mxu0 0.0
    %3259 = vmatpush1.msra.mxu0 0.0
    %3260 = vmatprep.subr.mxu0 0.0
    %3261 = vmatpush1.msra.mxu0 0.0
    %3262 = vmatprep.subr.mxu0 0.0
    %3263 = vmatpush1.msra.mxu0 0.0
    %3264 = vmatprep.subr.mxu0 0.0
    %3265 = vmatpush1.msra.mxu0 0.0
    %3266 = vmatprep.subr.mxu0 0.0
    %3267 = vmatpush1.msra.mxu0 0.0
    %3268 = vmatprep.subr.mxu0 0.0
    %3269 = vmatpush1.msra.mxu0 0.0
    %3270 = vmatprep.subr.mxu0 0.0
    %3271 = vmatpush1.msra.mxu0 0.0
    %3272 = vmatprep.subr.mxu0 0.0
    %3273 = vmatpush1.msra.mxu0 0.0
    %3274 = vmatprep.mubr.f32.mxu0 0.0
    %3275 = vmatmul.mubr.f32.gmra.mrb[0].mxu0 %v3205
    %v3276 = vpop.f32.mrb[0].mxu0
    %v3277 = vadd.f32 0.0, %v3276
    %v3278 = vpop.f32.mrb[0].mxu0
    %3279 = vmatprep.mubr.f32.mxu0 0.0
    %3280 = vmatmul.mubr.f32.gmra.mrb[0].mxu0 %v3208
    %v3281 = vpop.f32.mrb[0].mxu0
    %v3282 = vadd.f32 0.0, %v3281
    %v3283 = vpop.f32.mrb[0].mxu0
    %3284 = vdwg.mxu0
    %v3285 = vpack.c.bf16 %v3282, %v3277
    %v3287 = vsel %vm506, %v3285, 0
    %v3290 = vsel %vm650, %v198, 0
    %3292 = vmatprep.subr.bf16.mxu0 0
    %3293 = vmatpush1.bf16.msra.mxu0 %v3290
    %3294 = vmatprep.subr.bf16.mxu0 0
    %3295 = vmatpush1.bf16.msra.mxu0 0
    %3296 = vmatprep.subr.bf16.mxu0 0
    %3297 = vmatpush1.bf16.msra.mxu0 0
    %3298 = vmatprep.subr.bf16.mxu0 0
    %3299 = vmatpush1.bf16.msra.mxu0 0
    %3300 = vmatprep.subr.bf16.mxu0 0
    %3301 = vmatpush1.bf16.msra.mxu0 0
    %3302 = vmatprep.subr.bf16.mxu0 0
    %3303 = vmatpush1.bf16.msra.mxu0 0
    %3304 = vmatprep.subr.bf16.mxu0 0
    %3305 = vmatpush1.bf16.msra.mxu0 0
    %3306 = vmatprep.subr.bf16.mxu0 0
    %3307 = vmatpush1.bf16.msra.mxu0 0
    %3308 = vmatprep.subr.bf16.mxu0 0
    %3309 = vmatpush1.bf16.msra.mxu0 0
    %3310 = vmatprep.subr.bf16.mxu0 0
    %3311 = vmatpush1.bf16.msra.mxu0 0
    %3312 = vmatprep.subr.bf16.mxu0 0
    %3313 = vmatpush1.bf16.msra.mxu0 0
    %3314 = vmatprep.subr.bf16.mxu0 0
    %3315 = vmatpush1.bf16.msra.mxu0 0
    %3316 = vmatprep.subr.bf16.mxu0 0
    %3317 = vmatpush1.bf16.msra.mxu0 0
    %3318 = vmatprep.subr.bf16.mxu0 0
    %3319 = vmatpush1.bf16.msra.mxu0 0
    %3320 = vmatprep.subr.bf16.mxu0 0
    %3321 = vmatpush1.bf16.msra.mxu0 0
    %3322 = vmatprep.subr.bf16.mxu0 0
    %3323 = vmatpush1.bf16.msra.mxu0 0
    %3324 = vmatprep.mubr.bf16.mxu0 0
    %3325 = vmatmul.mubr.bf16.gmra.mrb[0].mxu0 %v3287
    %v3326 = vpop.f32.mrb[0].mxu0
    %v3327 = vadd.f32 0.0, %v3326
    %v3328 = vpop.f32.mrb[0].mxu0
    %v3329 = vpop.f32.mrb[0].mxu0
    %v3330 = vadd.f32 0.0, %v3329
    %v3331 = vpop.f32.mrb[0].mxu0
    %3332 = vdwg.mxu0
    %v3333 = vadd.f32 %v3126, %v3327
    %v3334 = vadd.f32 %v3127, %v3330
    %3335 = vrot.lane.b32.xlu0 %v2701, 116
    %v3336 = vpop.permute.xlu0 %3335
    %3337 = vrot.lane.b32.xlu0 %v2702, 116
    %v3338 = vpop.permute.xlu0 %3337
    %v3340 = vsel %vm506, %v3336, 0
    %v3343 = vsel %vm506, %v3338, 0
    %3345 = vmatprep.subr.bf16.mxu0 0
    %3346 = vmatpush1.bf16.xpose.msra.mxu0 %v3343
    %3347 = vmatprep.subr.bf16.mxu0 0
    %3348 = vmatpush1.bf16.xpose.msra.mxu0 0
    %3349 = vmatprep.subr.bf16.mxu0 0
    %3350 = vmatpush1.bf16.xpose.msra.mxu0 0
    %3351 = vmatprep.subr.bf16.mxu0 0
    %3352 = vmatpush1.bf16.xpose.msra.mxu0 0
    %3353 = vmatprep.subr.bf16.mxu0 0
    %3354 = vmatpush1.bf16.xpose.msra.mxu0 0
    %3355 = vmatprep.subr.bf16.mxu0 0
    %3356 = vmatpush1.bf16.xpose.msra.mxu0 0
    %3357 = vmatprep.subr.bf16.mxu0 0
    %3358 = vmatpush1.bf16.xpose.msra.mxu0 0
    %3359 = vmatprep.subr.bf16.mxu0 0
    %3360 = vmatpush1.bf16.xpose.msra.mxu0 0
    %3361 = vmatprep.subr.bf16.mxu0 0
    %3362 = vmatpush1.bf16.xpose.msra.mxu0 0
    %3363 = vmatprep.subr.bf16.mxu0 0
    %3364 = vmatpush1.bf16.xpose.msra.mxu0 0
    %3365 = vmatprep.subr.bf16.mxu0 0
    %3366 = vmatpush1.bf16.xpose.msra.mxu0 0
    %3367 = vmatprep.subr.bf16.mxu0 0
    %3368 = vmatpush1.bf16.xpose.msra.mxu0 0
    %3369 = vmatprep.subr.bf16.mxu0 0
    %3370 = vmatpush1.bf16.xpose.msra.mxu0 0
    %3371 = vmatprep.subr.bf16.mxu0 0
    %3372 = vmatpush1.bf16.xpose.msra.mxu0 0
    %3373 = vmatprep.subr.bf16.mxu0 0
    %3374 = vmatpush1.bf16.xpose.msra.mxu0 0
    %3375 = vmatprep.subr.bf16.mxu0 0
    %3376 = vmatpush1.bf16.xpose.msra.mxu0 0
    %3377 = vmatprep.mubr.bf16.mxu0 0
    %3378 = vmatmul.mubr.bf16.gmra.mrb[0].mxu0 %v3340
    %v3379 = vpop.f32.mrb[0].mxu0
    %v3380 = vadd.f32 0.0, %v3379
    %v3381 = vpop.f32.mrb[0].mxu0
    %v3382 = vpop.f32.mrb[0].mxu0
    %v3383 = vadd.f32 0.0, %v3382
    %v3384 = vpop.f32.mrb[0].mxu0
    %3385 = vdwg.mxu0
    %v3386 = vsel %vm2757, %v3380, -inf
    %3387 = vmax.xlane.f32.xlu0 %v3386
    %v3388 = vpop.xlane.xlu0 %3387
    %v3389 = vsel %vm2757, %v3383, -inf
    %3390 = vmax.xlane.f32.xlu0 %v3389
    %v3391 = vpop.xlane.xlu0 %3390
    %v3392 = vsub.f32 %v3380, %v3388
    %v3393 = vsub.f32 %v3383, %v3391
    %v3394 = vmul.f32 %v3392, 1.442695
    %v3395 = vpow.pop %v3394
    %v3396 = vmul.f32 %v3393, 1.442695
    %v3397 = vpow.pop %v3396
    %v3398 = vsel %vm2757, %v3395, 0.0
    %3399 = vadd.xlane.f32.xlu0 %v3398
    %v3400 = vpop.xlane.xlu0 %3399
    %v3401 = vsel %vm2757, %v3397, 0.0
    %3402 = vadd.xlane.f32.xlu0 %v3401
    %v3403 = vpop.xlane.xlu0 %3402
    %v3404 = vrcp.pop %v3400
    %v3405 = vmul.f32 %v3395, %v3404
    %v3406 = vrcp.pop %v3403
    %v3407 = vmul.f32 %v3397, %v3406
    %3408 = vrot.lane.b32.xlu0 %v2696, 84
    %v3409 = vpop.permute.xlu0 %3408
    %v3412 = vsel %vm2757, %v3405, 0
    %v3415 = vsel %vm2757, %v3407, 0
    %3417 = vmatprep.subr.mxu0 0.0
    %3418 = vmatpush1.msra.mxu0 %v3409
    %3419 = vmatprep.subr.mxu0 0.0
    %3420 = vmatpush1.msra.mxu0 0.0
    %3421 = vmatprep.subr.mxu0 0.0
    %3422 = vmatpush1.msra.mxu0 0.0
    %3423 = vmatprep.subr.mxu0 0.0
    %3424 = vmatpush1.msra.mxu0 0.0
    %3425 = vmatprep.subr.mxu0 0.0
    %3426 = vmatpush1.msra.mxu0 0.0
    %3427 = vmatprep.subr.mxu0 0.0
    %3428 = vmatpush1.msra.mxu0 0.0
    %3429 = vmatprep.subr.mxu0 0.0
    %3430 = vmatpush1.msra.mxu0 0.0
    %3431 = vmatprep.subr.mxu0 0.0
    %3432 = vmatpush1.msra.mxu0 0.0
    %3433 = vmatprep.subr.mxu0 0.0
    %3434 = vmatpush1.msra.mxu0 0.0
    %3435 = vmatprep.subr.mxu0 0.0
    %3436 = vmatpush1.msra.mxu0 0.0
    %3437 = vmatprep.subr.mxu0 0.0
    %3438 = vmatpush1.msra.mxu0 0.0
    %3439 = vmatprep.subr.mxu0 0.0
    %3440 = vmatpush1.msra.mxu0 0.0
    %3441 = vmatprep.subr.mxu0 0.0
    %3442 = vmatpush1.msra.mxu0 0.0
    %3443 = vmatprep.subr.mxu0 0.0
    %3444 = vmatpush1.msra.mxu0 0.0
    %3445 = vmatprep.subr.mxu0 0.0
    %3446 = vmatpush1.msra.mxu0 0.0
    %3447 = vmatprep.subr.mxu0 0.0
    %3448 = vmatpush1.msra.mxu0 0.0
    %3449 = vmatprep.subr.mxu0 0.0
    %3450 = vmatpush1.msra.mxu0 0.0
    %3451 = vmatprep.subr.mxu0 0.0
    %3452 = vmatpush1.msra.mxu0 0.0
    %3453 = vmatprep.subr.mxu0 0.0
    %3454 = vmatpush1.msra.mxu0 0.0
    %3455 = vmatprep.subr.mxu0 0.0
    %3456 = vmatpush1.msra.mxu0 0.0
    %3457 = vmatprep.subr.mxu0 0.0
    %3458 = vmatpush1.msra.mxu0 0.0
    %3459 = vmatprep.subr.mxu0 0.0
    %3460 = vmatpush1.msra.mxu0 0.0
    %3461 = vmatprep.subr.mxu0 0.0
    %3462 = vmatpush1.msra.mxu0 0.0
    %3463 = vmatprep.subr.mxu0 0.0
    %3464 = vmatpush1.msra.mxu0 0.0
    %3465 = vmatprep.subr.mxu0 0.0
    %3466 = vmatpush1.msra.mxu0 0.0
    %3467 = vmatprep.subr.mxu0 0.0
    %3468 = vmatpush1.msra.mxu0 0.0
    %3469 = vmatprep.subr.mxu0 0.0
    %3470 = vmatpush1.msra.mxu0 0.0
    %3471 = vmatprep.subr.mxu0 0.0
    %3472 = vmatpush1.msra.mxu0 0.0
    %3473 = vmatprep.subr.mxu0 0.0
    %3474 = vmatpush1.msra.mxu0 0.0
    %3475 = vmatprep.subr.mxu0 0.0
    %3476 = vmatpush1.msra.mxu0 0.0
    %3477 = vmatprep.subr.mxu0 0.0
    %3478 = vmatpush1.msra.mxu0 0.0
    %3479 = vmatprep.subr.mxu0 0.0
    %3480 = vmatpush1.msra.mxu0 0.0
    %3481 = vmatprep.mubr.f32.mxu0 0.0
    %3482 = vmatmul.mubr.f32.gmra.mrb[0].mxu0 %v3412
    %v3483 = vpop.f32.mrb[0].mxu0
    %v3484 = vadd.f32 0.0, %v3483
    %v3485 = vpop.f32.mrb[0].mxu0
    %3486 = vmatprep.mubr.f32.mxu0 0.0
    %3487 = vmatmul.mubr.f32.gmra.mrb[0].mxu0 %v3415
    %v3488 = vpop.f32.mrb[0].mxu0
    %v3489 = vadd.f32 0.0, %v3488
    %v3490 = vpop.f32.mrb[0].mxu0
    %3491 = vdwg.mxu0
    %v3492 = vpack.c.bf16 %v3489, %v3484
    %v3494 = vunpack.c.l.b16 %v198
    %v3495 = vpack.c.b16 %v3494, %v3494
    %v3496 = vrot.slane %v3495, 2
    %v3498 = vsel %vm506, %v3492, 0
    %v3501 = vsel %vm650, %v3496, 0
    %3503 = vmatprep.subr.bf16.mxu0 0
    %3504 = vmatpush1.bf16.msra.mxu0 %v3501
    %3505 = vmatprep.subr.bf16.mxu0 0
    %3506 = vmatpush1.bf16.msra.mxu0 0
    %3507 = vmatprep.subr.bf16.mxu0 0
    %3508 = vmatpush1.bf16.msra.mxu0 0
    %3509 = vmatprep.subr.bf16.mxu0 0
    %3510 = vmatpush1.bf16.msra.mxu0 0
    %3511 = vmatprep.subr.bf16.mxu0 0
    %3512 = vmatpush1.bf16.msra.mxu0 0
    %3513 = vmatprep.subr.bf16.mxu0 0
    %3514 = vmatpush1.bf16.msra.mxu0 0
    %3515 = vmatprep.subr.bf16.mxu0 0
    %3516 = vmatpush1.bf16.msra.mxu0 0
    %3517 = vmatprep.subr.bf16.mxu0 0
    %3518 = vmatpush1.bf16.msra.mxu0 0
    %3519 = vmatprep.subr.bf16.mxu0 0
    %3520 = vmatpush1.bf16.msra.mxu0 0
    %3521 = vmatprep.subr.bf16.mxu0 0
    %3522 = vmatpush1.bf16.msra.mxu0 0
    %3523 = vmatprep.subr.bf16.mxu0 0
    %3524 = vmatpush1.bf16.msra.mxu0 0
    %3525 = vmatprep.subr.bf16.mxu0 0
    %3526 = vmatpush1.bf16.msra.mxu0 0
    %3527 = vmatprep.subr.bf16.mxu0 0
    %3528 = vmatpush1.bf16.msra.mxu0 0
    %3529 = vmatprep.subr.bf16.mxu0 0
    %3530 = vmatpush1.bf16.msra.mxu0 0
    %3531 = vmatprep.subr.bf16.mxu0 0
    %3532 = vmatpush1.bf16.msra.mxu0 0
    %3533 = vmatprep.subr.bf16.mxu0 0
    %3534 = vmatpush1.bf16.msra.mxu0 0
    %3535 = vmatprep.mubr.bf16.mxu0 0
    %3536 = vmatmul.mubr.bf16.gmra.mrb[0].mxu0 %v3498
    %v3537 = vpop.f32.mrb[0].mxu0
    %v3538 = vadd.f32 0.0, %v3537
    %v3539 = vpop.f32.mrb[0].mxu0
    %v3540 = vpop.f32.mrb[0].mxu0
    %v3541 = vadd.f32 0.0, %v3540
    %v3542 = vpop.f32.mrb[0].mxu0
    %3543 = vdwg.mxu0
    %v3544 = vadd.f32 %v3333, %v3538
    %v3545 = vadd.f32 %v3334, %v3541
    %3546 = vrot.lane.b32.xlu0 %v2701, 112
    %v3547 = vpop.permute.xlu0 %3546
    %3548 = vrot.lane.b32.xlu0 %v2702, 112
    %v3549 = vpop.permute.xlu0 %3548
    %v3551 = vsel %vm506, %v3547, 0
    %v3554 = vsel %vm506, %v3549, 0
    %3556 = vmatprep.subr.bf16.mxu0 0
    %3557 = vmatpush1.bf16.xpose.msra.mxu0 %v3554
    %3558 = vmatprep.subr.bf16.mxu0 0
    %3559 = vmatpush1.bf16.xpose.msra.mxu0 0
    %3560 = vmatprep.subr.bf16.mxu0 0
    %3561 = vmatpush1.bf16.xpose.msra.mxu0 0
    %3562 = vmatprep.subr.bf16.mxu0 0
    %3563 = vmatpush1.bf16.xpose.msra.mxu0 0
    %3564 = vmatprep.subr.bf16.mxu0 0
    %3565 = vmatpush1.bf16.xpose.msra.mxu0 0
    %3566 = vmatprep.subr.bf16.mxu0 0
    %3567 = vmatpush1.bf16.xpose.msra.mxu0 0
    %3568 = vmatprep.subr.bf16.mxu0 0
    %3569 = vmatpush1.bf16.xpose.msra.mxu0 0
    %3570 = vmatprep.subr.bf16.mxu0 0
    %3571 = vmatpush1.bf16.xpose.msra.mxu0 0
    %3572 = vmatprep.subr.bf16.mxu0 0
    %3573 = vmatpush1.bf16.xpose.msra.mxu0 0
    %3574 = vmatprep.subr.bf16.mxu0 0
    %3575 = vmatpush1.bf16.xpose.msra.mxu0 0
    %3576 = vmatprep.subr.bf16.mxu0 0
    %3577 = vmatpush1.bf16.xpose.msra.mxu0 0
    %3578 = vmatprep.subr.bf16.mxu0 0
    %3579 = vmatpush1.bf16.xpose.msra.mxu0 0
    %3580 = vmatprep.subr.bf16.mxu0 0
    %3581 = vmatpush1.bf16.xpose.msra.mxu0 0
    %3582 = vmatprep.subr.bf16.mxu0 0
    %3583 = vmatpush1.bf16.xpose.msra.mxu0 0
    %3584 = vmatprep.subr.bf16.mxu0 0
    %3585 = vmatpush1.bf16.xpose.msra.mxu0 0
    %3586 = vmatprep.subr.bf16.mxu0 0
    %3587 = vmatpush1.bf16.xpose.msra.mxu0 0
    %3588 = vmatprep.mubr.bf16.mxu0 0
    %3589 = vmatmul.mubr.bf16.gmra.mrb[0].mxu0 %v3551
    %v3590 = vpop.f32.mrb[0].mxu0
    %v3591 = vadd.f32 0.0, %v3590
    %v3592 = vpop.f32.mrb[0].mxu0
    %v3593 = vpop.f32.mrb[0].mxu0
    %v3594 = vadd.f32 0.0, %v3593
    %v3595 = vpop.f32.mrb[0].mxu0
    %3596 = vdwg.mxu0
    %v3597 = vsel %vm2757, %v3591, -inf
    %3598 = vmax.xlane.f32.xlu0 %v3597
    %v3599 = vpop.xlane.xlu0 %3598
    %v3600 = vsel %vm2757, %v3594, -inf
    %3601 = vmax.xlane.f32.xlu0 %v3600
    %v3602 = vpop.xlane.xlu0 %3601
    %v3603 = vsub.f32 %v3591, %v3599
    %v3604 = vsub.f32 %v3594, %v3602
    %v3605 = vmul.f32 %v3603, 1.442695
    %v3606 = vpow.pop %v3605
    %v3607 = vmul.f32 %v3604, 1.442695
    %v3608 = vpow.pop %v3607
    %v3609 = vsel %vm2757, %v3606, 0.0
    %3610 = vadd.xlane.f32.xlu0 %v3609
    %v3611 = vpop.xlane.xlu0 %3610
    %v3612 = vsel %vm2757, %v3608, 0.0
    %3613 = vadd.xlane.f32.xlu0 %v3612
    %v3614 = vpop.xlane.xlu0 %3613
    %v3615 = vrcp.pop %v3611
    %v3616 = vmul.f32 %v3606, %v3615
    %v3617 = vrcp.pop %v3614
    %v3618 = vmul.f32 %v3608, %v3617
    %3619 = vrot.lane.b32.xlu0 %v2696, 80
    %v3620 = vpop.permute.xlu0 %3619
    %v3623 = vsel %vm2757, %v3616, 0
    %v3626 = vsel %vm2757, %v3618, 0
    %3628 = vmatprep.subr.mxu0 0.0
    %3629 = vmatpush1.msra.mxu0 %v3620
    %3630 = vmatprep.subr.mxu0 0.0
    %3631 = vmatpush1.msra.mxu0 0.0
    %3632 = vmatprep.subr.mxu0 0.0
    %3633 = vmatpush1.msra.mxu0 0.0
    %3634 = vmatprep.subr.mxu0 0.0
    %3635 = vmatpush1.msra.mxu0 0.0
    %3636 = vmatprep.subr.mxu0 0.0
    %3637 = vmatpush1.msra.mxu0 0.0
    %3638 = vmatprep.subr.mxu0 0.0
    %3639 = vmatpush1.msra.mxu0 0.0
    %3640 = vmatprep.subr.mxu0 0.0
    %3641 = vmatpush1.msra.mxu0 0.0
    %3642 = vmatprep.subr.mxu0 0.0
    %3643 = vmatpush1.msra.mxu0 0.0
    %3644 = vmatprep.subr.mxu0 0.0
    %3645 = vmatpush1.msra.mxu0 0.0
    %3646 = vmatprep.subr.mxu0 0.0
    %3647 = vmatpush1.msra.mxu0 0.0
    %3648 = vmatprep.subr.mxu0 0.0
    %3649 = vmatpush1.msra.mxu0 0.0
    %3650 = vmatprep.subr.mxu0 0.0
    %3651 = vmatpush1.msra.mxu0 0.0
    %3652 = vmatprep.subr.mxu0 0.0
    %3653 = vmatpush1.msra.mxu0 0.0
    %3654 = vmatprep.subr.mxu0 0.0
    %3655 = vmatpush1.msra.mxu0 0.0
    %3656 = vmatprep.subr.mxu0 0.0
    %3657 = vmatpush1.msra.mxu0 0.0
    %3658 = vmatprep.subr.mxu0 0.0
    %3659 = vmatpush1.msra.mxu0 0.0
    %3660 = vmatprep.subr.mxu0 0.0
    %3661 = vmatpush1.msra.mxu0 0.0
    %3662 = vmatprep.subr.mxu0 0.0
    %3663 = vmatpush1.msra.mxu0 0.0
    %3664 = vmatprep.subr.mxu0 0.0
    %3665 = vmatpush1.msra.mxu0 0.0
    %3666 = vmatprep.subr.mxu0 0.0
    %3667 = vmatpush1.msra.mxu0 0.0
    %3668 = vmatprep.subr.mxu0 0.0
    %3669 = vmatpush1.msra.mxu0 0.0
    %3670 = vmatprep.subr.mxu0 0.0
    %3671 = vmatpush1.msra.mxu0 0.0
    %3672 = vmatprep.subr.mxu0 0.0
    %3673 = vmatpush1.msra.mxu0 0.0
    %3674 = vmatprep.subr.mxu0 0.0
    %3675 = vmatpush1.msra.mxu0 0.0
    %3676 = vmatprep.subr.mxu0 0.0
    %3677 = vmatpush1.msra.mxu0 0.0
    %3678 = vmatprep.subr.mxu0 0.0
    %3679 = vmatpush1.msra.mxu0 0.0
    %3680 = vmatprep.subr.mxu0 0.0
    %3681 = vmatpush1.msra.mxu0 0.0
    %3682 = vmatprep.subr.mxu0 0.0
    %3683 = vmatpush1.msra.mxu0 0.0
    %3684 = vmatprep.subr.mxu0 0.0
    %3685 = vmatpush1.msra.mxu0 0.0
    %3686 = vmatprep.subr.mxu0 0.0
    %3687 = vmatpush1.msra.mxu0 0.0
    %3688 = vmatprep.subr.mxu0 0.0
    %3689 = vmatpush1.msra.mxu0 0.0
    %3690 = vmatprep.subr.mxu0 0.0
    %3691 = vmatpush1.msra.mxu0 0.0
    %3692 = vmatprep.mubr.f32.mxu0 0.0
    %3693 = vmatmul.mubr.f32.gmra.mrb[0].mxu0 %v3623
    %v3694 = vpop.f32.mrb[0].mxu0
    %v3695 = vadd.f32 0.0, %v3694
    %v3696 = vpop.f32.mrb[0].mxu0
    %3697 = vmatprep.mubr.f32.mxu0 0.0
    %3698 = vmatmul.mubr.f32.gmra.mrb[0].mxu0 %v3626
    %v3699 = vpop.f32.mrb[0].mxu0
    %v3700 = vadd.f32 0.0, %v3699
    %v3701 = vpop.f32.mrb[0].mxu0
    %3702 = vdwg.mxu0
    %v3703 = vpack.c.bf16 %v3700, %v3695
    %v3705 = vsel %vm506, %v3703, 0
    %v3708 = vsel %vm650, %v199, 0
    %3710 = vmatprep.subr.bf16.mxu0 0
    %3711 = vmatpush1.bf16.msra.mxu0 %v3708
    %3712 = vmatprep.subr.bf16.mxu0 0
    %3713 = vmatpush1.bf16.msra.mxu0 0
    %3714 = vmatprep.subr.bf16.mxu0 0
    %3715 = vmatpush1.bf16.msra.mxu0 0
    %3716 = vmatprep.subr.bf16.mxu0 0
    %3717 = vmatpush1.bf16.msra.mxu0 0
    %3718 = vmatprep.subr.bf16.mxu0 0
    %3719 = vmatpush1.bf16.msra.mxu0 0
    %3720 = vmatprep.subr.bf16.mxu0 0
    %3721 = vmatpush1.bf16.msra.mxu0 0
    %3722 = vmatprep.subr.bf16.mxu0 0
    %3723 = vmatpush1.bf16.msra.mxu0 0
    %3724 = vmatprep.subr.bf16.mxu0 0
    %3725 = vmatpush1.bf16.msra.mxu0 0
    %3726 = vmatprep.subr.bf16.mxu0 0
    %3727 = vmatpush1.bf16.msra.mxu0 0
    %3728 = vmatprep.subr.bf16.mxu0 0
    %3729 = vmatpush1.bf16.msra.mxu0 0
    %3730 = vmatprep.subr.bf16.mxu0 0
    %3731 = vmatpush1.bf16.msra.mxu0 0
    %3732 = vmatprep.subr.bf16.mxu0 0
    %3733 = vmatpush1.bf16.msra.mxu0 0
    %3734 = vmatprep.subr.bf16.mxu0 0
    %3735 = vmatpush1.bf16.msra.mxu0 0
    %3736 = vmatprep.subr.bf16.mxu0 0
    %3737 = vmatpush1.bf16.msra.mxu0 0
    %3738 = vmatprep.subr.bf16.mxu0 0
    %3739 = vmatpush1.bf16.msra.mxu0 0
    %3740 = vmatprep.subr.bf16.mxu0 0
    %3741 = vmatpush1.bf16.msra.mxu0 0
    %3742 = vmatprep.mubr.bf16.mxu0 0
    %3743 = vmatmul.mubr.bf16.gmra.mrb[0].mxu0 %v3705
    %v3744 = vpop.f32.mrb[0].mxu0
    %v3745 = vadd.f32 0.0, %v3744
    %v3746 = vpop.f32.mrb[0].mxu0
    %v3747 = vpop.f32.mrb[0].mxu0
    %v3748 = vadd.f32 0.0, %v3747
    %v3749 = vpop.f32.mrb[0].mxu0
    %3750 = vdwg.mxu0
    %v3751 = vadd.f32 %v3544, %v3745
    %v3752 = vadd.f32 %v3545, %v3748
    %3753 = vrot.lane.b32.xlu0 %v2701, 108
    %v3754 = vpop.permute.xlu0 %3753
    %3755 = vrot.lane.b32.xlu0 %v2702, 108
    %v3756 = vpop.permute.xlu0 %3755
    %v3758 = vsel %vm506, %v3754, 0
    %v3761 = vsel %vm506, %v3756, 0
    %3763 = vmatprep.subr.bf16.mxu0 0
    %3764 = vmatpush1.bf16.xpose.msra.mxu0 %v3761
    %3765 = vmatprep.subr.bf16.mxu0 0
    %3766 = vmatpush1.bf16.xpose.msra.mxu0 0
    %3767 = vmatprep.subr.bf16.mxu0 0
    %3768 = vmatpush1.bf16.xpose.msra.mxu0 0
    %3769 = vmatprep.subr.bf16.mxu0 0
    %3770 = vmatpush1.bf16.xpose.msra.mxu0 0
    %3771 = vmatprep.subr.bf16.mxu0 0
    %3772 = vmatpush1.bf16.xpose.msra.mxu0 0
    %3773 = vmatprep.subr.bf16.mxu0 0
    %3774 = vmatpush1.bf16.xpose.msra.mxu0 0
    %3775 = vmatprep.subr.bf16.mxu0 0
    %3776 = vmatpush1.bf16.xpose.msra.mxu0 0
    %3777 = vmatprep.subr.bf16.mxu0 0
    %3778 = vmatpush1.bf16.xpose.msra.mxu0 0
    %3779 = vmatprep.subr.bf16.mxu0 0
    %3780 = vmatpush1.bf16.xpose.msra.mxu0 0
    %3781 = vmatprep.subr.bf16.mxu0 0
    %3782 = vmatpush1.bf16.xpose.msra.mxu0 0
    %3783 = vmatprep.subr.bf16.mxu0 0
    %3784 = vmatpush1.bf16.xpose.msra.mxu0 0
    %3785 = vmatprep.subr.bf16.mxu0 0
    %3786 = vmatpush1.bf16.xpose.msra.mxu0 0
    %3787 = vmatprep.subr.bf16.mxu0 0
    %3788 = vmatpush1.bf16.xpose.msra.mxu0 0
    %3789 = vmatprep.subr.bf16.mxu0 0
    %3790 = vmatpush1.bf16.xpose.msra.mxu0 0
    %3791 = vmatprep.subr.bf16.mxu0 0
    %3792 = vmatpush1.bf16.xpose.msra.mxu0 0
    %3793 = vmatprep.subr.bf16.mxu0 0
    %3794 = vmatpush1.bf16.xpose.msra.mxu0 0
    %3795 = vmatprep.mubr.bf16.mxu0 0
    %3796 = vmatmul.mubr.bf16.gmra.mrb[0].mxu0 %v3758
    %v3797 = vpop.f32.mrb[0].mxu0
    %v3798 = vadd.f32 0.0, %v3797
    %v3799 = vpop.f32.mrb[0].mxu0
    %v3800 = vpop.f32.mrb[0].mxu0
    %v3801 = vadd.f32 0.0, %v3800
    %v3802 = vpop.f32.mrb[0].mxu0
    %3803 = vdwg.mxu0
    %v3804 = vsel %vm2757, %v3798, -inf
    %3805 = vmax.xlane.f32.xlu0 %v3804
    %v3806 = vpop.xlane.xlu0 %3805
    %v3807 = vsel %vm2757, %v3801, -inf
    %3808 = vmax.xlane.f32.xlu0 %v3807
    %v3809 = vpop.xlane.xlu0 %3808
    %v3810 = vsub.f32 %v3798, %v3806
    %v3811 = vsub.f32 %v3801, %v3809
    %v3812 = vmul.f32 %v3810, 1.442695
    %v3813 = vpow.pop %v3812
    %v3814 = vmul.f32 %v3811, 1.442695
    %v3815 = vpow.pop %v3814
    %v3816 = vsel %vm2757, %v3813, 0.0
    %3817 = vadd.xlane.f32.xlu0 %v3816
    %v3818 = vpop.xlane.xlu0 %3817
    %v3819 = vsel %vm2757, %v3815, 0.0
    %3820 = vadd.xlane.f32.xlu0 %v3819
    %v3821 = vpop.xlane.xlu0 %3820
    %v3822 = vrcp.pop %v3818
    %v3823 = vmul.f32 %v3813, %v3822
    %v3824 = vrcp.pop %v3821
    %v3825 = vmul.f32 %v3815, %v3824
    %3826 = vrot.lane.b32.xlu0 %v2696, 76
    %v3827 = vpop.permute.xlu0 %3826
    %v3830 = vsel %vm2757, %v3823, 0
    %v3833 = vsel %vm2757, %v3825, 0
    %3835 = vmatprep.subr.mxu0 0.0
    %3836 = vmatpush1.msra.mxu0 %v3827
    %3837 = vmatprep.subr.mxu0 0.0
    %3838 = vmatpush1.msra.mxu0 0.0
    %3839 = vmatprep.subr.mxu0 0.0
    %3840 = vmatpush1.msra.mxu0 0.0
    %3841 = vmatprep.subr.mxu0 0.0
    %3842 = vmatpush1.msra.mxu0 0.0
    %3843 = vmatprep.subr.mxu0 0.0
    %3844 = vmatpush1.msra.mxu0 0.0
    %3845 = vmatprep.subr.mxu0 0.0
    %3846 = vmatpush1.msra.mxu0 0.0
    %3847 = vmatprep.subr.mxu0 0.0
    %3848 = vmatpush1.msra.mxu0 0.0
    %3849 = vmatprep.subr.mxu0 0.0
    %3850 = vmatpush1.msra.mxu0 0.0
    %3851 = vmatprep.subr.mxu0 0.0
    %3852 = vmatpush1.msra.mxu0 0.0
    %3853 = vmatprep.subr.mxu0 0.0
    %3854 = vmatpush1.msra.mxu0 0.0
    %3855 = vmatprep.subr.mxu0 0.0
    %3856 = vmatpush1.msra.mxu0 0.0
    %3857 = vmatprep.subr.mxu0 0.0
    %3858 = vmatpush1.msra.mxu0 0.0
    %3859 = vmatprep.subr.mxu0 0.0
    %3860 = vmatpush1.msra.mxu0 0.0
    %3861 = vmatprep.subr.mxu0 0.0
    %3862 = vmatpush1.msra.mxu0 0.0
    %3863 = vmatprep.subr.mxu0 0.0
    %3864 = vmatpush1.msra.mxu0 0.0
    %3865 = vmatprep.subr.mxu0 0.0
    %3866 = vmatpush1.msra.mxu0 0.0
    %3867 = vmatprep.subr.mxu0 0.0
    %3868 = vmatpush1.msra.mxu0 0.0
    %3869 = vmatprep.subr.mxu0 0.0
    %3870 = vmatpush1.msra.mxu0 0.0
    %3871 = vmatprep.subr.mxu0 0.0
    %3872 = vmatpush1.msra.mxu0 0.0
    %3873 = vmatprep.subr.mxu0 0.0
    %3874 = vmatpush1.msra.mxu0 0.0
    %3875 = vmatprep.subr.mxu0 0.0
    %3876 = vmatpush1.msra.mxu0 0.0
    %3877 = vmatprep.subr.mxu0 0.0
    %3878 = vmatpush1.msra.mxu0 0.0
    %3879 = vmatprep.subr.mxu0 0.0
    %3880 = vmatpush1.msra.mxu0 0.0
    %3881 = vmatprep.subr.mxu0 0.0
    %3882 = vmatpush1.msra.mxu0 0.0
    %3883 = vmatprep.subr.mxu0 0.0
    %3884 = vmatpush1.msra.mxu0 0.0
    %3885 = vmatprep.subr.mxu0 0.0
    %3886 = vmatpush1.msra.mxu0 0.0
    %3887 = vmatprep.subr.mxu0 0.0
    %3888 = vmatpush1.msra.mxu0 0.0
    %3889 = vmatprep.subr.mxu0 0.0
    %3890 = vmatpush1.msra.mxu0 0.0
    %3891 = vmatprep.subr.mxu0 0.0
    %3892 = vmatpush1.msra.mxu0 0.0
    %3893 = vmatprep.subr.mxu0 0.0
    %3894 = vmatpush1.msra.mxu0 0.0
    %3895 = vmatprep.subr.mxu0 0.0
    %3896 = vmatpush1.msra.mxu0 0.0
    %3897 = vmatprep.subr.mxu0 0.0
    %3898 = vmatpush1.msra.mxu0 0.0
    %3899 = vmatprep.mubr.f32.mxu0 0.0
    %3900 = vmatmul.mubr.f32.gmra.mrb[0].mxu0 %v3830
    %v3901 = vpop.f32.mrb[0].mxu0
    %v3902 = vadd.f32 0.0, %v3901
    %v3903 = vpop.f32.mrb[0].mxu0
    %3904 = vmatprep.mubr.f32.mxu0 0.0
    %3905 = vmatmul.mubr.f32.gmra.mrb[0].mxu0 %v3833
    %v3906 = vpop.f32.mrb[0].mxu0
    %v3907 = vadd.f32 0.0, %v3906
    %v3908 = vpop.f32.mrb[0].mxu0
    %3909 = vdwg.mxu0
    %v3910 = vpack.c.bf16 %v3907, %v3902
    %v3912 = vunpack.c.l.b16 %v199
    %v3913 = vpack.c.b16 %v3912, %v3912
    %v3914 = vrot.slane %v3913, 2
    %v3916 = vsel %vm506, %v3910, 0
    %v3919 = vsel %vm650, %v3914, 0
    %3921 = vmatprep.subr.bf16.mxu0 0
    %3922 = vmatpush1.bf16.msra.mxu0 %v3919
    %3923 = vmatprep.subr.bf16.mxu0 0
    %3924 = vmatpush1.bf16.msra.mxu0 0
    %3925 = vmatprep.subr.bf16.mxu0 0
    %3926 = vmatpush1.bf16.msra.mxu0 0
    %3927 = vmatprep.subr.bf16.mxu0 0
    %3928 = vmatpush1.bf16.msra.mxu0 0
    %3929 = vmatprep.subr.bf16.mxu0 0
    %3930 = vmatpush1.bf16.msra.mxu0 0
    %3931 = vmatprep.subr.bf16.mxu0 0
    %3932 = vmatpush1.bf16.msra.mxu0 0
    %3933 = vmatprep.subr.bf16.mxu0 0
    %3934 = vmatpush1.bf16.msra.mxu0 0
    %3935 = vmatprep.subr.bf16.mxu0 0
    %3936 = vmatpush1.bf16.msra.mxu0 0
    %3937 = vmatprep.subr.bf16.mxu0 0
    %3938 = vmatpush1.bf16.msra.mxu0 0
    %3939 = vmatprep.subr.bf16.mxu0 0
    %3940 = vmatpush1.bf16.msra.mxu0 0
    %3941 = vmatprep.subr.bf16.mxu0 0
    %3942 = vmatpush1.bf16.msra.mxu0 0
    %3943 = vmatprep.subr.bf16.mxu0 0
    %3944 = vmatpush1.bf16.msra.mxu0 0
    %3945 = vmatprep.subr.bf16.mxu0 0
    %3946 = vmatpush1.bf16.msra.mxu0 0
    %3947 = vmatprep.subr.bf16.mxu0 0
    %3948 = vmatpush1.bf16.msra.mxu0 0
    %3949 = vmatprep.subr.bf16.mxu0 0
    %3950 = vmatpush1.bf16.msra.mxu0 0
    %3951 = vmatprep.subr.bf16.mxu0 0
    %3952 = vmatpush1.bf16.msra.mxu0 0
    %3953 = vmatprep.mubr.bf16.mxu0 0
    %3954 = vmatmul.mubr.bf16.gmra.mrb[0].mxu0 %v3916
    %v3955 = vpop.f32.mrb[0].mxu0
    %v3956 = vadd.f32 0.0, %v3955
    %v3957 = vpop.f32.mrb[0].mxu0
    %v3958 = vpop.f32.mrb[0].mxu0
    %v3959 = vadd.f32 0.0, %v3958
    %v3960 = vpop.f32.mrb[0].mxu0
    %3961 = vdwg.mxu0
    %v3962 = vadd.f32 %v3751, %v3956
    %v3963 = vadd.f32 %v3752, %v3959
    %3964 = vrot.lane.b32.xlu0 %v2701, 104
    %v3965 = vpop.permute.xlu0 %3964
    %3966 = vrot.lane.b32.xlu0 %v2702, 104
    %v3967 = vpop.permute.xlu0 %3966
    %v3969 = vsel %vm506, %v3965, 0
    %v3972 = vsel %vm506, %v3967, 0
    %3974 = vmatprep.subr.bf16.mxu0 0
    %3975 = vmatpush1.bf16.xpose.msra.mxu0 %v3972
    %3976 = vmatprep.subr.bf16.mxu0 0
    %3977 = vmatpush1.bf16.xpose.msra.mxu0 0
    %3978 = vmatprep.subr.bf16.mxu0 0
    %3979 = vmatpush1.bf16.xpose.msra.mxu0 0
    %3980 = vmatprep.subr.bf16.mxu0 0
    %3981 = vmatpush1.bf16.xpose.msra.mxu0 0
    %3982 = vmatprep.subr.bf16.mxu0 0
    %3983 = vmatpush1.bf16.xpose.msra.mxu0 0
    %3984 = vmatprep.subr.bf16.mxu0 0
    %3985 = vmatpush1.bf16.xpose.msra.mxu0 0
    %3986 = vmatprep.subr.bf16.mxu0 0
    %3987 = vmatpush1.bf16.xpose.msra.mxu0 0
    %3988 = vmatprep.subr.bf16.mxu0 0
    %3989 = vmatpush1.bf16.xpose.msra.mxu0 0
    %3990 = vmatprep.subr.bf16.mxu0 0
    %3991 = vmatpush1.bf16.xpose.msra.mxu0 0
    %3992 = vmatprep.subr.bf16.mxu0 0
    %3993 = vmatpush1.bf16.xpose.msra.mxu0 0
    %3994 = vmatprep.subr.bf16.mxu0 0
    %3995 = vmatpush1.bf16.xpose.msra.mxu0 0
    %3996 = vmatprep.subr.bf16.mxu0 0
    %3997 = vmatpush1.bf16.xpose.msra.mxu0 0
    %3998 = vmatprep.subr.bf16.mxu0 0
    %3999 = vmatpush1.bf16.xpose.msra.mxu0 0
    %4000 = vmatprep.subr.bf16.mxu0 0
    %4001 = vmatpush1.bf16.xpose.msra.mxu0 0
    %4002 = vmatprep.subr.bf16.mxu0 0
    %4003 = vmatpush1.bf16.xpose.msra.mxu0 0
    %4004 = vmatprep.subr.bf16.mxu0 0
    %4005 = vmatpush1.bf16.xpose.msra.mxu0 0
    %4006 = vmatprep.mubr.bf16.mxu0 0
    %4007 = vmatmul.mubr.bf16.gmra.mrb[0].mxu0 %v3969
    %v4008 = vpop.f32.mrb[0].mxu0
    %v4009 = vadd.f32 0.0, %v4008
    %v4010 = vpop.f32.mrb[0].mxu0
    %v4011 = vpop.f32.mrb[0].mxu0
    %v4012 = vadd.f32 0.0, %v4011
    %v4013 = vpop.f32.mrb[0].mxu0
    %4014 = vdwg.mxu0
    %v4015 = vsel %vm2757, %v4009, -inf
    %4016 = vmax.xlane.f32.xlu0 %v4015
    %v4017 = vpop.xlane.xlu0 %4016
    %v4018 = vsel %vm2757, %v4012, -inf
    %4019 = vmax.xlane.f32.xlu0 %v4018
    %v4020 = vpop.xlane.xlu0 %4019
    %v4021 = vsub.f32 %v4009, %v4017
    %v4022 = vsub.f32 %v4012, %v4020
    %v4023 = vmul.f32 %v4021, 1.442695
    %v4024 = vpow.pop %v4023
    %v4025 = vmul.f32 %v4022, 1.442695
    %v4026 = vpow.pop %v4025
    %v4027 = vsel %vm2757, %v4024, 0.0
    %4028 = vadd.xlane.f32.xlu0 %v4027
    %v4029 = vpop.xlane.xlu0 %4028
    %v4030 = vsel %vm2757, %v4026, 0.0
    %4031 = vadd.xlane.f32.xlu0 %v4030
    %v4032 = vpop.xlane.xlu0 %4031
    %v4033 = vrcp.pop %v4029
    %v4034 = vmul.f32 %v4024, %v4033
    %v4035 = vrcp.pop %v4032
    %v4036 = vmul.f32 %v4026, %v4035
    %4037 = vrot.lane.b32.xlu0 %v2696, 72
    %v4038 = vpop.permute.xlu0 %4037
    %v4041 = vsel %vm2757, %v4034, 0
    %v4044 = vsel %vm2757, %v4036, 0
    %4046 = vmatprep.subr.mxu0 0.0
    %4047 = vmatpush1.msra.mxu0 %v4038
    %4048 = vmatprep.subr.mxu0 0.0
    %4049 = vmatpush1.msra.mxu0 0.0
    %4050 = vmatprep.subr.mxu0 0.0
    %4051 = vmatpush1.msra.mxu0 0.0
    %4052 = vmatprep.subr.mxu0 0.0
    %4053 = vmatpush1.msra.mxu0 0.0
    %4054 = vmatprep.subr.mxu0 0.0
    %4055 = vmatpush1.msra.mxu0 0.0
    %4056 = vmatprep.subr.mxu0 0.0
    %4057 = vmatpush1.msra.mxu0 0.0
    %4058 = vmatprep.subr.mxu0 0.0
    %4059 = vmatpush1.msra.mxu0 0.0
    %4060 = vmatprep.subr.mxu0 0.0
    %4061 = vmatpush1.msra.mxu0 0.0
    %4062 = vmatprep.subr.mxu0 0.0
    %4063 = vmatpush1.msra.mxu0 0.0
    %4064 = vmatprep.subr.mxu0 0.0
    %4065 = vmatpush1.msra.mxu0 0.0
    %4066 = vmatprep.subr.mxu0 0.0
    %4067 = vmatpush1.msra.mxu0 0.0
    %4068 = vmatprep.subr.mxu0 0.0
    %4069 = vmatpush1.msra.mxu0 0.0
    %4070 = vmatprep.subr.mxu0 0.0
    %4071 = vmatpush1.msra.mxu0 0.0
    %4072 = vmatprep.subr.mxu0 0.0
    %4073 = vmatpush1.msra.mxu0 0.0
    %4074 = vmatprep.subr.mxu0 0.0
    %4075 = vmatpush1.msra.mxu0 0.0
    %4076 = vmatprep.subr.mxu0 0.0
    %4077 = vmatpush1.msra.mxu0 0.0
    %4078 = vmatprep.subr.mxu0 0.0
    %4079 = vmatpush1.msra.mxu0 0.0
    %4080 = vmatprep.subr.mxu0 0.0
    %4081 = vmatpush1.msra.mxu0 0.0
    %4082 = vmatprep.subr.mxu0 0.0
    %4083 = vmatpush1.msra.mxu0 0.0
    %4084 = vmatprep.subr.mxu0 0.0
    %4085 = vmatpush1.msra.mxu0 0.0
    %4086 = vmatprep.subr.mxu0 0.0
    %4087 = vmatpush1.msra.mxu0 0.0
    %4088 = vmatprep.subr.mxu0 0.0
    %4089 = vmatpush1.msra.mxu0 0.0
    %4090 = vmatprep.subr.mxu0 0.0
    %4091 = vmatpush1.msra.mxu0 0.0
    %4092 = vmatprep.subr.mxu0 0.0
    %4093 = vmatpush1.msra.mxu0 0.0
    %4094 = vmatprep.subr.mxu0 0.0
    %4095 = vmatpush1.msra.mxu0 0.0
    %4096 = vmatprep.subr.mxu0 0.0
    %4097 = vmatpush1.msra.mxu0 0.0
    %4098 = vmatprep.subr.mxu0 0.0
    %4099 = vmatpush1.msra.mxu0 0.0
    %4100 = vmatprep.subr.mxu0 0.0
    %4101 = vmatpush1.msra.mxu0 0.0
    %4102 = vmatprep.subr.mxu0 0.0
    %4103 = vmatpush1.msra.mxu0 0.0
    %4104 = vmatprep.subr.mxu0 0.0
    %4105 = vmatpush1.msra.mxu0 0.0
    %4106 = vmatprep.subr.mxu0 0.0
    %4107 = vmatpush1.msra.mxu0 0.0
    %4108 = vmatprep.subr.mxu0 0.0
    %4109 = vmatpush1.msra.mxu0 0.0
    %4110 = vmatprep.mubr.f32.mxu0 0.0
    %4111 = vmatmul.mubr.f32.gmra.mrb[0].mxu0 %v4041
    %v4112 = vpop.f32.mrb[0].mxu0
    %v4113 = vadd.f32 0.0, %v4112
    %v4114 = vpop.f32.mrb[0].mxu0
    %4115 = vmatprep.mubr.f32.mxu0 0.0
    %4116 = vmatmul.mubr.f32.gmra.mrb[0].mxu0 %v4044
    %v4117 = vpop.f32.mrb[0].mxu0
    %v4118 = vadd.f32 0.0, %v4117
    %v4119 = vpop.f32.mrb[0].mxu0
    %4120 = vdwg.mxu0
    %v4121 = vpack.c.bf16 %v4118, %v4113
    %v4123 = vsel %vm506, %v4121, 0
    %v4126 = vsel %vm650, %v200, 0
    %4128 = vmatprep.subr.bf16.mxu0 0
    %4129 = vmatpush1.bf16.msra.mxu0 %v4126
    %4130 = vmatprep.subr.bf16.mxu0 0
    %4131 = vmatpush1.bf16.msra.mxu0 0
    %4132 = vmatprep.subr.bf16.mxu0 0
    %4133 = vmatpush1.bf16.msra.mxu0 0
    %4134 = vmatprep.subr.bf16.mxu0 0
    %4135 = vmatpush1.bf16.msra.mxu0 0
    %4136 = vmatprep.subr.bf16.mxu0 0
    %4137 = vmatpush1.bf16.msra.mxu0 0
    %4138 = vmatprep.subr.bf16.mxu0 0
    %4139 = vmatpush1.bf16.msra.mxu0 0
    %4140 = vmatprep.subr.bf16.mxu0 0
    %4141 = vmatpush1.bf16.msra.mxu0 0
    %4142 = vmatprep.subr.bf16.mxu0 0
    %4143 = vmatpush1.bf16.msra.mxu0 0
    %4144 = vmatprep.subr.bf16.mxu0 0
    %4145 = vmatpush1.bf16.msra.mxu0 0
    %4146 = vmatprep.subr.bf16.mxu0 0
    %4147 = vmatpush1.bf16.msra.mxu0 0
    %4148 = vmatprep.subr.bf16.mxu0 0
    %4149 = vmatpush1.bf16.msra.mxu0 0
    %4150 = vmatprep.subr.bf16.mxu0 0
    %4151 = vmatpush1.bf16.msra.mxu0 0
    %4152 = vmatprep.subr.bf16.mxu0 0
    %4153 = vmatpush1.bf16.msra.mxu0 0
    %4154 = vmatprep.subr.bf16.mxu0 0
    %4155 = vmatpush1.bf16.msra.mxu0 0
    %4156 = vmatprep.subr.bf16.mxu0 0
    %4157 = vmatpush1.bf16.msra.mxu0 0
    %4158 = vmatprep.subr.bf16.mxu0 0
    %4159 = vmatpush1.bf16.msra.mxu0 0
    %4160 = vmatprep.mubr.bf16.mxu0 0
    %4161 = vmatmul.mubr.bf16.gmra.mrb[0].mxu0 %v4123
    %v4162 = vpop.f32.mrb[0].mxu0
    %v4163 = vadd.f32 0.0, %v4162
    %v4164 = vpop.f32.mrb[0].mxu0
    %v4165 = vpop.f32.mrb[0].mxu0
    %v4166 = vadd.f32 0.0, %v4165
    %v4167 = vpop.f32.mrb[0].mxu0
    %4168 = vdwg.mxu0
    %v4169 = vadd.f32 %v3962, %v4163
    %v4170 = vadd.f32 %v3963, %v4166
    %4171 = vrot.lane.b32.xlu0 %v2701, 100
    %v4172 = vpop.permute.xlu0 %4171
    %4173 = vrot.lane.b32.xlu0 %v2702, 100
    %v4174 = vpop.permute.xlu0 %4173
    %v4176 = vsel %vm506, %v4172, 0
    %v4179 = vsel %vm506, %v4174, 0
    %4181 = vmatprep.subr.bf16.mxu0 0
    %4182 = vmatpush1.bf16.xpose.msra.mxu0 %v4179
    %4183 = vmatprep.subr.bf16.mxu0 0
    %4184 = vmatpush1.bf16.xpose.msra.mxu0 0
    %4185 = vmatprep.subr.bf16.mxu0 0
    %4186 = vmatpush1.bf16.xpose.msra.mxu0 0
    %4187 = vmatprep.subr.bf16.mxu0 0
    %4188 = vmatpush1.bf16.xpose.msra.mxu0 0
    %4189 = vmatprep.subr.bf16.mxu0 0
    %4190 = vmatpush1.bf16.xpose.msra.mxu0 0
    %4191 = vmatprep.subr.bf16.mxu0 0
    %4192 = vmatpush1.bf16.xpose.msra.mxu0 0
    %4193 = vmatprep.subr.bf16.mxu0 0
    %4194 = vmatpush1.bf16.xpose.msra.mxu0 0
    %4195 = vmatprep.subr.bf16.mxu0 0
    %4196 = vmatpush1.bf16.xpose.msra.mxu0 0
    %4197 = vmatprep.subr.bf16.mxu0 0
    %4198 = vmatpush1.bf16.xpose.msra.mxu0 0
    %4199 = vmatprep.subr.bf16.mxu0 0
    %4200 = vmatpush1.bf16.xpose.msra.mxu0 0
    %4201 = vmatprep.subr.bf16.mxu0 0
    %4202 = vmatpush1.bf16.xpose.msra.mxu0 0
    %4203 = vmatprep.subr.bf16.mxu0 0
    %4204 = vmatpush1.bf16.xpose.msra.mxu0 0
    %4205 = vmatprep.subr.bf16.mxu0 0
    %4206 = vmatpush1.bf16.xpose.msra.mxu0 0
    %4207 = vmatprep.subr.bf16.mxu0 0
    %4208 = vmatpush1.bf16.xpose.msra.mxu0 0
    %4209 = vmatprep.subr.bf16.mxu0 0
    %4210 = vmatpush1.bf16.xpose.msra.mxu0 0
    %4211 = vmatprep.subr.bf16.mxu0 0
    %4212 = vmatpush1.bf16.xpose.msra.mxu0 0
    %4213 = vmatprep.mubr.bf16.mxu0 0
    %4214 = vmatmul.mubr.bf16.gmra.mrb[0].mxu0 %v4176
    %v4215 = vpop.f32.mrb[0].mxu0
    %v4216 = vadd.f32 0.0, %v4215
    %v4217 = vpop.f32.mrb[0].mxu0
    %v4218 = vpop.f32.mrb[0].mxu0
    %v4219 = vadd.f32 0.0, %v4218
    %v4220 = vpop.f32.mrb[0].mxu0
    %4221 = vdwg.mxu0
    %v4222 = vsel %vm2757, %v4216, -inf
    %4223 = vmax.xlane.f32.xlu0 %v4222
    %v4224 = vpop.xlane.xlu0 %4223
    %v4225 = vsel %vm2757, %v4219, -inf
    %4226 = vmax.xlane.f32.xlu0 %v4225
    %v4227 = vpop.xlane.xlu0 %4226
    %v4228 = vsub.f32 %v4216, %v4224
    %v4229 = vsub.f32 %v4219, %v4227
    %v4230 = vmul.f32 %v4228, 1.442695
    %v4231 = vpow.pop %v4230
    %v4232 = vmul.f32 %v4229, 1.442695
    %v4233 = vpow.pop %v4232
    %v4234 = vsel %vm2757, %v4231, 0.0
    %4235 = vadd.xlane.f32.xlu0 %v4234
    %v4236 = vpop.xlane.xlu0 %4235
    %v4237 = vsel %vm2757, %v4233, 0.0
    %4238 = vadd.xlane.f32.xlu0 %v4237
    %v4239 = vpop.xlane.xlu0 %4238
    %v4240 = vrcp.pop %v4236
    %v4241 = vmul.f32 %v4231, %v4240
    %v4242 = vrcp.pop %v4239
    %v4243 = vmul.f32 %v4233, %v4242
    %4244 = vrot.lane.b32.xlu0 %v2696, 68
    %v4245 = vpop.permute.xlu0 %4244
    %v4248 = vsel %vm2757, %v4241, 0
    %v4251 = vsel %vm2757, %v4243, 0
    %4253 = vmatprep.subr.mxu0 0.0
    %4254 = vmatpush1.msra.mxu0 %v4245
    %4255 = vmatprep.subr.mxu0 0.0
    %4256 = vmatpush1.msra.mxu0 0.0
    %4257 = vmatprep.subr.mxu0 0.0
    %4258 = vmatpush1.msra.mxu0 0.0
    %4259 = vmatprep.subr.mxu0 0.0
    %4260 = vmatpush1.msra.mxu0 0.0
    %4261 = vmatprep.subr.mxu0 0.0
    %4262 = vmatpush1.msra.mxu0 0.0
    %4263 = vmatprep.subr.mxu0 0.0
    %4264 = vmatpush1.msra.mxu0 0.0
    %4265 = vmatprep.subr.mxu0 0.0
    %4266 = vmatpush1.msra.mxu0 0.0
    %4267 = vmatprep.subr.mxu0 0.0
    %4268 = vmatpush1.msra.mxu0 0.0
    %4269 = vmatprep.subr.mxu0 0.0
    %4270 = vmatpush1.msra.mxu0 0.0
    %4271 = vmatprep.subr.mxu0 0.0
    %4272 = vmatpush1.msra.mxu0 0.0
    %4273 = vmatprep.subr.mxu0 0.0
    %4274 = vmatpush1.msra.mxu0 0.0
    %4275 = vmatprep.subr.mxu0 0.0
    %4276 = vmatpush1.msra.mxu0 0.0
    %4277 = vmatprep.subr.mxu0 0.0
    %4278 = vmatpush1.msra.mxu0 0.0
    %4279 = vmatprep.subr.mxu0 0.0
    %4280 = vmatpush1.msra.mxu0 0.0
    %4281 = vmatprep.subr.mxu0 0.0
    %4282 = vmatpush1.msra.mxu0 0.0
    %4283 = vmatprep.subr.mxu0 0.0
    %4284 = vmatpush1.msra.mxu0 0.0
    %4285 = vmatprep.subr.mxu0 0.0
    %4286 = vmatpush1.msra.mxu0 0.0
    %4287 = vmatprep.subr.mxu0 0.0
    %4288 = vmatpush1.msra.mxu0 0.0
    %4289 = vmatprep.subr.mxu0 0.0
    %4290 = vmatpush1.msra.mxu0 0.0
    %4291 = vmatprep.subr.mxu0 0.0
    %4292 = vmatpush1.msra.mxu0 0.0
    %4293 = vmatprep.subr.mxu0 0.0
    %4294 = vmatpush1.msra.mxu0 0.0
    %4295 = vmatprep.subr.mxu0 0.0
    %4296 = vmatpush1.msra.mxu0 0.0
    %4297 = vmatprep.subr.mxu0 0.0
    %4298 = vmatpush1.msra.mxu0 0.0
    %4299 = vmatprep.subr.mxu0 0.0
    %4300 = vmatpush1.msra.mxu0 0.0
    %4301 = vmatprep.subr.mxu0 0.0
    %4302 = vmatpush1.msra.mxu0 0.0
    %4303 = vmatprep.subr.mxu0 0.0
    %4304 = vmatpush1.msra.mxu0 0.0
    %4305 = vmatprep.subr.mxu0 0.0
    %4306 = vmatpush1.msra.mxu0 0.0
    %4307 = vmatprep.subr.mxu0 0.0
    %4308 = vmatpush1.msra.mxu0 0.0
    %4309 = vmatprep.subr.mxu0 0.0
    %4310 = vmatpush1.msra.mxu0 0.0
    %4311 = vmatprep.subr.mxu0 0.0
    %4312 = vmatpush1.msra.mxu0 0.0
    %4313 = vmatprep.subr.mxu0 0.0
    %4314 = vmatpush1.msra.mxu0 0.0
    %4315 = vmatprep.subr.mxu0 0.0
    %4316 = vmatpush1.msra.mxu0 0.0
    %4317 = vmatprep.mubr.f32.mxu0 0.0
    %4318 = vmatmul.mubr.f32.gmra.mrb[0].mxu0 %v4248
    %v4319 = vpop.f32.mrb[0].mxu0
    %v4320 = vadd.f32 0.0, %v4319
    %v4321 = vpop.f32.mrb[0].mxu0
    %4322 = vmatprep.mubr.f32.mxu0 0.0
    %4323 = vmatmul.mubr.f32.gmra.mrb[0].mxu0 %v4251
    %v4324 = vpop.f32.mrb[0].mxu0
    %v4325 = vadd.f32 0.0, %v4324
    %v4326 = vpop.f32.mrb[0].mxu0
    %4327 = vdwg.mxu0
    %v4328 = vpack.c.bf16 %v4325, %v4320
    %v4330 = vunpack.c.l.b16 %v200
    %v4331 = vpack.c.b16 %v4330, %v4330
    %v4332 = vrot.slane %v4331, 2
    %v4334 = vsel %vm506, %v4328, 0
    %v4337 = vsel %vm650, %v4332, 0
    %4339 = vmatprep.subr.bf16.mxu0 0
    %4340 = vmatpush1.bf16.msra.mxu0 %v4337
    %4341 = vmatprep.subr.bf16.mxu0 0
    %4342 = vmatpush1.bf16.msra.mxu0 0
    %4343 = vmatprep.subr.bf16.mxu0 0
    %4344 = vmatpush1.bf16.msra.mxu0 0
    %4345 = vmatprep.subr.bf16.mxu0 0
    %4346 = vmatpush1.bf16.msra.mxu0 0
    %4347 = vmatprep.subr.bf16.mxu0 0
    %4348 = vmatpush1.bf16.msra.mxu0 0
    %4349 = vmatprep.subr.bf16.mxu0 0
    %4350 = vmatpush1.bf16.msra.mxu0 0
    %4351 = vmatprep.subr.bf16.mxu0 0
    %4352 = vmatpush1.bf16.msra.mxu0 0
    %4353 = vmatprep.subr.bf16.mxu0 0
    %4354 = vmatpush1.bf16.msra.mxu0 0
    %4355 = vmatprep.subr.bf16.mxu0 0
    %4356 = vmatpush1.bf16.msra.mxu0 0
    %4357 = vmatprep.subr.bf16.mxu0 0
    %4358 = vmatpush1.bf16.msra.mxu0 0
    %4359 = vmatprep.subr.bf16.mxu0 0
    %4360 = vmatpush1.bf16.msra.mxu0 0
    %4361 = vmatprep.subr.bf16.mxu0 0
    %4362 = vmatpush1.bf16.msra.mxu0 0
    %4363 = vmatprep.subr.bf16.mxu0 0
    %4364 = vmatpush1.bf16.msra.mxu0 0
    %4365 = vmatprep.subr.bf16.mxu0 0
    %4366 = vmatpush1.bf16.msra.mxu0 0
    %4367 = vmatprep.subr.bf16.mxu0 0
    %4368 = vmatpush1.bf16.msra.mxu0 0
    %4369 = vmatprep.subr.bf16.mxu0 0
    %4370 = vmatpush1.bf16.msra.mxu0 0
    %4371 = vmatprep.mubr.bf16.mxu0 0
    %4372 = vmatmul.mubr.bf16.gmra.mrb[0].mxu0 %v4334
    %v4373 = vpop.f32.mrb[0].mxu0
    %v4374 = vadd.f32 0.0, %v4373
    %v4375 = vpop.f32.mrb[0].mxu0
    %v4376 = vpop.f32.mrb[0].mxu0
    %v4377 = vadd.f32 0.0, %v4376
    %v4378 = vpop.f32.mrb[0].mxu0
    %4379 = vdwg.mxu0
    %v4380 = vadd.f32 %v4169, %v4374
    %v4381 = vadd.f32 %v4170, %v4377
    %v4384 = vrot.slane %v4380, 1
    %v4385 = vrot.slane %v4380, 2
    %v4386 = vrot.slane %v4380, 3
    %v4387 = vrot.slane %v4380, 4
    %v4388 = vrot.slane %v4380, 5
    %v4389 = vrot.slane %v4380, 6
    %v4390 = vrot.slane %v4380, 7
    %v4391 = vrot.slane %v4381, 1
    %v4392 = vrot.slane %v4381, 2
    %v4393 = vrot.slane %v4381, 3
    %v4394 = vrot.slane %v4381, 4
    %v4395 = vrot.slane %v4381, 5
    %v4396 = vrot.slane %v4381, 6
    %v4397 = vrot.slane %v4381, 7
    %v4414 = vadd.f32 %v234, %v4380
    %v4415 = vadd.f32 %v235, %v4384
    %v4416 = vadd.f32 %v236, %v4385
    %v4417 = vadd.f32 %v237, %v4386
    %v4418 = vadd.f32 %v238, %v4387
    %v4419 = vadd.f32 %v239, %v4388
    %v4420 = vadd.f32 %v240, %v4389
    %v4421 = vadd.f32 %v241, %v4390
    %v4422 = vadd.f32 %v242, %v4381
    %v4423 = vadd.f32 %v243, %v4391
    %v4424 = vadd.f32 %v244, %v4392
    %v4425 = vadd.f32 %v245, %v4393
    %v4426 = vadd.f32 %v246, %v4394
    %v4427 = vadd.f32 %v247, %v4395
    %v4428 = vadd.f32 %v248, %v4396
    %v4429 = vadd.f32 %v249, %v4397
    %v4446 = vrot.slane %v4415, 7
    %v4447 = vsel %vm281, %v4446, %v4414
    %v4448 = vrot.slane %v4416, 6
    %v4449 = vsel %vm284, %v4448, %v4447
    %v4450 = vrot.slane %v4417, 5
    %v4451 = vsel %vm287, %v4450, %v4449
    %v4452 = vrot.slane %v4418, 4
    %v4453 = vsel %vm290, %v4452, %v4451
    %v4454 = vrot.slane %v4419, 3
    %v4455 = vsel %vm293, %v4454, %v4453
    %v4456 = vrot.slane %v4420, 2
    %v4457 = vsel %vm296, %v4456, %v4455
    %v4458 = vrot.slane %v4421, 1
    %v4459 = vsel %vm299, %v4458, %v4457
    %v4460 = vrot.slane %v4423, 7
    %v4461 = vsel %vm281, %v4460, %v4422
    %v4462 = vrot.slane %v4424, 6
    %v4463 = vsel %vm284, %v4462, %v4461
    %v4464 = vrot.slane %v4425, 5
    %v4465 = vsel %vm287, %v4464, %v4463
    %v4466 = vrot.slane %v4426, 4
    %v4467 = vsel %vm290, %v4466, %v4465
    %v4468 = vrot.slane %v4427, 3
    %v4469 = vsel %vm293, %v4468, %v4467
    %v4470 = vrot.slane %v4428, 2
    %v4471 = vsel %vm296, %v4470, %v4469
    %v4472 = vrot.slane %v4429, 1
    %v4473 = vsel %vm299, %v4472, %v4471
    %v4476 = vsel %vm314, %v4459, 0.0
    %4477 = vadd.xlane.f32.xlu0 %v4476
    %v4478 = vpop.xlane.xlu0 %4477
    %v4479 = vsel %vm314, %v4473, 0.0
    %4480 = vadd.xlane.f32.xlu0 %v4479
    %v4481 = vpop.xlane.xlu0 %4480
    %v4482 = vmul.f32 %v4478, %v2079
    %v4483 = vmul.f32 %v4481, %v2079
    %v4486 = vrot.slane %v4482, 1
    %v4487 = vrot.slane %v4482, 2
    %v4488 = vrot.slane %v4482, 3
    %v4489 = vrot.slane %v4482, 4
    %v4490 = vrot.slane %v4482, 5
    %v4491 = vrot.slane %v4482, 6
    %v4492 = vrot.slane %v4482, 7
    %v4493 = vrot.slane %v4483, 1
    %v4494 = vrot.slane %v4483, 2
    %v4495 = vrot.slane %v4483, 3
    %v4496 = vrot.slane %v4483, 4
    %v4497 = vrot.slane %v4483, 5
    %v4498 = vrot.slane %v4483, 6
    %v4499 = vrot.slane %v4483, 7
    %v4516 = vsub.f32 %v4414, %v4482
    %v4517 = vsub.f32 %v4415, %v4486
    %v4518 = vsub.f32 %v4416, %v4487
    %v4519 = vsub.f32 %v4417, %v4488
    %v4520 = vsub.f32 %v4418, %v4489
    %v4521 = vsub.f32 %v4419, %v4490
    %v4522 = vsub.f32 %v4420, %v4491
    %v4523 = vsub.f32 %v4421, %v4492
    %v4524 = vsub.f32 %v4422, %v4483
    %v4525 = vsub.f32 %v4423, %v4493
    %v4526 = vsub.f32 %v4424, %v4494
    %v4527 = vsub.f32 %v4425, %v4495
    %v4528 = vsub.f32 %v4426, %v4496
    %v4529 = vsub.f32 %v4427, %v4497
    %v4530 = vsub.f32 %v4428, %v4498
    %v4531 = vsub.f32 %v4429, %v4499
    %v4532 = vmul.f32 %v4516, %v4516
    %v4533 = vmul.f32 %v4517, %v4517
    %v4534 = vmul.f32 %v4518, %v4518
    %v4535 = vmul.f32 %v4519, %v4519
    %v4536 = vmul.f32 %v4520, %v4520
    %v4537 = vmul.f32 %v4521, %v4521
    %v4538 = vmul.f32 %v4522, %v4522
    %v4539 = vmul.f32 %v4523, %v4523
    %v4540 = vmul.f32 %v4524, %v4524
    %v4541 = vmul.f32 %v4525, %v4525
    %v4542 = vmul.f32 %v4526, %v4526
    %v4543 = vmul.f32 %v4527, %v4527
    %v4544 = vmul.f32 %v4528, %v4528
    %v4545 = vmul.f32 %v4529, %v4529
    %v4546 = vmul.f32 %v4530, %v4530
    %v4547 = vmul.f32 %v4531, %v4531
    %v4564 = vrot.slane %v4533, 7
    %v4565 = vsel %vm281, %v4564, %v4532
    %v4566 = vrot.slane %v4534, 6
    %v4567 = vsel %vm284, %v4566, %v4565
    %v4568 = vrot.slane %v4535, 5
    %v4569 = vsel %vm287, %v4568, %v4567
    %v4570 = vrot.slane %v4536, 4
    %v4571 = vsel %vm290, %v4570, %v4569
    %v4572 = vrot.slane %v4537, 3
    %v4573 = vsel %vm293, %v4572, %v4571
    %v4574 = vrot.slane %v4538, 2
    %v4575 = vsel %vm296, %v4574, %v4573
    %v4576 = vrot.slane %v4539, 1
    %v4577 = vsel %vm299, %v4576, %v4575
    %v4578 = vrot.slane %v4541, 7
    %v4579 = vsel %vm281, %v4578, %v4540
    %v4580 = vrot.slane %v4542, 6
    %v4581 = vsel %vm284, %v4580, %v4579
    %v4582 = vrot.slane %v4543, 5
    %v4583 = vsel %vm287, %v4582, %v4581
    %v4584 = vrot.slane %v4544, 4
    %v4585 = vsel %vm290, %v4584, %v4583
    %v4586 = vrot.slane %v4545, 3
    %v4587 = vsel %vm293, %v4586, %v4585
    %v4588 = vrot.slane %v4546, 2
    %v4589 = vsel %vm296, %v4588, %v4587
    %v4590 = vrot.slane %v4547, 1
    %v4591 = vsel %vm299, %v4590, %v4589
    %v4594 = vsel %vm314, %v4577, 0.0
    %4595 = vadd.xlane.f32.xlu0 %v4594
    %v4596 = vpop.xlane.xlu0 %4595
    %v4597 = vsel %vm314, %v4591, 0.0
    %4598 = vadd.xlane.f32.xlu0 %v4597
    %v4599 = vpop.xlane.xlu0 %4598
    %v4600 = vmul.f32 %v4596, %v2079
    %v4601 = vmul.f32 %v4599, %v2079
    %v4602 = vadd.f32 %v4600, 1e-05
    %v4603 = vadd.f32 %v4601, 1e-05
    %v4604 = vrsqrt.pop %v4602
    %v4605 = vrsqrt.pop %v4603
    %v4608 = vrot.slane %v4604, 1
    %v4609 = vrot.slane %v4604, 2
    %v4610 = vrot.slane %v4604, 3
    %v4611 = vrot.slane %v4604, 4
    %v4612 = vrot.slane %v4604, 5
    %v4613 = vrot.slane %v4604, 6
    %v4614 = vrot.slane %v4604, 7
    %v4615 = vrot.slane %v4605, 1
    %v4616 = vrot.slane %v4605, 2
    %v4617 = vrot.slane %v4605, 3
    %v4618 = vrot.slane %v4605, 4
    %v4619 = vrot.slane %v4605, 5
    %v4620 = vrot.slane %v4605, 6
    %v4621 = vrot.slane %v4605, 7
    %v4638 = vmul.f32 %v4516, %v4604
    %v4639 = vmul.f32 %v4517, %v4608
    %v4640 = vmul.f32 %v4518, %v4609
    %v4641 = vmul.f32 %v4519, %v4610
    %v4642 = vmul.f32 %v4520, %v4611
    %v4643 = vmul.f32 %v4521, %v4612
    %v4644 = vmul.f32 %v4522, %v4613
    %v4645 = vmul.f32 %v4523, %v4614
    %v4646 = vmul.f32 %v4524, %v4605
    %v4647 = vmul.f32 %v4525, %v4615
    %v4648 = vmul.f32 %v4526, %v4616
    %v4649 = vmul.f32 %v4527, %v4617
    %v4650 = vmul.f32 %v4528, %v4618
    %v4651 = vmul.f32 %v4529, %v4619
    %v4652 = vmul.f32 %v4530, %v4620
    %v4653 = vmul.f32 %v4531, %v4621
    %v4655 = vlaneseq
    %v4656 = vshrl.u32 %v4655, 7
    %v4657 = vsub.s32 0, %v4656
    %v4658 = vrot.slane %v224, %v4657
    %v4660 = vmul.f32 %v4638, %v4658
    %v4661 = vmul.f32 %v4639, %v4658
    %v4662 = vmul.f32 %v4640, %v4658
    %v4663 = vmul.f32 %v4641, %v4658
    %v4664 = vmul.f32 %v4642, %v4658
    %v4665 = vmul.f32 %v4643, %v4658
    %v4666 = vmul.f32 %v4644, %v4658
    %v4667 = vmul.f32 %v4645, %v4658
    %v4668 = vmul.f32 %v4646, %v4658
    %v4669 = vmul.f32 %v4647, %v4658
    %v4670 = vmul.f32 %v4648, %v4658
    %v4671 = vmul.f32 %v4649, %v4658
    %v4672 = vmul.f32 %v4650, %v4658
    %v4673 = vmul.f32 %v4651, %v4658
    %v4674 = vmul.f32 %v4652, %v4658
    %v4675 = vmul.f32 %v4653, %v4658
    %v4677 = vlaneseq
    %v4678 = vshrl.u32 %v4677, 7
    %v4679 = vsub.s32 0, %v4678
    %v4680 = vrot.slane %v225, %v4679
    %v4682 = vadd.f32 %v4660, %v4680
    %v4683 = vadd.f32 %v4661, %v4680
    %v4684 = vadd.f32 %v4662, %v4680
    %v4685 = vadd.f32 %v4663, %v4680
    %v4686 = vadd.f32 %v4664, %v4680
    %v4687 = vadd.f32 %v4665, %v4680
    %v4688 = vadd.f32 %v4666, %v4680
    %v4689 = vadd.f32 %v4667, %v4680
    %v4690 = vadd.f32 %v4668, %v4680
    %v4691 = vadd.f32 %v4669, %v4680
    %v4692 = vadd.f32 %v4670, %v4680
    %v4693 = vadd.f32 %v4671, %v4680
    %v4694 = vadd.f32 %v4672, %v4680
    %v4695 = vadd.f32 %v4673, %v4680
    %v4696 = vadd.f32 %v4674, %v4680
    %v4697 = vadd.f32 %v4675, %v4680
    %v4698 = vpack.c.bf16 %v4682, %v4682
    %v4699 = vpack.c.bf16 %v4683, %v4683
    %v4700 = vpack.c.bf16 %v4684, %v4684
    %v4701 = vpack.c.bf16 %v4685, %v4685
    %v4702 = vpack.c.bf16 %v4686, %v4686
    %v4703 = vpack.c.bf16 %v4687, %v4687
    %v4704 = vpack.c.bf16 %v4688, %v4688
    %v4705 = vpack.c.bf16 %v4689, %v4689
    %v4706 = vpack.c.bf16 %v4690, %v4690
    %v4707 = vpack.c.bf16 %v4691, %v4691
    %v4708 = vpack.c.bf16 %v4692, %v4692
    %v4709 = vpack.c.bf16 %v4693, %v4693
    %v4710 = vpack.c.bf16 %v4694, %v4694
    %v4711 = vpack.c.bf16 %v4695, %v4695
    %v4712 = vpack.c.bf16 %v4696, %v4696
    %v4713 = vpack.c.bf16 %v4697, %v4697
    %v4715 = vlaneseq
    %v4716 = vshrl.u32 %v4715, 7
    %v4717 = vsub.s32 0, %v4716
    %v4718 = vrot.slane %v206, %v4717
    %v4736 = vunpack.c.l.b16 %v4698
    %v4737 = vunpack.c.l.b16 %v4699
    %v4738 = vunpack.c.l.b16 %v4700
    %v4739 = vunpack.c.l.b16 %v4701
    %v4740 = vunpack.c.l.b16 %v4702
    %v4741 = vunpack.c.l.b16 %v4703
    %v4742 = vunpack.c.l.b16 %v4704
    %v4743 = vunpack.c.l.b16 %v4705
    %v4744 = vunpack.c.l.b16 %v4706
    %v4745 = vunpack.c.l.b16 %v4707
    %v4746 = vunpack.c.l.b16 %v4708
    %v4747 = vunpack.c.l.b16 %v4709
    %v4748 = vunpack.c.l.b16 %v4710
    %v4749 = vunpack.c.l.b16 %v4711
    %v4750 = vunpack.c.l.b16 %v4712
    %v4751 = vunpack.c.l.b16 %v4713
    %v4752 = vrot.slane %v4737, 7
    %v4753 = vsel %vm281, %v4752, %v4736
    %v4754 = vrot.slane %v4738, 6
    %v4755 = vsel %vm284, %v4754, %v4753
    %v4756 = vrot.slane %v4739, 5
    %v4757 = vsel %vm287, %v4756, %v4755
    %v4758 = vrot.slane %v4740, 4
    %v4759 = vsel %vm290, %v4758, %v4757
    %v4760 = vrot.slane %v4741, 3
    %v4761 = vsel %vm293, %v4760, %v4759
    %v4762 = vrot.slane %v4742, 2
    %v4763 = vsel %vm296, %v4762, %v4761
    %v4764 = vrot.slane %v4743, 1
    %v4765 = vsel %vm299, %v4764, %v4763
    %v4766 = vrot.slane %v4745, 7
    %v4767 = vsel %vm281, %v4766, %v4744
    %v4768 = vrot.slane %v4746, 6
    %v4769 = vsel %vm284, %v4768, %v4767
    %v4770 = vrot.slane %v4747, 5
    %v4771 = vsel %vm287, %v4770, %v4769
    %v4772 = vrot.slane %v4748, 4
    %v4773 = vsel %vm290, %v4772, %v4771
    %v4774 = vrot.slane %v4749, 3
    %v4775 = vsel %vm293, %v4774, %v4773
    %v4776 = vrot.slane %v4750, 2
    %v4777 = vsel %vm296, %v4776, %v4775
    %v4778 = vrot.slane %v4751, 1
    %v4779 = vsel %vm299, %v4778, %v4777
    %v4780 = vpack.c.b16 %v4779, %v4765
    %v4785 = vunpack.c.l.b16 %v202
    %v4786 = vunpack.c.l.b16 %v203
    %v4787 = vunpack.c.l.b16 %v204
    %v4788 = vunpack.c.l.b16 %v205
    %v4789 = vpack.c.b16 %v4786, %v4785
    %v4790 = vpack.c.b16 %v4788, %v4787
    %v4794 = vsel %vm314, %v4780, 0
    %4796 = vmatprep.subr.bf16.mxu0 0
    %4797 = vmatpush1.bf16.msra.mxu0 %v4789
    %4798 = vmatprep.subr.bf16.mxu0 0
    %4799 = vmatpush1.bf16.msra.mxu0 %v4790
    %4800 = vmatprep.subr.bf16.mxu0 0
    %4801 = vmatpush1.bf16.msra.mxu0 0
    %4802 = vmatprep.subr.bf16.mxu0 0
    %4803 = vmatpush1.bf16.msra.mxu0 0
    %4804 = vmatprep.subr.bf16.mxu0 0
    %4805 = vmatpush1.bf16.msra.mxu0 0
    %4806 = vmatprep.subr.bf16.mxu0 0
    %4807 = vmatpush1.bf16.msra.mxu0 0
    %4808 = vmatprep.subr.bf16.mxu0 0
    %4809 = vmatpush1.bf16.msra.mxu0 0
    %4810 = vmatprep.subr.bf16.mxu0 0
    %4811 = vmatpush1.bf16.msra.mxu0 0
    %4812 = vmatprep.subr.bf16.mxu0 0
    %4813 = vmatpush1.bf16.msra.mxu0 0
    %4814 = vmatprep.subr.bf16.mxu0 0
    %4815 = vmatpush1.bf16.msra.mxu0 0
    %4816 = vmatprep.subr.bf16.mxu0 0
    %4817 = vmatpush1.bf16.msra.mxu0 0
    %4818 = vmatprep.subr.bf16.mxu0 0
    %4819 = vmatpush1.bf16.msra.mxu0 0
    %4820 = vmatprep.subr.bf16.mxu0 0
    %4821 = vmatpush1.bf16.msra.mxu0 0
    %4822 = vmatprep.subr.bf16.mxu0 0
    %4823 = vmatpush1.bf16.msra.mxu0 0
    %4824 = vmatprep.subr.bf16.mxu0 0
    %4825 = vmatpush1.bf16.msra.mxu0 0
    %4826 = vmatprep.subr.bf16.mxu0 0
    %4827 = vmatpush1.bf16.msra.mxu0 0
    %4828 = vmatprep.mubr.bf16.mxu0 0
    %4829 = vmatmul.mubr.bf16.gmra.mrb[0].mxu0 %v4794
    %v4830 = vpop.f32.mrb[0].mxu0
    %v4831 = vadd.f32 %v4718, %v4830
    %v4832 = vpop.f32.mrb[0].mxu0
    %v4833 = vpop.f32.mrb[0].mxu0
    %v4834 = vadd.f32 %v4718, %v4833
    %v4835 = vpop.f32.mrb[0].mxu0
    %4836 = vdwg.mxu0
    %v4837 = vmax.f32 %v4831, 0.0
    %v4838 = vmax.f32 %v4834, 0.0
    %v4839 = vpack.c.bf16 %v4838, %v4837
    %v4841 = vlaneseq
    %v4842 = vshrl.u32 %v4841, 7
    %v4843 = vsub.s32 0, %v4842
    %v4844 = vrot.slane %v223, %v4843
    %v4862 = vunpack.c.l.b16 %v207
    %v4863 = vunpack.c.l.b16 %v208
    %v4864 = vunpack.c.l.b16 %v209
    %v4865 = vunpack.c.l.b16 %v210
    %v4866 = vunpack.c.l.b16 %v211
    %v4867 = vunpack.c.l.b16 %v212
    %v4868 = vunpack.c.l.b16 %v213
    %v4869 = vunpack.c.l.b16 %v214
    %v4870 = vunpack.c.l.b16 %v215
    %v4871 = vunpack.c.l.b16 %v216
    %v4872 = vunpack.c.l.b16 %v217
    %v4873 = vunpack.c.l.b16 %v218
    %v4874 = vunpack.c.l.b16 %v219
    %v4875 = vunpack.c.l.b16 %v220
    %v4876 = vunpack.c.l.b16 %v221
    %v4877 = vunpack.c.l.b16 %v222
    %v4878 = vpack.c.b16 %v4863, %v4862
    %v4879 = vpack.c.b16 %v4865, %v4864
    %v4880 = vpack.c.b16 %v4867, %v4866
    %v4881 = vpack.c.b16 %v4869, %v4868
    %v4882 = vpack.c.b16 %v4871, %v4870
    %v4883 = vpack.c.b16 %v4873, %v4872
    %v4884 = vpack.c.b16 %v4875, %v4874
    %v4885 = vpack.c.b16 %v4877, %v4876
    %4894 = vmatprep.subr.bf16.mxu0 0
    %4895 = vmatpush1.bf16.msra.mxu0 %v4878
    %4896 = vmatprep.subr.bf16.mxu0 0
    %4897 = vmatpush1.bf16.msra.mxu0 %v4879
    %4898 = vmatprep.subr.bf16.mxu0 0
    %4899 = vmatpush1.bf16.msra.mxu0 %v4880
    %4900 = vmatprep.subr.bf16.mxu0 0
    %4901 = vmatpush1.bf16.msra.mxu0 %v4881
    %4902 = vmatprep.subr.bf16.mxu0 0
    %4903 = vmatpush1.bf16.msra.mxu0 %v4882
    %4904 = vmatprep.subr.bf16.mxu0 0
    %4905 = vmatpush1.bf16.msra.mxu0 %v4883
    %4906 = vmatprep.subr.bf16.mxu0 0
    %4907 = vmatpush1.bf16.msra.mxu0 %v4884
    %4908 = vmatprep.subr.bf16.mxu0 0
    %4909 = vmatpush1.bf16.msra.mxu0 %v4885
    %4910 = vmatprep.subr.bf16.mxu0 0
    %4911 = vmatpush1.bf16.msra.mxu0 0
    %4912 = vmatprep.subr.bf16.mxu0 0
    %4913 = vmatpush1.bf16.msra.mxu0 0
    %4914 = vmatprep.subr.bf16.mxu0 0
    %4915 = vmatpush1.bf16.msra.mxu0 0
    %4916 = vmatprep.subr.bf16.mxu0 0
    %4917 = vmatpush1.bf16.msra.mxu0 0
    %4918 = vmatprep.subr.bf16.mxu0 0
    %4919 = vmatpush1.bf16.msra.mxu0 0
    %4920 = vmatprep.subr.bf16.mxu0 0
    %4921 = vmatpush1.bf16.msra.mxu0 0
    %4922 = vmatprep.subr.bf16.mxu0 0
    %4923 = vmatpush1.bf16.msra.mxu0 0
    %4924 = vmatprep.subr.bf16.mxu0 0
    %4925 = vmatpush1.bf16.msra.mxu0 0
    %4926 = vmatprep.mubr.bf16.mxu0 0
    %4927 = vmatmul.mubr.bf16.gmra.mrb[0].mxu0 %v4839
    %v4928 = vpop.f32.mrb[0].mxu0
    %v4929 = vadd.f32 %v4844, %v4928
    %v4930 = vpop.f32.mrb[0].mxu0
    %v4931 = vpop.f32.mrb[0].mxu0
    %v4932 = vadd.f32 %v4844, %v4931
    %v4933 = vpop.f32.mrb[0].mxu0
    %4934 = vdwg.mxu0
    %v4937 = vrot.slane %v4929, 1
    %v4938 = vrot.slane %v4929, 2
    %v4939 = vrot.slane %v4929, 3
    %v4940 = vrot.slane %v4929, 4
    %v4941 = vrot.slane %v4929, 5
    %v4942 = vrot.slane %v4929, 6
    %v4943 = vrot.slane %v4929, 7
    %v4944 = vrot.slane %v4932, 1
    %v4945 = vrot.slane %v4932, 2
    %v4946 = vrot.slane %v4932, 3
    %v4947 = vrot.slane %v4932, 4
    %v4948 = vrot.slane %v4932, 5
    %v4949 = vrot.slane %v4932, 6
    %v4950 = vrot.slane %v4932, 7
    %v4967 = vadd.f32 %v4682, %v4929
    %v4968 = vadd.f32 %v4683, %v4937
    %v4969 = vadd.f32 %v4684, %v4938
    %v4970 = vadd.f32 %v4685, %v4939
    %v4971 = vadd.f32 %v4686, %v4940
    %v4972 = vadd.f32 %v4687, %v4941
    %v4973 = vadd.f32 %v4688, %v4942
    %v4974 = vadd.f32 %v4689, %v4943
    %v4975 = vadd.f32 %v4690, %v4932
    %v4976 = vadd.f32 %v4691, %v4944
    %v4977 = vadd.f32 %v4692, %v4945
    %v4978 = vadd.f32 %v4693, %v4946
    %v4979 = vadd.f32 %v4694, %v4947
    %v4980 = vadd.f32 %v4695, %v4948
    %v4981 = vadd.f32 %v4696, %v4949
    %v4982 = vadd.f32 %v4697, %v4950
    %v4999 = vrot.slane %v4968, 7
    %v5000 = vsel %vm281, %v4999, %v4967
    %v5001 = vrot.slane %v4969, 6
    %v5002 = vsel %vm284, %v5001, %v5000
    %v5003 = vrot.slane %v4970, 5
    %v5004 = vsel %vm287, %v5003, %v5002
    %v5005 = vrot.slane %v4971, 4
    %v5006 = vsel %vm290, %v5005, %v5004
    %v5007 = vrot.slane %v4972, 3
    %v5008 = vsel %vm293, %v5007, %v5006
    %v5009 = vrot.slane %v4973, 2
    %v5010 = vsel %vm296, %v5009, %v5008
    %v5011 = vrot.slane %v4974, 1
    %v5012 = vsel %vm299, %v5011, %v5010
    %v5013 = vrot.slane %v4976, 7
    %v5014 = vsel %vm281, %v5013, %v4975
    %v5015 = vrot.slane %v4977, 6
    %v5016 = vsel %vm284, %v5015, %v5014
    %v5017 = vrot.slane %v4978, 5
    %v5018 = vsel %vm287, %v5017, %v5016
    %v5019 = vrot.slane %v4979, 4
    %v5020 = vsel %vm290, %v5019, %v5018
    %v5021 = vrot.slane %v4980, 3
    %v5022 = vsel %vm293, %v5021, %v5020
    %v5023 = vrot.slane %v4981, 2
    %v5024 = vsel %vm296, %v5023, %v5022
    %v5025 = vrot.slane %v4982, 1
    %v5026 = vsel %vm299, %v5025, %v5024
    %v5029 = vsel %vm314, %v5012, 0.0
    %5030 = vadd.xlane.f32.xlu0 %v5029
    %v5031 = vpop.xlane.xlu0 %5030
    %v5032 = vsel %vm314, %v5026, 0.0
    %5033 = vadd.xlane.f32.xlu0 %v5032
    %v5034 = vpop.xlane.xlu0 %5033
    %v5035 = vmul.f32 %v5031, %v2079
    %v5036 = vmul.f32 %v5034, %v2079
    %v5039 = vrot.slane %v5035, 1
    %v5040 = vrot.slane %v5035, 2
    %v5041 = vrot.slane %v5035, 3
    %v5042 = vrot.slane %v5035, 4
    %v5043 = vrot.slane %v5035, 5
    %v5044 = vrot.slane %v5035, 6
    %v5045 = vrot.slane %v5035, 7
    %v5046 = vrot.slane %v5036, 1
    %v5047 = vrot.slane %v5036, 2
    %v5048 = vrot.slane %v5036, 3
    %v5049 = vrot.slane %v5036, 4
    %v5050 = vrot.slane %v5036, 5
    %v5051 = vrot.slane %v5036, 6
    %v5052 = vrot.slane %v5036, 7
    %v5069 = vsub.f32 %v4967, %v5035
    %v5070 = vsub.f32 %v4968, %v5039
    %v5071 = vsub.f32 %v4969, %v5040
    %v5072 = vsub.f32 %v4970, %v5041
    %v5073 = vsub.f32 %v4971, %v5042
    %v5074 = vsub.f32 %v4972, %v5043
    %v5075 = vsub.f32 %v4973, %v5044
    %v5076 = vsub.f32 %v4974, %v5045
    %v5077 = vsub.f32 %v4975, %v5036
    %v5078 = vsub.f32 %v4976, %v5046
    %v5079 = vsub.f32 %v4977, %v5047
    %v5080 = vsub.f32 %v4978, %v5048
    %v5081 = vsub.f32 %v4979, %v5049
    %v5082 = vsub.f32 %v4980, %v5050
    %v5083 = vsub.f32 %v4981, %v5051
    %v5084 = vsub.f32 %v4982, %v5052
    %v5085 = vmul.f32 %v5069, %v5069
    %v5086 = vmul.f32 %v5070, %v5070
    %v5087 = vmul.f32 %v5071, %v5071
    %v5088 = vmul.f32 %v5072, %v5072
    %v5089 = vmul.f32 %v5073, %v5073
    %v5090 = vmul.f32 %v5074, %v5074
    %v5091 = vmul.f32 %v5075, %v5075
    %v5092 = vmul.f32 %v5076, %v5076
    %v5093 = vmul.f32 %v5077, %v5077
    %v5094 = vmul.f32 %v5078, %v5078
    %v5095 = vmul.f32 %v5079, %v5079
    %v5096 = vmul.f32 %v5080, %v5080
    %v5097 = vmul.f32 %v5081, %v5081
    %v5098 = vmul.f32 %v5082, %v5082
    %v5099 = vmul.f32 %v5083, %v5083
    %v5100 = vmul.f32 %v5084, %v5084
    %v5117 = vrot.slane %v5086, 7
    %v5118 = vsel %vm281, %v5117, %v5085
    %v5119 = vrot.slane %v5087, 6
    %v5120 = vsel %vm284, %v5119, %v5118
    %v5121 = vrot.slane %v5088, 5
    %v5122 = vsel %vm287, %v5121, %v5120
    %v5123 = vrot.slane %v5089, 4
    %v5124 = vsel %vm290, %v5123, %v5122
    %v5125 = vrot.slane %v5090, 3
    %v5126 = vsel %vm293, %v5125, %v5124
    %v5127 = vrot.slane %v5091, 2
    %v5128 = vsel %vm296, %v5127, %v5126
    %v5129 = vrot.slane %v5092, 1
    %v5130 = vsel %vm299, %v5129, %v5128
    %v5131 = vrot.slane %v5094, 7
    %v5132 = vsel %vm281, %v5131, %v5093
    %v5133 = vrot.slane %v5095, 6
    %v5134 = vsel %vm284, %v5133, %v5132
    %v5135 = vrot.slane %v5096, 5
    %v5136 = vsel %vm287, %v5135, %v5134
    %v5137 = vrot.slane %v5097, 4
    %v5138 = vsel %vm290, %v5137, %v5136
    %v5139 = vrot.slane %v5098, 3
    %v5140 = vsel %vm293, %v5139, %v5138
    %v5141 = vrot.slane %v5099, 2
    %v5142 = vsel %vm296, %v5141, %v5140
    %v5143 = vrot.slane %v5100, 1
    %v5144 = vsel %vm299, %v5143, %v5142
    %v5147 = vsel %vm314, %v5130, 0.0
    %5148 = vadd.xlane.f32.xlu0 %v5147
    %v5149 = vpop.xlane.xlu0 %5148
    %v5150 = vsel %vm314, %v5144, 0.0
    %5151 = vadd.xlane.f32.xlu0 %v5150
    %v5152 = vpop.xlane.xlu0 %5151
    %v5153 = vmul.f32 %v5149, %v2079
    %v5154 = vmul.f32 %v5152, %v2079
    %v5155 = vadd.f32 %v5153, 1e-05
    %v5156 = vadd.f32 %v5154, 1e-05
    %v5157 = vrsqrt.pop %v5155
    %v5158 = vrsqrt.pop %v5156
    %v5161 = vrot.slane %v5157, 1
    %v5162 = vrot.slane %v5157, 2
    %v5163 = vrot.slane %v5157, 3
    %v5164 = vrot.slane %v5157, 4
    %v5165 = vrot.slane %v5157, 5
    %v5166 = vrot.slane %v5157, 6
    %v5167 = vrot.slane %v5157, 7
    %v5168 = vrot.slane %v5158, 1
    %v5169 = vrot.slane %v5158, 2
    %v5170 = vrot.slane %v5158, 3
    %v5171 = vrot.slane %v5158, 4
    %v5172 = vrot.slane %v5158, 5
    %v5173 = vrot.slane %v5158, 6
    %v5174 = vrot.slane %v5158, 7
    %v5191 = vmul.f32 %v5069, %v5157
    %v5192 = vmul.f32 %v5070, %v5161
    %v5193 = vmul.f32 %v5071, %v5162
    %v5194 = vmul.f32 %v5072, %v5163
    %v5195 = vmul.f32 %v5073, %v5164
    %v5196 = vmul.f32 %v5074, %v5165
    %v5197 = vmul.f32 %v5075, %v5166
    %v5198 = vmul.f32 %v5076, %v5167
    %v5199 = vmul.f32 %v5077, %v5158
    %v5200 = vmul.f32 %v5078, %v5168
    %v5201 = vmul.f32 %v5079, %v5169
    %v5202 = vmul.f32 %v5080, %v5170
    %v5203 = vmul.f32 %v5081, %v5171
    %v5204 = vmul.f32 %v5082, %v5172
    %v5205 = vmul.f32 %v5083, %v5173
    %v5206 = vmul.f32 %v5084, %v5174
    %v5207 = vmul.f32 %v5191, %v4658
    %v5208 = vmul.f32 %v5192, %v4658
    %v5209 = vmul.f32 %v5193, %v4658
    %v5210 = vmul.f32 %v5194, %v4658
    %v5211 = vmul.f32 %v5195, %v4658
    %v5212 = vmul.f32 %v5196, %v4658
    %v5213 = vmul.f32 %v5197, %v4658
    %v5214 = vmul.f32 %v5198, %v4658
    %v5215 = vmul.f32 %v5199, %v4658
    %v5216 = vmul.f32 %v5200, %v4658
    %v5217 = vmul.f32 %v5201, %v4658
    %v5218 = vmul.f32 %v5202, %v4658
    %v5219 = vmul.f32 %v5203, %v4658
    %v5220 = vmul.f32 %v5204, %v4658
    %v5221 = vmul.f32 %v5205, %v4658
    %v5222 = vmul.f32 %v5206, %v4658
    %v5223 = vadd.f32 %v5207, %v4680
    %v5224 = vadd.f32 %v5208, %v4680
    %v5225 = vadd.f32 %v5209, %v4680
    %v5226 = vadd.f32 %v5210, %v4680
    %v5227 = vadd.f32 %v5211, %v4680
    %v5228 = vadd.f32 %v5212, %v4680
    %v5229 = vadd.f32 %v5213, %v4680
    %v5230 = vadd.f32 %v5214, %v4680
    %v5231 = vadd.f32 %v5215, %v4680
    %v5232 = vadd.f32 %v5216, %v4680
    %v5233 = vadd.f32 %v5217, %v4680
    %v5234 = vadd.f32 %v5218, %v4680
    %v5235 = vadd.f32 %v5219, %v4680
    %v5236 = vadd.f32 %v5220, %v4680
    %v5237 = vadd.f32 %v5221, %v4680
    %v5238 = vadd.f32 %v5222, %v4680
    %vm5239 = vcmask 253952
    %5240 = vst.msk [vmem:[#allocation11] sm:$0x1] %vm5239, %v2534
    %5241 = vst.msk [vmem:[#allocation11 + $0x2] sm:$0x1] %vm5239, %v2535
    %5242 = vst.msk [vmem:[#allocation11 + $0x4] sm:$0x1] %vm5239, %v2536
    %5243 = vst.msk [vmem:[#allocation11 + $0x6] sm:$0x1] %vm5239, %v2537
    %5244 = vst.msk [vmem:[#allocation11 + $0x8] sm:$0x1] %vm5239, %v2538
    %5245 = vst.msk [vmem:[#allocation11 + $0xa] sm:$0x1] %vm5239, %v2539
    %5246 = vst.msk [vmem:[#allocation11 + $0xc] sm:$0x1] %vm5239, %v2540
    %5247 = vst.msk [vmem:[#allocation11 + $0xe] sm:$0x1] %vm5239, %v2541
    %5248 = vst.msk [vmem:[#allocation12] sm:$0x1] %vm5239, %v5223
    %5249 = vst.msk [vmem:[#allocation12 + $0x2] sm:$0x1] %vm5239, %v5224
    %5250 = vst.msk [vmem:[#allocation12 + $0x4] sm:$0x1] %vm5239, %v5225
    %5251 = vst.msk [vmem:[#allocation12 + $0x6] sm:$0x1] %vm5239, %v5226
    %5252 = vst.msk [vmem:[#allocation12 + $0x8] sm:$0x1] %vm5239, %v5227
    %5253 = vst.msk [vmem:[#allocation12 + $0xa] sm:$0x1] %vm5239, %v5228
    %5254 = vst.msk [vmem:[#allocation12 + $0xc] sm:$0x1] %vm5239, %v5229
    %5255 = vst.msk [vmem:[#allocation12 + $0xe] sm:$0x1] %vm5239, %v5230
    %5256 = vst.msk [vmem:[#allocation12 + $0x10] sm:$0x1] %vm5239, %v5231
    %5257 = vst.msk [vmem:[#allocation12 + $0x12] sm:$0x1] %vm5239, %v5232
    %5258 = vst.msk [vmem:[#allocation12 + $0x14] sm:$0x1] %vm5239, %v5233
    %5259 = vst.msk [vmem:[#allocation12 + $0x16] sm:$0x1] %vm5239, %v5234
    %5260 = vst.msk [vmem:[#allocation12 + $0x18] sm:$0x1] %vm5239, %v5235
    %5261 = vst.msk [vmem:[#allocation12 + $0x1a] sm:$0x1] %vm5239, %v5236
    %5262 = vst.msk [vmem:[#allocation12 + $0x1c] sm:$0x1] %vm5239, %v5237
    %5263 = vst.msk [vmem:[#allocation12 + $0x1e] sm:$0x1] %vm5239, %v5238
    %v5264 = vld [vmem:[%s0 + $0x1] sm:$0x1]
    %v5265 = vld [vmem:[%s0 + $0x3] sm:$0x1]
    %v5266 = vld [vmem:[%s0 + $0x5] sm:$0x1]
    %v5267 = vld [vmem:[%s0 + $0x7] sm:$0x1]
    %v5268 = vld [vmem:[%s0 + $0x9] sm:$0x1]
    %v5269 = vld [vmem:[%s0 + $0xb] sm:$0x1]
    %v5270 = vld [vmem:[%s0 + $0xd] sm:$0x1]
    %v5271 = vld [vmem:[%s0 + $0xf] sm:$0x1]
    %v5272 = vld [vmem:[%s1 + $0x1] sm:$0x1]
    %v5273 = vld [vmem:[%s1 + $0x3] sm:$0x1]
    %v5274 = vld [vmem:[%s1 + $0x5] sm:$0x1]
    %v5275 = vld [vmem:[%s1 + $0x7] sm:$0x1]
    %v5276 = vld [vmem:[%s1 + $0x9] sm:$0x1]
    %v5277 = vld [vmem:[%s1 + $0xb] sm:$0x1]
    %v5278 = vld [vmem:[%s1 + $0xd] sm:$0x1]
    %v5279 = vld [vmem:[%s1 + $0xf] sm:$0x1]
    %v5280 = vld [vmem:[%s1 + $0x11] sm:$0x1]
    %v5281 = vld [vmem:[%s1 + $0x13] sm:$0x1]
    %v5282 = vld [vmem:[%s1 + $0x15] sm:$0x1]
    %v5283 = vld [vmem:[%s1 + $0x17] sm:$0x1]
    %v5284 = vld [vmem:[%s1 + $0x19] sm:$0x1]
    %v5285 = vld [vmem:[%s1 + $0x1b] sm:$0x1]
    %v5286 = vld [vmem:[%s1 + $0x1d] sm:$0x1]
    %v5287 = vld [vmem:[%s1 + $0x1f] sm:$0x1]
    %v5288 = vpack.c.bf16 %v5264, %v5264
    %v5289 = vpack.c.bf16 %v5265, %v5265
    %v5290 = vpack.c.bf16 %v5266, %v5266
    %v5291 = vpack.c.bf16 %v5267, %v5267
    %v5292 = vpack.c.bf16 %v5268, %v5268
    %v5293 = vpack.c.bf16 %v5269, %v5269
    %v5294 = vpack.c.bf16 %v5270, %v5270
    %v5295 = vpack.c.bf16 %v5271, %v5271
    %v5304 = vunpack.c.l.b16 %v5288
    %v5305 = vunpack.c.l.b16 %v5289
    %v5306 = vunpack.c.l.b16 %v5290
    %v5307 = vunpack.c.l.b16 %v5291
    %v5308 = vunpack.c.l.b16 %v5292
    %v5309 = vunpack.c.l.b16 %v5293
    %v5310 = vunpack.c.l.b16 %v5294
    %v5311 = vunpack.c.l.b16 %v5295
    %v5312 = vrot.slane %v5305, 7
    %v5313 = vsel %vm281, %v5312, %v5304
    %v5314 = vrot.slane %v5306, 6
    %v5315 = vsel %vm284, %v5314, %v5313
    %v5316 = vrot.slane %v5307, 5
    %v5317 = vsel %vm287, %v5316, %v5315
    %v5318 = vrot.slane %v5308, 4
    %v5319 = vsel %vm290, %v5318, %v5317
    %v5320 = vrot.slane %v5309, 3
    %v5321 = vsel %vm293, %v5320, %v5319
    %v5322 = vrot.slane %v5310, 2
    %v5323 = vsel %vm296, %v5322, %v5321
    %v5324 = vrot.slane %v5311, 1
    %v5325 = vsel %vm299, %v5324, %v5323
    %v5326 = vpack.c.b16 %v5325, %v5325
    %v5328 = vsel %vm314, %v5326, 0
    %5330 = vmatprep.subr.bf16.mxu0 0
    %5331 = vmatpush1.bf16.msra.mxu0 %v310
    %5332 = vmatprep.subr.bf16.mxu0 0
    %5333 = vmatpush1.bf16.msra.mxu0 %v311
    %5334 = vmatprep.subr.bf16.mxu0 0
    %5335 = vmatpush1.bf16.msra.mxu0 0
    %5336 = vmatprep.subr.bf16.mxu0 0
    %5337 = vmatpush1.bf16.msra.mxu0 0
    %5338 = vmatprep.subr.bf16.mxu0 0
    %5339 = vmatpush1.bf16.msra.mxu0 0
    %5340 = vmatprep.subr.bf16.mxu0 0
    %5341 = vmatpush1.bf16.msra.mxu0 0
    %5342 = vmatprep.subr.bf16.mxu0 0
    %5343 = vmatpush1.bf16.msra.mxu0 0
    %5344 = vmatprep.subr.bf16.mxu0 0
    %5345 = vmatpush1.bf16.msra.mxu0 0
    %5346 = vmatprep.subr.bf16.mxu0 0
    %5347 = vmatpush1.bf16.msra.mxu0 0
    %5348 = vmatprep.subr.bf16.mxu0 0
    %5349 = vmatpush1.bf16.msra.mxu0 0
    %5350 = vmatprep.subr.bf16.mxu0 0
    %5351 = vmatpush1.bf16.msra.mxu0 0
    %5352 = vmatprep.subr.bf16.mxu0 0
    %5353 = vmatpush1.bf16.msra.mxu0 0
    %5354 = vmatprep.subr.bf16.mxu0 0
    %5355 = vmatpush1.bf16.msra.mxu0 0
    %5356 = vmatprep.subr.bf16.mxu0 0
    %5357 = vmatpush1.bf16.msra.mxu0 0
    %5358 = vmatprep.subr.bf16.mxu0 0
    %5359 = vmatpush1.bf16.msra.mxu0 0
    %5360 = vmatprep.subr.bf16.mxu0 0
    %5361 = vmatpush1.bf16.msra.mxu0 0
    %5362 = vmatprep.mubr.bf16.mxu0 0
    %5363 = vmatmul.mubr.bf16.gmra.mrb[0].mxu0 %v5328
    %v5364 = vpop.f32.mrb[0].mxu0
    %v5365 = vadd.f32 %v262, %v5364
    %v5366 = vpop.f32.mrb[0].mxu0
    %v5367 = vpop.f32.mrb[0].mxu0
    %v5368 = vpop.f32.mrb[0].mxu0
    %5369 = vdwg.mxu0
    %v5370 = vpack.c.bf16 %v5272, %v5272
    %v5371 = vpack.c.bf16 %v5273, %v5273
    %v5372 = vpack.c.bf16 %v5274, %v5274
    %v5373 = vpack.c.bf16 %v5275, %v5275
    %v5374 = vpack.c.bf16 %v5276, %v5276
    %v5375 = vpack.c.bf16 %v5277, %v5277
    %v5376 = vpack.c.bf16 %v5278, %v5278
    %v5377 = vpack.c.bf16 %v5279, %v5279
    %v5378 = vpack.c.bf16 %v5280, %v5280
    %v5379 = vpack.c.bf16 %v5281, %v5281
    %v5380 = vpack.c.bf16 %v5282, %v5282
    %v5381 = vpack.c.bf16 %v5283, %v5283
    %v5382 = vpack.c.bf16 %v5284, %v5284
    %v5383 = vpack.c.bf16 %v5285, %v5285
    %v5384 = vpack.c.bf16 %v5286, %v5286
    %v5385 = vpack.c.bf16 %v5287, %v5287
    %v5402 = vunpack.c.l.b16 %v5370
    %v5403 = vunpack.c.l.b16 %v5371
    %v5404 = vunpack.c.l.b16 %v5372
    %v5405 = vunpack.c.l.b16 %v5373
    %v5406 = vunpack.c.l.b16 %v5374
    %v5407 = vunpack.c.l.b16 %v5375
    %v5408 = vunpack.c.l.b16 %v5376
    %v5409 = vunpack.c.l.b16 %v5377
    %v5410 = vunpack.c.l.b16 %v5378
    %v5411 = vunpack.c.l.b16 %v5379
    %v5412 = vunpack.c.l.b16 %v5380
    %v5413 = vunpack.c.l.b16 %v5381
    %v5414 = vunpack.c.l.b16 %v5382
    %v5415 = vunpack.c.l.b16 %v5383
    %v5416 = vunpack.c.l.b16 %v5384
    %v5417 = vunpack.c.l.b16 %v5385
    %v5418 = vrot.slane %v5403, 7
    %v5419 = vsel %vm281, %v5418, %v5402
    %v5420 = vrot.slane %v5404, 6
    %v5421 = vsel %vm284, %v5420, %v5419
    %v5422 = vrot.slane %v5405, 5
    %v5423 = vsel %vm287, %v5422, %v5421
    %v5424 = vrot.slane %v5406, 4
    %v5425 = vsel %vm290, %v5424, %v5423
    %v5426 = vrot.slane %v5407, 3
    %v5427 = vsel %vm293, %v5426, %v5425
    %v5428 = vrot.slane %v5408, 2
    %v5429 = vsel %vm296, %v5428, %v5427
    %v5430 = vrot.slane %v5409, 1
    %v5431 = vsel %vm299, %v5430, %v5429
    %v5432 = vrot.slane %v5411, 7
    %v5433 = vsel %vm281, %v5432, %v5410
    %v5434 = vrot.slane %v5412, 6
    %v5435 = vsel %vm284, %v5434, %v5433
    %v5436 = vrot.slane %v5413, 5
    %v5437 = vsel %vm287, %v5436, %v5435
    %v5438 = vrot.slane %v5414, 4
    %v5439 = vsel %vm290, %v5438, %v5437
    %v5440 = vrot.slane %v5415, 3
    %v5441 = vsel %vm293, %v5440, %v5439
    %v5442 = vrot.slane %v5416, 2
    %v5443 = vsel %vm296, %v5442, %v5441
    %v5444 = vrot.slane %v5417, 1
    %v5445 = vsel %vm299, %v5444, %v5443
    %v5446 = vpack.c.b16 %v5445, %v5431
    %v5448 = vsel %vm314, %v5446, 0
    %5450 = vmatprep.subr.bf16.mxu0 0
    %5451 = vmatpush1.bf16.msra.mxu0 %v449
    %5452 = vmatprep.subr.bf16.mxu0 0
    %5453 = vmatpush1.bf16.msra.mxu0 %v450
    %5454 = vmatprep.subr.bf16.mxu0 0
    %5455 = vmatpush1.bf16.msra.mxu0 0
    %5456 = vmatprep.subr.bf16.mxu0 0
    %5457 = vmatpush1.bf16.msra.mxu0 0
    %5458 = vmatprep.subr.bf16.mxu0 0
    %5459 = vmatpush1.bf16.msra.mxu0 0
    %5460 = vmatprep.subr.bf16.mxu0 0
    %5461 = vmatpush1.bf16.msra.mxu0 0
    %5462 = vmatprep.subr.bf16.mxu0 0
    %5463 = vmatpush1.bf16.msra.mxu0 0
    %5464 = vmatprep.subr.bf16.mxu0 0
    %5465 = vmatpush1.bf16.msra.mxu0 0
    %5466 = vmatprep.subr.bf16.mxu0 0
    %5467 = vmatpush1.bf16.msra.mxu0 0
    %5468 = vmatprep.subr.bf16.mxu0 0
    %5469 = vmatpush1.bf16.msra.mxu0 0
    %5470 = vmatprep.subr.bf16.mxu0 0
    %5471 = vmatpush1.bf16.msra.mxu0 0
    %5472 = vmatprep.subr.bf16.mxu0 0
    %5473 = vmatpush1.bf16.msra.mxu0 0
    %5474 = vmatprep.subr.bf16.mxu0 0
    %5475 = vmatpush1.bf16.msra.mxu0 0
    %5476 = vmatprep.subr.bf16.mxu0 0
    %5477 = vmatpush1.bf16.msra.mxu0 0
    %5478 = vmatprep.subr.bf16.mxu0 0
    %5479 = vmatpush1.bf16.msra.mxu0 0
    %5480 = vmatprep.subr.bf16.mxu0 0
    %5481 = vmatpush1.bf16.msra.mxu0 0
    %5482 = vmatprep.mubr.bf16.mxu0 0
    %5483 = vmatmul.mubr.bf16.gmra.mrb[0].mxu0 %v5448
    %v5484 = vpop.f32.mrb[0].mxu0
    %v5485 = vadd.f32 %v378, %v5484
    %v5486 = vpop.f32.mrb[0].mxu0
    %v5487 = vpop.f32.mrb[0].mxu0
    %v5488 = vadd.f32 %v378, %v5487
    %v5489 = vpop.f32.mrb[0].mxu0
    %5490 = vdwg.mxu0
    %v5491 = vpack.c.bf16 %v5365, %v5365
    %v5492 = vpack.c.bf16 %v5488, %v5485
    %v5494 = vsel %vm506, %v5491, 0
    %v5497 = vsel %vm506, %v5492, 0
    %5499 = vmatprep.subr.bf16.mxu0 0
    %5500 = vmatpush1.bf16.xpose.msra.mxu0 %v5497
    %5501 = vmatprep.subr.bf16.mxu0 0
    %5502 = vmatpush1.bf16.xpose.msra.mxu0 0
    %5503 = vmatprep.subr.bf16.mxu0 0
    %5504 = vmatpush1.bf16.xpose.msra.mxu0 0
    %5505 = vmatprep.subr.bf16.mxu0 0
    %5506 = vmatpush1.bf16.xpose.msra.mxu0 0
    %5507 = vmatprep.subr.bf16.mxu0 0
    %5508 = vmatpush1.bf16.xpose.msra.mxu0 0
    %5509 = vmatprep.subr.bf16.mxu0 0
    %5510 = vmatpush1.bf16.xpose.msra.mxu0 0
    %5511 = vmatprep.subr.bf16.mxu0 0
    %5512 = vmatpush1.bf16.xpose.msra.mxu0 0
    %5513 = vmatprep.subr.bf16.mxu0 0
    %5514 = vmatpush1.bf16.xpose.msra.mxu0 0
    %5515 = vmatprep.subr.bf16.mxu0 0
    %5516 = vmatpush1.bf16.xpose.msra.mxu0 0
    %5517 = vmatprep.subr.bf16.mxu0 0
    %5518 = vmatpush1.bf16.xpose.msra.mxu0 0
    %5519 = vmatprep.subr.bf16.mxu0 0
    %5520 = vmatpush1.bf16.xpose.msra.mxu0 0
    %5521 = vmatprep.subr.bf16.mxu0 0
    %5522 = vmatpush1.bf16.xpose.msra.mxu0 0
    %5523 = vmatprep.subr.bf16.mxu0 0
    %5524 = vmatpush1.bf16.xpose.msra.mxu0 0
    %5525 = vmatprep.subr.bf16.mxu0 0
    %5526 = vmatpush1.bf16.xpose.msra.mxu0 0
    %5527 = vmatprep.subr.bf16.mxu0 0
    %5528 = vmatpush1.bf16.xpose.msra.mxu0 0
    %5529 = vmatprep.subr.bf16.mxu0 0
    %5530 = vmatpush1.bf16.xpose.msra.mxu0 0
    %5531 = vmatprep.mubr.bf16.mxu0 0
    %5532 = vmatmul.mubr.bf16.gmra.mrb[0].mxu0 %v5494
    %v5533 = vpop.f32.mrb[0].mxu0
    %v5534 = vadd.f32 0.0, %v5533
    %v5535 = vpop.f32.mrb[0].mxu0
    %v5536 = vpop.f32.mrb[0].mxu0
    %v5537 = vpop.f32.mrb[0].mxu0
    %5538 = vdwg.mxu0
    %v5539 = vsel %vm553, %v5534, -inf
    %5540 = vmax.xlane.f32.xlu0 %v5539
    %v5541 = vpop.xlane.xlu0 %5540
    %v5542 = vsub.f32 %v5534, %v5541
    %v5543 = vmul.f32 %v5542, 1.442695
    %v5544 = vpow.pop %v5543
    %v5545 = vsel %vm553, %v5544, 0.0
    %5546 = vadd.xlane.f32.xlu0 %v5545
    %v5547 = vpop.xlane.xlu0 %5546
    %v5548 = vrcp.pop %v5547
    %v5549 = vmul.f32 %v5544, %v5548
    %5552 = vrot.lane.b32.xlu0 %v5485, 96
    %v5553 = vpop.permute.xlu0 %5552
    %5554 = vrot.lane.b32.xlu0 %v5488, 96
    %v5555 = vpop.permute.xlu0 %5554
    %v5559 = vsel %vm553, %v5549, 0
    %5561 = vmatprep.subr.mxu0 0.0
    %5562 = vmatpush1.msra.mxu0 %v5553
    %5563 = vmatprep.subr.mxu0 0.0
    %5564 = vmatpush1.msra.mxu0 %v5555
    %5565 = vmatprep.subr.mxu0 0.0
    %5566 = vmatpush1.msra.mxu0 0.0
    %5567 = vmatprep.subr.mxu0 0.0
    %5568 = vmatpush1.msra.mxu0 0.0
    %5569 = vmatprep.subr.mxu0 0.0
    %5570 = vmatpush1.msra.mxu0 0.0
    %5571 = vmatprep.subr.mxu0 0.0
    %5572 = vmatpush1.msra.mxu0 0.0
    %5573 = vmatprep.subr.mxu0 0.0
    %5574 = vmatpush1.msra.mxu0 0.0
    %5575 = vmatprep.subr.mxu0 0.0
    %5576 = vmatpush1.msra.mxu0 0.0
    %5577 = vmatprep.subr.mxu0 0.0
    %5578 = vmatpush1.msra.mxu0 0.0
    %5579 = vmatprep.subr.mxu0 0.0
    %5580 = vmatpush1.msra.mxu0 0.0
    %5581 = vmatprep.subr.mxu0 0.0
    %5582 = vmatpush1.msra.mxu0 0.0
    %5583 = vmatprep.subr.mxu0 0.0
    %5584 = vmatpush1.msra.mxu0 0.0
    %5585 = vmatprep.subr.mxu0 0.0
    %5586 = vmatpush1.msra.mxu0 0.0
    %5587 = vmatprep.subr.mxu0 0.0
    %5588 = vmatpush1.msra.mxu0 0.0
    %5589 = vmatprep.subr.mxu0 0.0
    %5590 = vmatpush1.msra.mxu0 0.0
    %5591 = vmatprep.subr.mxu0 0.0
    %5592 = vmatpush1.msra.mxu0 0.0
    %5593 = vmatprep.subr.mxu0 0.0
    %5594 = vmatpush1.msra.mxu0 0.0
    %5595 = vmatprep.subr.mxu0 0.0
    %5596 = vmatpush1.msra.mxu0 0.0
    %5597 = vmatprep.subr.mxu0 0.0
    %5598 = vmatpush1.msra.mxu0 0.0
    %5599 = vmatprep.subr.mxu0 0.0
    %5600 = vmatpush1.msra.mxu0 0.0
    %5601 = vmatprep.subr.mxu0 0.0
    %5602 = vmatpush1.msra.mxu0 0.0
    %5603 = vmatprep.subr.mxu0 0.0
    %5604 = vmatpush1.msra.mxu0 0.0
    %5605 = vmatprep.subr.mxu0 0.0
    %5606 = vmatpush1.msra.mxu0 0.0
    %5607 = vmatprep.subr.mxu0 0.0
    %5608 = vmatpush1.msra.mxu0 0.0
    %5609 = vmatprep.subr.mxu0 0.0
    %5610 = vmatpush1.msra.mxu0 0.0
    %5611 = vmatprep.subr.mxu0 0.0
    %5612 = vmatpush1.msra.mxu0 0.0
    %5613 = vmatprep.subr.mxu0 0.0
    %5614 = vmatpush1.msra.mxu0 0.0
    %5615 = vmatprep.subr.mxu0 0.0
    %5616 = vmatpush1.msra.mxu0 0.0
    %5617 = vmatprep.subr.mxu0 0.0
    %5618 = vmatpush1.msra.mxu0 0.0
    %5619 = vmatprep.subr.mxu0 0.0
    %5620 = vmatpush1.msra.mxu0 0.0
    %5621 = vmatprep.subr.mxu0 0.0
    %5622 = vmatpush1.msra.mxu0 0.0
    %5623 = vmatprep.subr.mxu0 0.0
    %5624 = vmatpush1.msra.mxu0 0.0
    %5625 = vmatprep.mubr.f32.mxu0 0.0
    %5626 = vmatmul.mubr.f32.gmra.mrb[0].mxu0 %v5559
    %v5627 = vpop.f32.mrb[0].mxu0
    %v5628 = vadd.f32 0.0, %v5627
    %v5629 = vpop.f32.mrb[0].mxu0
    %5630 = vdwg.mxu0
    %v5631 = vpack.c.bf16 %v5628, %v5628
    %v5633 = vsel %vm506, %v5631, 0
    %5635 = vmatprep.subr.bf16.mxu0 0
    %5636 = vmatpush1.bf16.msra.mxu0 %v652
    %5637 = vmatprep.subr.bf16.mxu0 0
    %5638 = vmatpush1.bf16.msra.mxu0 0
    %5639 = vmatprep.subr.bf16.mxu0 0
    %5640 = vmatpush1.bf16.msra.mxu0 0
    %5641 = vmatprep.subr.bf16.mxu0 0
    %5642 = vmatpush1.bf16.msra.mxu0 0
    %5643 = vmatprep.subr.bf16.mxu0 0
    %5644 = vmatpush1.bf16.msra.mxu0 0
    %5645 = vmatprep.subr.bf16.mxu0 0
    %5646 = vmatpush1.bf16.msra.mxu0 0
    %5647 = vmatprep.subr.bf16.mxu0 0
    %5648 = vmatpush1.bf16.msra.mxu0 0
    %5649 = vmatprep.subr.bf16.mxu0 0
    %5650 = vmatpush1.bf16.msra.mxu0 0
    %5651 = vmatprep.subr.bf16.mxu0 0
    %5652 = vmatpush1.bf16.msra.mxu0 0
    %5653 = vmatprep.subr.bf16.mxu0 0
    %5654 = vmatpush1.bf16.msra.mxu0 0
    %5655 = vmatprep.subr.bf16.mxu0 0
    %5656 = vmatpush1.bf16.msra.mxu0 0
    %5657 = vmatprep.subr.bf16.mxu0 0
    %5658 = vmatpush1.bf16.msra.mxu0 0
    %5659 = vmatprep.subr.bf16.mxu0 0
    %5660 = vmatpush1.bf16.msra.mxu0 0
    %5661 = vmatprep.subr.bf16.mxu0 0
    %5662 = vmatpush1.bf16.msra.mxu0 0
    %5663 = vmatprep.subr.bf16.mxu0 0
    %5664 = vmatpush1.bf16.msra.mxu0 0
    %5665 = vmatprep.subr.bf16.mxu0 0
    %5666 = vmatpush1.bf16.msra.mxu0 0
    %5667 = vmatprep.mubr.bf16.mxu0 0
    %5668 = vmatmul.mubr.bf16.gmra.mrb[0].mxu0 %v5633
    %v5669 = vpop.f32.mrb[0].mxu0
    %v5670 = vadd.f32 0.0, %v5669
    %v5671 = vpop.f32.mrb[0].mxu0
    %v5672 = vpop.f32.mrb[0].mxu0
    %v5673 = vpop.f32.mrb[0].mxu0
    %5674 = vdwg.mxu0
    %v5675 = vadd.f32 %v505, %v5670
    %5677 = vrot.lane.b32.xlu0 %v5491, 124
    %v5678 = vpop.permute.xlu0 %5677
    %5680 = vrot.lane.b32.xlu0 %v5492, 124
    %v5681 = vpop.permute.xlu0 %5680
    %v5683 = vsel %vm506, %v5678, 0
    %v5686 = vsel %vm506, %v5681, 0
    %5688 = vmatprep.subr.bf16.mxu0 0
    %5689 = vmatpush1.bf16.xpose.msra.mxu0 %v5686
    %5690 = vmatprep.subr.bf16.mxu0 0
    %5691 = vmatpush1.bf16.xpose.msra.mxu0 0
    %5692 = vmatprep.subr.bf16.mxu0 0
    %5693 = vmatpush1.bf16.xpose.msra.mxu0 0
    %5694 = vmatprep.subr.bf16.mxu0 0
    %5695 = vmatpush1.bf16.xpose.msra.mxu0 0
    %5696 = vmatprep.subr.bf16.mxu0 0
    %5697 = vmatpush1.bf16.xpose.msra.mxu0 0
    %5698 = vmatprep.subr.bf16.mxu0 0
    %5699 = vmatpush1.bf16.xpose.msra.mxu0 0
    %5700 = vmatprep.subr.bf16.mxu0 0
    %5701 = vmatpush1.bf16.xpose.msra.mxu0 0
    %5702 = vmatprep.subr.bf16.mxu0 0
    %5703 = vmatpush1.bf16.xpose.msra.mxu0 0
    %5704 = vmatprep.subr.bf16.mxu0 0
    %5705 = vmatpush1.bf16.xpose.msra.mxu0 0
    %5706 = vmatprep.subr.bf16.mxu0 0
    %5707 = vmatpush1.bf16.xpose.msra.mxu0 0
    %5708 = vmatprep.subr.bf16.mxu0 0
    %5709 = vmatpush1.bf16.xpose.msra.mxu0 0
    %5710 = vmatprep.subr.bf16.mxu0 0
    %5711 = vmatpush1.bf16.xpose.msra.mxu0 0
    %5712 = vmatprep.subr.bf16.mxu0 0
    %5713 = vmatpush1.bf16.xpose.msra.mxu0 0
    %5714 = vmatprep.subr.bf16.mxu0 0
    %5715 = vmatpush1.bf16.xpose.msra.mxu0 0
    %5716 = vmatprep.subr.bf16.mxu0 0
    %5717 = vmatpush1.bf16.xpose.msra.mxu0 0
    %5718 = vmatprep.subr.bf16.mxu0 0
    %5719 = vmatpush1.bf16.xpose.msra.mxu0 0
    %5720 = vmatprep.mubr.bf16.mxu0 0
    %5721 = vmatmul.mubr.bf16.gmra.mrb[0].mxu0 %v5683
    %v5722 = vpop.f32.mrb[0].mxu0
    %v5723 = vadd.f32 0.0, %v5722
    %v5724 = vpop.f32.mrb[0].mxu0
    %v5725 = vpop.f32.mrb[0].mxu0
    %v5726 = vpop.f32.mrb[0].mxu0
    %5727 = vdwg.mxu0
    %v5728 = vsel %vm553, %v5723, -inf
    %5729 = vmax.xlane.f32.xlu0 %v5728
    %v5730 = vpop.xlane.xlu0 %5729
    %v5731 = vsub.f32 %v5723, %v5730
    %v5732 = vmul.f32 %v5731, 1.442695
    %v5733 = vpow.pop %v5732
    %v5734 = vsel %vm553, %v5733, 0.0
    %5735 = vadd.xlane.f32.xlu0 %v5734
    %v5736 = vpop.xlane.xlu0 %5735
    %v5737 = vrcp.pop %v5736
    %v5738 = vmul.f32 %v5733, %v5737
    %5739 = vrot.lane.b32.xlu0 %v5485, 92
    %v5740 = vpop.permute.xlu0 %5739
    %5741 = vrot.lane.b32.xlu0 %v5488, 92
    %v5742 = vpop.permute.xlu0 %5741
    %v5746 = vsel %vm553, %v5738, 0
    %5748 = vmatprep.subr.mxu0 0.0
    %5749 = vmatpush1.msra.mxu0 %v5740
    %5750 = vmatprep.subr.mxu0 0.0
    %5751 = vmatpush1.msra.mxu0 %v5742
    %5752 = vmatprep.subr.mxu0 0.0
    %5753 = vmatpush1.msra.mxu0 0.0
    %5754 = vmatprep.subr.mxu0 0.0
    %5755 = vmatpush1.msra.mxu0 0.0
    %5756 = vmatprep.subr.mxu0 0.0
    %5757 = vmatpush1.msra.mxu0 0.0
    %5758 = vmatprep.subr.mxu0 0.0
    %5759 = vmatpush1.msra.mxu0 0.0
    %5760 = vmatprep.subr.mxu0 0.0
    %5761 = vmatpush1.msra.mxu0 0.0
    %5762 = vmatprep.subr.mxu0 0.0
    %5763 = vmatpush1.msra.mxu0 0.0
    %5764 = vmatprep.subr.mxu0 0.0
    %5765 = vmatpush1.msra.mxu0 0.0
    %5766 = vmatprep.subr.mxu0 0.0
    %5767 = vmatpush1.msra.mxu0 0.0
    %5768 = vmatprep.subr.mxu0 0.0
    %5769 = vmatpush1.msra.mxu0 0.0
    %5770 = vmatprep.subr.mxu0 0.0
    %5771 = vmatpush1.msra.mxu0 0.0
    %5772 = vmatprep.subr.mxu0 0.0
    %5773 = vmatpush1.msra.mxu0 0.0
    %5774 = vmatprep.subr.mxu0 0.0
    %5775 = vmatpush1.msra.mxu0 0.0
    %5776 = vmatprep.subr.mxu0 0.0
    %5777 = vmatpush1.msra.mxu0 0.0
    %5778 = vmatprep.subr.mxu0 0.0
    %5779 = vmatpush1.msra.mxu0 0.0
    %5780 = vmatprep.subr.mxu0 0.0
    %5781 = vmatpush1.msra.mxu0 0.0
    %5782 = vmatprep.subr.mxu0 0.0
    %5783 = vmatpush1.msra.mxu0 0.0
    %5784 = vmatprep.subr.mxu0 0.0
    %5785 = vmatpush1.msra.mxu0 0.0
    %5786 = vmatprep.subr.mxu0 0.0
    %5787 = vmatpush1.msra.mxu0 0.0
    %5788 = vmatprep.subr.mxu0 0.0
    %5789 = vmatpush1.msra.mxu0 0.0
    %5790 = vmatprep.subr.mxu0 0.0
    %5791 = vmatpush1.msra.mxu0 0.0
    %5792 = vmatprep.subr.mxu0 0.0
    %5793 = vmatpush1.msra.mxu0 0.0
    %5794 = vmatprep.subr.mxu0 0.0
    %5795 = vmatpush1.msra.mxu0 0.0
    %5796 = vmatprep.subr.mxu0 0.0
    %5797 = vmatpush1.msra.mxu0 0.0
    %5798 = vmatprep.subr.mxu0 0.0
    %5799 = vmatpush1.msra.mxu0 0.0
    %5800 = vmatprep.subr.mxu0 0.0
    %5801 = vmatpush1.msra.mxu0 0.0
    %5802 = vmatprep.subr.mxu0 0.0
    %5803 = vmatpush1.msra.mxu0 0.0
    %5804 = vmatprep.subr.mxu0 0.0
    %5805 = vmatpush1.msra.mxu0 0.0
    %5806 = vmatprep.subr.mxu0 0.0
    %5807 = vmatpush1.msra.mxu0 0.0
    %5808 = vmatprep.subr.mxu0 0.0
    %5809 = vmatpush1.msra.mxu0 0.0
    %5810 = vmatprep.subr.mxu0 0.0
    %5811 = vmatpush1.msra.mxu0 0.0
    %5812 = vmatprep.mubr.f32.mxu0 0.0
    %5813 = vmatmul.mubr.f32.gmra.mrb[0].mxu0 %v5746
    %v5814 = vpop.f32.mrb[0].mxu0
    %v5815 = vadd.f32 0.0, %v5814
    %v5816 = vpop.f32.mrb[0].mxu0
    %5817 = vdwg.mxu0
    %v5818 = vpack.c.bf16 %v5815, %v5815
    %v5820 = vsel %vm506, %v5818, 0
    %5822 = vmatprep.subr.bf16.mxu0 0
    %5823 = vmatpush1.bf16.msra.mxu0 %v846
    %5824 = vmatprep.subr.bf16.mxu0 0
    %5825 = vmatpush1.bf16.msra.mxu0 0
    %5826 = vmatprep.subr.bf16.mxu0 0
    %5827 = vmatpush1.bf16.msra.mxu0 0
    %5828 = vmatprep.subr.bf16.mxu0 0
    %5829 = vmatpush1.bf16.msra.mxu0 0
    %5830 = vmatprep.subr.bf16.mxu0 0
    %5831 = vmatpush1.bf16.msra.mxu0 0
    %5832 = vmatprep.subr.bf16.mxu0 0
    %5833 = vmatpush1.bf16.msra.mxu0 0
    %5834 = vmatprep.subr.bf16.mxu0 0
    %5835 = vmatpush1.bf16.msra.mxu0 0
    %5836 = vmatprep.subr.bf16.mxu0 0
    %5837 = vmatpush1.bf16.msra.mxu0 0
    %5838 = vmatprep.subr.bf16.mxu0 0
    %5839 = vmatpush1.bf16.msra.mxu0 0
    %5840 = vmatprep.subr.bf16.mxu0 0
    %5841 = vmatpush1.bf16.msra.mxu0 0
    %5842 = vmatprep.subr.bf16.mxu0 0
    %5843 = vmatpush1.bf16.msra.mxu0 0
    %5844 = vmatprep.subr.bf16.mxu0 0
    %5845 = vmatpush1.bf16.msra.mxu0 0
    %5846 = vmatprep.subr.bf16.mxu0 0
    %5847 = vmatpush1.bf16.msra.mxu0 0
    %5848 = vmatprep.subr.bf16.mxu0 0
    %5849 = vmatpush1.bf16.msra.mxu0 0
    %5850 = vmatprep.subr.bf16.mxu0 0
    %5851 = vmatpush1.bf16.msra.mxu0 0
    %5852 = vmatprep.subr.bf16.mxu0 0
    %5853 = vmatpush1.bf16.msra.mxu0 0
    %5854 = vmatprep.mubr.bf16.mxu0 0
    %5855 = vmatmul.mubr.bf16.gmra.mrb[0].mxu0 %v5820
    %v5856 = vpop.f32.mrb[0].mxu0
    %v5857 = vadd.f32 0.0, %v5856
    %v5858 = vpop.f32.mrb[0].mxu0
    %v5859 = vpop.f32.mrb[0].mxu0
    %v5860 = vpop.f32.mrb[0].mxu0
    %5861 = vdwg.mxu0
    %v5862 = vadd.f32 %v5675, %v5857
    %5863 = vrot.lane.b32.xlu0 %v5491, 120
    %v5864 = vpop.permute.xlu0 %5863
    %5865 = vrot.lane.b32.xlu0 %v5492, 120
    %v5866 = vpop.permute.xlu0 %5865
    %v5868 = vsel %vm506, %v5864, 0
    %v5871 = vsel %vm506, %v5866, 0
    %5873 = vmatprep.subr.bf16.mxu0 0
    %5874 = vmatpush1.bf16.xpose.msra.mxu0 %v5871
    %5875 = vmatprep.subr.bf16.mxu0 0
    %5876 = vmatpush1.bf16.xpose.msra.mxu0 0
    %5877 = vmatprep.subr.bf16.mxu0 0
    %5878 = vmatpush1.bf16.xpose.msra.mxu0 0
    %5879 = vmatprep.subr.bf16.mxu0 0
    %5880 = vmatpush1.bf16.xpose.msra.mxu0 0
    %5881 = vmatprep.subr.bf16.mxu0 0
    %5882 = vmatpush1.bf16.xpose.msra.mxu0 0
    %5883 = vmatprep.subr.bf16.mxu0 0
    %5884 = vmatpush1.bf16.xpose.msra.mxu0 0
    %5885 = vmatprep.subr.bf16.mxu0 0
    %5886 = vmatpush1.bf16.xpose.msra.mxu0 0
    %5887 = vmatprep.subr.bf16.mxu0 0
    %5888 = vmatpush1.bf16.xpose.msra.mxu0 0
    %5889 = vmatprep.subr.bf16.mxu0 0
    %5890 = vmatpush1.bf16.xpose.msra.mxu0 0
    %5891 = vmatprep.subr.bf16.mxu0 0
    %5892 = vmatpush1.bf16.xpose.msra.mxu0 0
    %5893 = vmatprep.subr.bf16.mxu0 0
    %5894 = vmatpush1.bf16.xpose.msra.mxu0 0
    %5895 = vmatprep.subr.bf16.mxu0 0
    %5896 = vmatpush1.bf16.xpose.msra.mxu0 0
    %5897 = vmatprep.subr.bf16.mxu0 0
    %5898 = vmatpush1.bf16.xpose.msra.mxu0 0
    %5899 = vmatprep.subr.bf16.mxu0 0
    %5900 = vmatpush1.bf16.xpose.msra.mxu0 0
    %5901 = vmatprep.subr.bf16.mxu0 0
    %5902 = vmatpush1.bf16.xpose.msra.mxu0 0
    %5903 = vmatprep.subr.bf16.mxu0 0
    %5904 = vmatpush1.bf16.xpose.msra.mxu0 0
    %5905 = vmatprep.mubr.bf16.mxu0 0
    %5906 = vmatmul.mubr.bf16.gmra.mrb[0].mxu0 %v5868
    %v5907 = vpop.f32.mrb[0].mxu0
    %v5908 = vadd.f32 0.0, %v5907
    %v5909 = vpop.f32.mrb[0].mxu0
    %v5910 = vpop.f32.mrb[0].mxu0
    %v5911 = vpop.f32.mrb[0].mxu0
    %5912 = vdwg.mxu0
    %v5913 = vsel %vm553, %v5908, -inf
    %5914 = vmax.xlane.f32.xlu0 %v5913
    %v5915 = vpop.xlane.xlu0 %5914
    %v5916 = vsub.f32 %v5908, %v5915
    %v5917 = vmul.f32 %v5916, 1.442695
    %v5918 = vpow.pop %v5917
    %v5919 = vsel %vm553, %v5918, 0.0
    %5920 = vadd.xlane.f32.xlu0 %v5919
    %v5921 = vpop.xlane.xlu0 %5920
    %v5922 = vrcp.pop %v5921
    %v5923 = vmul.f32 %v5918, %v5922
    %5924 = vrot.lane.b32.xlu0 %v5485, 88
    %v5925 = vpop.permute.xlu0 %5924
    %5926 = vrot.lane.b32.xlu0 %v5488, 88
    %v5927 = vpop.permute.xlu0 %5926
    %v5931 = vsel %vm553, %v5923, 0
    %5933 = vmatprep.subr.mxu0 0.0
    %5934 = vmatpush1.msra.mxu0 %v5925
    %5935 = vmatprep.subr.mxu0 0.0
    %5936 = vmatpush1.msra.mxu0 %v5927
    %5937 = vmatprep.subr.mxu0 0.0
    %5938 = vmatpush1.msra.mxu0 0.0
    %5939 = vmatprep.subr.mxu0 0.0
    %5940 = vmatpush1.msra.mxu0 0.0
    %5941 = vmatprep.subr.mxu0 0.0
    %5942 = vmatpush1.msra.mxu0 0.0
    %5943 = vmatprep.subr.mxu0 0.0
    %5944 = vmatpush1.msra.mxu0 0.0
    %5945 = vmatprep.subr.mxu0 0.0
    %5946 = vmatpush1.msra.mxu0 0.0
    %5947 = vmatprep.subr.mxu0 0.0
    %5948 = vmatpush1.msra.mxu0 0.0
    %5949 = vmatprep.subr.mxu0 0.0
    %5950 = vmatpush1.msra.mxu0 0.0
    %5951 = vmatprep.subr.mxu0 0.0
    %5952 = vmatpush1.msra.mxu0 0.0
    %5953 = vmatprep.subr.mxu0 0.0
    %5954 = vmatpush1.msra.mxu0 0.0
    %5955 = vmatprep.subr.mxu0 0.0
    %5956 = vmatpush1.msra.mxu0 0.0
    %5957 = vmatprep.subr.mxu0 0.0
    %5958 = vmatpush1.msra.mxu0 0.0
    %5959 = vmatprep.subr.mxu0 0.0
    %5960 = vmatpush1.msra.mxu0 0.0
    %5961 = vmatprep.subr.mxu0 0.0
    %5962 = vmatpush1.msra.mxu0 0.0
    %5963 = vmatprep.subr.mxu0 0.0
    %5964 = vmatpush1.msra.mxu0 0.0
    %5965 = vmatprep.subr.mxu0 0.0
    %5966 = vmatpush1.msra.mxu0 0.0
    %5967 = vmatprep.subr.mxu0 0.0
    %5968 = vmatpush1.msra.mxu0 0.0
    %5969 = vmatprep.subr.mxu0 0.0
    %5970 = vmatpush1.msra.mxu0 0.0
    %5971 = vmatprep.subr.mxu0 0.0
    %5972 = vmatpush1.msra.mxu0 0.0
    %5973 = vmatprep.subr.mxu0 0.0
    %5974 = vmatpush1.msra.mxu0 0.0
    %5975 = vmatprep.subr.mxu0 0.0
    %5976 = vmatpush1.msra.mxu0 0.0
    %5977 = vmatprep.subr.mxu0 0.0
    %5978 = vmatpush1.msra.mxu0 0.0
    %5979 = vmatprep.subr.mxu0 0.0
    %5980 = vmatpush1.msra.mxu0 0.0
    %5981 = vmatprep.subr.mxu0 0.0
    %5982 = vmatpush1.msra.mxu0 0.0
    %5983 = vmatprep.subr.mxu0 0.0
    %5984 = vmatpush1.msra.mxu0 0.0
    %5985 = vmatprep.subr.mxu0 0.0
    %5986 = vmatpush1.msra.mxu0 0.0
    %5987 = vmatprep.subr.mxu0 0.0
    %5988 = vmatpush1.msra.mxu0 0.0
    %5989 = vmatprep.subr.mxu0 0.0
    %5990 = vmatpush1.msra.mxu0 0.0
    %5991 = vmatprep.subr.mxu0 0.0
    %5992 = vmatpush1.msra.mxu0 0.0
    %5993 = vmatprep.subr.mxu0 0.0
    %5994 = vmatpush1.msra.mxu0 0.0
    %5995 = vmatprep.subr.mxu0 0.0
    %5996 = vmatpush1.msra.mxu0 0.0
    %5997 = vmatprep.mubr.f32.mxu0 0.0
    %5998 = vmatmul.mubr.f32.gmra.mrb[0].mxu0 %v5931
    %v5999 = vpop.f32.mrb[0].mxu0
    %v6000 = vadd.f32 0.0, %v5999
    %v6001 = vpop.f32.mrb[0].mxu0
    %6002 = vdwg.mxu0
    %v6003 = vpack.c.bf16 %v6000, %v6000
    %v6005 = vsel %vm506, %v6003, 0
    %6007 = vmatprep.subr.bf16.mxu0 0
    %6008 = vmatpush1.bf16.msra.mxu0 %v1034
    %6009 = vmatprep.subr.bf16.mxu0 0
    %6010 = vmatpush1.bf16.msra.mxu0 0
    %6011 = vmatprep.subr.bf16.mxu0 0
    %6012 = vmatpush1.bf16.msra.mxu0 0
    %6013 = vmatprep.subr.bf16.mxu0 0
    %6014 = vmatpush1.bf16.msra.mxu0 0
    %6015 = vmatprep.subr.bf16.mxu0 0
    %6016 = vmatpush1.bf16.msra.mxu0 0
    %6017 = vmatprep.subr.bf16.mxu0 0
    %6018 = vmatpush1.bf16.msra.mxu0 0
    %6019 = vmatprep.subr.bf16.mxu0 0
    %6020 = vmatpush1.bf16.msra.mxu0 0
    %6021 = vmatprep.subr.bf16.mxu0 0
    %6022 = vmatpush1.bf16.msra.mxu0 0
    %6023 = vmatprep.subr.bf16.mxu0 0
    %6024 = vmatpush1.bf16.msra.mxu0 0
    %6025 = vmatprep.subr.bf16.mxu0 0
    %6026 = vmatpush1.bf16.msra.mxu0 0
    %6027 = vmatprep.subr.bf16.mxu0 0
    %6028 = vmatpush1.bf16.msra.mxu0 0
    %6029 = vmatprep.subr.bf16.mxu0 0
    %6030 = vmatpush1.bf16.msra.mxu0 0
    %6031 = vmatprep.subr.bf16.mxu0 0
    %6032 = vmatpush1.bf16.msra.mxu0 0
    %6033 = vmatprep.subr.bf16.mxu0 0
    %6034 = vmatpush1.bf16.msra.mxu0 0
    %6035 = vmatprep.subr.bf16.mxu0 0
    %6036 = vmatpush1.bf16.msra.mxu0 0
    %6037 = vmatprep.subr.bf16.mxu0 0
    %6038 = vmatpush1.bf16.msra.mxu0 0
    %6039 = vmatprep.mubr.bf16.mxu0 0
    %6040 = vmatmul.mubr.bf16.gmra.mrb[0].mxu0 %v6005
    %v6041 = vpop.f32.mrb[0].mxu0
    %v6042 = vadd.f32 0.0, %v6041
    %v6043 = vpop.f32.mrb[0].mxu0
    %v6044 = vpop.f32.mrb[0].mxu0
    %v6045 = vpop.f32.mrb[0].mxu0
    %6046 = vdwg.mxu0
    %v6047 = vadd.f32 %v5862, %v6042
    %6048 = vrot.lane.b32.xlu0 %v5491, 116
    %v6049 = vpop.permute.xlu0 %6048
    %6050 = vrot.lane.b32.xlu0 %v5492, 116
    %v6051 = vpop.permute.xlu0 %6050
    %v6053 = vsel %vm506, %v6049, 0
    %v6056 = vsel %vm506, %v6051, 0
    %6058 = vmatprep.subr.bf16.mxu0 0
    %6059 = vmatpush1.bf16.xpose.msra.mxu0 %v6056
    %6060 = vmatprep.subr.bf16.mxu0 0
    %6061 = vmatpush1.bf16.xpose.msra.mxu0 0
    %6062 = vmatprep.subr.bf16.mxu0 0
    %6063 = vmatpush1.bf16.xpose.msra.mxu0 0
    %6064 = vmatprep.subr.bf16.mxu0 0
    %6065 = vmatpush1.bf16.xpose.msra.mxu0 0
    %6066 = vmatprep.subr.bf16.mxu0 0
    %6067 = vmatpush1.bf16.xpose.msra.mxu0 0
    %6068 = vmatprep.subr.bf16.mxu0 0
    %6069 = vmatpush1.bf16.xpose.msra.mxu0 0
    %6070 = vmatprep.subr.bf16.mxu0 0
    %6071 = vmatpush1.bf16.xpose.msra.mxu0 0
    %6072 = vmatprep.subr.bf16.mxu0 0
    %6073 = vmatpush1.bf16.xpose.msra.mxu0 0
    %6074 = vmatprep.subr.bf16.mxu0 0
    %6075 = vmatpush1.bf16.xpose.msra.mxu0 0
    %6076 = vmatprep.subr.bf16.mxu0 0
    %6077 = vmatpush1.bf16.xpose.msra.mxu0 0
    %6078 = vmatprep.subr.bf16.mxu0 0
    %6079 = vmatpush1.bf16.xpose.msra.mxu0 0
    %6080 = vmatprep.subr.bf16.mxu0 0
    %6081 = vmatpush1.bf16.xpose.msra.mxu0 0
    %6082 = vmatprep.subr.bf16.mxu0 0
    %6083 = vmatpush1.bf16.xpose.msra.mxu0 0
    %6084 = vmatprep.subr.bf16.mxu0 0
    %6085 = vmatpush1.bf16.xpose.msra.mxu0 0
    %6086 = vmatprep.subr.bf16.mxu0 0
    %6087 = vmatpush1.bf16.xpose.msra.mxu0 0
    %6088 = vmatprep.subr.bf16.mxu0 0
    %6089 = vmatpush1.bf16.xpose.msra.mxu0 0
    %6090 = vmatprep.mubr.bf16.mxu0 0
    %6091 = vmatmul.mubr.bf16.gmra.mrb[0].mxu0 %v6053
    %v6092 = vpop.f32.mrb[0].mxu0
    %v6093 = vadd.f32 0.0, %v6092
    %v6094 = vpop.f32.mrb[0].mxu0
    %v6095 = vpop.f32.mrb[0].mxu0
    %v6096 = vpop.f32.mrb[0].mxu0
    %6097 = vdwg.mxu0
    %v6098 = vsel %vm553, %v6093, -inf
    %6099 = vmax.xlane.f32.xlu0 %v6098
    %v6100 = vpop.xlane.xlu0 %6099
    %v6101 = vsub.f32 %v6093, %v6100
    %v6102 = vmul.f32 %v6101, 1.442695
    %v6103 = vpow.pop %v6102
    %v6104 = vsel %vm553, %v6103, 0.0
    %6105 = vadd.xlane.f32.xlu0 %v6104
    %v6106 = vpop.xlane.xlu0 %6105
    %v6107 = vrcp.pop %v6106
    %v6108 = vmul.f32 %v6103, %v6107
    %6109 = vrot.lane.b32.xlu0 %v5485, 84
    %v6110 = vpop.permute.xlu0 %6109
    %6111 = vrot.lane.b32.xlu0 %v5488, 84
    %v6112 = vpop.permute.xlu0 %6111
    %v6116 = vsel %vm553, %v6108, 0
    %6118 = vmatprep.subr.mxu0 0.0
    %6119 = vmatpush1.msra.mxu0 %v6110
    %6120 = vmatprep.subr.mxu0 0.0
    %6121 = vmatpush1.msra.mxu0 %v6112
    %6122 = vmatprep.subr.mxu0 0.0
    %6123 = vmatpush1.msra.mxu0 0.0
    %6124 = vmatprep.subr.mxu0 0.0
    %6125 = vmatpush1.msra.mxu0 0.0
    %6126 = vmatprep.subr.mxu0 0.0
    %6127 = vmatpush1.msra.mxu0 0.0
    %6128 = vmatprep.subr.mxu0 0.0
    %6129 = vmatpush1.msra.mxu0 0.0
    %6130 = vmatprep.subr.mxu0 0.0
    %6131 = vmatpush1.msra.mxu0 0.0
    %6132 = vmatprep.subr.mxu0 0.0
    %6133 = vmatpush1.msra.mxu0 0.0
    %6134 = vmatprep.subr.mxu0 0.0
    %6135 = vmatpush1.msra.mxu0 0.0
    %6136 = vmatprep.subr.mxu0 0.0
    %6137 = vmatpush1.msra.mxu0 0.0
    %6138 = vmatprep.subr.mxu0 0.0
    %6139 = vmatpush1.msra.mxu0 0.0
    %6140 = vmatprep.subr.mxu0 0.0
    %6141 = vmatpush1.msra.mxu0 0.0
    %6142 = vmatprep.subr.mxu0 0.0
    %6143 = vmatpush1.msra.mxu0 0.0
    %6144 = vmatprep.subr.mxu0 0.0
    %6145 = vmatpush1.msra.mxu0 0.0
    %6146 = vmatprep.subr.mxu0 0.0
    %6147 = vmatpush1.msra.mxu0 0.0
    %6148 = vmatprep.subr.mxu0 0.0
    %6149 = vmatpush1.msra.mxu0 0.0
    %6150 = vmatprep.subr.mxu0 0.0
    %6151 = vmatpush1.msra.mxu0 0.0
    %6152 = vmatprep.subr.mxu0 0.0
    %6153 = vmatpush1.msra.mxu0 0.0
    %6154 = vmatprep.subr.mxu0 0.0
    %6155 = vmatpush1.msra.mxu0 0.0
    %6156 = vmatprep.subr.mxu0 0.0
    %6157 = vmatpush1.msra.mxu0 0.0
    %6158 = vmatprep.subr.mxu0 0.0
    %6159 = vmatpush1.msra.mxu0 0.0
    %6160 = vmatprep.subr.mxu0 0.0
    %6161 = vmatpush1.msra.mxu0 0.0
    %6162 = vmatprep.subr.mxu0 0.0
    %6163 = vmatpush1.msra.mxu0 0.0
    %6164 = vmatprep.subr.mxu0 0.0
    %6165 = vmatpush1.msra.mxu0 0.0
    %6166 = vmatprep.subr.mxu0 0.0
    %6167 = vmatpush1.msra.mxu0 0.0
    %6168 = vmatprep.subr.mxu0 0.0
    %6169 = vmatpush1.msra.mxu0 0.0
    %6170 = vmatprep.subr.mxu0 0.0
    %6171 = vmatpush1.msra.mxu0 0.0
    %6172 = vmatprep.subr.mxu0 0.0
    %6173 = vmatpush1.msra.mxu0 0.0
    %6174 = vmatprep.subr.mxu0 0.0
    %6175 = vmatpush1.msra.mxu0 0.0
    %6176 = vmatprep.subr.mxu0 0.0
    %6177 = vmatpush1.msra.mxu0 0.0
    %6178 = vmatprep.subr.mxu0 0.0
    %6179 = vmatpush1.msra.mxu0 0.0
    %6180 = vmatprep.subr.mxu0 0.0
    %6181 = vmatpush1.msra.mxu0 0.0
    %6182 = vmatprep.mubr.f32.mxu0 0.0
    %6183 = vmatmul.mubr.f32.gmra.mrb[0].mxu0 %v6116
    %v6184 = vpop.f32.mrb[0].mxu0
    %v6185 = vadd.f32 0.0, %v6184
    %v6186 = vpop.f32.mrb[0].mxu0
    %6187 = vdwg.mxu0
    %v6188 = vpack.c.bf16 %v6185, %v6185
    %v6190 = vsel %vm506, %v6188, 0
    %6192 = vmatprep.subr.bf16.mxu0 0
    %6193 = vmatpush1.bf16.msra.mxu0 %v1226
    %6194 = vmatprep.subr.bf16.mxu0 0
    %6195 = vmatpush1.bf16.msra.mxu0 0
    %6196 = vmatprep.subr.bf16.mxu0 0
    %6197 = vmatpush1.bf16.msra.mxu0 0
    %6198 = vmatprep.subr.bf16.mxu0 0
    %6199 = vmatpush1.bf16.msra.mxu0 0
    %6200 = vmatprep.subr.bf16.mxu0 0
    %6201 = vmatpush1.bf16.msra.mxu0 0
    %6202 = vmatprep.subr.bf16.mxu0 0
    %6203 = vmatpush1.bf16.msra.mxu0 0
    %6204 = vmatprep.subr.bf16.mxu0 0
    %6205 = vmatpush1.bf16.msra.mxu0 0
    %6206 = vmatprep.subr.bf16.mxu0 0
    %6207 = vmatpush1.bf16.msra.mxu0 0
    %6208 = vmatprep.subr.bf16.mxu0 0
    %6209 = vmatpush1.bf16.msra.mxu0 0
    %6210 = vmatprep.subr.bf16.mxu0 0
    %6211 = vmatpush1.bf16.msra.mxu0 0
    %6212 = vmatprep.subr.bf16.mxu0 0
    %6213 = vmatpush1.bf16.msra.mxu0 0
    %6214 = vmatprep.subr.bf16.mxu0 0
    %6215 = vmatpush1.bf16.msra.mxu0 0
    %6216 = vmatprep.subr.bf16.mxu0 0
    %6217 = vmatpush1.bf16.msra.mxu0 0
    %6218 = vmatprep.subr.bf16.mxu0 0
    %6219 = vmatpush1.bf16.msra.mxu0 0
    %6220 = vmatprep.subr.bf16.mxu0 0
    %6221 = vmatpush1.bf16.msra.mxu0 0
    %6222 = vmatprep.subr.bf16.mxu0 0
    %6223 = vmatpush1.bf16.msra.mxu0 0
    %6224 = vmatprep.mubr.bf16.mxu0 0
    %6225 = vmatmul.mubr.bf16.gmra.mrb[0].mxu0 %v6190
    %v6226 = vpop.f32.mrb[0].mxu0
    %v6227 = vadd.f32 0.0, %v6226
    %v6228 = vpop.f32.mrb[0].mxu0
    %v6229 = vpop.f32.mrb[0].mxu0
    %v6230 = vpop.f32.mrb[0].mxu0
    %6231 = vdwg.mxu0
    %v6232 = vadd.f32 %v6047, %v6227
    %6233 = vrot.lane.b32.xlu0 %v5491, 112
    %v6234 = vpop.permute.xlu0 %6233
    %6235 = vrot.lane.b32.xlu0 %v5492, 112
    %v6236 = vpop.permute.xlu0 %6235
    %v6238 = vsel %vm506, %v6234, 0
    %v6241 = vsel %vm506, %v6236, 0
    %6243 = vmatprep.subr.bf16.mxu0 0
    %6244 = vmatpush1.bf16.xpose.msra.mxu0 %v6241
    %6245 = vmatprep.subr.bf16.mxu0 0
    %6246 = vmatpush1.bf16.xpose.msra.mxu0 0
    %6247 = vmatprep.subr.bf16.mxu0 0
    %6248 = vmatpush1.bf16.xpose.msra.mxu0 0
    %6249 = vmatprep.subr.bf16.mxu0 0
    %6250 = vmatpush1.bf16.xpose.msra.mxu0 0
    %6251 = vmatprep.subr.bf16.mxu0 0
    %6252 = vmatpush1.bf16.xpose.msra.mxu0 0
    %6253 = vmatprep.subr.bf16.mxu0 0
    %6254 = vmatpush1.bf16.xpose.msra.mxu0 0
    %6255 = vmatprep.subr.bf16.mxu0 0
    %6256 = vmatpush1.bf16.xpose.msra.mxu0 0
    %6257 = vmatprep.subr.bf16.mxu0 0
    %6258 = vmatpush1.bf16.xpose.msra.mxu0 0
    %6259 = vmatprep.subr.bf16.mxu0 0
    %6260 = vmatpush1.bf16.xpose.msra.mxu0 0
    %6261 = vmatprep.subr.bf16.mxu0 0
    %6262 = vmatpush1.bf16.xpose.msra.mxu0 0
    %6263 = vmatprep.subr.bf16.mxu0 0
    %6264 = vmatpush1.bf16.xpose.msra.mxu0 0
    %6265 = vmatprep.subr.bf16.mxu0 0
    %6266 = vmatpush1.bf16.xpose.msra.mxu0 0
    %6267 = vmatprep.subr.bf16.mxu0 0
    %6268 = vmatpush1.bf16.xpose.msra.mxu0 0
    %6269 = vmatprep.subr.bf16.mxu0 0
    %6270 = vmatpush1.bf16.xpose.msra.mxu0 0
    %6271 = vmatprep.subr.bf16.mxu0 0
    %6272 = vmatpush1.bf16.xpose.msra.mxu0 0
    %6273 = vmatprep.subr.bf16.mxu0 0
    %6274 = vmatpush1.bf16.xpose.msra.mxu0 0
    %6275 = vmatprep.mubr.bf16.mxu0 0
    %6276 = vmatmul.mubr.bf16.gmra.mrb[0].mxu0 %v6238
    %v6277 = vpop.f32.mrb[0].mxu0
    %v6278 = vadd.f32 0.0, %v6277
    %v6279 = vpop.f32.mrb[0].mxu0
    %v6280 = vpop.f32.mrb[0].mxu0
    %v6281 = vpop.f32.mrb[0].mxu0
    %6282 = vdwg.mxu0
    %v6283 = vsel %vm553, %v6278, -inf
    %6284 = vmax.xlane.f32.xlu0 %v6283
    %v6285 = vpop.xlane.xlu0 %6284
    %v6286 = vsub.f32 %v6278, %v6285
    %v6287 = vmul.f32 %v6286, 1.442695
    %v6288 = vpow.pop %v6287
    %v6289 = vsel %vm553, %v6288, 0.0
    %6290 = vadd.xlane.f32.xlu0 %v6289
    %v6291 = vpop.xlane.xlu0 %6290
    %v6292 = vrcp.pop %v6291
    %v6293 = vmul.f32 %v6288, %v6292
    %6294 = vrot.lane.b32.xlu0 %v5485, 80
    %v6295 = vpop.permute.xlu0 %6294
    %6296 = vrot.lane.b32.xlu0 %v5488, 80
    %v6297 = vpop.permute.xlu0 %6296
    %v6301 = vsel %vm553, %v6293, 0
    %6303 = vmatprep.subr.mxu0 0.0
    %6304 = vmatpush1.msra.mxu0 %v6295
    %6305 = vmatprep.subr.mxu0 0.0
    %6306 = vmatpush1.msra.mxu0 %v6297
    %6307 = vmatprep.subr.mxu0 0.0
    %6308 = vmatpush1.msra.mxu0 0.0
    %6309 = vmatprep.subr.mxu0 0.0
    %6310 = vmatpush1.msra.mxu0 0.0
    %6311 = vmatprep.subr.mxu0 0.0
    %6312 = vmatpush1.msra.mxu0 0.0
    %6313 = vmatprep.subr.mxu0 0.0
    %6314 = vmatpush1.msra.mxu0 0.0
    %6315 = vmatprep.subr.mxu0 0.0
    %6316 = vmatpush1.msra.mxu0 0.0
    %6317 = vmatprep.subr.mxu0 0.0
    %6318 = vmatpush1.msra.mxu0 0.0
    %6319 = vmatprep.subr.mxu0 0.0
    %6320 = vmatpush1.msra.mxu0 0.0
    %6321 = vmatprep.subr.mxu0 0.0
    %6322 = vmatpush1.msra.mxu0 0.0
    %6323 = vmatprep.subr.mxu0 0.0
    %6324 = vmatpush1.msra.mxu0 0.0
    %6325 = vmatprep.subr.mxu0 0.0
    %6326 = vmatpush1.msra.mxu0 0.0
    %6327 = vmatprep.subr.mxu0 0.0
    %6328 = vmatpush1.msra.mxu0 0.0
    %6329 = vmatprep.subr.mxu0 0.0
    %6330 = vmatpush1.msra.mxu0 0.0
    %6331 = vmatprep.subr.mxu0 0.0
    %6332 = vmatpush1.msra.mxu0 0.0
    %6333 = vmatprep.subr.mxu0 0.0
    %6334 = vmatpush1.msra.mxu0 0.0
    %6335 = vmatprep.subr.mxu0 0.0
    %6336 = vmatpush1.msra.mxu0 0.0
    %6337 = vmatprep.subr.mxu0 0.0
    %6338 = vmatpush1.msra.mxu0 0.0
    %6339 = vmatprep.subr.mxu0 0.0
    %6340 = vmatpush1.msra.mxu0 0.0
    %6341 = vmatprep.subr.mxu0 0.0
    %6342 = vmatpush1.msra.mxu0 0.0
    %6343 = vmatprep.subr.mxu0 0.0
    %6344 = vmatpush1.msra.mxu0 0.0
    %6345 = vmatprep.subr.mxu0 0.0
    %6346 = vmatpush1.msra.mxu0 0.0
    %6347 = vmatprep.subr.mxu0 0.0
    %6348 = vmatpush1.msra.mxu0 0.0
    %6349 = vmatprep.subr.mxu0 0.0
    %6350 = vmatpush1.msra.mxu0 0.0
    %6351 = vmatprep.subr.mxu0 0.0
    %6352 = vmatpush1.msra.mxu0 0.0
    %6353 = vmatprep.subr.mxu0 0.0
    %6354 = vmatpush1.msra.mxu0 0.0
    %6355 = vmatprep.subr.mxu0 0.0
    %6356 = vmatpush1.msra.mxu0 0.0
    %6357 = vmatprep.subr.mxu0 0.0
    %6358 = vmatpush1.msra.mxu0 0.0
    %6359 = vmatprep.subr.mxu0 0.0
    %6360 = vmatpush1.msra.mxu0 0.0
    %6361 = vmatprep.subr.mxu0 0.0
    %6362 = vmatpush1.msra.mxu0 0.0
    %6363 = vmatprep.subr.mxu0 0.0
    %6364 = vmatpush1.msra.mxu0 0.0
    %6365 = vmatprep.subr.mxu0 0.0
    %6366 = vmatpush1.msra.mxu0 0.0
    %6367 = vmatprep.mubr.f32.mxu0 0.0
    %6368 = vmatmul.mubr.f32.gmra.mrb[0].mxu0 %v6301
    %v6369 = vpop.f32.mrb[0].mxu0
    %v6370 = vadd.f32 0.0, %v6369
    %v6371 = vpop.f32.mrb[0].mxu0
    %6372 = vdwg.mxu0
    %v6373 = vpack.c.bf16 %v6370, %v6370
    %v6375 = vsel %vm506, %v6373, 0
    %6377 = vmatprep.subr.bf16.mxu0 0
    %6378 = vmatpush1.bf16.msra.mxu0 %v1414
    %6379 = vmatprep.subr.bf16.mxu0 0
    %6380 = vmatpush1.bf16.msra.mxu0 0
    %6381 = vmatprep.subr.bf16.mxu0 0
    %6382 = vmatpush1.bf16.msra.mxu0 0
    %6383 = vmatprep.subr.bf16.mxu0 0
    %6384 = vmatpush1.bf16.msra.mxu0 0
    %6385 = vmatprep.subr.bf16.mxu0 0
    %6386 = vmatpush1.bf16.msra.mxu0 0
    %6387 = vmatprep.subr.bf16.mxu0 0
    %6388 = vmatpush1.bf16.msra.mxu0 0
    %6389 = vmatprep.subr.bf16.mxu0 0
    %6390 = vmatpush1.bf16.msra.mxu0 0
    %6391 = vmatprep.subr.bf16.mxu0 0
    %6392 = vmatpush1.bf16.msra.mxu0 0
    %6393 = vmatprep.subr.bf16.mxu0 0
    %6394 = vmatpush1.bf16.msra.mxu0 0
    %6395 = vmatprep.subr.bf16.mxu0 0
    %6396 = vmatpush1.bf16.msra.mxu0 0
    %6397 = vmatprep.subr.bf16.mxu0 0
    %6398 = vmatpush1.bf16.msra.mxu0 0
    %6399 = vmatprep.subr.bf16.mxu0 0
    %6400 = vmatpush1.bf16.msra.mxu0 0
    %6401 = vmatprep.subr.bf16.mxu0 0
    %6402 = vmatpush1.bf16.msra.mxu0 0
    %6403 = vmatprep.subr.bf16.mxu0 0
    %6404 = vmatpush1.bf16.msra.mxu0 0
    %6405 = vmatprep.subr.bf16.mxu0 0
    %6406 = vmatpush1.bf16.msra.mxu0 0
    %6407 = vmatprep.subr.bf16.mxu0 0
    %6408 = vmatpush1.bf16.msra.mxu0 0
    %6409 = vmatprep.mubr.bf16.mxu0 0
    %6410 = vmatmul.mubr.bf16.gmra.mrb[0].mxu0 %v6375
    %v6411 = vpop.f32.mrb[0].mxu0
    %v6412 = vadd.f32 0.0, %v6411
    %v6413 = vpop.f32.mrb[0].mxu0
    %v6414 = vpop.f32.mrb[0].mxu0
    %v6415 = vpop.f32.mrb[0].mxu0
    %6416 = vdwg.mxu0
    %v6417 = vadd.f32 %v6232, %v6412
    %6418 = vrot.lane.b32.xlu0 %v5491, 108
    %v6419 = vpop.permute.xlu0 %6418
    %6420 = vrot.lane.b32.xlu0 %v5492, 108
    %v6421 = vpop.permute.xlu0 %6420
    %v6423 = vsel %vm506, %v6419, 0
    %v6426 = vsel %vm506, %v6421, 0
    %6428 = vmatprep.subr.bf16.mxu0 0
    %6429 = vmatpush1.bf16.xpose.msra.mxu0 %v6426
    %6430 = vmatprep.subr.bf16.mxu0 0
    %6431 = vmatpush1.bf16.xpose.msra.mxu0 0
    %6432 = vmatprep.subr.bf16.mxu0 0
    %6433 = vmatpush1.bf16.xpose.msra.mxu0 0
    %6434 = vmatprep.subr.bf16.mxu0 0
    %6435 = vmatpush1.bf16.xpose.msra.mxu0 0
    %6436 = vmatprep.subr.bf16.mxu0 0
    %6437 = vmatpush1.bf16.xpose.msra.mxu0 0
    %6438 = vmatprep.subr.bf16.mxu0 0
    %6439 = vmatpush1.bf16.xpose.msra.mxu0 0
    %6440 = vmatprep.subr.bf16.mxu0 0
    %6441 = vmatpush1.bf16.xpose.msra.mxu0 0
    %6442 = vmatprep.subr.bf16.mxu0 0
    %6443 = vmatpush1.bf16.xpose.msra.mxu0 0
    %6444 = vmatprep.subr.bf16.mxu0 0
    %6445 = vmatpush1.bf16.xpose.msra.mxu0 0
    %6446 = vmatprep.subr.bf16.mxu0 0
    %6447 = vmatpush1.bf16.xpose.msra.mxu0 0
    %6448 = vmatprep.subr.bf16.mxu0 0
    %6449 = vmatpush1.bf16.xpose.msra.mxu0 0
    %6450 = vmatprep.subr.bf16.mxu0 0
    %6451 = vmatpush1.bf16.xpose.msra.mxu0 0
    %6452 = vmatprep.subr.bf16.mxu0 0
    %6453 = vmatpush1.bf16.xpose.msra.mxu0 0
    %6454 = vmatprep.subr.bf16.mxu0 0
    %6455 = vmatpush1.bf16.xpose.msra.mxu0 0
    %6456 = vmatprep.subr.bf16.mxu0 0
    %6457 = vmatpush1.bf16.xpose.msra.mxu0 0
    %6458 = vmatprep.subr.bf16.mxu0 0
    %6459 = vmatpush1.bf16.xpose.msra.mxu0 0
    %6460 = vmatprep.mubr.bf16.mxu0 0
    %6461 = vmatmul.mubr.bf16.gmra.mrb[0].mxu0 %v6423
    %v6462 = vpop.f32.mrb[0].mxu0
    %v6463 = vadd.f32 0.0, %v6462
    %v6464 = vpop.f32.mrb[0].mxu0
    %v6465 = vpop.f32.mrb[0].mxu0
    %v6466 = vpop.f32.mrb[0].mxu0
    %6467 = vdwg.mxu0
    %v6468 = vsel %vm553, %v6463, -inf
    %6469 = vmax.xlane.f32.xlu0 %v6468
    %v6470 = vpop.xlane.xlu0 %6469
    %v6471 = vsub.f32 %v6463, %v6470
    %v6472 = vmul.f32 %v6471, 1.442695
    %v6473 = vpow.pop %v6472
    %v6474 = vsel %vm553, %v6473, 0.0
    %6475 = vadd.xlane.f32.xlu0 %v6474
    %v6476 = vpop.xlane.xlu0 %6475
    %v6477 = vrcp.pop %v6476
    %v6478 = vmul.f32 %v6473, %v6477
    %6479 = vrot.lane.b32.xlu0 %v5485, 76
    %v6480 = vpop.permute.xlu0 %6479
    %6481 = vrot.lane.b32.xlu0 %v5488, 76
    %v6482 = vpop.permute.xlu0 %6481
    %v6486 = vsel %vm553, %v6478, 0
    %6488 = vmatprep.subr.mxu0 0.0
    %6489 = vmatpush1.msra.mxu0 %v6480
    %6490 = vmatprep.subr.mxu0 0.0
    %6491 = vmatpush1.msra.mxu0 %v6482
    %6492 = vmatprep.subr.mxu0 0.0
    %6493 = vmatpush1.msra.mxu0 0.0
    %6494 = vmatprep.subr.mxu0 0.0
    %6495 = vmatpush1.msra.mxu0 0.0
    %6496 = vmatprep.subr.mxu0 0.0
    %6497 = vmatpush1.msra.mxu0 0.0
    %6498 = vmatprep.subr.mxu0 0.0
    %6499 = vmatpush1.msra.mxu0 0.0
    %6500 = vmatprep.subr.mxu0 0.0
    %6501 = vmatpush1.msra.mxu0 0.0
    %6502 = vmatprep.subr.mxu0 0.0
    %6503 = vmatpush1.msra.mxu0 0.0
    %6504 = vmatprep.subr.mxu0 0.0
    %6505 = vmatpush1.msra.mxu0 0.0
    %6506 = vmatprep.subr.mxu0 0.0
    %6507 = vmatpush1.msra.mxu0 0.0
    %6508 = vmatprep.subr.mxu0 0.0
    %6509 = vmatpush1.msra.mxu0 0.0
    %6510 = vmatprep.subr.mxu0 0.0
    %6511 = vmatpush1.msra.mxu0 0.0
    %6512 = vmatprep.subr.mxu0 0.0
    %6513 = vmatpush1.msra.mxu0 0.0
    %6514 = vmatprep.subr.mxu0 0.0
    %6515 = vmatpush1.msra.mxu0 0.0
    %6516 = vmatprep.subr.mxu0 0.0
    %6517 = vmatpush1.msra.mxu0 0.0
    %6518 = vmatprep.subr.mxu0 0.0
    %6519 = vmatpush1.msra.mxu0 0.0
    %6520 = vmatprep.subr.mxu0 0.0
    %6521 = vmatpush1.msra.mxu0 0.0
    %6522 = vmatprep.subr.mxu0 0.0
    %6523 = vmatpush1.msra.mxu0 0.0
    %6524 = vmatprep.subr.mxu0 0.0
    %6525 = vmatpush1.msra.mxu0 0.0
    %6526 = vmatprep.subr.mxu0 0.0
    %6527 = vmatpush1.msra.mxu0 0.0
    %6528 = vmatprep.subr.mxu0 0.0
    %6529 = vmatpush1.msra.mxu0 0.0
    %6530 = vmatprep.subr.mxu0 0.0
    %6531 = vmatpush1.msra.mxu0 0.0
    %6532 = vmatprep.subr.mxu0 0.0
    %6533 = vmatpush1.msra.mxu0 0.0
    %6534 = vmatprep.subr.mxu0 0.0
    %6535 = vmatpush1.msra.mxu0 0.0
    %6536 = vmatprep.subr.mxu0 0.0
    %6537 = vmatpush1.msra.mxu0 0.0
    %6538 = vmatprep.subr.mxu0 0.0
    %6539 = vmatpush1.msra.mxu0 0.0
    %6540 = vmatprep.subr.mxu0 0.0
    %6541 = vmatpush1.msra.mxu0 0.0
    %6542 = vmatprep.subr.mxu0 0.0
    %6543 = vmatpush1.msra.mxu0 0.0
    %6544 = vmatprep.subr.mxu0 0.0
    %6545 = vmatpush1.msra.mxu0 0.0
    %6546 = vmatprep.subr.mxu0 0.0
    %6547 = vmatpush1.msra.mxu0 0.0
    %6548 = vmatprep.subr.mxu0 0.0
    %6549 = vmatpush1.msra.mxu0 0.0
    %6550 = vmatprep.subr.mxu0 0.0
    %6551 = vmatpush1.msra.mxu0 0.0
    %6552 = vmatprep.mubr.f32.mxu0 0.0
    %6553 = vmatmul.mubr.f32.gmra.mrb[0].mxu0 %v6486
    %v6554 = vpop.f32.mrb[0].mxu0
    %v6555 = vadd.f32 0.0, %v6554
    %v6556 = vpop.f32.mrb[0].mxu0
    %6557 = vdwg.mxu0
    %v6558 = vpack.c.bf16 %v6555, %v6555
    %v6560 = vsel %vm506, %v6558, 0
    %6562 = vmatprep.subr.bf16.mxu0 0
    %6563 = vmatpush1.bf16.msra.mxu0 %v1606
    %6564 = vmatprep.subr.bf16.mxu0 0
    %6565 = vmatpush1.bf16.msra.mxu0 0
    %6566 = vmatprep.subr.bf16.mxu0 0
    %6567 = vmatpush1.bf16.msra.mxu0 0
    %6568 = vmatprep.subr.bf16.mxu0 0
    %6569 = vmatpush1.bf16.msra.mxu0 0
    %6570 = vmatprep.subr.bf16.mxu0 0
    %6571 = vmatpush1.bf16.msra.mxu0 0
    %6572 = vmatprep.subr.bf16.mxu0 0
    %6573 = vmatpush1.bf16.msra.mxu0 0
    %6574 = vmatprep.subr.bf16.mxu0 0
    %6575 = vmatpush1.bf16.msra.mxu0 0
    %6576 = vmatprep.subr.bf16.mxu0 0
    %6577 = vmatpush1.bf16.msra.mxu0 0
    %6578 = vmatprep.subr.bf16.mxu0 0
    %6579 = vmatpush1.bf16.msra.mxu0 0
    %6580 = vmatprep.subr.bf16.mxu0 0
    %6581 = vmatpush1.bf16.msra.mxu0 0
    %6582 = vmatprep.subr.bf16.mxu0 0
    %6583 = vmatpush1.bf16.msra.mxu0 0
    %6584 = vmatprep.subr.bf16.mxu0 0
    %6585 = vmatpush1.bf16.msra.mxu0 0
    %6586 = vmatprep.subr.bf16.mxu0 0
    %6587 = vmatpush1.bf16.msra.mxu0 0
    %6588 = vmatprep.subr.bf16.mxu0 0
    %6589 = vmatpush1.bf16.msra.mxu0 0
    %6590 = vmatprep.subr.bf16.mxu0 0
    %6591 = vmatpush1.bf16.msra.mxu0 0
    %6592 = vmatprep.subr.bf16.mxu0 0
    %6593 = vmatpush1.bf16.msra.mxu0 0
    %6594 = vmatprep.mubr.bf16.mxu0 0
    %6595 = vmatmul.mubr.bf16.gmra.mrb[0].mxu0 %v6560
    %v6596 = vpop.f32.mrb[0].mxu0
    %v6597 = vadd.f32 0.0, %v6596
    %v6598 = vpop.f32.mrb[0].mxu0
    %v6599 = vpop.f32.mrb[0].mxu0
    %v6600 = vpop.f32.mrb[0].mxu0
    %6601 = vdwg.mxu0
    %v6602 = vadd.f32 %v6417, %v6597
    %6603 = vrot.lane.b32.xlu0 %v5491, 104
    %v6604 = vpop.permute.xlu0 %6603
    %6605 = vrot.lane.b32.xlu0 %v5492, 104
    %v6606 = vpop.permute.xlu0 %6605
    %v6608 = vsel %vm506, %v6604, 0
    %v6611 = vsel %vm506, %v6606, 0
    %6613 = vmatprep.subr.bf16.mxu0 0
    %6614 = vmatpush1.bf16.xpose.msra.mxu0 %v6611
    %6615 = vmatprep.subr.bf16.mxu0 0
    %6616 = vmatpush1.bf16.xpose.msra.mxu0 0
    %6617 = vmatprep.subr.bf16.mxu0 0
    %6618 = vmatpush1.bf16.xpose.msra.mxu0 0
    %6619 = vmatprep.subr.bf16.mxu0 0
    %6620 = vmatpush1.bf16.xpose.msra.mxu0 0
    %6621 = vmatprep.subr.bf16.mxu0 0
    %6622 = vmatpush1.bf16.xpose.msra.mxu0 0
    %6623 = vmatprep.subr.bf16.mxu0 0
    %6624 = vmatpush1.bf16.xpose.msra.mxu0 0
    %6625 = vmatprep.subr.bf16.mxu0 0
    %6626 = vmatpush1.bf16.xpose.msra.mxu0 0
    %6627 = vmatprep.subr.bf16.mxu0 0
    %6628 = vmatpush1.bf16.xpose.msra.mxu0 0
    %6629 = vmatprep.subr.bf16.mxu0 0
    %6630 = vmatpush1.bf16.xpose.msra.mxu0 0
    %6631 = vmatprep.subr.bf16.mxu0 0
    %6632 = vmatpush1.bf16.xpose.msra.mxu0 0
    %6633 = vmatprep.subr.bf16.mxu0 0
    %6634 = vmatpush1.bf16.xpose.msra.mxu0 0
    %6635 = vmatprep.subr.bf16.mxu0 0
    %6636 = vmatpush1.bf16.xpose.msra.mxu0 0
    %6637 = vmatprep.subr.bf16.mxu0 0
    %6638 = vmatpush1.bf16.xpose.msra.mxu0 0
    %6639 = vmatprep.subr.bf16.mxu0 0
    %6640 = vmatpush1.bf16.xpose.msra.mxu0 0
    %6641 = vmatprep.subr.bf16.mxu0 0
    %6642 = vmatpush1.bf16.xpose.msra.mxu0 0
    %6643 = vmatprep.subr.bf16.mxu0 0
    %6644 = vmatpush1.bf16.xpose.msra.mxu0 0
    %6645 = vmatprep.mubr.bf16.mxu0 0
    %6646 = vmatmul.mubr.bf16.gmra.mrb[0].mxu0 %v6608
    %v6647 = vpop.f32.mrb[0].mxu0
    %v6648 = vadd.f32 0.0, %v6647
    %v6649 = vpop.f32.mrb[0].mxu0
    %v6650 = vpop.f32.mrb[0].mxu0
    %v6651 = vpop.f32.mrb[0].mxu0
    %6652 = vdwg.mxu0
    %v6653 = vsel %vm553, %v6648, -inf
    %6654 = vmax.xlane.f32.xlu0 %v6653
    %v6655 = vpop.xlane.xlu0 %6654
    %v6656 = vsub.f32 %v6648, %v6655
    %v6657 = vmul.f32 %v6656, 1.442695
    %v6658 = vpow.pop %v6657
    %v6659 = vsel %vm553, %v6658, 0.0
    %6660 = vadd.xlane.f32.xlu0 %v6659
    %v6661 = vpop.xlane.xlu0 %6660
    %v6662 = vrcp.pop %v6661
    %v6663 = vmul.f32 %v6658, %v6662
    %6664 = vrot.lane.b32.xlu0 %v5485, 72
    %v6665 = vpop.permute.xlu0 %6664
    %6666 = vrot.lane.b32.xlu0 %v5488, 72
    %v6667 = vpop.permute.xlu0 %6666
    %v6671 = vsel %vm553, %v6663, 0
    %6673 = vmatprep.subr.mxu0 0.0
    %6674 = vmatpush1.msra.mxu0 %v6665
    %6675 = vmatprep.subr.mxu0 0.0
    %6676 = vmatpush1.msra.mxu0 %v6667
    %6677 = vmatprep.subr.mxu0 0.0
    %6678 = vmatpush1.msra.mxu0 0.0
    %6679 = vmatprep.subr.mxu0 0.0
    %6680 = vmatpush1.msra.mxu0 0.0
    %6681 = vmatprep.subr.mxu0 0.0
    %6682 = vmatpush1.msra.mxu0 0.0
    %6683 = vmatprep.subr.mxu0 0.0
    %6684 = vmatpush1.msra.mxu0 0.0
    %6685 = vmatprep.subr.mxu0 0.0
    %6686 = vmatpush1.msra.mxu0 0.0
    %6687 = vmatprep.subr.mxu0 0.0
    %6688 = vmatpush1.msra.mxu0 0.0
    %6689 = vmatprep.subr.mxu0 0.0
    %6690 = vmatpush1.msra.mxu0 0.0
    %6691 = vmatprep.subr.mxu0 0.0
    %6692 = vmatpush1.msra.mxu0 0.0
    %6693 = vmatprep.subr.mxu0 0.0
    %6694 = vmatpush1.msra.mxu0 0.0
    %6695 = vmatprep.subr.mxu0 0.0
    %6696 = vmatpush1.msra.mxu0 0.0
    %6697 = vmatprep.subr.mxu0 0.0
    %6698 = vmatpush1.msra.mxu0 0.0
    %6699 = vmatprep.subr.mxu0 0.0
    %6700 = vmatpush1.msra.mxu0 0.0
    %6701 = vmatprep.subr.mxu0 0.0
    %6702 = vmatpush1.msra.mxu0 0.0
    %6703 = vmatprep.subr.mxu0 0.0
    %6704 = vmatpush1.msra.mxu0 0.0
    %6705 = vmatprep.subr.mxu0 0.0
    %6706 = vmatpush1.msra.mxu0 0.0
    %6707 = vmatprep.subr.mxu0 0.0
    %6708 = vmatpush1.msra.mxu0 0.0
    %6709 = vmatprep.subr.mxu0 0.0
    %6710 = vmatpush1.msra.mxu0 0.0
    %6711 = vmatprep.subr.mxu0 0.0
    %6712 = vmatpush1.msra.mxu0 0.0
    %6713 = vmatprep.subr.mxu0 0.0
    %6714 = vmatpush1.msra.mxu0 0.0
    %6715 = vmatprep.subr.mxu0 0.0
    %6716 = vmatpush1.msra.mxu0 0.0
    %6717 = vmatprep.subr.mxu0 0.0
    %6718 = vmatpush1.msra.mxu0 0.0
    %6719 = vmatprep.subr.mxu0 0.0
    %6720 = vmatpush1.msra.mxu0 0.0
    %6721 = vmatprep.subr.mxu0 0.0
    %6722 = vmatpush1.msra.mxu0 0.0
    %6723 = vmatprep.subr.mxu0 0.0
    %6724 = vmatpush1.msra.mxu0 0.0
    %6725 = vmatprep.subr.mxu0 0.0
    %6726 = vmatpush1.msra.mxu0 0.0
    %6727 = vmatprep.subr.mxu0 0.0
    %6728 = vmatpush1.msra.mxu0 0.0
    %6729 = vmatprep.subr.mxu0 0.0
    %6730 = vmatpush1.msra.mxu0 0.0
    %6731 = vmatprep.subr.mxu0 0.0
    %6732 = vmatpush1.msra.mxu0 0.0
    %6733 = vmatprep.subr.mxu0 0.0
    %6734 = vmatpush1.msra.mxu0 0.0
    %6735 = vmatprep.subr.mxu0 0.0
    %6736 = vmatpush1.msra.mxu0 0.0
    %6737 = vmatprep.mubr.f32.mxu0 0.0
    %6738 = vmatmul.mubr.f32.gmra.mrb[0].mxu0 %v6671
    %v6739 = vpop.f32.mrb[0].mxu0
    %v6740 = vadd.f32 0.0, %v6739
    %v6741 = vpop.f32.mrb[0].mxu0
    %6742 = vdwg.mxu0
    %v6743 = vpack.c.bf16 %v6740, %v6740
    %v6745 = vsel %vm506, %v6743, 0
    %6747 = vmatprep.subr.bf16.mxu0 0
    %6748 = vmatpush1.bf16.msra.mxu0 %v1794
    %6749 = vmatprep.subr.bf16.mxu0 0
    %6750 = vmatpush1.bf16.msra.mxu0 0
    %6751 = vmatprep.subr.bf16.mxu0 0
    %6752 = vmatpush1.bf16.msra.mxu0 0
    %6753 = vmatprep.subr.bf16.mxu0 0
    %6754 = vmatpush1.bf16.msra.mxu0 0
    %6755 = vmatprep.subr.bf16.mxu0 0
    %6756 = vmatpush1.bf16.msra.mxu0 0
    %6757 = vmatprep.subr.bf16.mxu0 0
    %6758 = vmatpush1.bf16.msra.mxu0 0
    %6759 = vmatprep.subr.bf16.mxu0 0
    %6760 = vmatpush1.bf16.msra.mxu0 0
    %6761 = vmatprep.subr.bf16.mxu0 0
    %6762 = vmatpush1.bf16.msra.mxu0 0
    %6763 = vmatprep.subr.bf16.mxu0 0
    %6764 = vmatpush1.bf16.msra.mxu0 0
    %6765 = vmatprep.subr.bf16.mxu0 0
    %6766 = vmatpush1.bf16.msra.mxu0 0
    %6767 = vmatprep.subr.bf16.mxu0 0
    %6768 = vmatpush1.bf16.msra.mxu0 0
    %6769 = vmatprep.subr.bf16.mxu0 0
    %6770 = vmatpush1.bf16.msra.mxu0 0
    %6771 = vmatprep.subr.bf16.mxu0 0
    %6772 = vmatpush1.bf16.msra.mxu0 0
    %6773 = vmatprep.subr.bf16.mxu0 0
    %6774 = vmatpush1.bf16.msra.mxu0 0
    %6775 = vmatprep.subr.bf16.mxu0 0
    %6776 = vmatpush1.bf16.msra.mxu0 0
    %6777 = vmatprep.subr.bf16.mxu0 0
    %6778 = vmatpush1.bf16.msra.mxu0 0
    %6779 = vmatprep.mubr.bf16.mxu0 0
    %6780 = vmatmul.mubr.bf16.gmra.mrb[0].mxu0 %v6745
    %v6781 = vpop.f32.mrb[0].mxu0
    %v6782 = vadd.f32 0.0, %v6781
    %v6783 = vpop.f32.mrb[0].mxu0
    %v6784 = vpop.f32.mrb[0].mxu0
    %v6785 = vpop.f32.mrb[0].mxu0
    %6786 = vdwg.mxu0
    %v6787 = vadd.f32 %v6602, %v6782
    %6788 = vrot.lane.b32.xlu0 %v5491, 100
    %v6789 = vpop.permute.xlu0 %6788
    %6790 = vrot.lane.b32.xlu0 %v5492, 100
    %v6791 = vpop.permute.xlu0 %6790
    %v6793 = vsel %vm506, %v6789, 0
    %v6796 = vsel %vm506, %v6791, 0
    %6798 = vmatprep.subr.bf16.mxu0 0
    %6799 = vmatpush1.bf16.xpose.msra.mxu0 %v6796
    %6800 = vmatprep.subr.bf16.mxu0 0
    %6801 = vmatpush1.bf16.xpose.msra.mxu0 0
    %6802 = vmatprep.subr.bf16.mxu0 0
    %6803 = vmatpush1.bf16.xpose.msra.mxu0 0
    %6804 = vmatprep.subr.bf16.mxu0 0
    %6805 = vmatpush1.bf16.xpose.msra.mxu0 0
    %6806 = vmatprep.subr.bf16.mxu0 0
    %6807 = vmatpush1.bf16.xpose.msra.mxu0 0
    %6808 = vmatprep.subr.bf16.mxu0 0
    %6809 = vmatpush1.bf16.xpose.msra.mxu0 0
    %6810 = vmatprep.subr.bf16.mxu0 0
    %6811 = vmatpush1.bf16.xpose.msra.mxu0 0
    %6812 = vmatprep.subr.bf16.mxu0 0
    %6813 = vmatpush1.bf16.xpose.msra.mxu0 0
    %6814 = vmatprep.subr.bf16.mxu0 0
    %6815 = vmatpush1.bf16.xpose.msra.mxu0 0
    %6816 = vmatprep.subr.bf16.mxu0 0
    %6817 = vmatpush1.bf16.xpose.msra.mxu0 0
    %6818 = vmatprep.subr.bf16.mxu0 0
    %6819 = vmatpush1.bf16.xpose.msra.mxu0 0
    %6820 = vmatprep.subr.bf16.mxu0 0
    %6821 = vmatpush1.bf16.xpose.msra.mxu0 0
    %6822 = vmatprep.subr.bf16.mxu0 0
    %6823 = vmatpush1.bf16.xpose.msra.mxu0 0
    %6824 = vmatprep.subr.bf16.mxu0 0
    %6825 = vmatpush1.bf16.xpose.msra.mxu0 0
    %6826 = vmatprep.subr.bf16.mxu0 0
    %6827 = vmatpush1.bf16.xpose.msra.mxu0 0
    %6828 = vmatprep.subr.bf16.mxu0 0
    %6829 = vmatpush1.bf16.xpose.msra.mxu0 0
    %6830 = vmatprep.mubr.bf16.mxu0 0
    %6831 = vmatmul.mubr.bf16.gmra.mrb[0].mxu0 %v6793
    %v6832 = vpop.f32.mrb[0].mxu0
    %v6833 = vadd.f32 0.0, %v6832
    %v6834 = vpop.f32.mrb[0].mxu0
    %v6835 = vpop.f32.mrb[0].mxu0
    %v6836 = vpop.f32.mrb[0].mxu0
    %6837 = vdwg.mxu0
    %v6838 = vsel %vm553, %v6833, -inf
    %6839 = vmax.xlane.f32.xlu0 %v6838
    %v6840 = vpop.xlane.xlu0 %6839
    %v6841 = vsub.f32 %v6833, %v6840
    %v6842 = vmul.f32 %v6841, 1.442695
    %v6843 = vpow.pop %v6842
    %v6844 = vsel %vm553, %v6843, 0.0
    %6845 = vadd.xlane.f32.xlu0 %v6844
    %v6846 = vpop.xlane.xlu0 %6845
    %v6847 = vrcp.pop %v6846
    %v6848 = vmul.f32 %v6843, %v6847
    %6849 = vrot.lane.b32.xlu0 %v5485, 68
    %v6850 = vpop.permute.xlu0 %6849
    %6851 = vrot.lane.b32.xlu0 %v5488, 68
    %v6852 = vpop.permute.xlu0 %6851
    %v6856 = vsel %vm553, %v6848, 0
    %6858 = vmatprep.subr.mxu0 0.0
    %6859 = vmatpush1.msra.mxu0 %v6850
    %6860 = vmatprep.subr.mxu0 0.0
    %6861 = vmatpush1.msra.mxu0 %v6852
    %6862 = vmatprep.subr.mxu0 0.0
    %6863 = vmatpush1.msra.mxu0 0.0
    %6864 = vmatprep.subr.mxu0 0.0
    %6865 = vmatpush1.msra.mxu0 0.0
    %6866 = vmatprep.subr.mxu0 0.0
    %6867 = vmatpush1.msra.mxu0 0.0
    %6868 = vmatprep.subr.mxu0 0.0
    %6869 = vmatpush1.msra.mxu0 0.0
    %6870 = vmatprep.subr.mxu0 0.0
    %6871 = vmatpush1.msra.mxu0 0.0
    %6872 = vmatprep.subr.mxu0 0.0
    %6873 = vmatpush1.msra.mxu0 0.0
    %6874 = vmatprep.subr.mxu0 0.0
    %6875 = vmatpush1.msra.mxu0 0.0
    %6876 = vmatprep.subr.mxu0 0.0
    %6877 = vmatpush1.msra.mxu0 0.0
    %6878 = vmatprep.subr.mxu0 0.0
    %6879 = vmatpush1.msra.mxu0 0.0
    %6880 = vmatprep.subr.mxu0 0.0
    %6881 = vmatpush1.msra.mxu0 0.0
    %6882 = vmatprep.subr.mxu0 0.0
    %6883 = vmatpush1.msra.mxu0 0.0
    %6884 = vmatprep.subr.mxu0 0.0
    %6885 = vmatpush1.msra.mxu0 0.0
    %6886 = vmatprep.subr.mxu0 0.0
    %6887 = vmatpush1.msra.mxu0 0.0
    %6888 = vmatprep.subr.mxu0 0.0
    %6889 = vmatpush1.msra.mxu0 0.0
    %6890 = vmatprep.subr.mxu0 0.0
    %6891 = vmatpush1.msra.mxu0 0.0
    %6892 = vmatprep.subr.mxu0 0.0
    %6893 = vmatpush1.msra.mxu0 0.0
    %6894 = vmatprep.subr.mxu0 0.0
    %6895 = vmatpush1.msra.mxu0 0.0
    %6896 = vmatprep.subr.mxu0 0.0
    %6897 = vmatpush1.msra.mxu0 0.0
    %6898 = vmatprep.subr.mxu0 0.0
    %6899 = vmatpush1.msra.mxu0 0.0
    %6900 = vmatprep.subr.mxu0 0.0
    %6901 = vmatpush1.msra.mxu0 0.0
    %6902 = vmatprep.subr.mxu0 0.0
    %6903 = vmatpush1.msra.mxu0 0.0
    %6904 = vmatprep.subr.mxu0 0.0
    %6905 = vmatpush1.msra.mxu0 0.0
    %6906 = vmatprep.subr.mxu0 0.0
    %6907 = vmatpush1.msra.mxu0 0.0
    %6908 = vmatprep.subr.mxu0 0.0
    %6909 = vmatpush1.msra.mxu0 0.0
    %6910 = vmatprep.subr.mxu0 0.0
    %6911 = vmatpush1.msra.mxu0 0.0
    %6912 = vmatprep.subr.mxu0 0.0
    %6913 = vmatpush1.msra.mxu0 0.0
    %6914 = vmatprep.subr.mxu0 0.0
    %6915 = vmatpush1.msra.mxu0 0.0
    %6916 = vmatprep.subr.mxu0 0.0
    %6917 = vmatpush1.msra.mxu0 0.0
    %6918 = vmatprep.subr.mxu0 0.0
    %6919 = vmatpush1.msra.mxu0 0.0
    %6920 = vmatprep.subr.mxu0 0.0
    %6921 = vmatpush1.msra.mxu0 0.0
    %6922 = vmatprep.mubr.f32.mxu0 0.0
    %6923 = vmatmul.mubr.f32.gmra.mrb[0].mxu0 %v6856
    %v6924 = vpop.f32.mrb[0].mxu0
    %v6925 = vadd.f32 0.0, %v6924
    %v6926 = vpop.f32.mrb[0].mxu0
    %6927 = vdwg.mxu0
    %v6928 = vpack.c.bf16 %v6925, %v6925
    %v6930 = vsel %vm506, %v6928, 0
    %6932 = vmatprep.subr.bf16.mxu0 0
    %6933 = vmatpush1.bf16.msra.mxu0 %v1986
    %6934 = vmatprep.subr.bf16.mxu0 0
    %6935 = vmatpush1.bf16.msra.mxu0 0
    %6936 = vmatprep.subr.bf16.mxu0 0
    %6937 = vmatpush1.bf16.msra.mxu0 0
    %6938 = vmatprep.subr.bf16.mxu0 0
    %6939 = vmatpush1.bf16.msra.mxu0 0
    %6940 = vmatprep.subr.bf16.mxu0 0
    %6941 = vmatpush1.bf16.msra.mxu0 0
    %6942 = vmatprep.subr.bf16.mxu0 0
    %6943 = vmatpush1.bf16.msra.mxu0 0
    %6944 = vmatprep.subr.bf16.mxu0 0
    %6945 = vmatpush1.bf16.msra.mxu0 0
    %6946 = vmatprep.subr.bf16.mxu0 0
    %6947 = vmatpush1.bf16.msra.mxu0 0
    %6948 = vmatprep.subr.bf16.mxu0 0
    %6949 = vmatpush1.bf16.msra.mxu0 0
    %6950 = vmatprep.subr.bf16.mxu0 0
    %6951 = vmatpush1.bf16.msra.mxu0 0
    %6952 = vmatprep.subr.bf16.mxu0 0
    %6953 = vmatpush1.bf16.msra.mxu0 0
    %6954 = vmatprep.subr.bf16.mxu0 0
    %6955 = vmatpush1.bf16.msra.mxu0 0
    %6956 = vmatprep.subr.bf16.mxu0 0
    %6957 = vmatpush1.bf16.msra.mxu0 0
    %6958 = vmatprep.subr.bf16.mxu0 0
    %6959 = vmatpush1.bf16.msra.mxu0 0
    %6960 = vmatprep.subr.bf16.mxu0 0
    %6961 = vmatpush1.bf16.msra.mxu0 0
    %6962 = vmatprep.subr.bf16.mxu0 0
    %6963 = vmatpush1.bf16.msra.mxu0 0
    %6964 = vmatprep.mubr.bf16.mxu0 0
    %6965 = vmatmul.mubr.bf16.gmra.mrb[0].mxu0 %v6930
    %v6966 = vpop.f32.mrb[0].mxu0
    %v6967 = vadd.f32 0.0, %v6966
    %v6968 = vpop.f32.mrb[0].mxu0
    %v6969 = vpop.f32.mrb[0].mxu0
    %v6970 = vpop.f32.mrb[0].mxu0
    %6971 = vdwg.mxu0
    %v6972 = vadd.f32 %v6787, %v6967
    %v6974 = vrot.slane %v6972, 1
    %v6975 = vrot.slane %v6972, 2
    %v6976 = vrot.slane %v6972, 3
    %v6977 = vrot.slane %v6972, 4
    %v6978 = vrot.slane %v6972, 5
    %v6979 = vrot.slane %v6972, 6
    %v6980 = vrot.slane %v6972, 7
    %v6989 = vadd.f32 %v5264, %v6972
    %v6990 = vadd.f32 %v5265, %v6974
    %v6991 = vadd.f32 %v5266, %v6975
    %v6992 = vadd.f32 %v5267, %v6976
    %v6993 = vadd.f32 %v5268, %v6977
    %v6994 = vadd.f32 %v5269, %v6978
    %v6995 = vadd.f32 %v5270, %v6979
    %v6996 = vadd.f32 %v5271, %v6980
    %v7005 = vrot.slane %v6990, 7
    %v7006 = vsel %vm281, %v7005, %v6989
    %v7007 = vrot.slane %v6991, 6
    %v7008 = vsel %vm284, %v7007, %v7006
    %v7009 = vrot.slane %v6992, 5
    %v7010 = vsel %vm287, %v7009, %v7008
    %v7011 = vrot.slane %v6993, 4
    %v7012 = vsel %vm290, %v7011, %v7010
    %v7013 = vrot.slane %v6994, 3
    %v7014 = vsel %vm293, %v7013, %v7012
    %v7015 = vrot.slane %v6995, 2
    %v7016 = vsel %vm296, %v7015, %v7014
    %v7017 = vrot.slane %v6996, 1
    %v7018 = vsel %vm299, %v7017, %v7016
    %v7020 = vsel %vm314, %v7018, 0.0
    %7021 = vadd.xlane.f32.xlu0 %v7020
    %v7022 = vpop.xlane.xlu0 %7021
    %v7023 = vmul.f32 %v7022, %v2079
    %v7025 = vrot.slane %v7023, 1
    %v7026 = vrot.slane %v7023, 2
    %v7027 = vrot.slane %v7023, 3
    %v7028 = vrot.slane %v7023, 4
    %v7029 = vrot.slane %v7023, 5
    %v7030 = vrot.slane %v7023, 6
    %v7031 = vrot.slane %v7023, 7
    %v7040 = vsub.f32 %v6989, %v7023
    %v7041 = vsub.f32 %v6990, %v7025
    %v7042 = vsub.f32 %v6991, %v7026
    %v7043 = vsub.f32 %v6992, %v7027
    %v7044 = vsub.f32 %v6993, %v7028
    %v7045 = vsub.f32 %v6994, %v7029
    %v7046 = vsub.f32 %v6995, %v7030
    %v7047 = vsub.f32 %v6996, %v7031
    %v7048 = vmul.f32 %v7040, %v7040
    %v7049 = vmul.f32 %v7041, %v7041
    %v7050 = vmul.f32 %v7042, %v7042
    %v7051 = vmul.f32 %v7043, %v7043
    %v7052 = vmul.f32 %v7044, %v7044
    %v7053 = vmul.f32 %v7045, %v7045
    %v7054 = vmul.f32 %v7046, %v7046
    %v7055 = vmul.f32 %v7047, %v7047
    %v7064 = vrot.slane %v7049, 7
    %v7065 = vsel %vm281, %v7064, %v7048
    %v7066 = vrot.slane %v7050, 6
    %v7067 = vsel %vm284, %v7066, %v7065
    %v7068 = vrot.slane %v7051, 5
    %v7069 = vsel %vm287, %v7068, %v7067
    %v7070 = vrot.slane %v7052, 4
    %v7071 = vsel %vm290, %v7070, %v7069
    %v7072 = vrot.slane %v7053, 3
    %v7073 = vsel %vm293, %v7072, %v7071
    %v7074 = vrot.slane %v7054, 2
    %v7075 = vsel %vm296, %v7074, %v7073
    %v7076 = vrot.slane %v7055, 1
    %v7077 = vsel %vm299, %v7076, %v7075
    %v7079 = vsel %vm314, %v7077, 0.0
    %7080 = vadd.xlane.f32.xlu0 %v7079
    %v7081 = vpop.xlane.xlu0 %7080
    %v7082 = vmul.f32 %v7081, %v2079
    %v7083 = vadd.f32 %v7082, 1e-05
    %v7084 = vrsqrt.pop %v7083
    %v7086 = vrot.slane %v7084, 1
    %v7087 = vrot.slane %v7084, 2
    %v7088 = vrot.slane %v7084, 3
    %v7089 = vrot.slane %v7084, 4
    %v7090 = vrot.slane %v7084, 5
    %v7091 = vrot.slane %v7084, 6
    %v7092 = vrot.slane %v7084, 7
    %v7101 = vmul.f32 %v7040, %v7084
    %v7102 = vmul.f32 %v7041, %v7086
    %v7103 = vmul.f32 %v7042, %v7087
    %v7104 = vmul.f32 %v7043, %v7088
    %v7105 = vmul.f32 %v7044, %v7089
    %v7106 = vmul.f32 %v7045, %v7090
    %v7107 = vmul.f32 %v7046, %v7091
    %v7108 = vmul.f32 %v7047, %v7092
    %v7109 = vmul.f32 %v7101, %v2170
    %v7110 = vmul.f32 %v7102, %v2170
    %v7111 = vmul.f32 %v7103, %v2170
    %v7112 = vmul.f32 %v7104, %v2170
    %v7113 = vmul.f32 %v7105, %v2170
    %v7114 = vmul.f32 %v7106, %v2170
    %v7115 = vmul.f32 %v7107, %v2170
    %v7116 = vmul.f32 %v7108, %v2170
    %v7117 = vadd.f32 %v7109, %v2184
    %v7118 = vadd.f32 %v7110, %v2184
    %v7119 = vadd.f32 %v7111, %v2184
    %v7120 = vadd.f32 %v7112, %v2184
    %v7121 = vadd.f32 %v7113, %v2184
    %v7122 = vadd.f32 %v7114, %v2184
    %v7123 = vadd.f32 %v7115, %v2184
    %v7124 = vadd.f32 %v7116, %v2184
    %v7125 = vpack.c.bf16 %v7117, %v7117
    %v7126 = vpack.c.bf16 %v7118, %v7118
    %v7127 = vpack.c.bf16 %v7119, %v7119
    %v7128 = vpack.c.bf16 %v7120, %v7120
    %v7129 = vpack.c.bf16 %v7121, %v7121
    %v7130 = vpack.c.bf16 %v7122, %v7122
    %v7131 = vpack.c.bf16 %v7123, %v7123
    %v7132 = vpack.c.bf16 %v7124, %v7124
    %v7141 = vunpack.c.l.b16 %v7125
    %v7142 = vunpack.c.l.b16 %v7126
    %v7143 = vunpack.c.l.b16 %v7127
    %v7144 = vunpack.c.l.b16 %v7128
    %v7145 = vunpack.c.l.b16 %v7129
    %v7146 = vunpack.c.l.b16 %v7130
    %v7147 = vunpack.c.l.b16 %v7131
    %v7148 = vunpack.c.l.b16 %v7132
    %v7149 = vrot.slane %v7142, 7
    %v7150 = vsel %vm281, %v7149, %v7141
    %v7151 = vrot.slane %v7143, 6
    %v7152 = vsel %vm284, %v7151, %v7150
    %v7153 = vrot.slane %v7144, 5
    %v7154 = vsel %vm287, %v7153, %v7152
    %v7155 = vrot.slane %v7145, 4
    %v7156 = vsel %vm290, %v7155, %v7154
    %v7157 = vrot.slane %v7146, 3
    %v7158 = vsel %vm293, %v7157, %v7156
    %v7159 = vrot.slane %v7147, 2
    %v7160 = vsel %vm296, %v7159, %v7158
    %v7161 = vrot.slane %v7148, 1
    %v7162 = vsel %vm299, %v7161, %v7160
    %v7163 = vpack.c.b16 %v7162, %v7162
    %v7165 = vsel %vm314, %v7163, 0
    %7167 = vmatprep.subr.bf16.mxu0 0
    %7168 = vmatpush1.bf16.msra.mxu0 %v2247
    %7169 = vmatprep.subr.bf16.mxu0 0
    %7170 = vmatpush1.bf16.msra.mxu0 %v2248
    %7171 = vmatprep.subr.bf16.mxu0 0
    %7172 = vmatpush1.bf16.msra.mxu0 0
    %7173 = vmatprep.subr.bf16.mxu0 0
    %7174 = vmatpush1.bf16.msra.mxu0 0
    %7175 = vmatprep.subr.bf16.mxu0 0
    %7176 = vmatpush1.bf16.msra.mxu0 0
    %7177 = vmatprep.subr.bf16.mxu0 0
    %7178 = vmatpush1.bf16.msra.mxu0 0
    %7179 = vmatprep.subr.bf16.mxu0 0
    %7180 = vmatpush1.bf16.msra.mxu0 0
    %7181 = vmatprep.subr.bf16.mxu0 0
    %7182 = vmatpush1.bf16.msra.mxu0 0
    %7183 = vmatprep.subr.bf16.mxu0 0
    %7184 = vmatpush1.bf16.msra.mxu0 0
    %7185 = vmatprep.subr.bf16.mxu0 0
    %7186 = vmatpush1.bf16.msra.mxu0 0
    %7187 = vmatprep.subr.bf16.mxu0 0
    %7188 = vmatpush1.bf16.msra.mxu0 0
    %7189 = vmatprep.subr.bf16.mxu0 0
    %7190 = vmatpush1.bf16.msra.mxu0 0
    %7191 = vmatprep.subr.bf16.mxu0 0
    %7192 = vmatpush1.bf16.msra.mxu0 0
    %7193 = vmatprep.subr.bf16.mxu0 0
    %7194 = vmatpush1.bf16.msra.mxu0 0
    %7195 = vmatprep.subr.bf16.mxu0 0
    %7196 = vmatpush1.bf16.msra.mxu0 0
    %7197 = vmatprep.subr.bf16.mxu0 0
    %7198 = vmatpush1.bf16.msra.mxu0 0
    %7199 = vmatprep.mubr.bf16.mxu0 0
    %7200 = vmatmul.mubr.bf16.gmra.mrb[0].mxu0 %v7165
    %v7201 = vpop.f32.mrb[0].mxu0
    %v7202 = vadd.f32 %v2206, %v7201
    %v7203 = vpop.f32.mrb[0].mxu0
    %v7204 = vpop.f32.mrb[0].mxu0
    %v7205 = vpop.f32.mrb[0].mxu0
    %7206 = vdwg.mxu0
    %v7207 = vmax.f32 %v7202, 0.0
    %v7208 = vpack.c.bf16 %v7207, %v7207
    %7209 = vmatprep.subr.bf16.mxu0 0
    %7210 = vmatpush1.bf16.msra.mxu0 %v2334
    %7211 = vmatprep.subr.bf16.mxu0 0
    %7212 = vmatpush1.bf16.msra.mxu0 %v2335
    %7213 = vmatprep.subr.bf16.mxu0 0
    %7214 = vmatpush1.bf16.msra.mxu0 %v2336
    %7215 = vmatprep.subr.bf16.mxu0 0
    %7216 = vmatpush1.bf16.msra.mxu0 %v2337
    %7217 = vmatprep.subr.bf16.mxu0 0
    %7218 = vmatpush1.bf16.msra.mxu0 %v2338
    %7219 = vmatprep.subr.bf16.mxu0 0
    %7220 = vmatpush1.bf16.msra.mxu0 %v2339
    %7221 = vmatprep.subr.bf16.mxu0 0
    %7222 = vmatpush1.bf16.msra.mxu0 %v2340
    %7223 = vmatprep.subr.bf16.mxu0 0
    %7224 = vmatpush1.bf16.msra.mxu0 %v2341
    %7225 = vmatprep.subr.bf16.mxu0 0
    %7226 = vmatpush1.bf16.msra.mxu0 0
    %7227 = vmatprep.subr.bf16.mxu0 0
    %7228 = vmatpush1.bf16.msra.mxu0 0
    %7229 = vmatprep.subr.bf16.mxu0 0
    %7230 = vmatpush1.bf16.msra.mxu0 0
    %7231 = vmatprep.subr.bf16.mxu0 0
    %7232 = vmatpush1.bf16.msra.mxu0 0
    %7233 = vmatprep.subr.bf16.mxu0 0
    %7234 = vmatpush1.bf16.msra.mxu0 0
    %7235 = vmatprep.subr.bf16.mxu0 0
    %7236 = vmatpush1.bf16.msra.mxu0 0
    %7237 = vmatprep.subr.bf16.mxu0 0
    %7238 = vmatpush1.bf16.msra.mxu0 0
    %7239 = vmatprep.subr.bf16.mxu0 0
    %7240 = vmatpush1.bf16.msra.mxu0 0
    %7241 = vmatprep.mubr.bf16.mxu0 0
    %7242 = vmatmul.mubr.bf16.gmra.mrb[0].mxu0 %v7208
    %v7243 = vpop.f32.mrb[0].mxu0
    %v7244 = vadd.f32 %v2300, %v7243
    %v7245 = vpop.f32.mrb[0].mxu0
    %v7246 = vpop.f32.mrb[0].mxu0
    %v7247 = vpop.f32.mrb[0].mxu0
    %7248 = vdwg.mxu0
    %v7250 = vrot.slane %v7244, 1
    %v7251 = vrot.slane %v7244, 2
    %v7252 = vrot.slane %v7244, 3
    %v7253 = vrot.slane %v7244, 4
    %v7254 = vrot.slane %v7244, 5
    %v7255 = vrot.slane %v7244, 6
    %v7256 = vrot.slane %v7244, 7
    %v7265 = vadd.f32 %v7117, %v7244
    %v7266 = vadd.f32 %v7118, %v7250
    %v7267 = vadd.f32 %v7119, %v7251
    %v7268 = vadd.f32 %v7120, %v7252
    %v7269 = vadd.f32 %v7121, %v7253
    %v7270 = vadd.f32 %v7122, %v7254
    %v7271 = vadd.f32 %v7123, %v7255
    %v7272 = vadd.f32 %v7124, %v7256
    %v7281 = vrot.slane %v7266, 7
    %v7282 = vsel %vm281, %v7281, %v7265
    %v7283 = vrot.slane %v7267, 6
    %v7284 = vsel %vm284, %v7283, %v7282
    %v7285 = vrot.slane %v7268, 5
    %v7286 = vsel %vm287, %v7285, %v7284
    %v7287 = vrot.slane %v7269, 4
    %v7288 = vsel %vm290, %v7287, %v7286
    %v7289 = vrot.slane %v7270, 3
    %v7290 = vsel %vm293, %v7289, %v7288
    %v7291 = vrot.slane %v7271, 2
    %v7292 = vsel %vm296, %v7291, %v7290
    %v7293 = vrot.slane %v7272, 1
    %v7294 = vsel %vm299, %v7293, %v7292
    %v7296 = vsel %vm314, %v7294, 0.0
    %7297 = vadd.xlane.f32.xlu0 %v7296
    %v7298 = vpop.xlane.xlu0 %7297
    %v7299 = vmul.f32 %v7298, %v2079
    %v7301 = vrot.slane %v7299, 1
    %v7302 = vrot.slane %v7299, 2
    %v7303 = vrot.slane %v7299, 3
    %v7304 = vrot.slane %v7299, 4
    %v7305 = vrot.slane %v7299, 5
    %v7306 = vrot.slane %v7299, 6
    %v7307 = vrot.slane %v7299, 7
    %v7316 = vsub.f32 %v7265, %v7299
    %v7317 = vsub.f32 %v7266, %v7301
    %v7318 = vsub.f32 %v7267, %v7302
    %v7319 = vsub.f32 %v7268, %v7303
    %v7320 = vsub.f32 %v7269, %v7304
    %v7321 = vsub.f32 %v7270, %v7305
    %v7322 = vsub.f32 %v7271, %v7306
    %v7323 = vsub.f32 %v7272, %v7307
    %v7324 = vmul.f32 %v7316, %v7316
    %v7325 = vmul.f32 %v7317, %v7317
    %v7326 = vmul.f32 %v7318, %v7318
    %v7327 = vmul.f32 %v7319, %v7319
    %v7328 = vmul.f32 %v7320, %v7320
    %v7329 = vmul.f32 %v7321, %v7321
    %v7330 = vmul.f32 %v7322, %v7322
    %v7331 = vmul.f32 %v7323, %v7323
    %v7340 = vrot.slane %v7325, 7
    %v7341 = vsel %vm281, %v7340, %v7324
    %v7342 = vrot.slane %v7326, 6
    %v7343 = vsel %vm284, %v7342, %v7341
    %v7344 = vrot.slane %v7327, 5
    %v7345 = vsel %vm287, %v7344, %v7343
    %v7346 = vrot.slane %v7328, 4
    %v7347 = vsel %vm290, %v7346, %v7345
    %v7348 = vrot.slane %v7329, 3
    %v7349 = vsel %vm293, %v7348, %v7347
    %v7350 = vrot.slane %v7330, 2
    %v7351 = vsel %vm296, %v7350, %v7349
    %v7352 = vrot.slane %v7331, 1
    %v7353 = vsel %vm299, %v7352, %v7351
    %v7355 = vsel %vm314, %v7353, 0.0
    %7356 = vadd.xlane.f32.xlu0 %v7355
    %v7357 = vpop.xlane.xlu0 %7356
    %v7358 = vmul.f32 %v7357, %v2079
    %v7359 = vadd.f32 %v7358, 1e-05
    %v7360 = vrsqrt.pop %v7359
    %v7362 = vrot.slane %v7360, 1
    %v7363 = vrot.slane %v7360, 2
    %v7364 = vrot.slane %v7360, 3
    %v7365 = vrot.slane %v7360, 4
    %v7366 = vrot.slane %v7360, 5
    %v7367 = vrot.slane %v7360, 6
    %v7368 = vrot.slane %v7360, 7
    %v7377 = vmul.f32 %v7316, %v7360
    %v7378 = vmul.f32 %v7317, %v7362
    %v7379 = vmul.f32 %v7318, %v7363
    %v7380 = vmul.f32 %v7319, %v7364
    %v7381 = vmul.f32 %v7320, %v7365
    %v7382 = vmul.f32 %v7321, %v7366
    %v7383 = vmul.f32 %v7322, %v7367
    %v7384 = vmul.f32 %v7323, %v7368
    %v7385 = vmul.f32 %v7377, %v2170
    %v7386 = vmul.f32 %v7378, %v2170
    %v7387 = vmul.f32 %v7379, %v2170
    %v7388 = vmul.f32 %v7380, %v2170
    %v7389 = vmul.f32 %v7381, %v2170
    %v7390 = vmul.f32 %v7382, %v2170
    %v7391 = vmul.f32 %v7383, %v2170
    %v7392 = vmul.f32 %v7384, %v2170
    %v7393 = vadd.f32 %v7385, %v2184
    %v7394 = vadd.f32 %v7386, %v2184
    %v7395 = vadd.f32 %v7387, %v2184
    %v7396 = vadd.f32 %v7388, %v2184
    %v7397 = vadd.f32 %v7389, %v2184
    %v7398 = vadd.f32 %v7390, %v2184
    %v7399 = vadd.f32 %v7391, %v2184
    %v7400 = vadd.f32 %v7392, %v2184
    %7401 = vmatprep.subr.bf16.mxu0 0
    %7402 = vmatpush1.bf16.msra.mxu0 %v2556
    %7403 = vmatprep.subr.bf16.mxu0 0
    %7404 = vmatpush1.bf16.msra.mxu0 %v2557
    %7405 = vmatprep.subr.bf16.mxu0 0
    %7406 = vmatpush1.bf16.msra.mxu0 0
    %7407 = vmatprep.subr.bf16.mxu0 0
    %7408 = vmatpush1.bf16.msra.mxu0 0
    %7409 = vmatprep.subr.bf16.mxu0 0
    %7410 = vmatpush1.bf16.msra.mxu0 0
    %7411 = vmatprep.subr.bf16.mxu0 0
    %7412 = vmatpush1.bf16.msra.mxu0 0
    %7413 = vmatprep.subr.bf16.mxu0 0
    %7414 = vmatpush1.bf16.msra.mxu0 0
    %7415 = vmatprep.subr.bf16.mxu0 0
    %7416 = vmatpush1.bf16.msra.mxu0 0
    %7417 = vmatprep.subr.bf16.mxu0 0
    %7418 = vmatpush1.bf16.msra.mxu0 0
    %7419 = vmatprep.subr.bf16.mxu0 0
    %7420 = vmatpush1.bf16.msra.mxu0 0
    %7421 = vmatprep.subr.bf16.mxu0 0
    %7422 = vmatpush1.bf16.msra.mxu0 0
    %7423 = vmatprep.subr.bf16.mxu0 0
    %7424 = vmatpush1.bf16.msra.mxu0 0
    %7425 = vmatprep.subr.bf16.mxu0 0
    %7426 = vmatpush1.bf16.msra.mxu0 0
    %7427 = vmatprep.subr.bf16.mxu0 0
    %7428 = vmatpush1.bf16.msra.mxu0 0
    %7429 = vmatprep.subr.bf16.mxu0 0
    %7430 = vmatpush1.bf16.msra.mxu0 0
    %7431 = vmatprep.subr.bf16.mxu0 0
    %7432 = vmatpush1.bf16.msra.mxu0 0
    %7433 = vmatprep.mubr.bf16.mxu0 0
    %7434 = vmatmul.mubr.bf16.gmra.mrb[0].mxu0 %v5448
    %v7435 = vpop.f32.mrb[0].mxu0
    %v7436 = vadd.f32 %v2546, %v7435
    %v7437 = vpop.f32.mrb[0].mxu0
    %v7438 = vpop.f32.mrb[0].mxu0
    %v7439 = vadd.f32 %v2546, %v7438
    %v7440 = vpop.f32.mrb[0].mxu0
    %7441 = vdwg.mxu0
    %v7442 = vpack.c.bf16 %v7393, %v7393
    %v7443 = vpack.c.bf16 %v7394, %v7394
    %v7444 = vpack.c.bf16 %v7395, %v7395
    %v7445 = vpack.c.bf16 %v7396, %v7396
    %v7446 = vpack.c.bf16 %v7397, %v7397
    %v7447 = vpack.c.bf16 %v7398, %v7398
    %v7448 = vpack.c.bf16 %v7399, %v7399
    %v7449 = vpack.c.bf16 %v7400, %v7400
    %v7458 = vunpack.c.l.b16 %v7442
    %v7459 = vunpack.c.l.b16 %v7443
    %v7460 = vunpack.c.l.b16 %v7444
    %v7461 = vunpack.c.l.b16 %v7445
    %v7462 = vunpack.c.l.b16 %v7446
    %v7463 = vunpack.c.l.b16 %v7447
    %v7464 = vunpack.c.l.b16 %v7448
    %v7465 = vunpack.c.l.b16 %v7449
    %v7466 = vrot.slane %v7459, 7
    %v7467 = vsel %vm281, %v7466, %v7458
    %v7468 = vrot.slane %v7460, 6
    %v7469 = vsel %vm284, %v7468, %v7467
    %v7470 = vrot.slane %v7461, 5
    %v7471 = vsel %vm287, %v7470, %v7469
    %v7472 = vrot.slane %v7462, 4
    %v7473 = vsel %vm290, %v7472, %v7471
    %v7474 = vrot.slane %v7463, 3
    %v7475 = vsel %vm293, %v7474, %v7473
    %v7476 = vrot.slane %v7464, 2
    %v7477 = vsel %vm296, %v7476, %v7475
    %v7478 = vrot.slane %v7465, 1
    %v7479 = vsel %vm299, %v7478, %v7477
    %v7480 = vpack.c.b16 %v7479, %v7479
    %v7482 = vsel %vm314, %v7480, 0
    %7484 = vmatprep.subr.bf16.mxu0 0
    %7485 = vmatpush1.bf16.msra.mxu0 %v2654
    %7486 = vmatprep.subr.bf16.mxu0 0
    %7487 = vmatpush1.bf16.msra.mxu0 %v2655
    %7488 = vmatprep.subr.bf16.mxu0 0
    %7489 = vmatpush1.bf16.msra.mxu0 0
    %7490 = vmatprep.subr.bf16.mxu0 0
    %7491 = vmatpush1.bf16.msra.mxu0 0
    %7492 = vmatprep.subr.bf16.mxu0 0
    %7493 = vmatpush1.bf16.msra.mxu0 0
    %7494 = vmatprep.subr.bf16.mxu0 0
    %7495 = vmatpush1.bf16.msra.mxu0 0
    %7496 = vmatprep.subr.bf16.mxu0 0
    %7497 = vmatpush1.bf16.msra.mxu0 0
    %7498 = vmatprep.subr.bf16.mxu0 0
    %7499 = vmatpush1.bf16.msra.mxu0 0
    %7500 = vmatprep.subr.bf16.mxu0 0
    %7501 = vmatpush1.bf16.msra.mxu0 0
    %7502 = vmatprep.subr.bf16.mxu0 0
    %7503 = vmatpush1.bf16.msra.mxu0 0
    %7504 = vmatprep.subr.bf16.mxu0 0
    %7505 = vmatpush1.bf16.msra.mxu0 0
    %7506 = vmatprep.subr.bf16.mxu0 0
    %7507 = vmatpush1.bf16.msra.mxu0 0
    %7508 = vmatprep.subr.bf16.mxu0 0
    %7509 = vmatpush1.bf16.msra.mxu0 0
    %7510 = vmatprep.subr.bf16.mxu0 0
    %7511 = vmatpush1.bf16.msra.mxu0 0
    %7512 = vmatprep.subr.bf16.mxu0 0
    %7513 = vmatpush1.bf16.msra.mxu0 0
    %7514 = vmatprep.subr.bf16.mxu0 0
    %7515 = vmatpush1.bf16.msra.mxu0 0
    %7516 = vmatprep.mubr.bf16.mxu0 0
    %7517 = vmatmul.mubr.bf16.gmra.mrb[0].mxu0 %v7482
    %v7518 = vpop.f32.mrb[0].mxu0
    %v7519 = vadd.f32 %v2613, %v7518
    %v7520 = vpop.f32.mrb[0].mxu0
    %v7521 = vpop.f32.mrb[0].mxu0
    %v7522 = vpop.f32.mrb[0].mxu0
    %7523 = vdwg.mxu0
    %v7524 = vpack.c.bf16 %v7439, %v7436
    %v7525 = vpack.c.bf16 %v7519, %v7519
    %v7527 = vsel %vm506, %v7524, 0
    %v7530 = vsel %vm506, %v7525, 0
    %7532 = vmatprep.subr.bf16.mxu0 0
    %7533 = vmatpush1.bf16.xpose.msra.mxu0 %v7530
    %7534 = vmatprep.subr.bf16.mxu0 0
    %7535 = vmatpush1.bf16.xpose.msra.mxu0 0
    %7536 = vmatprep.subr.bf16.mxu0 0
    %7537 = vmatpush1.bf16.xpose.msra.mxu0 0
    %7538 = vmatprep.subr.bf16.mxu0 0
    %7539 = vmatpush1.bf16.xpose.msra.mxu0 0
    %7540 = vmatprep.subr.bf16.mxu0 0
    %7541 = vmatpush1.bf16.xpose.msra.mxu0 0
    %7542 = vmatprep.subr.bf16.mxu0 0
    %7543 = vmatpush1.bf16.xpose.msra.mxu0 0
    %7544 = vmatprep.subr.bf16.mxu0 0
    %7545 = vmatpush1.bf16.xpose.msra.mxu0 0
    %7546 = vmatprep.subr.bf16.mxu0 0
    %7547 = vmatpush1.bf16.xpose.msra.mxu0 0
    %7548 = vmatprep.subr.bf16.mxu0 0
    %7549 = vmatpush1.bf16.xpose.msra.mxu0 0
    %7550 = vmatprep.subr.bf16.mxu0 0
    %7551 = vmatpush1.bf16.xpose.msra.mxu0 0
    %7552 = vmatprep.subr.bf16.mxu0 0
    %7553 = vmatpush1.bf16.xpose.msra.mxu0 0
    %7554 = vmatprep.subr.bf16.mxu0 0
    %7555 = vmatpush1.bf16.xpose.msra.mxu0 0
    %7556 = vmatprep.subr.bf16.mxu0 0
    %7557 = vmatpush1.bf16.xpose.msra.mxu0 0
    %7558 = vmatprep.subr.bf16.mxu0 0
    %7559 = vmatpush1.bf16.xpose.msra.mxu0 0
    %7560 = vmatprep.subr.bf16.mxu0 0
    %7561 = vmatpush1.bf16.xpose.msra.mxu0 0
    %7562 = vmatprep.subr.bf16.mxu0 0
    %7563 = vmatpush1.bf16.xpose.msra.mxu0 0
    %7564 = vmatprep.mubr.bf16.mxu0 0
    %7565 = vmatmul.mubr.bf16.gmra.mrb[0].mxu0 %v7527
    %v7566 = vpop.f32.mrb[0].mxu0
    %v7567 = vadd.f32 0.0, %v7566
    %v7568 = vpop.f32.mrb[0].mxu0
    %v7569 = vpop.f32.mrb[0].mxu0
    %v7570 = vadd.f32 0.0, %v7569
    %v7571 = vpop.f32.mrb[0].mxu0
    %7572 = vdwg.mxu0
    %v7573 = vsel %vm2757, %v7567, -inf
    %7574 = vmax.xlane.f32.xlu0 %v7573
    %v7575 = vpop.xlane.xlu0 %7574
    %v7576 = vsel %vm2757, %v7570, -inf
    %7577 = vmax.xlane.f32.xlu0 %v7576
    %v7578 = vpop.xlane.xlu0 %7577
    %v7579 = vsub.f32 %v7567, %v7575
    %v7580 = vsub.f32 %v7570, %v7578
    %v7581 = vmul.f32 %v7579, 1.442695
    %v7582 = vpow.pop %v7581
    %v7583 = vmul.f32 %v7580, 1.442695
    %v7584 = vpow.pop %v7583
    %v7585 = vsel %vm2757, %v7582, 0.0
    %7586 = vadd.xlane.f32.xlu0 %v7585
    %v7587 = vpop.xlane.xlu0 %7586
    %v7588 = vsel %vm2757, %v7584, 0.0
    %7589 = vadd.xlane.f32.xlu0 %v7588
    %v7590 = vpop.xlane.xlu0 %7589
    %v7591 = vrcp.pop %v7587
    %v7592 = vmul.f32 %v7582, %v7591
    %v7593 = vrcp.pop %v7590
    %v7594 = vmul.f32 %v7584, %v7593
    %7596 = vrot.lane.b32.xlu0 %v7519, 96
    %v7597 = vpop.permute.xlu0 %7596
    %v7600 = vsel %vm2757, %v7592, 0
    %v7603 = vsel %vm2757, %v7594, 0
    %7605 = vmatprep.subr.mxu0 0.0
    %7606 = vmatpush1.msra.mxu0 %v7597
    %7607 = vmatprep.subr.mxu0 0.0
    %7608 = vmatpush1.msra.mxu0 0.0
    %7609 = vmatprep.subr.mxu0 0.0
    %7610 = vmatpush1.msra.mxu0 0.0
    %7611 = vmatprep.subr.mxu0 0.0
    %7612 = vmatpush1.msra.mxu0 0.0
    %7613 = vmatprep.subr.mxu0 0.0
    %7614 = vmatpush1.msra.mxu0 0.0
    %7615 = vmatprep.subr.mxu0 0.0
    %7616 = vmatpush1.msra.mxu0 0.0
    %7617 = vmatprep.subr.mxu0 0.0
    %7618 = vmatpush1.msra.mxu0 0.0
    %7619 = vmatprep.subr.mxu0 0.0
    %7620 = vmatpush1.msra.mxu0 0.0
    %7621 = vmatprep.subr.mxu0 0.0
    %7622 = vmatpush1.msra.mxu0 0.0
    %7623 = vmatprep.subr.mxu0 0.0
    %7624 = vmatpush1.msra.mxu0 0.0
    %7625 = vmatprep.subr.mxu0 0.0
    %7626 = vmatpush1.msra.mxu0 0.0
    %7627 = vmatprep.subr.mxu0 0.0
    %7628 = vmatpush1.msra.mxu0 0.0
    %7629 = vmatprep.subr.mxu0 0.0
    %7630 = vmatpush1.msra.mxu0 0.0
    %7631 = vmatprep.subr.mxu0 0.0
    %7632 = vmatpush1.msra.mxu0 0.0
    %7633 = vmatprep.subr.mxu0 0.0
    %7634 = vmatpush1.msra.mxu0 0.0
    %7635 = vmatprep.subr.mxu0 0.0
    %7636 = vmatpush1.msra.mxu0 0.0
    %7637 = vmatprep.subr.mxu0 0.0
    %7638 = vmatpush1.msra.mxu0 0.0
    %7639 = vmatprep.subr.mxu0 0.0
    %7640 = vmatpush1.msra.mxu0 0.0
    %7641 = vmatprep.subr.mxu0 0.0
    %7642 = vmatpush1.msra.mxu0 0.0
    %7643 = vmatprep.subr.mxu0 0.0
    %7644 = vmatpush1.msra.mxu0 0.0
    %7645 = vmatprep.subr.mxu0 0.0
    %7646 = vmatpush1.msra.mxu0 0.0
    %7647 = vmatprep.subr.mxu0 0.0
    %7648 = vmatpush1.msra.mxu0 0.0
    %7649 = vmatprep.subr.mxu0 0.0
    %7650 = vmatpush1.msra.mxu0 0.0
    %7651 = vmatprep.subr.mxu0 0.0
    %7652 = vmatpush1.msra.mxu0 0.0
    %7653 = vmatprep.subr.mxu0 0.0
    %7654 = vmatpush1.msra.mxu0 0.0
    %7655 = vmatprep.subr.mxu0 0.0
    %7656 = vmatpush1.msra.mxu0 0.0
    %7657 = vmatprep.subr.mxu0 0.0
    %7658 = vmatpush1.msra.mxu0 0.0
    %7659 = vmatprep.subr.mxu0 0.0
    %7660 = vmatpush1.msra.mxu0 0.0
    %7661 = vmatprep.subr.mxu0 0.0
    %7662 = vmatpush1.msra.mxu0 0.0
    %7663 = vmatprep.subr.mxu0 0.0
    %7664 = vmatpush1.msra.mxu0 0.0
    %7665 = vmatprep.subr.mxu0 0.0
    %7666 = vmatpush1.msra.mxu0 0.0
    %7667 = vmatprep.subr.mxu0 0.0
    %7668 = vmatpush1.msra.mxu0 0.0
    %7669 = vmatprep.mubr.f32.mxu0 0.0
    %7670 = vmatmul.mubr.f32.gmra.mrb[0].mxu0 %v7600
    %v7671 = vpop.f32.mrb[0].mxu0
    %v7672 = vadd.f32 0.0, %v7671
    %v7673 = vpop.f32.mrb[0].mxu0
    %7674 = vmatprep.mubr.f32.mxu0 0.0
    %7675 = vmatmul.mubr.f32.gmra.mrb[0].mxu0 %v7603
    %v7676 = vpop.f32.mrb[0].mxu0
    %v7677 = vadd.f32 0.0, %v7676
    %v7678 = vpop.f32.mrb[0].mxu0
    %7679 = vdwg.mxu0
    %v7680 = vpack.c.bf16 %v7677, %v7672
    %v7682 = vsel %vm506, %v7680, 0
    %7684 = vmatprep.subr.bf16.mxu0 0
    %7685 = vmatpush1.bf16.msra.mxu0 %v2870
    %7686 = vmatprep.subr.bf16.mxu0 0
    %7687 = vmatpush1.bf16.msra.mxu0 0
    %7688 = vmatprep.subr.bf16.mxu0 0
    %7689 = vmatpush1.bf16.msra.mxu0 0
    %7690 = vmatprep.subr.bf16.mxu0 0
    %7691 = vmatpush1.bf16.msra.mxu0 0
    %7692 = vmatprep.subr.bf16.mxu0 0
    %7693 = vmatpush1.bf16.msra.mxu0 0
    %7694 = vmatprep.subr.bf16.mxu0 0
    %7695 = vmatpush1.bf16.msra.mxu0 0
    %7696 = vmatprep.subr.bf16.mxu0 0
    %7697 = vmatpush1.bf16.msra.mxu0 0
    %7698 = vmatprep.subr.bf16.mxu0 0
    %7699 = vmatpush1.bf16.msra.mxu0 0
    %7700 = vmatprep.subr.bf16.mxu0 0
    %7701 = vmatpush1.bf16.msra.mxu0 0
    %7702 = vmatprep.subr.bf16.mxu0 0
    %7703 = vmatpush1.bf16.msra.mxu0 0
    %7704 = vmatprep.subr.bf16.mxu0 0
    %7705 = vmatpush1.bf16.msra.mxu0 0
    %7706 = vmatprep.subr.bf16.mxu0 0
    %7707 = vmatpush1.bf16.msra.mxu0 0
    %7708 = vmatprep.subr.bf16.mxu0 0
    %7709 = vmatpush1.bf16.msra.mxu0 0
    %7710 = vmatprep.subr.bf16.mxu0 0
    %7711 = vmatpush1.bf16.msra.mxu0 0
    %7712 = vmatprep.subr.bf16.mxu0 0
    %7713 = vmatpush1.bf16.msra.mxu0 0
    %7714 = vmatprep.subr.bf16.mxu0 0
    %7715 = vmatpush1.bf16.msra.mxu0 0
    %7716 = vmatprep.mubr.bf16.mxu0 0
    %7717 = vmatmul.mubr.bf16.gmra.mrb[0].mxu0 %v7682
    %v7718 = vpop.f32.mrb[0].mxu0
    %v7719 = vadd.f32 0.0, %v7718
    %v7720 = vpop.f32.mrb[0].mxu0
    %v7721 = vpop.f32.mrb[0].mxu0
    %v7722 = vadd.f32 0.0, %v7721
    %v7723 = vpop.f32.mrb[0].mxu0
    %7724 = vdwg.mxu0
    %v7725 = vadd.f32 %v2709, %v7719
    %v7726 = vadd.f32 %v2709, %v7722
    %7728 = vrot.lane.b32.xlu0 %v7524, 124
    %v7729 = vpop.permute.xlu0 %7728
    %7731 = vrot.lane.b32.xlu0 %v7525, 124
    %v7732 = vpop.permute.xlu0 %7731
    %v7734 = vsel %vm506, %v7729, 0
    %v7737 = vsel %vm506, %v7732, 0
    %7739 = vmatprep.subr.bf16.mxu0 0
    %7740 = vmatpush1.bf16.xpose.msra.mxu0 %v7737
    %7741 = vmatprep.subr.bf16.mxu0 0
    %7742 = vmatpush1.bf16.xpose.msra.mxu0 0
    %7743 = vmatprep.subr.bf16.mxu0 0
    %7744 = vmatpush1.bf16.xpose.msra.mxu0 0
    %7745 = vmatprep.subr.bf16.mxu0 0
    %7746 = vmatpush1.bf16.xpose.msra.mxu0 0
    %7747 = vmatprep.subr.bf16.mxu0 0
    %7748 = vmatpush1.bf16.xpose.msra.mxu0 0
    %7749 = vmatprep.subr.bf16.mxu0 0
    %7750 = vmatpush1.bf16.xpose.msra.mxu0 0
    %7751 = vmatprep.subr.bf16.mxu0 0
    %7752 = vmatpush1.bf16.xpose.msra.mxu0 0
    %7753 = vmatprep.subr.bf16.mxu0 0
    %7754 = vmatpush1.bf16.xpose.msra.mxu0 0
    %7755 = vmatprep.subr.bf16.mxu0 0
    %7756 = vmatpush1.bf16.xpose.msra.mxu0 0
    %7757 = vmatprep.subr.bf16.mxu0 0
    %7758 = vmatpush1.bf16.xpose.msra.mxu0 0
    %7759 = vmatprep.subr.bf16.mxu0 0
    %7760 = vmatpush1.bf16.xpose.msra.mxu0 0
    %7761 = vmatprep.subr.bf16.mxu0 0
    %7762 = vmatpush1.bf16.xpose.msra.mxu0 0
    %7763 = vmatprep.subr.bf16.mxu0 0
    %7764 = vmatpush1.bf16.xpose.msra.mxu0 0
    %7765 = vmatprep.subr.bf16.mxu0 0
    %7766 = vmatpush1.bf16.xpose.msra.mxu0 0
    %7767 = vmatprep.subr.bf16.mxu0 0
    %7768 = vmatpush1.bf16.xpose.msra.mxu0 0
    %7769 = vmatprep.subr.bf16.mxu0 0
    %7770 = vmatpush1.bf16.xpose.msra.mxu0 0
    %7771 = vmatprep.mubr.bf16.mxu0 0
    %7772 = vmatmul.mubr.bf16.gmra.mrb[0].mxu0 %v7734
    %v7773 = vpop.f32.mrb[0].mxu0
    %v7774 = vadd.f32 0.0, %v7773
    %v7775 = vpop.f32.mrb[0].mxu0
    %v7776 = vpop.f32.mrb[0].mxu0
    %v7777 = vadd.f32 0.0, %v7776
    %v7778 = vpop.f32.mrb[0].mxu0
    %7779 = vdwg.mxu0
    %v7780 = vsel %vm2757, %v7774, -inf
    %7781 = vmax.xlane.f32.xlu0 %v7780
    %v7782 = vpop.xlane.xlu0 %7781
    %v7783 = vsel %vm2757, %v7777, -inf
    %7784 = vmax.xlane.f32.xlu0 %v7783
    %v7785 = vpop.xlane.xlu0 %7784
    %v7786 = vsub.f32 %v7774, %v7782
    %v7787 = vsub.f32 %v7777, %v7785
    %v7788 = vmul.f32 %v7786, 1.442695
    %v7789 = vpow.pop %v7788
    %v7790 = vmul.f32 %v7787, 1.442695
    %v7791 = vpow.pop %v7790
    %v7792 = vsel %vm2757, %v7789, 0.0
    %7793 = vadd.xlane.f32.xlu0 %v7792
    %v7794 = vpop.xlane.xlu0 %7793
    %v7795 = vsel %vm2757, %v7791, 0.0
    %7796 = vadd.xlane.f32.xlu0 %v7795
    %v7797 = vpop.xlane.xlu0 %7796
    %v7798 = vrcp.pop %v7794
    %v7799 = vmul.f32 %v7789, %v7798
    %v7800 = vrcp.pop %v7797
    %v7801 = vmul.f32 %v7791, %v7800
    %7802 = vrot.lane.b32.xlu0 %v7519, 92
    %v7803 = vpop.permute.xlu0 %7802
    %v7806 = vsel %vm2757, %v7799, 0
    %v7809 = vsel %vm2757, %v7801, 0
    %7811 = vmatprep.subr.mxu0 0.0
    %7812 = vmatpush1.msra.mxu0 %v7803
    %7813 = vmatprep.subr.mxu0 0.0
    %7814 = vmatpush1.msra.mxu0 0.0
    %7815 = vmatprep.subr.mxu0 0.0
    %7816 = vmatpush1.msra.mxu0 0.0
    %7817 = vmatprep.subr.mxu0 0.0
    %7818 = vmatpush1.msra.mxu0 0.0
    %7819 = vmatprep.subr.mxu0 0.0
    %7820 = vmatpush1.msra.mxu0 0.0
    %7821 = vmatprep.subr.mxu0 0.0
    %7822 = vmatpush1.msra.mxu0 0.0
    %7823 = vmatprep.subr.mxu0 0.0
    %7824 = vmatpush1.msra.mxu0 0.0
    %7825 = vmatprep.subr.mxu0 0.0
    %7826 = vmatpush1.msra.mxu0 0.0
    %7827 = vmatprep.subr.mxu0 0.0
    %7828 = vmatpush1.msra.mxu0 0.0
    %7829 = vmatprep.subr.mxu0 0.0
    %7830 = vmatpush1.msra.mxu0 0.0
    %7831 = vmatprep.subr.mxu0 0.0
    %7832 = vmatpush1.msra.mxu0 0.0
    %7833 = vmatprep.subr.mxu0 0.0
    %7834 = vmatpush1.msra.mxu0 0.0
    %7835 = vmatprep.subr.mxu0 0.0
    %7836 = vmatpush1.msra.mxu0 0.0
    %7837 = vmatprep.subr.mxu0 0.0
    %7838 = vmatpush1.msra.mxu0 0.0
    %7839 = vmatprep.subr.mxu0 0.0
    %7840 = vmatpush1.msra.mxu0 0.0
    %7841 = vmatprep.subr.mxu0 0.0
    %7842 = vmatpush1.msra.mxu0 0.0
    %7843 = vmatprep.subr.mxu0 0.0
    %7844 = vmatpush1.msra.mxu0 0.0
    %7845 = vmatprep.subr.mxu0 0.0
    %7846 = vmatpush1.msra.mxu0 0.0
    %7847 = vmatprep.subr.mxu0 0.0
    %7848 = vmatpush1.msra.mxu0 0.0
    %7849 = vmatprep.subr.mxu0 0.0
    %7850 = vmatpush1.msra.mxu0 0.0
    %7851 = vmatprep.subr.mxu0 0.0
    %7852 = vmatpush1.msra.mxu0 0.0
    %7853 = vmatprep.subr.mxu0 0.0
    %7854 = vmatpush1.msra.mxu0 0.0
    %7855 = vmatprep.subr.mxu0 0.0
    %7856 = vmatpush1.msra.mxu0 0.0
    %7857 = vmatprep.subr.mxu0 0.0
    %7858 = vmatpush1.msra.mxu0 0.0
    %7859 = vmatprep.subr.mxu0 0.0
    %7860 = vmatpush1.msra.mxu0 0.0
    %7861 = vmatprep.subr.mxu0 0.0
    %7862 = vmatpush1.msra.mxu0 0.0
    %7863 = vmatprep.subr.mxu0 0.0
    %7864 = vmatpush1.msra.mxu0 0.0
    %7865 = vmatprep.subr.mxu0 0.0
    %7866 = vmatpush1.msra.mxu0 0.0
    %7867 = vmatprep.subr.mxu0 0.0
    %7868 = vmatpush1.msra.mxu0 0.0
    %7869 = vmatprep.subr.mxu0 0.0
    %7870 = vmatpush1.msra.mxu0 0.0
    %7871 = vmatprep.subr.mxu0 0.0
    %7872 = vmatpush1.msra.mxu0 0.0
    %7873 = vmatprep.subr.mxu0 0.0
    %7874 = vmatpush1.msra.mxu0 0.0
    %7875 = vmatprep.mubr.f32.mxu0 0.0
    %7876 = vmatmul.mubr.f32.gmra.mrb[0].mxu0 %v7806
    %v7877 = vpop.f32.mrb[0].mxu0
    %v7878 = vadd.f32 0.0, %v7877
    %v7879 = vpop.f32.mrb[0].mxu0
    %7880 = vmatprep.mubr.f32.mxu0 0.0
    %7881 = vmatmul.mubr.f32.gmra.mrb[0].mxu0 %v7809
    %v7882 = vpop.f32.mrb[0].mxu0
    %v7883 = vadd.f32 0.0, %v7882
    %v7884 = vpop.f32.mrb[0].mxu0
    %7885 = vdwg.mxu0
    %v7886 = vpack.c.bf16 %v7883, %v7878
    %v7888 = vsel %vm506, %v7886, 0
    %7890 = vmatprep.subr.bf16.mxu0 0
    %7891 = vmatpush1.bf16.msra.mxu0 %v3083
    %7892 = vmatprep.subr.bf16.mxu0 0
    %7893 = vmatpush1.bf16.msra.mxu0 0
    %7894 = vmatprep.subr.bf16.mxu0 0
    %7895 = vmatpush1.bf16.msra.mxu0 0
    %7896 = vmatprep.subr.bf16.mxu0 0
    %7897 = vmatpush1.bf16.msra.mxu0 0
    %7898 = vmatprep.subr.bf16.mxu0 0
    %7899 = vmatpush1.bf16.msra.mxu0 0
    %7900 = vmatprep.subr.bf16.mxu0 0
    %7901 = vmatpush1.bf16.msra.mxu0 0
    %7902 = vmatprep.subr.bf16.mxu0 0
    %7903 = vmatpush1.bf16.msra.mxu0 0
    %7904 = vmatprep.subr.bf16.mxu0 0
    %7905 = vmatpush1.bf16.msra.mxu0 0
    %7906 = vmatprep.subr.bf16.mxu0 0
    %7907 = vmatpush1.bf16.msra.mxu0 0
    %7908 = vmatprep.subr.bf16.mxu0 0
    %7909 = vmatpush1.bf16.msra.mxu0 0
    %7910 = vmatprep.subr.bf16.mxu0 0
    %7911 = vmatpush1.bf16.msra.mxu0 0
    %7912 = vmatprep.subr.bf16.mxu0 0
    %7913 = vmatpush1.bf16.msra.mxu0 0
    %7914 = vmatprep.subr.bf16.mxu0 0
    %7915 = vmatpush1.bf16.msra.mxu0 0
    %7916 = vmatprep.subr.bf16.mxu0 0
    %7917 = vmatpush1.bf16.msra.mxu0 0
    %7918 = vmatprep.subr.bf16.mxu0 0
    %7919 = vmatpush1.bf16.msra.mxu0 0
    %7920 = vmatprep.subr.bf16.mxu0 0
    %7921 = vmatpush1.bf16.msra.mxu0 0
    %7922 = vmatprep.mubr.bf16.mxu0 0
    %7923 = vmatmul.mubr.bf16.gmra.mrb[0].mxu0 %v7888
    %v7924 = vpop.f32.mrb[0].mxu0
    %v7925 = vadd.f32 0.0, %v7924
    %v7926 = vpop.f32.mrb[0].mxu0
    %v7927 = vpop.f32.mrb[0].mxu0
    %v7928 = vadd.f32 0.0, %v7927
    %v7929 = vpop.f32.mrb[0].mxu0
    %7930 = vdwg.mxu0
    %v7931 = vadd.f32 %v7725, %v7925
    %v7932 = vadd.f32 %v7726, %v7928
    %7933 = vrot.lane.b32.xlu0 %v7524, 120
    %v7934 = vpop.permute.xlu0 %7933
    %7935 = vrot.lane.b32.xlu0 %v7525, 120
    %v7936 = vpop.permute.xlu0 %7935
    %v7938 = vsel %vm506, %v7934, 0
    %v7941 = vsel %vm506, %v7936, 0
    %7943 = vmatprep.subr.bf16.mxu0 0
    %7944 = vmatpush1.bf16.xpose.msra.mxu0 %v7941
    %7945 = vmatprep.subr.bf16.mxu0 0
    %7946 = vmatpush1.bf16.xpose.msra.mxu0 0
    %7947 = vmatprep.subr.bf16.mxu0 0
    %7948 = vmatpush1.bf16.xpose.msra.mxu0 0
    %7949 = vmatprep.subr.bf16.mxu0 0
    %7950 = vmatpush1.bf16.xpose.msra.mxu0 0
    %7951 = vmatprep.subr.bf16.mxu0 0
    %7952 = vmatpush1.bf16.xpose.msra.mxu0 0
    %7953 = vmatprep.subr.bf16.mxu0 0
    %7954 = vmatpush1.bf16.xpose.msra.mxu0 0
    %7955 = vmatprep.subr.bf16.mxu0 0
    %7956 = vmatpush1.bf16.xpose.msra.mxu0 0
    %7957 = vmatprep.subr.bf16.mxu0 0
    %7958 = vmatpush1.bf16.xpose.msra.mxu0 0
    %7959 = vmatprep.subr.bf16.mxu0 0
    %7960 = vmatpush1.bf16.xpose.msra.mxu0 0
    %7961 = vmatprep.subr.bf16.mxu0 0
    %7962 = vmatpush1.bf16.xpose.msra.mxu0 0
    %7963 = vmatprep.subr.bf16.mxu0 0
    %7964 = vmatpush1.bf16.xpose.msra.mxu0 0
    %7965 = vmatprep.subr.bf16.mxu0 0
    %7966 = vmatpush1.bf16.xpose.msra.mxu0 0
    %7967 = vmatprep.subr.bf16.mxu0 0
    %7968 = vmatpush1.bf16.xpose.msra.mxu0 0
    %7969 = vmatprep.subr.bf16.mxu0 0
    %7970 = vmatpush1.bf16.xpose.msra.mxu0 0
    %7971 = vmatprep.subr.bf16.mxu0 0
    %7972 = vmatpush1.bf16.xpose.msra.mxu0 0
    %7973 = vmatprep.subr.bf16.mxu0 0
    %7974 = vmatpush1.bf16.xpose.msra.mxu0 0
    %7975 = vmatprep.mubr.bf16.mxu0 0
    %7976 = vmatmul.mubr.bf16.gmra.mrb[0].mxu0 %v7938
    %v7977 = vpop.f32.mrb[0].mxu0
    %v7978 = vadd.f32 0.0, %v7977
    %v7979 = vpop.f32.mrb[0].mxu0
    %v7980 = vpop.f32.mrb[0].mxu0
    %v7981 = vadd.f32 0.0, %v7980
    %v7982 = vpop.f32.mrb[0].mxu0
    %7983 = vdwg.mxu0
    %v7984 = vsel %vm2757, %v7978, -inf
    %7985 = vmax.xlane.f32.xlu0 %v7984
    %v7986 = vpop.xlane.xlu0 %7985
    %v7987 = vsel %vm2757, %v7981, -inf
    %7988 = vmax.xlane.f32.xlu0 %v7987
    %v7989 = vpop.xlane.xlu0 %7988
    %v7990 = vsub.f32 %v7978, %v7986
    %v7991 = vsub.f32 %v7981, %v7989
    %v7992 = vmul.f32 %v7990, 1.442695
    %v7993 = vpow.pop %v7992
    %v7994 = vmul.f32 %v7991, 1.442695
    %v7995 = vpow.pop %v7994
    %v7996 = vsel %vm2757, %v7993, 0.0
    %7997 = vadd.xlane.f32.xlu0 %v7996
    %v7998 = vpop.xlane.xlu0 %7997
    %v7999 = vsel %vm2757, %v7995, 0.0
    %8000 = vadd.xlane.f32.xlu0 %v7999
    %v8001 = vpop.xlane.xlu0 %8000
    %v8002 = vrcp.pop %v7998
    %v8003 = vmul.f32 %v7993, %v8002
    %v8004 = vrcp.pop %v8001
    %v8005 = vmul.f32 %v7995, %v8004
    %8006 = vrot.lane.b32.xlu0 %v7519, 88
    %v8007 = vpop.permute.xlu0 %8006
    %v8010 = vsel %vm2757, %v8003, 0
    %v8013 = vsel %vm2757, %v8005, 0
    %8015 = vmatprep.subr.mxu0 0.0
    %8016 = vmatpush1.msra.mxu0 %v8007
    %8017 = vmatprep.subr.mxu0 0.0
    %8018 = vmatpush1.msra.mxu0 0.0
    %8019 = vmatprep.subr.mxu0 0.0
    %8020 = vmatpush1.msra.mxu0 0.0
    %8021 = vmatprep.subr.mxu0 0.0
    %8022 = vmatpush1.msra.mxu0 0.0
    %8023 = vmatprep.subr.mxu0 0.0
    %8024 = vmatpush1.msra.mxu0 0.0
    %8025 = vmatprep.subr.mxu0 0.0
    %8026 = vmatpush1.msra.mxu0 0.0
    %8027 = vmatprep.subr.mxu0 0.0
    %8028 = vmatpush1.msra.mxu0 0.0
    %8029 = vmatprep.subr.mxu0 0.0
    %8030 = vmatpush1.msra.mxu0 0.0
    %8031 = vmatprep.subr.mxu0 0.0
    %8032 = vmatpush1.msra.mxu0 0.0
    %8033 = vmatprep.subr.mxu0 0.0
    %8034 = vmatpush1.msra.mxu0 0.0
    %8035 = vmatprep.subr.mxu0 0.0
    %8036 = vmatpush1.msra.mxu0 0.0
    %8037 = vmatprep.subr.mxu0 0.0
    %8038 = vmatpush1.msra.mxu0 0.0
    %8039 = vmatprep.subr.mxu0 0.0
    %8040 = vmatpush1.msra.mxu0 0.0
    %8041 = vmatprep.subr.mxu0 0.0
    %8042 = vmatpush1.msra.mxu0 0.0
    %8043 = vmatprep.subr.mxu0 0.0
    %8044 = vmatpush1.msra.mxu0 0.0
    %8045 = vmatprep.subr.mxu0 0.0
    %8046 = vmatpush1.msra.mxu0 0.0
    %8047 = vmatprep.subr.mxu0 0.0
    %8048 = vmatpush1.msra.mxu0 0.0
    %8049 = vmatprep.subr.mxu0 0.0
    %8050 = vmatpush1.msra.mxu0 0.0
    %8051 = vmatprep.subr.mxu0 0.0
    %8052 = vmatpush1.msra.mxu0 0.0
    %8053 = vmatprep.subr.mxu0 0.0
    %8054 = vmatpush1.msra.mxu0 0.0
    %8055 = vmatprep.subr.mxu0 0.0
    %8056 = vmatpush1.msra.mxu0 0.0
    %8057 = vmatprep.subr.mxu0 0.0
    %8058 = vmatpush1.msra.mxu0 0.0
    %8059 = vmatprep.subr.mxu0 0.0
    %8060 = vmatpush1.msra.mxu0 0.0
    %8061 = vmatprep.subr.mxu0 0.0
    %8062 = vmatpush1.msra.mxu0 0.0
    %8063 = vmatprep.subr.mxu0 0.0
    %8064 = vmatpush1.msra.mxu0 0.0
    %8065 = vmatprep.subr.mxu0 0.0
    %8066 = vmatpush1.msra.mxu0 0.0
    %8067 = vmatprep.subr.mxu0 0.0
    %8068 = vmatpush1.msra.mxu0 0.0
    %8069 = vmatprep.subr.mxu0 0.0
    %8070 = vmatpush1.msra.mxu0 0.0
    %8071 = vmatprep.subr.mxu0 0.0
    %8072 = vmatpush1.msra.mxu0 0.0
    %8073 = vmatprep.subr.mxu0 0.0
    %8074 = vmatpush1.msra.mxu0 0.0
    %8075 = vmatprep.subr.mxu0 0.0
    %8076 = vmatpush1.msra.mxu0 0.0
    %8077 = vmatprep.subr.mxu0 0.0
    %8078 = vmatpush1.msra.mxu0 0.0
    %8079 = vmatprep.mubr.f32.mxu0 0.0
    %8080 = vmatmul.mubr.f32.gmra.mrb[0].mxu0 %v8010
    %v8081 = vpop.f32.mrb[0].mxu0
    %v8082 = vadd.f32 0.0, %v8081
    %v8083 = vpop.f32.mrb[0].mxu0
    %8084 = vmatprep.mubr.f32.mxu0 0.0
    %8085 = vmatmul.mubr.f32.gmra.mrb[0].mxu0 %v8013
    %v8086 = vpop.f32.mrb[0].mxu0
    %v8087 = vadd.f32 0.0, %v8086
    %v8088 = vpop.f32.mrb[0].mxu0
    %8089 = vdwg.mxu0
    %v8090 = vpack.c.bf16 %v8087, %v8082
    %v8092 = vsel %vm506, %v8090, 0
    %8094 = vmatprep.subr.bf16.mxu0 0
    %8095 = vmatpush1.bf16.msra.mxu0 %v3290
    %8096 = vmatprep.subr.bf16.mxu0 0
    %8097 = vmatpush1.bf16.msra.mxu0 0
    %8098 = vmatprep.subr.bf16.mxu0 0
    %8099 = vmatpush1.bf16.msra.mxu0 0
    %8100 = vmatprep.subr.bf16.mxu0 0
    %8101 = vmatpush1.bf16.msra.mxu0 0
    %8102 = vmatprep.subr.bf16.mxu0 0
    %8103 = vmatpush1.bf16.msra.mxu0 0
    %8104 = vmatprep.subr.bf16.mxu0 0
    %8105 = vmatpush1.bf16.msra.mxu0 0
    %8106 = vmatprep.subr.bf16.mxu0 0
    %8107 = vmatpush1.bf16.msra.mxu0 0
    %8108 = vmatprep.subr.bf16.mxu0 0
    %8109 = vmatpush1.bf16.msra.mxu0 0
    %8110 = vmatprep.subr.bf16.mxu0 0
    %8111 = vmatpush1.bf16.msra.mxu0 0
    %8112 = vmatprep.subr.bf16.mxu0 0
    %8113 = vmatpush1.bf16.msra.mxu0 0
    %8114 = vmatprep.subr.bf16.mxu0 0
    %8115 = vmatpush1.bf16.msra.mxu0 0
    %8116 = vmatprep.subr.bf16.mxu0 0
    %8117 = vmatpush1.bf16.msra.mxu0 0
    %8118 = vmatprep.subr.bf16.mxu0 0
    %8119 = vmatpush1.bf16.msra.mxu0 0
    %8120 = vmatprep.subr.bf16.mxu0 0
    %8121 = vmatpush1.bf16.msra.mxu0 0
    %8122 = vmatprep.subr.bf16.mxu0 0
    %8123 = vmatpush1.bf16.msra.mxu0 0
    %8124 = vmatprep.subr.bf16.mxu0 0
    %8125 = vmatpush1.bf16.msra.mxu0 0
    %8126 = vmatprep.mubr.bf16.mxu0 0
    %8127 = vmatmul.mubr.bf16.gmra.mrb[0].mxu0 %v8092
    %v8128 = vpop.f32.mrb[0].mxu0
    %v8129 = vadd.f32 0.0, %v8128
    %v8130 = vpop.f32.mrb[0].mxu0
    %v8131 = vpop.f32.mrb[0].mxu0
    %v8132 = vadd.f32 0.0, %v8131
    %v8133 = vpop.f32.mrb[0].mxu0
    %8134 = vdwg.mxu0
    %v8135 = vadd.f32 %v7931, %v8129
    %v8136 = vadd.f32 %v7932, %v8132
    %8137 = vrot.lane.b32.xlu0 %v7524, 116
    %v8138 = vpop.permute.xlu0 %8137
    %8139 = vrot.lane.b32.xlu0 %v7525, 116
    %v8140 = vpop.permute.xlu0 %8139
    %v8142 = vsel %vm506, %v8138, 0
    %v8145 = vsel %vm506, %v8140, 0
    %8147 = vmatprep.subr.bf16.mxu0 0
    %8148 = vmatpush1.bf16.xpose.msra.mxu0 %v8145
    %8149 = vmatprep.subr.bf16.mxu0 0
    %8150 = vmatpush1.bf16.xpose.msra.mxu0 0
    %8151 = vmatprep.subr.bf16.mxu0 0
    %8152 = vmatpush1.bf16.xpose.msra.mxu0 0
    %8153 = vmatprep.subr.bf16.mxu0 0
    %8154 = vmatpush1.bf16.xpose.msra.mxu0 0
    %8155 = vmatprep.subr.bf16.mxu0 0
    %8156 = vmatpush1.bf16.xpose.msra.mxu0 0
    %8157 = vmatprep.subr.bf16.mxu0 0
    %8158 = vmatpush1.bf16.xpose.msra.mxu0 0
    %8159 = vmatprep.subr.bf16.mxu0 0
    %8160 = vmatpush1.bf16.xpose.msra.mxu0 0
    %8161 = vmatprep.subr.bf16.mxu0 0
    %8162 = vmatpush1.bf16.xpose.msra.mxu0 0
    %8163 = vmatprep.subr.bf16.mxu0 0
    %8164 = vmatpush1.bf16.xpose.msra.mxu0 0
    %8165 = vmatprep.subr.bf16.mxu0 0
    %8166 = vmatpush1.bf16.xpose.msra.mxu0 0
    %8167 = vmatprep.subr.bf16.mxu0 0
    %8168 = vmatpush1.bf16.xpose.msra.mxu0 0
    %8169 = vmatprep.subr.bf16.mxu0 0
    %8170 = vmatpush1.bf16.xpose.msra.mxu0 0
    %8171 = vmatprep.subr.bf16.mxu0 0
    %8172 = vmatpush1.bf16.xpose.msra.mxu0 0
    %8173 = vmatprep.subr.bf16.mxu0 0
    %8174 = vmatpush1.bf16.xpose.msra.mxu0 0
    %8175 = vmatprep.subr.bf16.mxu0 0
    %8176 = vmatpush1.bf16.xpose.msra.mxu0 0
    %8177 = vmatprep.subr.bf16.mxu0 0
    %8178 = vmatpush1.bf16.xpose.msra.mxu0 0
    %8179 = vmatprep.mubr.bf16.mxu0 0
    %8180 = vmatmul.mubr.bf16.gmra.mrb[0].mxu0 %v8142
    %v8181 = vpop.f32.mrb[0].mxu0
    %v8182 = vadd.f32 0.0, %v8181
    %v8183 = vpop.f32.mrb[0].mxu0
    %v8184 = vpop.f32.mrb[0].mxu0
    %v8185 = vadd.f32 0.0, %v8184
    %v8186 = vpop.f32.mrb[0].mxu0
    %8187 = vdwg.mxu0
    %v8188 = vsel %vm2757, %v8182, -inf
    %8189 = vmax.xlane.f32.xlu0 %v8188
    %v8190 = vpop.xlane.xlu0 %8189
    %v8191 = vsel %vm2757, %v8185, -inf
    %8192 = vmax.xlane.f32.xlu0 %v8191
    %v8193 = vpop.xlane.xlu0 %8192
    %v8194 = vsub.f32 %v8182, %v8190
    %v8195 = vsub.f32 %v8185, %v8193
    %v8196 = vmul.f32 %v8194, 1.442695
    %v8197 = vpow.pop %v8196
    %v8198 = vmul.f32 %v8195, 1.442695
    %v8199 = vpow.pop %v8198
    %v8200 = vsel %vm2757, %v8197, 0.0
    %8201 = vadd.xlane.f32.xlu0 %v8200
    %v8202 = vpop.xlane.xlu0 %8201
    %v8203 = vsel %vm2757, %v8199, 0.0
    %8204 = vadd.xlane.f32.xlu0 %v8203
    %v8205 = vpop.xlane.xlu0 %8204
    %v8206 = vrcp.pop %v8202
    %v8207 = vmul.f32 %v8197, %v8206
    %v8208 = vrcp.pop %v8205
    %v8209 = vmul.f32 %v8199, %v8208
    %8210 = vrot.lane.b32.xlu0 %v7519, 84
    %v8211 = vpop.permute.xlu0 %8210
    %v8214 = vsel %vm2757, %v8207, 0
    %v8217 = vsel %vm2757, %v8209, 0
    %8219 = vmatprep.subr.mxu0 0.0
    %8220 = vmatpush1.msra.mxu0 %v8211
    %8221 = vmatprep.subr.mxu0 0.0
    %8222 = vmatpush1.msra.mxu0 0.0
    %8223 = vmatprep.subr.mxu0 0.0
    %8224 = vmatpush1.msra.mxu0 0.0
    %8225 = vmatprep.subr.mxu0 0.0
    %8226 = vmatpush1.msra.mxu0 0.0
    %8227 = vmatprep.subr.mxu0 0.0
    %8228 = vmatpush1.msra.mxu0 0.0
    %8229 = vmatprep.subr.mxu0 0.0
    %8230 = vmatpush1.msra.mxu0 0.0
    %8231 = vmatprep.subr.mxu0 0.0
    %8232 = vmatpush1.msra.mxu0 0.0
    %8233 = vmatprep.subr.mxu0 0.0
    %8234 = vmatpush1.msra.mxu0 0.0
    %8235 = vmatprep.subr.mxu0 0.0
    %8236 = vmatpush1.msra.mxu0 0.0
    %8237 = vmatprep.subr.mxu0 0.0
    %8238 = vmatpush1.msra.mxu0 0.0
    %8239 = vmatprep.subr.mxu0 0.0
    %8240 = vmatpush1.msra.mxu0 0.0
    %8241 = vmatprep.subr.mxu0 0.0
    %8242 = vmatpush1.msra.mxu0 0.0
    %8243 = vmatprep.subr.mxu0 0.0
    %8244 = vmatpush1.msra.mxu0 0.0
    %8245 = vmatprep.subr.mxu0 0.0
    %8246 = vmatpush1.msra.mxu0 0.0
    %8247 = vmatprep.subr.mxu0 0.0
    %8248 = vmatpush1.msra.mxu0 0.0
    %8249 = vmatprep.subr.mxu0 0.0
    %8250 = vmatpush1.msra.mxu0 0.0
    %8251 = vmatprep.subr.mxu0 0.0
    %8252 = vmatpush1.msra.mxu0 0.0
    %8253 = vmatprep.subr.mxu0 0.0
    %8254 = vmatpush1.msra.mxu0 0.0
    %8255 = vmatprep.subr.mxu0 0.0
    %8256 = vmatpush1.msra.mxu0 0.0
    %8257 = vmatprep.subr.mxu0 0.0
    %8258 = vmatpush1.msra.mxu0 0.0
    %8259 = vmatprep.subr.mxu0 0.0
    %8260 = vmatpush1.msra.mxu0 0.0
    %8261 = vmatprep.subr.mxu0 0.0
    %8262 = vmatpush1.msra.mxu0 0.0
    %8263 = vmatprep.subr.mxu0 0.0
    %8264 = vmatpush1.msra.mxu0 0.0
    %8265 = vmatprep.subr.mxu0 0.0
    %8266 = vmatpush1.msra.mxu0 0.0
    %8267 = vmatprep.subr.mxu0 0.0
    %8268 = vmatpush1.msra.mxu0 0.0
    %8269 = vmatprep.subr.mxu0 0.0
    %8270 = vmatpush1.msra.mxu0 0.0
    %8271 = vmatprep.subr.mxu0 0.0
    %8272 = vmatpush1.msra.mxu0 0.0
    %8273 = vmatprep.subr.mxu0 0.0
    %8274 = vmatpush1.msra.mxu0 0.0
    %8275 = vmatprep.subr.mxu0 0.0
    %8276 = vmatpush1.msra.mxu0 0.0
    %8277 = vmatprep.subr.mxu0 0.0
    %8278 = vmatpush1.msra.mxu0 0.0
    %8279 = vmatprep.subr.mxu0 0.0
    %8280 = vmatpush1.msra.mxu0 0.0
    %8281 = vmatprep.subr.mxu0 0.0
    %8282 = vmatpush1.msra.mxu0 0.0
    %8283 = vmatprep.mubr.f32.mxu0 0.0
    %8284 = vmatmul.mubr.f32.gmra.mrb[0].mxu0 %v8214
    %v8285 = vpop.f32.mrb[0].mxu0
    %v8286 = vadd.f32 0.0, %v8285
    %v8287 = vpop.f32.mrb[0].mxu0
    %8288 = vmatprep.mubr.f32.mxu0 0.0
    %8289 = vmatmul.mubr.f32.gmra.mrb[0].mxu0 %v8217
    %v8290 = vpop.f32.mrb[0].mxu0
    %v8291 = vadd.f32 0.0, %v8290
    %v8292 = vpop.f32.mrb[0].mxu0
    %8293 = vdwg.mxu0
    %v8294 = vpack.c.bf16 %v8291, %v8286
    %v8296 = vsel %vm506, %v8294, 0
    %8298 = vmatprep.subr.bf16.mxu0 0
    %8299 = vmatpush1.bf16.msra.mxu0 %v3501
    %8300 = vmatprep.subr.bf16.mxu0 0
    %8301 = vmatpush1.bf16.msra.mxu0 0
    %8302 = vmatprep.subr.bf16.mxu0 0
    %8303 = vmatpush1.bf16.msra.mxu0 0
    %8304 = vmatprep.subr.bf16.mxu0 0
    %8305 = vmatpush1.bf16.msra.mxu0 0
    %8306 = vmatprep.subr.bf16.mxu0 0
    %8307 = vmatpush1.bf16.msra.mxu0 0
    %8308 = vmatprep.subr.bf16.mxu0 0
    %8309 = vmatpush1.bf16.msra.mxu0 0
    %8310 = vmatprep.subr.bf16.mxu0 0
    %8311 = vmatpush1.bf16.msra.mxu0 0
    %8312 = vmatprep.subr.bf16.mxu0 0
    %8313 = vmatpush1.bf16.msra.mxu0 0
    %8314 = vmatprep.subr.bf16.mxu0 0
    %8315 = vmatpush1.bf16.msra.mxu0 0
    %8316 = vmatprep.subr.bf16.mxu0 0
    %8317 = vmatpush1.bf16.msra.mxu0 0
    %8318 = vmatprep.subr.bf16.mxu0 0
    %8319 = vmatpush1.bf16.msra.mxu0 0
    %8320 = vmatprep.subr.bf16.mxu0 0
    %8321 = vmatpush1.bf16.msra.mxu0 0
    %8322 = vmatprep.subr.bf16.mxu0 0
    %8323 = vmatpush1.bf16.msra.mxu0 0
    %8324 = vmatprep.subr.bf16.mxu0 0
    %8325 = vmatpush1.bf16.msra.mxu0 0
    %8326 = vmatprep.subr.bf16.mxu0 0
    %8327 = vmatpush1.bf16.msra.mxu0 0
    %8328 = vmatprep.subr.bf16.mxu0 0
    %8329 = vmatpush1.bf16.msra.mxu0 0
    %8330 = vmatprep.mubr.bf16.mxu0 0
    %8331 = vmatmul.mubr.bf16.gmra.mrb[0].mxu0 %v8296
    %v8332 = vpop.f32.mrb[0].mxu0
    %v8333 = vadd.f32 0.0, %v8332
    %v8334 = vpop.f32.mrb[0].mxu0
    %v8335 = vpop.f32.mrb[0].mxu0
    %v8336 = vadd.f32 0.0, %v8335
    %v8337 = vpop.f32.mrb[0].mxu0
    %8338 = vdwg.mxu0
    %v8339 = vadd.f32 %v8135, %v8333
    %v8340 = vadd.f32 %v8136, %v8336
    %8341 = vrot.lane.b32.xlu0 %v7524, 112
    %v8342 = vpop.permute.xlu0 %8341
    %8343 = vrot.lane.b32.xlu0 %v7525, 112
    %v8344 = vpop.permute.xlu0 %8343
    %v8346 = vsel %vm506, %v8342, 0
    %v8349 = vsel %vm506, %v8344, 0
    %8351 = vmatprep.subr.bf16.mxu0 0
    %8352 = vmatpush1.bf16.xpose.msra.mxu0 %v8349
    %8353 = vmatprep.subr.bf16.mxu0 0
    %8354 = vmatpush1.bf16.xpose.msra.mxu0 0
    %8355 = vmatprep.subr.bf16.mxu0 0
    %8356 = vmatpush1.bf16.xpose.msra.mxu0 0
    %8357 = vmatprep.subr.bf16.mxu0 0
    %8358 = vmatpush1.bf16.xpose.msra.mxu0 0
    %8359 = vmatprep.subr.bf16.mxu0 0
    %8360 = vmatpush1.bf16.xpose.msra.mxu0 0
    %8361 = vmatprep.subr.bf16.mxu0 0
    %8362 = vmatpush1.bf16.xpose.msra.mxu0 0
    %8363 = vmatprep.subr.bf16.mxu0 0
    %8364 = vmatpush1.bf16.xpose.msra.mxu0 0
    %8365 = vmatprep.subr.bf16.mxu0 0
    %8366 = vmatpush1.bf16.xpose.msra.mxu0 0
    %8367 = vmatprep.subr.bf16.mxu0 0
    %8368 = vmatpush1.bf16.xpose.msra.mxu0 0
    %8369 = vmatprep.subr.bf16.mxu0 0
    %8370 = vmatpush1.bf16.xpose.msra.mxu0 0
    %8371 = vmatprep.subr.bf16.mxu0 0
    %8372 = vmatpush1.bf16.xpose.msra.mxu0 0
    %8373 = vmatprep.subr.bf16.mxu0 0
    %8374 = vmatpush1.bf16.xpose.msra.mxu0 0
    %8375 = vmatprep.subr.bf16.mxu0 0
    %8376 = vmatpush1.bf16.xpose.msra.mxu0 0
    %8377 = vmatprep.subr.bf16.mxu0 0
    %8378 = vmatpush1.bf16.xpose.msra.mxu0 0
    %8379 = vmatprep.subr.bf16.mxu0 0
    %8380 = vmatpush1.bf16.xpose.msra.mxu0 0
    %8381 = vmatprep.subr.bf16.mxu0 0
    %8382 = vmatpush1.bf16.xpose.msra.mxu0 0
    %8383 = vmatprep.mubr.bf16.mxu0 0
    %8384 = vmatmul.mubr.bf16.gmra.mrb[0].mxu0 %v8346
    %v8385 = vpop.f32.mrb[0].mxu0
    %v8386 = vadd.f32 0.0, %v8385
    %v8387 = vpop.f32.mrb[0].mxu0
    %v8388 = vpop.f32.mrb[0].mxu0
    %v8389 = vadd.f32 0.0, %v8388
    %v8390 = vpop.f32.mrb[0].mxu0
    %8391 = vdwg.mxu0
    %v8392 = vsel %vm2757, %v8386, -inf
    %8393 = vmax.xlane.f32.xlu0 %v8392
    %v8394 = vpop.xlane.xlu0 %8393
    %v8395 = vsel %vm2757, %v8389, -inf
    %8396 = vmax.xlane.f32.xlu0 %v8395
    %v8397 = vpop.xlane.xlu0 %8396
    %v8398 = vsub.f32 %v8386, %v8394
    %v8399 = vsub.f32 %v8389, %v8397
    %v8400 = vmul.f32 %v8398, 1.442695
    %v8401 = vpow.pop %v8400
    %v8402 = vmul.f32 %v8399, 1.442695
    %v8403 = vpow.pop %v8402
    %v8404 = vsel %vm2757, %v8401, 0.0
    %8405 = vadd.xlane.f32.xlu0 %v8404
    %v8406 = vpop.xlane.xlu0 %8405
    %v8407 = vsel %vm2757, %v8403, 0.0
    %8408 = vadd.xlane.f32.xlu0 %v8407
    %v8409 = vpop.xlane.xlu0 %8408
    %v8410 = vrcp.pop %v8406
    %v8411 = vmul.f32 %v8401, %v8410
    %v8412 = vrcp.pop %v8409
    %v8413 = vmul.f32 %v8403, %v8412
    %8414 = vrot.lane.b32.xlu0 %v7519, 80
    %v8415 = vpop.permute.xlu0 %8414
    %v8418 = vsel %vm2757, %v8411, 0
    %v8421 = vsel %vm2757, %v8413, 0
    %8423 = vmatprep.subr.mxu0 0.0
    %8424 = vmatpush1.msra.mxu0 %v8415
    %8425 = vmatprep.subr.mxu0 0.0
    %8426 = vmatpush1.msra.mxu0 0.0
    %8427 = vmatprep.subr.mxu0 0.0
    %8428 = vmatpush1.msra.mxu0 0.0
    %8429 = vmatprep.subr.mxu0 0.0
    %8430 = vmatpush1.msra.mxu0 0.0
    %8431 = vmatprep.subr.mxu0 0.0
    %8432 = vmatpush1.msra.mxu0 0.0
    %8433 = vmatprep.subr.mxu0 0.0
    %8434 = vmatpush1.msra.mxu0 0.0
    %8435 = vmatprep.subr.mxu0 0.0
    %8436 = vmatpush1.msra.mxu0 0.0
    %8437 = vmatprep.subr.mxu0 0.0
    %8438 = vmatpush1.msra.mxu0 0.0
    %8439 = vmatprep.subr.mxu0 0.0
    %8440 = vmatpush1.msra.mxu0 0.0
    %8441 = vmatprep.subr.mxu0 0.0
    %8442 = vmatpush1.msra.mxu0 0.0
    %8443 = vmatprep.subr.mxu0 0.0
    %8444 = vmatpush1.msra.mxu0 0.0
    %8445 = vmatprep.subr.mxu0 0.0
    %8446 = vmatpush1.msra.mxu0 0.0
    %8447 = vmatprep.subr.mxu0 0.0
    %8448 = vmatpush1.msra.mxu0 0.0
    %8449 = vmatprep.subr.mxu0 0.0
    %8450 = vmatpush1.msra.mxu0 0.0
    %8451 = vmatprep.subr.mxu0 0.0
    %8452 = vmatpush1.msra.mxu0 0.0
    %8453 = vmatprep.subr.mxu0 0.0
    %8454 = vmatpush1.msra.mxu0 0.0
    %8455 = vmatprep.subr.mxu0 0.0
    %8456 = vmatpush1.msra.mxu0 0.0
    %8457 = vmatprep.subr.mxu0 0.0
    %8458 = vmatpush1.msra.mxu0 0.0
    %8459 = vmatprep.subr.mxu0 0.0
    %8460 = vmatpush1.msra.mxu0 0.0
    %8461 = vmatprep.subr.mxu0 0.0
    %8462 = vmatpush1.msra.mxu0 0.0
    %8463 = vmatprep.subr.mxu0 0.0
    %8464 = vmatpush1.msra.mxu0 0.0
    %8465 = vmatprep.subr.mxu0 0.0
    %8466 = vmatpush1.msra.mxu0 0.0
    %8467 = vmatprep.subr.mxu0 0.0
    %8468 = vmatpush1.msra.mxu0 0.0
    %8469 = vmatprep.subr.mxu0 0.0
    %8470 = vmatpush1.msra.mxu0 0.0
    %8471 = vmatprep.subr.mxu0 0.0
    %8472 = vmatpush1.msra.mxu0 0.0
    %8473 = vmatprep.subr.mxu0 0.0
    %8474 = vmatpush1.msra.mxu0 0.0
    %8475 = vmatprep.subr.mxu0 0.0
    %8476 = vmatpush1.msra.mxu0 0.0
    %8477 = vmatprep.subr.mxu0 0.0
    %8478 = vmatpush1.msra.mxu0 0.0
    %8479 = vmatprep.subr.mxu0 0.0
    %8480 = vmatpush1.msra.mxu0 0.0
    %8481 = vmatprep.subr.mxu0 0.0
    %8482 = vmatpush1.msra.mxu0 0.0
    %8483 = vmatprep.subr.mxu0 0.0
    %8484 = vmatpush1.msra.mxu0 0.0
    %8485 = vmatprep.subr.mxu0 0.0
    %8486 = vmatpush1.msra.mxu0 0.0
    %8487 = vmatprep.mubr.f32.mxu0 0.0
    %8488 = vmatmul.mubr.f32.gmra.mrb[0].mxu0 %v8418
    %v8489 = vpop.f32.mrb[0].mxu0
    %v8490 = vadd.f32 0.0, %v8489
    %v8491 = vpop.f32.mrb[0].mxu0
    %8492 = vmatprep.mubr.f32.mxu0 0.0
    %8493 = vmatmul.mubr.f32.gmra.mrb[0].mxu0 %v8421
    %v8494 = vpop.f32.mrb[0].mxu0
    %v8495 = vadd.f32 0.0, %v8494
    %v8496 = vpop.f32.mrb[0].mxu0
    %8497 = vdwg.mxu0
    %v8498 = vpack.c.bf16 %v8495, %v8490
    %v8500 = vsel %vm506, %v8498, 0
    %8502 = vmatprep.subr.bf16.mxu0 0
    %8503 = vmatpush1.bf16.msra.mxu0 %v3708
    %8504 = vmatprep.subr.bf16.mxu0 0
    %8505 = vmatpush1.bf16.msra.mxu0 0
    %8506 = vmatprep.subr.bf16.mxu0 0
    %8507 = vmatpush1.bf16.msra.mxu0 0
    %8508 = vmatprep.subr.bf16.mxu0 0
    %8509 = vmatpush1.bf16.msra.mxu0 0
    %8510 = vmatprep.subr.bf16.mxu0 0
    %8511 = vmatpush1.bf16.msra.mxu0 0
    %8512 = vmatprep.subr.bf16.mxu0 0
    %8513 = vmatpush1.bf16.msra.mxu0 0
    %8514 = vmatprep.subr.bf16.mxu0 0
    %8515 = vmatpush1.bf16.msra.mxu0 0
    %8516 = vmatprep.subr.bf16.mxu0 0
    %8517 = vmatpush1.bf16.msra.mxu0 0
    %8518 = vmatprep.subr.bf16.mxu0 0
    %8519 = vmatpush1.bf16.msra.mxu0 0
    %8520 = vmatprep.subr.bf16.mxu0 0
    %8521 = vmatpush1.bf16.msra.mxu0 0
    %8522 = vmatprep.subr.bf16.mxu0 0
    %8523 = vmatpush1.bf16.msra.mxu0 0
    %8524 = vmatprep.subr.bf16.mxu0 0
    %8525 = vmatpush1.bf16.msra.mxu0 0
    %8526 = vmatprep.subr.bf16.mxu0 0
    %8527 = vmatpush1.bf16.msra.mxu0 0
    %8528 = vmatprep.subr.bf16.mxu0 0
    %8529 = vmatpush1.bf16.msra.mxu0 0
    %8530 = vmatprep.subr.bf16.mxu0 0
    %8531 = vmatpush1.bf16.msra.mxu0 0
    %8532 = vmatprep.subr.bf16.mxu0 0
    %8533 = vmatpush1.bf16.msra.mxu0 0
    %8534 = vmatprep.mubr.bf16.mxu0 0
    %8535 = vmatmul.mubr.bf16.gmra.mrb[0].mxu0 %v8500
    %v8536 = vpop.f32.mrb[0].mxu0
    %v8537 = vadd.f32 0.0, %v8536
    %v8538 = vpop.f32.mrb[0].mxu0
    %v8539 = vpop.f32.mrb[0].mxu0
    %v8540 = vadd.f32 0.0, %v8539
    %v8541 = vpop.f32.mrb[0].mxu0
    %8542 = vdwg.mxu0
    %v8543 = vadd.f32 %v8339, %v8537
    %v8544 = vadd.f32 %v8340, %v8540
    %8545 = vrot.lane.b32.xlu0 %v7524, 108
    %v8546 = vpop.permute.xlu0 %8545
    %8547 = vrot.lane.b32.xlu0 %v7525, 108
    %v8548 = vpop.permute.xlu0 %8547
    %v8550 = vsel %vm506, %v8546, 0
    %v8553 = vsel %vm506, %v8548, 0
    %8555 = vmatprep.subr.bf16.mxu0 0
    %8556 = vmatpush1.bf16.xpose.msra.mxu0 %v8553
    %8557 = vmatprep.subr.bf16.mxu0 0
    %8558 = vmatpush1.bf16.xpose.msra.mxu0 0
    %8559 = vmatprep.subr.bf16.mxu0 0
    %8560 = vmatpush1.bf16.xpose.msra.mxu0 0
    %8561 = vmatprep.subr.bf16.mxu0 0
    %8562 = vmatpush1.bf16.xpose.msra.mxu0 0
    %8563 = vmatprep.subr.bf16.mxu0 0
    %8564 = vmatpush1.bf16.xpose.msra.mxu0 0
    %8565 = vmatprep.subr.bf16.mxu0 0
    %8566 = vmatpush1.bf16.xpose.msra.mxu0 0
    %8567 = vmatprep.subr.bf16.mxu0 0
    %8568 = vmatpush1.bf16.xpose.msra.mxu0 0
    %8569 = vmatprep.subr.bf16.mxu0 0
    %8570 = vmatpush1.bf16.xpose.msra.mxu0 0
    %8571 = vmatprep.subr.bf16.mxu0 0
    %8572 = vmatpush1.bf16.xpose.msra.mxu0 0
    %8573 = vmatprep.subr.bf16.mxu0 0
    %8574 = vmatpush1.bf16.xpose.msra.mxu0 0
    %8575 = vmatprep.subr.bf16.mxu0 0
    %8576 = vmatpush1.bf16.xpose.msra.mxu0 0
    %8577 = vmatprep.subr.bf16.mxu0 0
    %8578 = vmatpush1.bf16.xpose.msra.mxu0 0
    %8579 = vmatprep.subr.bf16.mxu0 0
    %8580 = vmatpush1.bf16.xpose.msra.mxu0 0
    %8581 = vmatprep.subr.bf16.mxu0 0
    %8582 = vmatpush1.bf16.xpose.msra.mxu0 0
    %8583 = vmatprep.subr.bf16.mxu0 0
    %8584 = vmatpush1.bf16.xpose.msra.mxu0 0
    %8585 = vmatprep.subr.bf16.mxu0 0
    %8586 = vmatpush1.bf16.xpose.msra.mxu0 0
    %8587 = vmatprep.mubr.bf16.mxu0 0
    %8588 = vmatmul.mubr.bf16.gmra.mrb[0].mxu0 %v8550
    %v8589 = vpop.f32.mrb[0].mxu0
    %v8590 = vadd.f32 0.0, %v8589
    %v8591 = vpop.f32.mrb[0].mxu0
    %v8592 = vpop.f32.mrb[0].mxu0
    %v8593 = vadd.f32 0.0, %v8592
    %v8594 = vpop.f32.mrb[0].mxu0
    %8595 = vdwg.mxu0
    %v8596 = vsel %vm2757, %v8590, -inf
    %8597 = vmax.xlane.f32.xlu0 %v8596
    %v8598 = vpop.xlane.xlu0 %8597
    %v8599 = vsel %vm2757, %v8593, -inf
    %8600 = vmax.xlane.f32.xlu0 %v8599
    %v8601 = vpop.xlane.xlu0 %8600
    %v8602 = vsub.f32 %v8590, %v8598
    %v8603 = vsub.f32 %v8593, %v8601
    %v8604 = vmul.f32 %v8602, 1.442695
    %v8605 = vpow.pop %v8604
    %v8606 = vmul.f32 %v8603, 1.442695
    %v8607 = vpow.pop %v8606
    %v8608 = vsel %vm2757, %v8605, 0.0
    %8609 = vadd.xlane.f32.xlu0 %v8608
    %v8610 = vpop.xlane.xlu0 %8609
    %v8611 = vsel %vm2757, %v8607, 0.0
    %8612 = vadd.xlane.f32.xlu0 %v8611
    %v8613 = vpop.xlane.xlu0 %8612
    %v8614 = vrcp.pop %v8610
    %v8615 = vmul.f32 %v8605, %v8614
    %v8616 = vrcp.pop %v8613
    %v8617 = vmul.f32 %v8607, %v8616
    %8618 = vrot.lane.b32.xlu0 %v7519, 76
    %v8619 = vpop.permute.xlu0 %8618
    %v8622 = vsel %vm2757, %v8615, 0
    %v8625 = vsel %vm2757, %v8617, 0
    %8627 = vmatprep.subr.mxu0 0.0
    %8628 = vmatpush1.msra.mxu0 %v8619
    %8629 = vmatprep.subr.mxu0 0.0
    %8630 = vmatpush1.msra.mxu0 0.0
    %8631 = vmatprep.subr.mxu0 0.0
    %8632 = vmatpush1.msra.mxu0 0.0
    %8633 = vmatprep.subr.mxu0 0.0
    %8634 = vmatpush1.msra.mxu0 0.0
    %8635 = vmatprep.subr.mxu0 0.0
    %8636 = vmatpush1.msra.mxu0 0.0
    %8637 = vmatprep.subr.mxu0 0.0
    %8638 = vmatpush1.msra.mxu0 0.0
    %8639 = vmatprep.subr.mxu0 0.0
    %8640 = vmatpush1.msra.mxu0 0.0
    %8641 = vmatprep.subr.mxu0 0.0
    %8642 = vmatpush1.msra.mxu0 0.0
    %8643 = vmatprep.subr.mxu0 0.0
    %8644 = vmatpush1.msra.mxu0 0.0
    %8645 = vmatprep.subr.mxu0 0.0
    %8646 = vmatpush1.msra.mxu0 0.0
    %8647 = vmatprep.subr.mxu0 0.0
    %8648 = vmatpush1.msra.mxu0 0.0
    %8649 = vmatprep.subr.mxu0 0.0
    %8650 = vmatpush1.msra.mxu0 0.0
    %8651 = vmatprep.subr.mxu0 0.0
    %8652 = vmatpush1.msra.mxu0 0.0
    %8653 = vmatprep.subr.mxu0 0.0
    %8654 = vmatpush1.msra.mxu0 0.0
    %8655 = vmatprep.subr.mxu0 0.0
    %8656 = vmatpush1.msra.mxu0 0.0
    %8657 = vmatprep.subr.mxu0 0.0
    %8658 = vmatpush1.msra.mxu0 0.0
    %8659 = vmatprep.subr.mxu0 0.0
    %8660 = vmatpush1.msra.mxu0 0.0
    %8661 = vmatprep.subr.mxu0 0.0
    %8662 = vmatpush1.msra.mxu0 0.0
    %8663 = vmatprep.subr.mxu0 0.0
    %8664 = vmatpush1.msra.mxu0 0.0
    %8665 = vmatprep.subr.mxu0 0.0
    %8666 = vmatpush1.msra.mxu0 0.0
    %8667 = vmatprep.subr.mxu0 0.0
    %8668 = vmatpush1.msra.mxu0 0.0
    %8669 = vmatprep.subr.mxu0 0.0
    %8670 = vmatpush1.msra.mxu0 0.0
    %8671 = vmatprep.subr.mxu0 0.0
    %8672 = vmatpush1.msra.mxu0 0.0
    %8673 = vmatprep.subr.mxu0 0.0
    %8674 = vmatpush1.msra.mxu0 0.0
    %8675 = vmatprep.subr.mxu0 0.0
    %8676 = vmatpush1.msra.mxu0 0.0
    %8677 = vmatprep.subr.mxu0 0.0
    %8678 = vmatpush1.msra.mxu0 0.0
    %8679 = vmatprep.subr.mxu0 0.0
    %8680 = vmatpush1.msra.mxu0 0.0
    %8681 = vmatprep.subr.mxu0 0.0
    %8682 = vmatpush1.msra.mxu0 0.0
    %8683 = vmatprep.subr.mxu0 0.0
    %8684 = vmatpush1.msra.mxu0 0.0
    %8685 = vmatprep.subr.mxu0 0.0
    %8686 = vmatpush1.msra.mxu0 0.0
    %8687 = vmatprep.subr.mxu0 0.0
    %8688 = vmatpush1.msra.mxu0 0.0
    %8689 = vmatprep.subr.mxu0 0.0
    %8690 = vmatpush1.msra.mxu0 0.0
    %8691 = vmatprep.mubr.f32.mxu0 0.0
    %8692 = vmatmul.mubr.f32.gmra.mrb[0].mxu0 %v8622
    %v8693 = vpop.f32.mrb[0].mxu0
    %v8694 = vadd.f32 0.0, %v8693
    %v8695 = vpop.f32.mrb[0].mxu0
    %8696 = vmatprep.mubr.f32.mxu0 0.0
    %8697 = vmatmul.mubr.f32.gmra.mrb[0].mxu0 %v8625
    %v8698 = vpop.f32.mrb[0].mxu0
    %v8699 = vadd.f32 0.0, %v8698
    %v8700 = vpop.f32.mrb[0].mxu0
    %8701 = vdwg.mxu0
    %v8702 = vpack.c.bf16 %v8699, %v8694
    %v8704 = vsel %vm506, %v8702, 0
    %8706 = vmatprep.subr.bf16.mxu0 0
    %8707 = vmatpush1.bf16.msra.mxu0 %v3919
    %8708 = vmatprep.subr.bf16.mxu0 0
    %8709 = vmatpush1.bf16.msra.mxu0 0
    %8710 = vmatprep.subr.bf16.mxu0 0
    %8711 = vmatpush1.bf16.msra.mxu0 0
    %8712 = vmatprep.subr.bf16.mxu0 0
    %8713 = vmatpush1.bf16.msra.mxu0 0
    %8714 = vmatprep.subr.bf16.mxu0 0
    %8715 = vmatpush1.bf16.msra.mxu0 0
    %8716 = vmatprep.subr.bf16.mxu0 0
    %8717 = vmatpush1.bf16.msra.mxu0 0
    %8718 = vmatprep.subr.bf16.mxu0 0
    %8719 = vmatpush1.bf16.msra.mxu0 0
    %8720 = vmatprep.subr.bf16.mxu0 0
    %8721 = vmatpush1.bf16.msra.mxu0 0
    %8722 = vmatprep.subr.bf16.mxu0 0
    %8723 = vmatpush1.bf16.msra.mxu0 0
    %8724 = vmatprep.subr.bf16.mxu0 0
    %8725 = vmatpush1.bf16.msra.mxu0 0
    %8726 = vmatprep.subr.bf16.mxu0 0
    %8727 = vmatpush1.bf16.msra.mxu0 0
    %8728 = vmatprep.subr.bf16.mxu0 0
    %8729 = vmatpush1.bf16.msra.mxu0 0
    %8730 = vmatprep.subr.bf16.mxu0 0
    %8731 = vmatpush1.bf16.msra.mxu0 0
    %8732 = vmatprep.subr.bf16.mxu0 0
    %8733 = vmatpush1.bf16.msra.mxu0 0
    %8734 = vmatprep.subr.bf16.mxu0 0
    %8735 = vmatpush1.bf16.msra.mxu0 0
    %8736 = vmatprep.subr.bf16.mxu0 0
    %8737 = vmatpush1.bf16.msra.mxu0 0
    %8738 = vmatprep.mubr.bf16.mxu0 0
    %8739 = vmatmul.mubr.bf16.gmra.mrb[0].mxu0 %v8704
    %v8740 = vpop.f32.mrb[0].mxu0
    %v8741 = vadd.f32 0.0, %v8740
    %v8742 = vpop.f32.mrb[0].mxu0
    %v8743 = vpop.f32.mrb[0].mxu0
    %v8744 = vadd.f32 0.0, %v8743
    %v8745 = vpop.f32.mrb[0].mxu0
    %8746 = vdwg.mxu0
    %v8747 = vadd.f32 %v8543, %v8741
    %v8748 = vadd.f32 %v8544, %v8744
    %8749 = vrot.lane.b32.xlu0 %v7524, 104
    %v8750 = vpop.permute.xlu0 %8749
    %8751 = vrot.lane.b32.xlu0 %v7525, 104
    %v8752 = vpop.permute.xlu0 %8751
    %v8754 = vsel %vm506, %v8750, 0
    %v8757 = vsel %vm506, %v8752, 0
    %8759 = vmatprep.subr.bf16.mxu0 0
    %8760 = vmatpush1.bf16.xpose.msra.mxu0 %v8757
    %8761 = vmatprep.subr.bf16.mxu0 0
    %8762 = vmatpush1.bf16.xpose.msra.mxu0 0
    %8763 = vmatprep.subr.bf16.mxu0 0
    %8764 = vmatpush1.bf16.xpose.msra.mxu0 0
    %8765 = vmatprep.subr.bf16.mxu0 0
    %8766 = vmatpush1.bf16.xpose.msra.mxu0 0
    %8767 = vmatprep.subr.bf16.mxu0 0
    %8768 = vmatpush1.bf16.xpose.msra.mxu0 0
    %8769 = vmatprep.subr.bf16.mxu0 0
    %8770 = vmatpush1.bf16.xpose.msra.mxu0 0
    %8771 = vmatprep.subr.bf16.mxu0 0
    %8772 = vmatpush1.bf16.xpose.msra.mxu0 0
    %8773 = vmatprep.subr.bf16.mxu0 0
    %8774 = vmatpush1.bf16.xpose.msra.mxu0 0
    %8775 = vmatprep.subr.bf16.mxu0 0
    %8776 = vmatpush1.bf16.xpose.msra.mxu0 0
    %8777 = vmatprep.subr.bf16.mxu0 0
    %8778 = vmatpush1.bf16.xpose.msra.mxu0 0
    %8779 = vmatprep.subr.bf16.mxu0 0
    %8780 = vmatpush1.bf16.xpose.msra.mxu0 0
    %8781 = vmatprep.subr.bf16.mxu0 0
    %8782 = vmatpush1.bf16.xpose.msra.mxu0 0
    %8783 = vmatprep.subr.bf16.mxu0 0
    %8784 = vmatpush1.bf16.xpose.msra.mxu0 0
    %8785 = vmatprep.subr.bf16.mxu0 0
    %8786 = vmatpush1.bf16.xpose.msra.mxu0 0
    %8787 = vmatprep.subr.bf16.mxu0 0
    %8788 = vmatpush1.bf16.xpose.msra.mxu0 0
    %8789 = vmatprep.subr.bf16.mxu0 0
    %8790 = vmatpush1.bf16.xpose.msra.mxu0 0
    %8791 = vmatprep.mubr.bf16.mxu0 0
    %8792 = vmatmul.mubr.bf16.gmra.mrb[0].mxu0 %v8754
    %v8793 = vpop.f32.mrb[0].mxu0
    %v8794 = vadd.f32 0.0, %v8793
    %v8795 = vpop.f32.mrb[0].mxu0
    %v8796 = vpop.f32.mrb[0].mxu0
    %v8797 = vadd.f32 0.0, %v8796
    %v8798 = vpop.f32.mrb[0].mxu0
    %8799 = vdwg.mxu0
    %v8800 = vsel %vm2757, %v8794, -inf
    %8801 = vmax.xlane.f32.xlu0 %v8800
    %v8802 = vpop.xlane.xlu0 %8801
    %v8803 = vsel %vm2757, %v8797, -inf
    %8804 = vmax.xlane.f32.xlu0 %v8803
    %v8805 = vpop.xlane.xlu0 %8804
    %v8806 = vsub.f32 %v8794, %v8802
    %v8807 = vsub.f32 %v8797, %v8805
    %v8808 = vmul.f32 %v8806, 1.442695
    %v8809 = vpow.pop %v8808
    %v8810 = vmul.f32 %v8807, 1.442695
    %v8811 = vpow.pop %v8810
    %v8812 = vsel %vm2757, %v8809, 0.0
    %8813 = vadd.xlane.f32.xlu0 %v8812
    %v8814 = vpop.xlane.xlu0 %8813
    %v8815 = vsel %vm2757, %v8811, 0.0
    %8816 = vadd.xlane.f32.xlu0 %v8815
    %v8817 = vpop.xlane.xlu0 %8816
    %v8818 = vrcp.pop %v8814
    %v8819 = vmul.f32 %v8809, %v8818
    %v8820 = vrcp.pop %v8817
    %v8821 = vmul.f32 %v8811, %v8820
    %8822 = vrot.lane.b32.xlu0 %v7519, 72
    %v8823 = vpop.permute.xlu0 %8822
    %v8826 = vsel %vm2757, %v8819, 0
    %v8829 = vsel %vm2757, %v8821, 0
    %8831 = vmatprep.subr.mxu0 0.0
    %8832 = vmatpush1.msra.mxu0 %v8823
    %8833 = vmatprep.subr.mxu0 0.0
    %8834 = vmatpush1.msra.mxu0 0.0
    %8835 = vmatprep.subr.mxu0 0.0
    %8836 = vmatpush1.msra.mxu0 0.0
    %8837 = vmatprep.subr.mxu0 0.0
    %8838 = vmatpush1.msra.mxu0 0.0
    %8839 = vmatprep.subr.mxu0 0.0
    %8840 = vmatpush1.msra.mxu0 0.0
    %8841 = vmatprep.subr.mxu0 0.0
    %8842 = vmatpush1.msra.mxu0 0.0
    %8843 = vmatprep.subr.mxu0 0.0
    %8844 = vmatpush1.msra.mxu0 0.0
    %8845 = vmatprep.subr.mxu0 0.0
    %8846 = vmatpush1.msra.mxu0 0.0
    %8847 = vmatprep.subr.mxu0 0.0
    %8848 = vmatpush1.msra.mxu0 0.0
    %8849 = vmatprep.subr.mxu0 0.0
    %8850 = vmatpush1.msra.mxu0 0.0
    %8851 = vmatprep.subr.mxu0 0.0
    %8852 = vmatpush1.msra.mxu0 0.0
    %8853 = vmatprep.subr.mxu0 0.0
    %8854 = vmatpush1.msra.mxu0 0.0
    %8855 = vmatprep.subr.mxu0 0.0
    %8856 = vmatpush1.msra.mxu0 0.0
    %8857 = vmatprep.subr.mxu0 0.0
    %8858 = vmatpush1.msra.mxu0 0.0
    %8859 = vmatprep.subr.mxu0 0.0
    %8860 = vmatpush1.msra.mxu0 0.0
    %8861 = vmatprep.subr.mxu0 0.0
    %8862 = vmatpush1.msra.mxu0 0.0
    %8863 = vmatprep.subr.mxu0 0.0
    %8864 = vmatpush1.msra.mxu0 0.0
    %8865 = vmatprep.subr.mxu0 0.0
    %8866 = vmatpush1.msra.mxu0 0.0
    %8867 = vmatprep.subr.mxu0 0.0
    %8868 = vmatpush1.msra.mxu0 0.0
    %8869 = vmatprep.subr.mxu0 0.0
    %8870 = vmatpush1.msra.mxu0 0.0
    %8871 = vmatprep.subr.mxu0 0.0
    %8872 = vmatpush1.msra.mxu0 0.0
    %8873 = vmatprep.subr.mxu0 0.0
    %8874 = vmatpush1.msra.mxu0 0.0
    %8875 = vmatprep.subr.mxu0 0.0
    %8876 = vmatpush1.msra.mxu0 0.0
    %8877 = vmatprep.subr.mxu0 0.0
    %8878 = vmatpush1.msra.mxu0 0.0
    %8879 = vmatprep.subr.mxu0 0.0
    %8880 = vmatpush1.msra.mxu0 0.0
    %8881 = vmatprep.subr.mxu0 0.0
    %8882 = vmatpush1.msra.mxu0 0.0
    %8883 = vmatprep.subr.mxu0 0.0
    %8884 = vmatpush1.msra.mxu0 0.0
    %8885 = vmatprep.subr.mxu0 0.0
    %8886 = vmatpush1.msra.mxu0 0.0
    %8887 = vmatprep.subr.mxu0 0.0
    %8888 = vmatpush1.msra.mxu0 0.0
    %8889 = vmatprep.subr.mxu0 0.0
    %8890 = vmatpush1.msra.mxu0 0.0
    %8891 = vmatprep.subr.mxu0 0.0
    %8892 = vmatpush1.msra.mxu0 0.0
    %8893 = vmatprep.subr.mxu0 0.0
    %8894 = vmatpush1.msra.mxu0 0.0
    %8895 = vmatprep.mubr.f32.mxu0 0.0
    %8896 = vmatmul.mubr.f32.gmra.mrb[0].mxu0 %v8826
    %v8897 = vpop.f32.mrb[0].mxu0
    %v8898 = vadd.f32 0.0, %v8897
    %v8899 = vpop.f32.mrb[0].mxu0
    %8900 = vmatprep.mubr.f32.mxu0 0.0
    %8901 = vmatmul.mubr.f32.gmra.mrb[0].mxu0 %v8829
    %v8902 = vpop.f32.mrb[0].mxu0
    %v8903 = vadd.f32 0.0, %v8902
    %v8904 = vpop.f32.mrb[0].mxu0
    %8905 = vdwg.mxu0
    %v8906 = vpack.c.bf16 %v8903, %v8898
    %v8908 = vsel %vm506, %v8906, 0
    %8910 = vmatprep.subr.bf16.mxu0 0
    %8911 = vmatpush1.bf16.msra.mxu0 %v4126
    %8912 = vmatprep.subr.bf16.mxu0 0
    %8913 = vmatpush1.bf16.msra.mxu0 0
    %8914 = vmatprep.subr.bf16.mxu0 0
    %8915 = vmatpush1.bf16.msra.mxu0 0
    %8916 = vmatprep.subr.bf16.mxu0 0
    %8917 = vmatpush1.bf16.msra.mxu0 0
    %8918 = vmatprep.subr.bf16.mxu0 0
    %8919 = vmatpush1.bf16.msra.mxu0 0
    %8920 = vmatprep.subr.bf16.mxu0 0
    %8921 = vmatpush1.bf16.msra.mxu0 0
    %8922 = vmatprep.subr.bf16.mxu0 0
    %8923 = vmatpush1.bf16.msra.mxu0 0
    %8924 = vmatprep.subr.bf16.mxu0 0
    %8925 = vmatpush1.bf16.msra.mxu0 0
    %8926 = vmatprep.subr.bf16.mxu0 0
    %8927 = vmatpush1.bf16.msra.mxu0 0
    %8928 = vmatprep.subr.bf16.mxu0 0
    %8929 = vmatpush1.bf16.msra.mxu0 0
    %8930 = vmatprep.subr.bf16.mxu0 0
    %8931 = vmatpush1.bf16.msra.mxu0 0
    %8932 = vmatprep.subr.bf16.mxu0 0
    %8933 = vmatpush1.bf16.msra.mxu0 0
    %8934 = vmatprep.subr.bf16.mxu0 0
    %8935 = vmatpush1.bf16.msra.mxu0 0
    %8936 = vmatprep.subr.bf16.mxu0 0
    %8937 = vmatpush1.bf16.msra.mxu0 0
    %8938 = vmatprep.subr.bf16.mxu0 0
    %8939 = vmatpush1.bf16.msra.mxu0 0
    %8940 = vmatprep.subr.bf16.mxu0 0
    %8941 = vmatpush1.bf16.msra.mxu0 0
    %8942 = vmatprep.mubr.bf16.mxu0 0
    %8943 = vmatmul.mubr.bf16.gmra.mrb[0].mxu0 %v8908
    %v8944 = vpop.f32.mrb[0].mxu0
    %v8945 = vadd.f32 0.0, %v8944
    %v8946 = vpop.f32.mrb[0].mxu0
    %v8947 = vpop.f32.mrb[0].mxu0
    %v8948 = vadd.f32 0.0, %v8947
    %v8949 = vpop.f32.mrb[0].mxu0
    %8950 = vdwg.mxu0
    %v8951 = vadd.f32 %v8747, %v8945
    %v8952 = vadd.f32 %v8748, %v8948
    %8953 = vrot.lane.b32.xlu0 %v7524, 100
    %v8954 = vpop.permute.xlu0 %8953
    %8955 = vrot.lane.b32.xlu0 %v7525, 100
    %v8956 = vpop.permute.xlu0 %8955
    %v8958 = vsel %vm506, %v8954, 0
    %v8961 = vsel %vm506, %v8956, 0
    %8963 = vmatprep.subr.bf16.mxu0 0
    %8964 = vmatpush1.bf16.xpose.msra.mxu0 %v8961
    %8965 = vmatprep.subr.bf16.mxu0 0
    %8966 = vmatpush1.bf16.xpose.msra.mxu0 0
    %8967 = vmatprep.subr.bf16.mxu0 0
    %8968 = vmatpush1.bf16.xpose.msra.mxu0 0
    %8969 = vmatprep.subr.bf16.mxu0 0
    %8970 = vmatpush1.bf16.xpose.msra.mxu0 0
    %8971 = vmatprep.subr.bf16.mxu0 0
    %8972 = vmatpush1.bf16.xpose.msra.mxu0 0
    %8973 = vmatprep.subr.bf16.mxu0 0
    %8974 = vmatpush1.bf16.xpose.msra.mxu0 0
    %8975 = vmatprep.subr.bf16.mxu0 0
    %8976 = vmatpush1.bf16.xpose.msra.mxu0 0
    %8977 = vmatprep.subr.bf16.mxu0 0
    %8978 = vmatpush1.bf16.xpose.msra.mxu0 0
    %8979 = vmatprep.subr.bf16.mxu0 0
    %8980 = vmatpush1.bf16.xpose.msra.mxu0 0
    %8981 = vmatprep.subr.bf16.mxu0 0
    %8982 = vmatpush1.bf16.xpose.msra.mxu0 0
    %8983 = vmatprep.subr.bf16.mxu0 0
    %8984 = vmatpush1.bf16.xpose.msra.mxu0 0
    %8985 = vmatprep.subr.bf16.mxu0 0
    %8986 = vmatpush1.bf16.xpose.msra.mxu0 0
    %8987 = vmatprep.subr.bf16.mxu0 0
    %8988 = vmatpush1.bf16.xpose.msra.mxu0 0
    %8989 = vmatprep.subr.bf16.mxu0 0
    %8990 = vmatpush1.bf16.xpose.msra.mxu0 0
    %8991 = vmatprep.subr.bf16.mxu0 0
    %8992 = vmatpush1.bf16.xpose.msra.mxu0 0
    %8993 = vmatprep.subr.bf16.mxu0 0
    %8994 = vmatpush1.bf16.xpose.msra.mxu0 0
    %8995 = vmatprep.mubr.bf16.mxu0 0
    %8996 = vmatmul.mubr.bf16.gmra.mrb[0].mxu0 %v8958
    %v8997 = vpop.f32.mrb[0].mxu0
    %v8998 = vadd.f32 0.0, %v8997
    %v8999 = vpop.f32.mrb[0].mxu0
    %v9000 = vpop.f32.mrb[0].mxu0
    %v9001 = vadd.f32 0.0, %v9000
    %v9002 = vpop.f32.mrb[0].mxu0
    %9003 = vdwg.mxu0
    %v9004 = vsel %vm2757, %v8998, -inf
    %9005 = vmax.xlane.f32.xlu0 %v9004
    %v9006 = vpop.xlane.xlu0 %9005
    %v9007 = vsel %vm2757, %v9001, -inf
    %9008 = vmax.xlane.f32.xlu0 %v9007
    %v9009 = vpop.xlane.xlu0 %9008
    %v9010 = vsub.f32 %v8998, %v9006
    %v9011 = vsub.f32 %v9001, %v9009
    %v9012 = vmul.f32 %v9010, 1.442695
    %v9013 = vpow.pop %v9012
    %v9014 = vmul.f32 %v9011, 1.442695
    %v9015 = vpow.pop %v9014
    %v9016 = vsel %vm2757, %v9013, 0.0
    %9017 = vadd.xlane.f32.xlu0 %v9016
    %v9018 = vpop.xlane.xlu0 %9017
    %v9019 = vsel %vm2757, %v9015, 0.0
    %9020 = vadd.xlane.f32.xlu0 %v9019
    %v9021 = vpop.xlane.xlu0 %9020
    %v9022 = vrcp.pop %v9018
    %v9023 = vmul.f32 %v9013, %v9022
    %v9024 = vrcp.pop %v9021
    %v9025 = vmul.f32 %v9015, %v9024
    %9026 = vrot.lane.b32.xlu0 %v7519, 68
    %v9027 = vpop.permute.xlu0 %9026
    %v9030 = vsel %vm2757, %v9023, 0
    %v9033 = vsel %vm2757, %v9025, 0
    %9035 = vmatprep.subr.mxu0 0.0
    %9036 = vmatpush1.msra.mxu0 %v9027
    %9037 = vmatprep.subr.mxu0 0.0
    %9038 = vmatpush1.msra.mxu0 0.0
    %9039 = vmatprep.subr.mxu0 0.0
    %9040 = vmatpush1.msra.mxu0 0.0
    %9041 = vmatprep.subr.mxu0 0.0
    %9042 = vmatpush1.msra.mxu0 0.0
    %9043 = vmatprep.subr.mxu0 0.0
    %9044 = vmatpush1.msra.mxu0 0.0
    %9045 = vmatprep.subr.mxu0 0.0
    %9046 = vmatpush1.msra.mxu0 0.0
    %9047 = vmatprep.subr.mxu0 0.0
    %9048 = vmatpush1.msra.mxu0 0.0
    %9049 = vmatprep.subr.mxu0 0.0
    %9050 = vmatpush1.msra.mxu0 0.0
    %9051 = vmatprep.subr.mxu0 0.0
    %9052 = vmatpush1.msra.mxu0 0.0
    %9053 = vmatprep.subr.mxu0 0.0
    %9054 = vmatpush1.msra.mxu0 0.0
    %9055 = vmatprep.subr.mxu0 0.0
    %9056 = vmatpush1.msra.mxu0 0.0
    %9057 = vmatprep.subr.mxu0 0.0
    %9058 = vmatpush1.msra.mxu0 0.0
    %9059 = vmatprep.subr.mxu0 0.0
    %9060 = vmatpush1.msra.mxu0 0.0
    %9061 = vmatprep.subr.mxu0 0.0
    %9062 = vmatpush1.msra.mxu0 0.0
    %9063 = vmatprep.subr.mxu0 0.0
    %9064 = vmatpush1.msra.mxu0 0.0
    %9065 = vmatprep.subr.mxu0 0.0
    %9066 = vmatpush1.msra.mxu0 0.0
    %9067 = vmatprep.subr.mxu0 0.0
    %9068 = vmatpush1.msra.mxu0 0.0
    %9069 = vmatprep.subr.mxu0 0.0
    %9070 = vmatpush1.msra.mxu0 0.0
    %9071 = vmatprep.subr.mxu0 0.0
    %9072 = vmatpush1.msra.mxu0 0.0
    %9073 = vmatprep.subr.mxu0 0.0
    %9074 = vmatpush1.msra.mxu0 0.0
    %9075 = vmatprep.subr.mxu0 0.0
    %9076 = vmatpush1.msra.mxu0 0.0
    %9077 = vmatprep.subr.mxu0 0.0
    %9078 = vmatpush1.msra.mxu0 0.0
    %9079 = vmatprep.subr.mxu0 0.0
    %9080 = vmatpush1.msra.mxu0 0.0
    %9081 = vmatprep.subr.mxu0 0.0
    %9082 = vmatpush1.msra.mxu0 0.0
    %9083 = vmatprep.subr.mxu0 0.0
    %9084 = vmatpush1.msra.mxu0 0.0
    %9085 = vmatprep.subr.mxu0 0.0
    %9086 = vmatpush1.msra.mxu0 0.0
    %9087 = vmatprep.subr.mxu0 0.0
    %9088 = vmatpush1.msra.mxu0 0.0
    %9089 = vmatprep.subr.mxu0 0.0
    %9090 = vmatpush1.msra.mxu0 0.0
    %9091 = vmatprep.subr.mxu0 0.0
    %9092 = vmatpush1.msra.mxu0 0.0
    %9093 = vmatprep.subr.mxu0 0.0
    %9094 = vmatpush1.msra.mxu0 0.0
    %9095 = vmatprep.subr.mxu0 0.0
    %9096 = vmatpush1.msra.mxu0 0.0
    %9097 = vmatprep.subr.mxu0 0.0
    %9098 = vmatpush1.msra.mxu0 0.0
    %9099 = vmatprep.mubr.f32.mxu0 0.0
    %9100 = vmatmul.mubr.f32.gmra.mrb[0].mxu0 %v9030
    %v9101 = vpop.f32.mrb[0].mxu0
    %v9102 = vadd.f32 0.0, %v9101
    %v9103 = vpop.f32.mrb[0].mxu0
    %9104 = vmatprep.mubr.f32.mxu0 0.0
    %9105 = vmatmul.mubr.f32.gmra.mrb[0].mxu0 %v9033
    %v9106 = vpop.f32.mrb[0].mxu0
    %v9107 = vadd.f32 0.0, %v9106
    %v9108 = vpop.f32.mrb[0].mxu0
    %9109 = vdwg.mxu0
    %v9110 = vpack.c.bf16 %v9107, %v9102
    %v9112 = vsel %vm506, %v9110, 0
    %9114 = vmatprep.subr.bf16.mxu0 0
    %9115 = vmatpush1.bf16.msra.mxu0 %v4337
    %9116 = vmatprep.subr.bf16.mxu0 0
    %9117 = vmatpush1.bf16.msra.mxu0 0
    %9118 = vmatprep.subr.bf16.mxu0 0
    %9119 = vmatpush1.bf16.msra.mxu0 0
    %9120 = vmatprep.subr.bf16.mxu0 0
    %9121 = vmatpush1.bf16.msra.mxu0 0
    %9122 = vmatprep.subr.bf16.mxu0 0
    %9123 = vmatpush1.bf16.msra.mxu0 0
    %9124 = vmatprep.subr.bf16.mxu0 0
    %9125 = vmatpush1.bf16.msra.mxu0 0
    %9126 = vmatprep.subr.bf16.mxu0 0
    %9127 = vmatpush1.bf16.msra.mxu0 0
    %9128 = vmatprep.subr.bf16.mxu0 0
    %9129 = vmatpush1.bf16.msra.mxu0 0
    %9130 = vmatprep.subr.bf16.mxu0 0
    %9131 = vmatpush1.bf16.msra.mxu0 0
    %9132 = vmatprep.subr.bf16.mxu0 0
    %9133 = vmatpush1.bf16.msra.mxu0 0
    %9134 = vmatprep.subr.bf16.mxu0 0
    %9135 = vmatpush1.bf16.msra.mxu0 0
    %9136 = vmatprep.subr.bf16.mxu0 0
    %9137 = vmatpush1.bf16.msra.mxu0 0
    %9138 = vmatprep.subr.bf16.mxu0 0
    %9139 = vmatpush1.bf16.msra.mxu0 0
    %9140 = vmatprep.subr.bf16.mxu0 0
    %9141 = vmatpush1.bf16.msra.mxu0 0
    %9142 = vmatprep.subr.bf16.mxu0 0
    %9143 = vmatpush1.bf16.msra.mxu0 0
    %9144 = vmatprep.subr.bf16.mxu0 0
    %9145 = vmatpush1.bf16.msra.mxu0 0
    %9146 = vmatprep.mubr.bf16.mxu0 0
    %9147 = vmatmul.mubr.bf16.gmra.mrb[0].mxu0 %v9112
    %v9148 = vpop.f32.mrb[0].mxu0
    %v9149 = vadd.f32 0.0, %v9148
    %v9150 = vpop.f32.mrb[0].mxu0
    %v9151 = vpop.f32.mrb[0].mxu0
    %v9152 = vadd.f32 0.0, %v9151
    %v9153 = vpop.f32.mrb[0].mxu0
    %9154 = vdwg.mxu0
    %v9155 = vadd.f32 %v8951, %v9149
    %v9156 = vadd.f32 %v8952, %v9152
    %v9159 = vrot.slane %v9155, 1
    %v9160 = vrot.slane %v9155, 2
    %v9161 = vrot.slane %v9155, 3
    %v9162 = vrot.slane %v9155, 4
    %v9163 = vrot.slane %v9155, 5
    %v9164 = vrot.slane %v9155, 6
    %v9165 = vrot.slane %v9155, 7
    %v9166 = vrot.slane %v9156, 1
    %v9167 = vrot.slane %v9156, 2
    %v9168 = vrot.slane %v9156, 3
    %v9169 = vrot.slane %v9156, 4
    %v9170 = vrot.slane %v9156, 5
    %v9171 = vrot.slane %v9156, 6
    %v9172 = vrot.slane %v9156, 7
    %v9189 = vadd.f32 %v5272, %v9155
    %v9190 = vadd.f32 %v5273, %v9159
    %v9191 = vadd.f32 %v5274, %v9160
    %v9192 = vadd.f32 %v5275, %v9161
    %v9193 = vadd.f32 %v5276, %v9162
    %v9194 = vadd.f32 %v5277, %v9163
    %v9195 = vadd.f32 %v5278, %v9164
    %v9196 = vadd.f32 %v5279, %v9165
    %v9197 = vadd.f32 %v5280, %v9156
    %v9198 = vadd.f32 %v5281, %v9166
    %v9199 = vadd.f32 %v5282, %v9167
    %v9200 = vadd.f32 %v5283, %v9168
    %v9201 = vadd.f32 %v5284, %v9169
    %v9202 = vadd.f32 %v5285, %v9170
    %v9203 = vadd.f32 %v5286, %v9171
    %v9204 = vadd.f32 %v5287, %v9172
    %v9221 = vrot.slane %v9190, 7
    %v9222 = vsel %vm281, %v9221, %v9189
    %v9223 = vrot.slane %v9191, 6
    %v9224 = vsel %vm284, %v9223, %v9222
    %v9225 = vrot.slane %v9192, 5
    %v9226 = vsel %vm287, %v9225, %v9224
    %v9227 = vrot.slane %v9193, 4
    %v9228 = vsel %vm290, %v9227, %v9226
    %v9229 = vrot.slane %v9194, 3
    %v9230 = vsel %vm293, %v9229, %v9228
    %v9231 = vrot.slane %v9195, 2
    %v9232 = vsel %vm296, %v9231, %v9230
    %v9233 = vrot.slane %v9196, 1
    %v9234 = vsel %vm299, %v9233, %v9232
    %v9235 = vrot.slane %v9198, 7
    %v9236 = vsel %vm281, %v9235, %v9197
    %v9237 = vrot.slane %v9199, 6
    %v9238 = vsel %vm284, %v9237, %v9236
    %v9239 = vrot.slane %v9200, 5
    %v9240 = vsel %vm287, %v9239, %v9238
    %v9241 = vrot.slane %v9201, 4
    %v9242 = vsel %vm290, %v9241, %v9240
    %v9243 = vrot.slane %v9202, 3
    %v9244 = vsel %vm293, %v9243, %v9242
    %v9245 = vrot.slane %v9203, 2
    %v9246 = vsel %vm296, %v9245, %v9244
    %v9247 = vrot.slane %v9204, 1
    %v9248 = vsel %vm299, %v9247, %v9246
    %v9251 = vsel %vm314, %v9234, 0.0
    %9252 = vadd.xlane.f32.xlu0 %v9251
    %v9253 = vpop.xlane.xlu0 %9252
    %v9254 = vsel %vm314, %v9248, 0.0
    %9255 = vadd.xlane.f32.xlu0 %v9254
    %v9256 = vpop.xlane.xlu0 %9255
    %v9257 = vmul.f32 %v9253, %v2079
    %v9258 = vmul.f32 %v9256, %v2079
    %v9261 = vrot.slane %v9257, 1
    %v9262 = vrot.slane %v9257, 2
    %v9263 = vrot.slane %v9257, 3
    %v9264 = vrot.slane %v9257, 4
    %v9265 = vrot.slane %v9257, 5
    %v9266 = vrot.slane %v9257, 6
    %v9267 = vrot.slane %v9257, 7
    %v9268 = vrot.slane %v9258, 1
    %v9269 = vrot.slane %v9258, 2
    %v9270 = vrot.slane %v9258, 3
    %v9271 = vrot.slane %v9258, 4
    %v9272 = vrot.slane %v9258, 5
    %v9273 = vrot.slane %v9258, 6
    %v9274 = vrot.slane %v9258, 7
    %v9291 = vsub.f32 %v9189, %v9257
    %v9292 = vsub.f32 %v9190, %v9261
    %v9293 = vsub.f32 %v9191, %v9262
    %v9294 = vsub.f32 %v9192, %v9263
    %v9295 = vsub.f32 %v9193, %v9264
    %v9296 = vsub.f32 %v9194, %v9265
    %v9297 = vsub.f32 %v9195, %v9266
    %v9298 = vsub.f32 %v9196, %v9267
    %v9299 = vsub.f32 %v9197, %v9258
    %v9300 = vsub.f32 %v9198, %v9268
    %v9301 = vsub.f32 %v9199, %v9269
    %v9302 = vsub.f32 %v9200, %v9270
    %v9303 = vsub.f32 %v9201, %v9271
    %v9304 = vsub.f32 %v9202, %v9272
    %v9305 = vsub.f32 %v9203, %v9273
    %v9306 = vsub.f32 %v9204, %v9274
    %v9307 = vmul.f32 %v9291, %v9291
    %v9308 = vmul.f32 %v9292, %v9292
    %v9309 = vmul.f32 %v9293, %v9293
    %v9310 = vmul.f32 %v9294, %v9294
    %v9311 = vmul.f32 %v9295, %v9295
    %v9312 = vmul.f32 %v9296, %v9296
    %v9313 = vmul.f32 %v9297, %v9297
    %v9314 = vmul.f32 %v9298, %v9298
    %v9315 = vmul.f32 %v9299, %v9299
    %v9316 = vmul.f32 %v9300, %v9300
    %v9317 = vmul.f32 %v9301, %v9301
    %v9318 = vmul.f32 %v9302, %v9302
    %v9319 = vmul.f32 %v9303, %v9303
    %v9320 = vmul.f32 %v9304, %v9304
    %v9321 = vmul.f32 %v9305, %v9305
    %v9322 = vmul.f32 %v9306, %v9306
    %v9339 = vrot.slane %v9308, 7
    %v9340 = vsel %vm281, %v9339, %v9307
    %v9341 = vrot.slane %v9309, 6
    %v9342 = vsel %vm284, %v9341, %v9340
    %v9343 = vrot.slane %v9310, 5
    %v9344 = vsel %vm287, %v9343, %v9342
    %v9345 = vrot.slane %v9311, 4
    %v9346 = vsel %vm290, %v9345, %v9344
    %v9347 = vrot.slane %v9312, 3
    %v9348 = vsel %vm293, %v9347, %v9346
    %v9349 = vrot.slane %v9313, 2
    %v9350 = vsel %vm296, %v9349, %v9348
    %v9351 = vrot.slane %v9314, 1
    %v9352 = vsel %vm299, %v9351, %v9350
    %v9353 = vrot.slane %v9316, 7
    %v9354 = vsel %vm281, %v9353, %v9315
    %v9355 = vrot.slane %v9317, 6
    %v9356 = vsel %vm284, %v9355, %v9354
    %v9357 = vrot.slane %v9318, 5
    %v9358 = vsel %vm287, %v9357, %v9356
    %v9359 = vrot.slane %v9319, 4
    %v9360 = vsel %vm290, %v9359, %v9358
    %v9361 = vrot.slane %v9320, 3
    %v9362 = vsel %vm293, %v9361, %v9360
    %v9363 = vrot.slane %v9321, 2
    %v9364 = vsel %vm296, %v9363, %v9362
    %v9365 = vrot.slane %v9322, 1
    %v9366 = vsel %vm299, %v9365, %v9364
    %v9369 = vsel %vm314, %v9352, 0.0
    %9370 = vadd.xlane.f32.xlu0 %v9369
    %v9371 = vpop.xlane.xlu0 %9370
    %v9372 = vsel %vm314, %v9366, 0.0
    %9373 = vadd.xlane.f32.xlu0 %v9372
    %v9374 = vpop.xlane.xlu0 %9373
    %v9375 = vmul.f32 %v9371, %v2079
    %v9376 = vmul.f32 %v9374, %v2079
    %v9377 = vadd.f32 %v9375, 1e-05
    %v9378 = vadd.f32 %v9376, 1e-05
    %v9379 = vrsqrt.pop %v9377
    %v9380 = vrsqrt.pop %v9378
    %v9383 = vrot.slane %v9379, 1
    %v9384 = vrot.slane %v9379, 2
    %v9385 = vrot.slane %v9379, 3
    %v9386 = vrot.slane %v9379, 4
    %v9387 = vrot.slane %v9379, 5
    %v9388 = vrot.slane %v9379, 6
    %v9389 = vrot.slane %v9379, 7
    %v9390 = vrot.slane %v9380, 1
    %v9391 = vrot.slane %v9380, 2
    %v9392 = vrot.slane %v9380, 3
    %v9393 = vrot.slane %v9380, 4
    %v9394 = vrot.slane %v9380, 5
    %v9395 = vrot.slane %v9380, 6
    %v9396 = vrot.slane %v9380, 7
    %v9413 = vmul.f32 %v9291, %v9379
    %v9414 = vmul.f32 %v9292, %v9383
    %v9415 = vmul.f32 %v9293, %v9384
    %v9416 = vmul.f32 %v9294, %v9385
    %v9417 = vmul.f32 %v9295, %v9386
    %v9418 = vmul.f32 %v9296, %v9387
    %v9419 = vmul.f32 %v9297, %v9388
    %v9420 = vmul.f32 %v9298, %v9389
    %v9421 = vmul.f32 %v9299, %v9380
    %v9422 = vmul.f32 %v9300, %v9390
    %v9423 = vmul.f32 %v9301, %v9391
    %v9424 = vmul.f32 %v9302, %v9392
    %v9425 = vmul.f32 %v9303, %v9393
    %v9426 = vmul.f32 %v9304, %v9394
    %v9427 = vmul.f32 %v9305, %v9395
    %v9428 = vmul.f32 %v9306, %v9396
    %v9429 = vmul.f32 %v9413, %v4658
    %v9430 = vmul.f32 %v9414, %v4658
    %v9431 = vmul.f32 %v9415, %v4658
    %v9432 = vmul.f32 %v9416, %v4658
    %v9433 = vmul.f32 %v9417, %v4658
    %v9434 = vmul.f32 %v9418, %v4658
    %v9435 = vmul.f32 %v9419, %v4658
    %v9436 = vmul.f32 %v9420, %v4658
    %v9437 = vmul.f32 %v9421, %v4658
    %v9438 = vmul.f32 %v9422, %v4658
    %v9439 = vmul.f32 %v9423, %v4658
    %v9440 = vmul.f32 %v9424, %v4658
    %v9441 = vmul.f32 %v9425, %v4658
    %v9442 = vmul.f32 %v9426, %v4658
    %v9443 = vmul.f32 %v9427, %v4658
    %v9444 = vmul.f32 %v9428, %v4658
    %v9445 = vadd.f32 %v9429, %v4680
    %v9446 = vadd.f32 %v9430, %v4680
    %v9447 = vadd.f32 %v9431, %v4680
    %v9448 = vadd.f32 %v9432, %v4680
    %v9449 = vadd.f32 %v9433, %v4680
    %v9450 = vadd.f32 %v9434, %v4680
    %v9451 = vadd.f32 %v9435, %v4680
    %v9452 = vadd.f32 %v9436, %v4680
    %v9453 = vadd.f32 %v9437, %v4680
    %v9454 = vadd.f32 %v9438, %v4680
    %v9455 = vadd.f32 %v9439, %v4680
    %v9456 = vadd.f32 %v9440, %v4680
    %v9457 = vadd.f32 %v9441, %v4680
    %v9458 = vadd.f32 %v9442, %v4680
    %v9459 = vadd.f32 %v9443, %v4680
    %v9460 = vadd.f32 %v9444, %v4680
    %v9461 = vpack.c.bf16 %v9445, %v9445
    %v9462 = vpack.c.bf16 %v9446, %v9446
    %v9463 = vpack.c.bf16 %v9447, %v9447
    %v9464 = vpack.c.bf16 %v9448, %v9448
    %v9465 = vpack.c.bf16 %v9449, %v9449
    %v9466 = vpack.c.bf16 %v9450, %v9450
    %v9467 = vpack.c.bf16 %v9451, %v9451
    %v9468 = vpack.c.bf16 %v9452, %v9452
    %v9469 = vpack.c.bf16 %v9453, %v9453
    %v9470 = vpack.c.bf16 %v9454, %v9454
    %v9471 = vpack.c.bf16 %v9455, %v9455
    %v9472 = vpack.c.bf16 %v9456, %v9456
    %v9473 = vpack.c.bf16 %v9457, %v9457
    %v9474 = vpack.c.bf16 %v9458, %v9458
    %v9475 = vpack.c.bf16 %v9459, %v9459
    %v9476 = vpack.c.bf16 %v9460, %v9460
    %v9493 = vunpack.c.l.b16 %v9461
    %v9494 = vunpack.c.l.b16 %v9462
    %v9495 = vunpack.c.l.b16 %v9463
    %v9496 = vunpack.c.l.b16 %v9464
    %v9497 = vunpack.c.l.b16 %v9465
    %v9498 = vunpack.c.l.b16 %v9466
    %v9499 = vunpack.c.l.b16 %v9467
    %v9500 = vunpack.c.l.b16 %v9468
    %v9501 = vunpack.c.l.b16 %v9469
    %v9502 = vunpack.c.l.b16 %v9470
    %v9503 = vunpack.c.l.b16 %v9471
    %v9504 = vunpack.c.l.b16 %v9472
    %v9505 = vunpack.c.l.b16 %v9473
    %v9506 = vunpack.c.l.b16 %v9474
    %v9507 = vunpack.c.l.b16 %v9475
    %v9508 = vunpack.c.l.b16 %v9476
    %v9509 = vrot.slane %v9494, 7
    %v9510 = vsel %vm281, %v9509, %v9493
    %v9511 = vrot.slane %v9495, 6
    %v9512 = vsel %vm284, %v9511, %v9510
    %v9513 = vrot.slane %v9496, 5
    %v9514 = vsel %vm287, %v9513, %v9512
    %v9515 = vrot.slane %v9497, 4
    %v9516 = vsel %vm290, %v9515, %v9514
    %v9517 = vrot.slane %v9498, 3
    %v9518 = vsel %vm293, %v9517, %v9516
    %v9519 = vrot.slane %v9499, 2
    %v9520 = vsel %vm296, %v9519, %v9518
    %v9521 = vrot.slane %v9500, 1
    %v9522 = vsel %vm299, %v9521, %v9520
    %v9523 = vrot.slane %v9502, 7
    %v9524 = vsel %vm281, %v9523, %v9501
    %v9525 = vrot.slane %v9503, 6
    %v9526 = vsel %vm284, %v9525, %v9524
    %v9527 = vrot.slane %v9504, 5
    %v9528 = vsel %vm287, %v9527, %v9526
    %v9529 = vrot.slane %v9505, 4
    %v9530 = vsel %vm290, %v9529, %v9528
    %v9531 = vrot.slane %v9506, 3
    %v9532 = vsel %vm293, %v9531, %v9530
    %v9533 = vrot.slane %v9507, 2
    %v9534 = vsel %vm296, %v9533, %v9532
    %v9535 = vrot.slane %v9508, 1
    %v9536 = vsel %vm299, %v9535, %v9534
    %v9537 = vpack.c.b16 %v9536, %v9522
    %v9539 = vsel %vm314, %v9537, 0
    %9541 = vmatprep.subr.bf16.mxu0 0
    %9542 = vmatpush1.bf16.msra.mxu0 %v4789
    %9543 = vmatprep.subr.bf16.mxu0 0
    %9544 = vmatpush1.bf16.msra.mxu0 %v4790
    %9545 = vmatprep.subr.bf16.mxu0 0
    %9546 = vmatpush1.bf16.msra.mxu0 0
    %9547 = vmatprep.subr.bf16.mxu0 0
    %9548 = vmatpush1.bf16.msra.mxu0 0
    %9549 = vmatprep.subr.bf16.mxu0 0
    %9550 = vmatpush1.bf16.msra.mxu0 0
    %9551 = vmatprep.subr.bf16.mxu0 0
    %9552 = vmatpush1.bf16.msra.mxu0 0
    %9553 = vmatprep.subr.bf16.mxu0 0
    %9554 = vmatpush1.bf16.msra.mxu0 0
    %9555 = vmatprep.subr.bf16.mxu0 0
    %9556 = vmatpush1.bf16.msra.mxu0 0
    %9557 = vmatprep.subr.bf16.mxu0 0
    %9558 = vmatpush1.bf16.msra.mxu0 0
    %9559 = vmatprep.subr.bf16.mxu0 0
    %9560 = vmatpush1.bf16.msra.mxu0 0
    %9561 = vmatprep.subr.bf16.mxu0 0
    %9562 = vmatpush1.bf16.msra.mxu0 0
    %9563 = vmatprep.subr.bf16.mxu0 0
    %9564 = vmatpush1.bf16.msra.mxu0 0
    %9565 = vmatprep.subr.bf16.mxu0 0
    %9566 = vmatpush1.bf16.msra.mxu0 0
    %9567 = vmatprep.subr.bf16.mxu0 0
    %9568 = vmatpush1.bf16.msra.mxu0 0
    %9569 = vmatprep.subr.bf16.mxu0 0
    %9570 = vmatpush1.bf16.msra.mxu0 0
    %9571 = vmatprep.subr.bf16.mxu0 0
    %9572 = vmatpush1.bf16.msra.mxu0 0
    %9573 = vmatprep.mubr.bf16.mxu0 0
    %9574 = vmatmul.mubr.bf16.gmra.mrb[0].mxu0 %v9539
    %v9575 = vpop.f32.mrb[0].mxu0
    %v9576 = vadd.f32 %v4718, %v9575
    %v9577 = vpop.f32.mrb[0].mxu0
    %v9578 = vpop.f32.mrb[0].mxu0
    %v9579 = vadd.f32 %v4718, %v9578
    %v9580 = vpop.f32.mrb[0].mxu0
    %9581 = vdwg.mxu0
    %v9582 = vmax.f32 %v9576, 0.0
    %v9583 = vmax.f32 %v9579, 0.0
    %v9584 = vpack.c.bf16 %v9583, %v9582
    %9585 = vmatprep.subr.bf16.mxu0 0
    %9586 = vmatpush1.bf16.msra.mxu0 %v4878
    %9587 = vmatprep.subr.bf16.mxu0 0
    %9588 = vmatpush1.bf16.msra.mxu0 %v4879
    %9589 = vmatprep.subr.bf16.mxu0 0
    %9590 = vmatpush1.bf16.msra.mxu0 %v4880
    %9591 = vmatprep.subr.bf16.mxu0 0
    %9592 = vmatpush1.bf16.msra.mxu0 %v4881
    %9593 = vmatprep.subr.bf16.mxu0 0
    %9594 = vmatpush1.bf16.msra.mxu0 %v4882
    %9595 = vmatprep.subr.bf16.mxu0 0
    %9596 = vmatpush1.bf16.msra.mxu0 %v4883
    %9597 = vmatprep.subr.bf16.mxu0 0
    %9598 = vmatpush1.bf16.msra.mxu0 %v4884
    %9599 = vmatprep.subr.bf16.mxu0 0
    %9600 = vmatpush1.bf16.msra.mxu0 %v4885
    %9601 = vmatprep.subr.bf16.mxu0 0
    %9602 = vmatpush1.bf16.msra.mxu0 0
    %9603 = vmatprep.subr.bf16.mxu0 0
    %9604 = vmatpush1.bf16.msra.mxu0 0
    %9605 = vmatprep.subr.bf16.mxu0 0
    %9606 = vmatpush1.bf16.msra.mxu0 0
    %9607 = vmatprep.subr.bf16.mxu0 0
    %9608 = vmatpush1.bf16.msra.mxu0 0
    %9609 = vmatprep.subr.bf16.mxu0 0
    %9610 = vmatpush1.bf16.msra.mxu0 0
    %9611 = vmatprep.subr.bf16.mxu0 0
    %9612 = vmatpush1.bf16.msra.mxu0 0
    %9613 = vmatprep.subr.bf16.mxu0 0
    %9614 = vmatpush1.bf16.msra.mxu0 0
    %9615 = vmatprep.subr.bf16.mxu0 0
    %9616 = vmatpush1.bf16.msra.mxu0 0
    %9617 = vmatprep.mubr.bf16.mxu0 0
    %9618 = vmatmul.mubr.bf16.gmra.mrb[0].mxu0 %v9584
    %v9619 = vpop.f32.mrb[0].mxu0
    %v9620 = vadd.f32 %v4844, %v9619
    %v9621 = vpop.f32.mrb[0].mxu0
    %v9622 = vpop.f32.mrb[0].mxu0
    %v9623 = vadd.f32 %v4844, %v9622
    %v9624 = vpop.f32.mrb[0].mxu0
    %9625 = vdwg.mxu0
    %v9628 = vrot.slane %v9620, 1
    %v9629 = vrot.slane %v9620, 2
    %v9630 = vrot.slane %v9620, 3
    %v9631 = vrot.slane %v9620, 4
    %v9632 = vrot.slane %v9620, 5
    %v9633 = vrot.slane %v9620, 6
    %v9634 = vrot.slane %v9620, 7
    %v9635 = vrot.slane %v9623, 1
    %v9636 = vrot.slane %v9623, 2
    %v9637 = vrot.slane %v9623, 3
    %v9638 = vrot.slane %v9623, 4
    %v9639 = vrot.slane %v9623, 5
    %v9640 = vrot.slane %v9623, 6
    %v9641 = vrot.slane %v9623, 7
    %v9658 = vadd.f32 %v9445, %v9620
    %v9659 = vadd.f32 %v9446, %v9628
    %v9660 = vadd.f32 %v9447, %v9629
    %v9661 = vadd.f32 %v9448, %v9630
    %v9662 = vadd.f32 %v9449, %v9631
    %v9663 = vadd.f32 %v9450, %v9632
    %v9664 = vadd.f32 %v9451, %v9633
    %v9665 = vadd.f32 %v9452, %v9634
    %v9666 = vadd.f32 %v9453, %v9623
    %v9667 = vadd.f32 %v9454, %v9635
    %v9668 = vadd.f32 %v9455, %v9636
    %v9669 = vadd.f32 %v9456, %v9637
    %v9670 = vadd.f32 %v9457, %v9638
    %v9671 = vadd.f32 %v9458, %v9639
    %v9672 = vadd.f32 %v9459, %v9640
    %v9673 = vadd.f32 %v9460, %v9641
    %v9690 = vrot.slane %v9659, 7
    %v9691 = vsel %vm281, %v9690, %v9658
    %v9692 = vrot.slane %v9660, 6
    %v9693 = vsel %vm284, %v9692, %v9691
    %v9694 = vrot.slane %v9661, 5
    %v9695 = vsel %vm287, %v9694, %v9693
    %v9696 = vrot.slane %v9662, 4
    %v9697 = vsel %vm290, %v9696, %v9695
    %v9698 = vrot.slane %v9663, 3
    %v9699 = vsel %vm293, %v9698, %v9697
    %v9700 = vrot.slane %v9664, 2
    %v9701 = vsel %vm296, %v9700, %v9699
    %v9702 = vrot.slane %v9665, 1
    %v9703 = vsel %vm299, %v9702, %v9701
    %v9704 = vrot.slane %v9667, 7
    %v9705 = vsel %vm281, %v9704, %v9666
    %v9706 = vrot.slane %v9668, 6
    %v9707 = vsel %vm284, %v9706, %v9705
    %v9708 = vrot.slane %v9669, 5
    %v9709 = vsel %vm287, %v9708, %v9707
    %v9710 = vrot.slane %v9670, 4
    %v9711 = vsel %vm290, %v9710, %v9709
    %v9712 = vrot.slane %v9671, 3
    %v9713 = vsel %vm293, %v9712, %v9711
    %v9714 = vrot.slane %v9672, 2
    %v9715 = vsel %vm296, %v9714, %v9713
    %v9716 = vrot.slane %v9673, 1
    %v9717 = vsel %vm299, %v9716, %v9715
    %v9720 = vsel %vm314, %v9703, 0.0
    %9721 = vadd.xlane.f32.xlu0 %v9720
    %v9722 = vpop.xlane.xlu0 %9721
    %v9723 = vsel %vm314, %v9717, 0.0
    %9724 = vadd.xlane.f32.xlu0 %v9723
    %v9725 = vpop.xlane.xlu0 %9724
    %v9726 = vmul.f32 %v9722, %v2079
    %v9727 = vmul.f32 %v9725, %v2079
    %v9730 = vrot.slane %v9726, 1
    %v9731 = vrot.slane %v9726, 2
    %v9732 = vrot.slane %v9726, 3
    %v9733 = vrot.slane %v9726, 4
    %v9734 = vrot.slane %v9726, 5
    %v9735 = vrot.slane %v9726, 6
    %v9736 = vrot.slane %v9726, 7
    %v9737 = vrot.slane %v9727, 1
    %v9738 = vrot.slane %v9727, 2
    %v9739 = vrot.slane %v9727, 3
    %v9740 = vrot.slane %v9727, 4
    %v9741 = vrot.slane %v9727, 5
    %v9742 = vrot.slane %v9727, 6
    %v9743 = vrot.slane %v9727, 7
    %v9760 = vsub.f32 %v9658, %v9726
    %v9761 = vsub.f32 %v9659, %v9730
    %v9762 = vsub.f32 %v9660, %v9731
    %v9763 = vsub.f32 %v9661, %v9732
    %v9764 = vsub.f32 %v9662, %v9733
    %v9765 = vsub.f32 %v9663, %v9734
    %v9766 = vsub.f32 %v9664, %v9735
    %v9767 = vsub.f32 %v9665, %v9736
    %v9768 = vsub.f32 %v9666, %v9727
    %v9769 = vsub.f32 %v9667, %v9737
    %v9770 = vsub.f32 %v9668, %v9738
    %v9771 = vsub.f32 %v9669, %v9739
    %v9772 = vsub.f32 %v9670, %v9740
    %v9773 = vsub.f32 %v9671, %v9741
    %v9774 = vsub.f32 %v9672, %v9742
    %v9775 = vsub.f32 %v9673, %v9743
    %v9776 = vmul.f32 %v9760, %v9760
    %v9777 = vmul.f32 %v9761, %v9761
    %v9778 = vmul.f32 %v9762, %v9762
    %v9779 = vmul.f32 %v9763, %v9763
    %v9780 = vmul.f32 %v9764, %v9764
    %v9781 = vmul.f32 %v9765, %v9765
    %v9782 = vmul.f32 %v9766, %v9766
    %v9783 = vmul.f32 %v9767, %v9767
    %v9784 = vmul.f32 %v9768, %v9768
    %v9785 = vmul.f32 %v9769, %v9769
    %v9786 = vmul.f32 %v9770, %v9770
    %v9787 = vmul.f32 %v9771, %v9771
    %v9788 = vmul.f32 %v9772, %v9772
    %v9789 = vmul.f32 %v9773, %v9773
    %v9790 = vmul.f32 %v9774, %v9774
    %v9791 = vmul.f32 %v9775, %v9775
    %v9808 = vrot.slane %v9777, 7
    %v9809 = vsel %vm281, %v9808, %v9776
    %v9810 = vrot.slane %v9778, 6
    %v9811 = vsel %vm284, %v9810, %v9809
    %v9812 = vrot.slane %v9779, 5
    %v9813 = vsel %vm287, %v9812, %v9811
    %v9814 = vrot.slane %v9780, 4
    %v9815 = vsel %vm290, %v9814, %v9813
    %v9816 = vrot.slane %v9781, 3
    %v9817 = vsel %vm293, %v9816, %v9815
    %v9818 = vrot.slane %v9782, 2
    %v9819 = vsel %vm296, %v9818, %v9817
    %v9820 = vrot.slane %v9783, 1
    %v9821 = vsel %vm299, %v9820, %v9819
    %v9822 = vrot.slane %v9785, 7
    %v9823 = vsel %vm281, %v9822, %v9784
    %v9824 = vrot.slane %v9786, 6
    %v9825 = vsel %vm284, %v9824, %v9823
    %v9826 = vrot.slane %v9787, 5
    %v9827 = vsel %vm287, %v9826, %v9825
    %v9828 = vrot.slane %v9788, 4
    %v9829 = vsel %vm290, %v9828, %v9827
    %v9830 = vrot.slane %v9789, 3
    %v9831 = vsel %vm293, %v9830, %v9829
    %v9832 = vrot.slane %v9790, 2
    %v9833 = vsel %vm296, %v9832, %v9831
    %v9834 = vrot.slane %v9791, 1
    %v9835 = vsel %vm299, %v9834, %v9833
    %v9838 = vsel %vm314, %v9821, 0.0
    %9839 = vadd.xlane.f32.xlu0 %v9838
    %v9840 = vpop.xlane.xlu0 %9839
    %v9841 = vsel %vm314, %v9835, 0.0
    %9842 = vadd.xlane.f32.xlu0 %v9841
    %v9843 = vpop.xlane.xlu0 %9842
    %v9844 = vmul.f32 %v9840, %v2079
    %v9845 = vmul.f32 %v9843, %v2079
    %v9846 = vadd.f32 %v9844, 1e-05
    %v9847 = vadd.f32 %v9845, 1e-05
    %v9848 = vrsqrt.pop %v9846
    %v9849 = vrsqrt.pop %v9847
    %v9852 = vrot.slane %v9848, 1
    %v9853 = vrot.slane %v9848, 2
    %v9854 = vrot.slane %v9848, 3
    %v9855 = vrot.slane %v9848, 4
    %v9856 = vrot.slane %v9848, 5
    %v9857 = vrot.slane %v9848, 6
    %v9858 = vrot.slane %v9848, 7
    %v9859 = vrot.slane %v9849, 1
    %v9860 = vrot.slane %v9849, 2
    %v9861 = vrot.slane %v9849, 3
    %v9862 = vrot.slane %v9849, 4
    %v9863 = vrot.slane %v9849, 5
    %v9864 = vrot.slane %v9849, 6
    %v9865 = vrot.slane %v9849, 7
    %v9882 = vmul.f32 %v9760, %v9848
    %v9883 = vmul.f32 %v9761, %v9852
    %v9884 = vmul.f32 %v9762, %v9853
    %v9885 = vmul.f32 %v9763, %v9854
    %v9886 = vmul.f32 %v9764, %v9855
    %v9887 = vmul.f32 %v9765, %v9856
    %v9888 = vmul.f32 %v9766, %v9857
    %v9889 = vmul.f32 %v9767, %v9858
    %v9890 = vmul.f32 %v9768, %v9849
    %v9891 = vmul.f32 %v9769, %v9859
    %v9892 = vmul.f32 %v9770, %v9860
    %v9893 = vmul.f32 %v9771, %v9861
    %v9894 = vmul.f32 %v9772, %v9862
    %v9895 = vmul.f32 %v9773, %v9863
    %v9896 = vmul.f32 %v9774, %v9864
    %v9897 = vmul.f32 %v9775, %v9865
    %v9898 = vmul.f32 %v9882, %v4658
    %v9899 = vmul.f32 %v9883, %v4658
    %v9900 = vmul.f32 %v9884, %v4658
    %v9901 = vmul.f32 %v9885, %v4658
    %v9902 = vmul.f32 %v9886, %v4658
    %v9903 = vmul.f32 %v9887, %v4658
    %v9904 = vmul.f32 %v9888, %v4658
    %v9905 = vmul.f32 %v9889, %v4658
    %v9906 = vmul.f32 %v9890, %v4658
    %v9907 = vmul.f32 %v9891, %v4658
    %v9908 = vmul.f32 %v9892, %v4658
    %v9909 = vmul.f32 %v9893, %v4658
    %v9910 = vmul.f32 %v9894, %v4658
    %v9911 = vmul.f32 %v9895, %v4658
    %v9912 = vmul.f32 %v9896, %v4658
    %v9913 = vmul.f32 %v9897, %v4658
    %v9914 = vadd.f32 %v9898, %v4680
    %v9915 = vadd.f32 %v9899, %v4680
    %v9916 = vadd.f32 %v9900, %v4680
    %v9917 = vadd.f32 %v9901, %v4680
    %v9918 = vadd.f32 %v9902, %v4680
    %v9919 = vadd.f32 %v9903, %v4680
    %v9920 = vadd.f32 %v9904, %v4680
    %v9921 = vadd.f32 %v9905, %v4680
    %v9922 = vadd.f32 %v9906, %v4680
    %v9923 = vadd.f32 %v9907, %v4680
    %v9924 = vadd.f32 %v9908, %v4680
    %v9925 = vadd.f32 %v9909, %v4680
    %v9926 = vadd.f32 %v9910, %v4680
    %v9927 = vadd.f32 %v9911, %v4680
    %v9928 = vadd.f32 %v9912, %v4680
    %v9929 = vadd.f32 %v9913, %v4680
    %9930 = vst.msk [vmem:[#allocation11 + $0x1] sm:$0x1] %vm5239, %v7393
    %9931 = vst.msk [vmem:[#allocation11 + $0x3] sm:$0x1] %vm5239, %v7394
    %9932 = vst.msk [vmem:[#allocation11 + $0x5] sm:$0x1] %vm5239, %v7395
    %9933 = vst.msk [vmem:[#allocation11 + $0x7] sm:$0x1] %vm5239, %v7396
    %9934 = vst.msk [vmem:[#allocation11 + $0x9] sm:$0x1] %vm5239, %v7397
    %9935 = vst.msk [vmem:[#allocation11 + $0xb] sm:$0x1] %vm5239, %v7398
    %9936 = vst.msk [vmem:[#allocation11 + $0xd] sm:$0x1] %vm5239, %v7399
    %9937 = vst.msk [vmem:[#allocation11 + $0xf] sm:$0x1] %vm5239, %v7400
    %9938 = vst.msk [vmem:[#allocation12 + $0x1] sm:$0x1] %vm5239, %v9914
    %9939 = vst.msk [vmem:[#allocation12 + $0x3] sm:$0x1] %vm5239, %v9915
    %9940 = vst.msk [vmem:[#allocation12 + $0x5] sm:$0x1] %vm5239, %v9916
    %9941 = vst.msk [vmem:[#allocation12 + $0x7] sm:$0x1] %vm5239, %v9917
    %9942 = vst.msk [vmem:[#allocation12 + $0x9] sm:$0x1] %vm5239, %v9918
    %9943 = vst.msk [vmem:[#allocation12 + $0xb] sm:$0x1] %vm5239, %v9919
    %9944 = vst.msk [vmem:[#allocation12 + $0xd] sm:$0x1] %vm5239, %v9920
    %9945 = vst.msk [vmem:[#allocation12 + $0xf] sm:$0x1] %vm5239, %v9921
    %9946 = vst.msk [vmem:[#allocation12 + $0x11] sm:$0x1] %vm5239, %v9922
    %9947 = vst.msk [vmem:[#allocation12 + $0x13] sm:$0x1] %vm5239, %v9923
    %9948 = vst.msk [vmem:[#allocation12 + $0x15] sm:$0x1] %vm5239, %v9924
    %9949 = vst.msk [vmem:[#allocation12 + $0x17] sm:$0x1] %vm5239, %v9925
    %9950 = vst.msk [vmem:[#allocation12 + $0x19] sm:$0x1] %vm5239, %v9926
    %9951 = vst.msk [vmem:[#allocation12 + $0x1b] sm:$0x1] %vm5239, %v9927
    %9952 = vst.msk [vmem:[#allocation12 + $0x1d] sm:$0x1] %vm5239, %v9928
    %9953 = vst.msk [vmem:[#allocation12 + $0x1f] sm:$0x1] %vm5239, %v9929
    // Predicated region
    $region126: #{cross_attention_layer_forward.1} parent=1 // pred_check
      _
    $region127: #{cross_attention_layer_forward.1} parent=1 // pred_check_branch
      %9955 = sbr.rel (0) target = $region129
    $region128: #{cross_attention_layer_forward.1} parent=1 // pred_region
      %s9957 = ssub.s32 256, 256
      %9958 = vsyncadd [#allocation4], %s9957
      %s9959 = sshll.u32 [#allocation11], 4
      %s9960 = int_to_ptr.vmem [resolvable:$true] %s9959
      %9965 = dma.vmem_to_hbm [thread:$0]  %s9960, 256, %s26, [#allocation4], 32, 32, 2
    $region129: #{cross_attention_layer_forward.1} parent=1 // pred_fallthru
      _
    // Predicated region
    $region130: #{cross_attention_layer_forward.1} parent=1 // pred_check
      _
    $region131: #{cross_attention_layer_forward.1} parent=1 // pred_check_branch
      %9967 = sbr.rel (0) target = $region133
    $region132: #{cross_attention_layer_forward.1} parent=1 // pred_region
      %s9969 = ssub.s32 512, 512
      %9970 = vsyncadd [#allocation13], %s9969
      %s9971 = sshll.u32 [#allocation12], 4
      %s9972 = int_to_ptr.vmem [resolvable:$true] %s9971
      %9977 = dma.vmem_to_hbm [thread:$0]  %s9972, 512, %s27, [#allocation13], 32, 32, 2
    $region133: #{cross_attention_layer_forward.1} parent=1 // pred_fallthru
      _
    // Predicated region
    $region134: #{cross_attention_layer_forward.1} parent=1 // pred_check
      _
    $region135: #{cross_attention_layer_forward.1} parent=1 // pred_check_branch
      %9979 = sbr.rel (0) target = $region137
    $region136: #{cross_attention_layer_forward.1} parent=1 // pred_region
      %9980 = dma.done [#allocation4], 256
    $region137: #{cross_attention_layer_forward.1} parent=1 // pred_fallthru
      _
    // Predicated region
    $region138: #{cross_attention_layer_forward.1} parent=1 // pred_check
      _
    $region139: #{cross_attention_layer_forward.1} parent=1 // pred_check_branch
      %9982 = sbr.rel (0) target = $region141
    $region140: #{cross_attention_layer_forward.1} parent=1 // pred_region
      %9983 = dma.done [#allocation13], 512
    $region141: #{cross_attention_layer_forward.1} parent=1 // pred_fallthru
      _
    %9984 = vsyncpa [#allocation3], 1
    %9985 = vsyncpa [#allocation6], 1
    %9986 = vsyncpa [#allocation9], 1
    %9987 = vsyncpa [#allocation4], 1
    %9988 = vsyncpa [#allocation13], 1

</llo_original>
